<compile_context>
chip_gen: v7x
topology: tpu7x:2x2x1
jax: 0.10.0
libtpu: 0.0.40
codegen_flags: <defaults>
</compile_context>

<pallas_src>
import math
import functools

import jax
import jax.numpy as jnp
from jax.experimental import pallas as pl
from jax.experimental.pallas import tpu as pltpu


# ----------------------------------------------------------------------------
# small helpers
# ----------------------------------------------------------------------------
def _round_up(x, m):
    return (x + m - 1) // m * m


def _pick_tile(size, candidates):
    for c in candidates:
        if size % c == 0:
            return c
    raise ValueError(f"no tile in {candidates} divides {size}")


def _pad_to(x, shape):
    return jnp.pad(x, [(0, s - d) for d, s in zip(x.shape, shape)])


# ----------------------------------------------------------------------------
# Pallas kernel: tiled matmul, bias folded into acc init, (+LeakyReLU) (+residual)
# ----------------------------------------------------------------------------
def _mm_kernel(x_ref, w_ref, b_ref, *rest, slope, has_res):
    if has_res:
        r_ref, o_ref, acc_ref = rest
    else:
        o_ref, acc_ref = rest
        r_ref = None

    k = pl.program_id(2)

    @pl.when(k == 0)
    def _():
        # bias goes straight into the f32 accumulator -> no epilogue add
        acc_ref[...] = jnp.broadcast_to(b_ref[...].astype(jnp.float32), acc_ref.shape)

    acc_ref[...] += jnp.dot(x_ref[...], w_ref[...],
                            preferred_element_type=jnp.float32)

    @pl.when(k == pl.num_programs(2) - 1)
    def _():
        y = acc_ref[...]
        if slope is not None:
            y = jnp.where(y >= 0.0, y, slope * y)
        if r_ref is not None:
            y = y + r_ref[...].astype(jnp.float32)  # residual AFTER activation (matches module)
        o_ref[...] = y.astype(o_ref.dtype)


def matmul_bias_act(x, layer, slope=None, residual=None, out_dtype=jnp.bfloat16):
    """x: (M, K). layer: {'w': (K_pad, N_pad) bf16, 'b': (1, N_pad) f32}.
    Returns (M, N_pad): the N dim stays padded/lane-dense; callers only slice at the
    classifier head."""
    M, K = x.shape
    K_pad, N_pad = layer["w"].shape

    x = x.astype(jnp.bfloat16)
    if K_pad != K:
        x = jnp.pad(x, ((0, 0), (0, K_pad - K)))
    M_pad = _round_up(M, 16)            # 16 sublanes = one packed bf16 vreg group
    if M_pad != M:
        x = jnp.pad(x, ((0, M_pad - M), (0, 0)))

    # Keep >= 2 blocks on the parallel M axis when M_pad >= 256 so v7x's 2 TCs both run.
    if M_pad >= 1024:
        tm = _pick_tile(M_pad, (512, 256, 128, 64, 32, 16))
    else:
        tm = _pick_tile(M_pad, (128, 64, 32, 16))
    tn = _pick_tile(N_pad, (256, 128))
    tk = _pick_tile(K_pad, (512, 384, 256, 128))
    grid = (M_pad // tm, N_pad // tn, K_pad // tk)

    has_res = residual is not None
    in_specs = [
        pl.BlockSpec((tm, tk), lambda i, j, k: (i, k)),
        pl.BlockSpec((tk, tn), lambda i, j, k: (k, j)),
        pl.BlockSpec((1, tn), lambda i, j, k: (0, j)),
    ]
    args = [x, layer["w"], layer["b"]]
    io_aliases = {}
    if has_res:
        r = residual.astype(out_dtype)
        if r.shape[0] != M_pad:
            r = jnp.pad(r, ((0, M_pad - r.shape[0]), (0, 0)))
        assert r.shape == (M_pad, N_pad), (r.shape, (M_pad, N_pad))
        in_specs.append(pl.BlockSpec((tm, tn), lambda i, j, k: (i, j)))
        args.append(r)
        io_aliases = {3: 0}             # residual buffer is reused as the output buffer

    out = pl.pallas_call(
        functools.partial(_mm_kernel, slope=slope, has_res=has_res),
        out_shape=jax.ShapeDtypeStruct((M_pad, N_pad), out_dtype),
        grid=grid,
        in_specs=in_specs,
        out_specs=pl.BlockSpec((tm, tn), lambda i, j, k: (i, j)),
        scratch_shapes=[pltpu.VMEM((tm, tn), jnp.float32)],
        input_output_aliases=io_aliases,
        compiler_params=pltpu.CompilerParams(
            dimension_semantics=("parallel", "parallel", "arbitrary"),
            vmem_limit_bytes=32 * 1024 * 1024),
    )(*args)
    return out[:M]


# ----------------------------------------------------------------------------
# Pallas kernel: scaled-dot-product attention, one batch element per grid step
# ----------------------------------------------------------------------------
def _attention_kernel(q_ref, k_ref, v_ref, o_ref, *, scale):
    s = jnp.einsum("bqd,bkd->bqk", q_ref[...], k_ref[...],
                   preferred_element_type=jnp.float32) * scale      # (1, L, L) f32
    s = s - jnp.max(s, axis=-1, keepdims=True)
    p = jnp.exp(s)
    denom = jnp.sum(p, axis=-1, keepdims=True)
    o = jnp.einsum("bqk,bkd->bqd", p.astype(v_ref.dtype), v_ref[...],
                   preferred_element_type=jnp.float32)
    o = o * pl.reciprocal(denom, approx=True)                        # normalize in f32 after PV
    o_ref[...] = o.astype(o_ref.dtype)


def attention_pallas(q, k, v):
    """q, k, v: (B, L, D) -> (B, L, D); head dim D kept at its natural size."""
    B, L, D = q.shape
    scale = 1.0 / math.sqrt(D)
    q = q.astype(jnp.bfloat16)
    k = k.astype(jnp.bfloat16)
    v = v.astype(jnp.bfloat16)
    spec = pl.BlockSpec((1, L, D), lambda b: (b, 0, 0))
    return pl.pallas_call(
        functools.partial(_attention_kernel, scale=scale),
        out_shape=jax.ShapeDtypeStruct((B, L, D), jnp.bfloat16),
        grid=(B,),
        in_specs=[spec, spec, spec],
        out_specs=spec,
        compiler_params=pltpu.CompilerParams(
            dimension_semantics=("parallel",),
            vmem_limit_bytes=32 * 1024 * 1024),
    )(q, k, v)


# ----------------------------------------------------------------------------
# Pallas kernel: fused classifier head  fc1 -> LeakyReLU -> (dropout=id) -> fc2
# ----------------------------------------------------------------------------
def _head_kernel(x_ref, w1_ref, b1_ref, w2_ref, b2_ref, o_ref):
    h = jnp.dot(x_ref[...], w1_ref[...], preferred_element_type=jnp.float32) + b1_ref[...]
    h = jnp.where(h >= 0.0, h, 0.01 * h)          # nn.LeakyReLU() default slope
    y = jnp.dot(h.astype(jnp.bfloat16), w2_ref[...], preferred_element_type=jnp.float32)
    o_ref[...] = y + b2_ref[...]


def classifier_head(x, fc1, fc2):
    M, K = x.shape
    K1, N1 = fc1["w"].shape
    K2, N2 = fc2["w"].shape
    x = x.astype(jnp.bfloat16)
    if K1 != K:
        x = jnp.pad(x, ((0, 0), (0, K1 - K)))
    M_pad = _round_up(M, 16)
    if M_pad != M:
        x = jnp.pad(x, ((0, M_pad - M), (0, 0)))

    def full(shape):
        return pl.BlockSpec(shape, lambda i: (0,) * len(shape))

    out = pl.pallas_call(
        _head_kernel,
        out_shape=jax.ShapeDtypeStruct((M_pad, N2), jnp.float32),
        grid=(1,),
        in_specs=[full((M_pad, K1)), full((K1, N1)), full((1, N1)),
                  full((K2, N2)), full((1, N2))],
        out_specs=full((M_pad, N2)),
        compiler_params=pltpu.CompilerParams(vmem_limit_bytes=32 * 1024 * 1024),
    )(x, fc1["w"], fc1["b"], fc2["w"], fc2["b"])
    return out[:M]


# ----------------------------------------------------------------------------
# Glue: NHWC im2col + conv wrapper (the matmul runs in Pallas)
# ----------------------------------------------------------------------------
def _im2col_nhwc(x, kh, kw, stride, padding, dilation):
    """x: (N, H, W, C) -> (N*oh*ow, kh*kw*C); column order (kh, kw, C) matches weights."""
    N, H, W, C = x.shape
    xp = jnp.pad(x, ((0, 0), (padding, padding), (padding, padding), (0, 0)))
    Hp, Wp = H + 2 * padding, W + 2 * padding
    oh = (Hp - dilation * (kh - 1) - 1) // stride + 1
    ow = (Wp - dilation * (kw - 1) - 1) // stride + 1
    patches = []
    for i in range(kh):
        for j in range(kw):
            r0, c0 = i * dilation, j * dilation
            patches.append(xp[:,
                              r0: r0 + stride * (oh - 1) + 1: stride,
                              c0: c0 + stride * (ow - 1) + 1: stride, :])
    col = jnp.stack(patches, axis=3)                 # (N, oh, ow, kh*kw, C)
    return col.reshape(N * oh * ow, kh * kw * C), oh, ow


def conv2d_nhwc(x, layer, *, kh, kw, stride=1, padding=0, dilation=1,
                slope=None, residual=None):
    """PyTorch-semantics Conv2d on NHWC input; output keeps padded channel dim."""
    N, H, W, C = x.shape
    if kh == 1 and kw == 1 and stride == 1 and padding == 0 and dilation == 1:
        cols, oh, ow = x.reshape(N * H * W, C), H, W
    else:
        cols, oh, ow = _im2col_nhwc(x, kh, kw, stride, padding, dilation)
    res2 = None if residual is None else residual.reshape(N * oh * ow, residual.shape[-1])
    y = matmul_bias_act(cols, layer, slope=slope, residual=res2)
    return y.reshape(N, oh, ow, layer["w"].shape[1])


# ----------------------------------------------------------------------------
# Patch split / merge (NHWC-natural feature ordering; numerically equivalent to the
# PyTorch permute/view dance because the feature-dim permutation is applied
# consistently to q/k/v and inverted on merge)
# ----------------------------------------------------------------------------
def _extract_patches(x, b, t, height, width):
    bt, h, w, d_k = x.shape
    oh, ow = h // height, w // width
    x = x.reshape(b, t, oh, height, ow, width, d_k)
    x = x.transpose(0, 1, 2, 4, 3, 5, 6)            # (b, t, oh, ow, height, width, d_k)
    return x.reshape(b, t * oh * ow, height * width * d_k)


def _merge_patches(y, b, t, d_k, h, w, height, width):
    oh, ow = h // height, w // width
    y = y.reshape(b, t, oh, ow, height, width, d_k)
    y = y.transpose(0, 1, 2, 4, 3, 5, 6)            # (b, t, oh, height, ow, width, d_k)
    return y.reshape(b * t, h, w, d_k)


# ----------------------------------------------------------------------------
# Model pieces
# ----------------------------------------------------------------------------
def multi_headed_attention(x, p, b, t, patchsizes, d_model, residual):
    bt, h, w, _ = x.shape
    qkv = conv2d_nhwc(x, p["qkv"], kh=1, kw=1)       # fused q/k/v 1x1 conv, valid 3*d_model
    n_heads = len(patchsizes)
    d_k = d_model // n_heads
    outs = []
    for hidx, (width_, height_) in enumerate(patchsizes):
        q = qkv[..., hidx * d_k:(hidx + 1) * d_k]
        k = qkv[..., d_model + hidx * d_k: d_model + (hidx + 1) * d_k]
        v = qkv[..., 2 * d_model + hidx * d_k: 2 * d_model + (hidx + 1) * d_k]
        qp = _extract_patches(q, b, t, height_, width_)
        kp = _extract_patches(k, b, t, height_, width_)
        vp = _extract_patches(v, b, t, height_, width_)
        yp = attention_pallas(qp, kp, vp)
        outs.append(_merge_patches(yp, b, t, d_k, h, w, height_, width_))
    out = jnp.concatenate(outs, axis=-1)             # (bt, h, w, d_model)
    # output_linear (3x3 conv + LeakyReLU 0.2) with residual fused into the epilogue
    return conv2d_nhwc(out, p["out"], kh=3, kw=3, padding=1, slope=0.2, residual=residual)


def feed_forward(x, p, residual):
    y = conv2d_nhwc(x, p["ff1"], kh=3, kw=3, padding=2, dilation=2, slope=0.2)
    return conv2d_nhwc(y, p["ff2"], kh=3, kw=3, padding=1, slope=0.2, residual=residual)


def transformer_block(x, p, b, t, patchsizes, d_model):
    x = multi_headed_attention(x, p, b, t, patchsizes, d_model, residual=x)   # x + attn(x)
    x = feed_forward(x, p, residual=x)                                        # x + ff(x)
    return x


def inpaint_generator_forward(params, masked_frames, masks, *, patchsizes, channel, classes):
    b, t, c, H, W = masked_frames.shape
    # NCHW frames -> NHWC bf16 activations (single transpose at the boundary)
    x = masked_frames.reshape(b * t, c, H, W).transpose(0, 2, 3, 1).astype(jnp.bfloat16)
    # --- Conv encoder (outputs carried channel-padded to 128, padding lanes stay zero) ---
    x = conv2d_nhwc(x, params["enc1"], kh=3, kw=3, stride=2, padding=1, slope=0.2)
    x = conv2d_nhwc(x, params["enc2"], kh=3, kw=3, stride=1, padding=1, slope=0.2)
    x = conv2d_nhwc(x, params["enc3"], kh=3, kw=3, stride=2, padding=1, slope=0.2)
    x = conv2d_nhwc(x, params["enc4"], kh=3, kw=3, stride=1, padding=1, slope=0.2)
    # (masks would be nearest-downsampled here; unused downstream — see TODO above)
    # --- Transformer stack ---
    for blk in params["blocks"]:
        x = transformer_block(x, blk, b, t, patchsizes, channel)
    # --- classifier head (flatten in NCHW order to match torch.flatten) ---
    bt, h, w, _ = x.shape
    y = x[..., :channel].transpose(0, 3, 1, 2).reshape(bt, channel * h * w)
    logits = classifier_head(y, params["fc1"], params["fc2"])
    return logits[:, :classes]


# ----------------------------------------------------------------------------
# Parameter init (init_weights 'normal', gain=0.02, bias=0) + one-time packing.
# Packed layers contain ARRAYS ONLY (jit-safe): bf16 weight (K_pad, N_pad) with rows
# ordered (kh, kw, cin[, padded]) and f32 bias (1, N_pad).
# ----------------------------------------------------------------------------
def _normal(key, shape, std=0.02):
    return std * jax.random.normal(key, shape, dtype=jnp.float32)


def _pack_conv(w, b, cin_pack=None):
    cout, cin, kh, kw = w.shape
    if cin_pack is None:
        cin_pack = cin
    if cin_pack != cin:                  # zero rows for the carried channel padding
        w = jnp.pad(w, ((0, 0), (0, cin_pack - cin), (0, 0), (0, 0)))
    w2 = jnp.transpose(w, (2, 3, 1, 0)).reshape(kh * kw * cin_pack, cout)
    K_pad = _round_up(kh * kw * cin_pack, 128)
    N_pad = _round_up(cout, 128)
    return {"w": _pad_to(w2, (K_pad, N_pad)).astype(jnp.bfloat16),
            "b": _pad_to(b.reshape(1, cout), (1, N_pad)).astype(jnp.float32)}


def _pack_linear(w, b):
    out_f, in_f = w.shape
    K_pad, N_pad = _round_up(in_f, 128), _round_up(out_f, 128)
    return {"w": _pad_to(w.T, (K_pad, N_pad)).astype(jnp.bfloat16),
            "b": _pad_to(b.reshape(1, out_f), (1, N_pad)).astype(jnp.float32)}


def init_params(key, channel, classes, n_layers, feat_hw):
    keys = iter(jax.random.split(key, 64))
    z = lambda n: jnp.zeros((n,), jnp.float32)
    cpad = _round_up(channel, 128)       # transformer activations carried at this width
    p = {}
    p["enc1"] = _pack_conv(_normal(next(keys), (64, 3, 3, 3)), z(64))           # image input: natural cin=3
    p["enc2"] = _pack_conv(_normal(next(keys), (64, 64, 3, 3)), z(64),
                           cin_pack=_round_up(64, 128))
    p["enc3"] = _pack_conv(_normal(next(keys), (128, 64, 3, 3)), z(128),
                           cin_pack=_round_up(64, 128))
    p["enc4"] = _pack_conv(_normal(next(keys), (channel, 128, 3, 3)), z(channel),
                           cin_pack=_round_up(128, 128))
    blocks = []
    for _ in range(n_layers):
        wq = _normal(next(keys), (channel, channel, 1, 1))
        wk = _normal(next(keys), (channel, channel, 1, 1))
        wv = _normal(next(keys), (channel, channel, 1, 1))
        blk = {
            # fused q/k/v embedding (concatenated along Cout), consumes padded activation
            "qkv": _pack_conv(jnp.concatenate([wq, wk, wv], axis=0), z(3 * channel),
                              cin_pack=cpad),
            # input is the freshly concatenated attention output (natural channel count)
            "out": _pack_conv(_normal(next(keys), (channel, channel, 3, 3)), z(channel)),
            "ff1": _pack_conv(_normal(next(keys), (channel, channel, 3, 3)), z(channel),
                              cin_pack=cpad),
            "ff2": _pack_conv(_normal(next(keys), (channel, channel, 3, 3)), z(channel),
                              cin_pack=cpad),
        }
        blocks.append(blk)
    p["blocks"] = blocks
    h, w = feat_hw
    p["fc1"] = _pack_linear(_normal(next(keys), (1024, channel * h * w)), z(1024))
    p["fc2"] = _pack_linear(_normal(next(keys), (classes, 1024)), z(classes))
    return p


# ----------------------------------------------------------------------------
# Main
# ----------------------------------------------------------------------------
if __name__ == "__main__":
    # Small config consistent with the module (backbone='Conv').
    Transformer_layers = 2
    Transformer_heads = [0, 1]
    patchsize_cfg = [1, 2]
    channel = 32
    classes = 2
    patchsizes = [(patchsize_cfg[x], patchsize_cfg[x]) for x in Transformer_heads]

    b, t, c_in, H, W = 2, 2, 3, 16, 16        # encoder: 16 -> 8 -> 8 -> 4 -> 4
    feat_hw = (4, 4)

    key = jax.random.PRNGKey(0)
    k_param, k_x, k_m = jax.random.split(key, 3)
    params = init_params(k_param, channel, classes, Transformer_layers, feat_hw)

    masked_frames = jax.random.normal(k_x, (b, t, c_in, H, W), dtype=jnp.float32)
    masks = (jax.random.uniform(k_m, (b, t, 1, H, W)) > 0.5).astype(jnp.float32)

    fwd = jax.jit(functools.partial(inpaint_generator_forward,
                                    patchsizes=patchsizes, channel=channel, classes=classes))
    y = fwd(params, masked_frames, masks)
    y = jax.block_until_ready(y)
    assert y.shape == (b * t, classes), y.shape
    assert bool(jnp.all(jnp.isfinite(y)))
    print("KERNEL_OK")
</pallas_src>

<mosaic_0001>
module attributes {stable_mosaic.version = 11 : i64} {
  func.func @_mm_kernel(%arg0: i32, %arg1: i32, %arg2: i32, %arg3: memref<128x128xbf16, #tpu.memory_space<vmem>>, %arg4: memref<128x128xbf16, #tpu.memory_space<vmem>>, %arg5: memref<1x128xf32, #tpu.memory_space<vmem>>, %arg6: memref<128x128xbf16, #tpu.memory_space<vmem>>, %arg7: memref<128x128xf32, #tpu.memory_space<vmem>>) attributes {dimension_semantics = [#tpu.dimension_semantics<parallel>, #tpu.dimension_semantics<parallel>, #tpu.dimension_semantics<arbitrary>], iteration_bounds = array<i64: 2, 1, 1>, scalar_prefetch = 0 : i64, scratch_operands = 1 : i64, tpu.core_type = #tpu.core_type<tc>, window_params = [{transform_indices = @transform_0, window_bounds = array<i64: 128, 128>}, {transform_indices = @transform_1, window_bounds = array<i64: 128, 128>}, {transform_indices = @transform_2, window_bounds = array<i64: 1, 128>}, {transform_indices = @transform_3, window_bounds = array<i64: 128, 128>}]} {
    %c0_i32 = arith.constant 0 : i32
    %0 = arith.cmpi eq, %arg2, %c0_i32 : i32
    %1 = arith.extui %0 : i1 to i32
    %c0_i32_0 = arith.constant 0 : i32
    %2 = arith.cmpi ne, %1, %c0_i32_0 : i32
    scf.if %2 {
      %c0_10 = arith.constant 0 : index
      %c0_11 = arith.constant 0 : index
      %12 = vector.load %arg5[%c0_10, %c0_11] : memref<1x128xf32, #tpu.memory_space<vmem>>, vector<1x128xf32>
      %13 = vector.shape_cast %12 : vector<1x128xf32> to vector<1x128xf32>
      %14 = vector.broadcast %13 : vector<1x128xf32> to vector<128x128xf32>
      %c0_12 = arith.constant 0 : index
      %c0_13 = arith.constant 0 : index
      %15 = vector.load %arg7[%c0_12, %c0_13] : memref<128x128xf32, #tpu.memory_space<vmem>>, vector<128x128xf32>
      tpu.vector_store %arg7[%c0_12, %c0_13], %14 {strides = array<i32>} : memref<128x128xf32, #tpu.memory_space<vmem>>, vector<128x128xf32>,
    } else {
    }
    %c0 = arith.constant 0 : index
    %c0_1 = arith.constant 0 : index
    %3 = vector.load %arg7[%c0, %c0_1] : memref<128x128xf32, #tpu.memory_space<vmem>>, vector<128x128xf32>
    %c0_2 = arith.constant 0 : index
    %c0_3 = arith.constant 0 : index
    %4 = vector.load %arg3[%c0_2, %c0_3] : memref<128x128xbf16, #tpu.memory_space<vmem>>, vector<128x128xbf16>
    %c0_4 = arith.constant 0 : index
    %c0_5 = arith.constant 0 : index
    %5 = vector.load %arg4[%c0_4, %c0_5] : memref<128x128xbf16, #tpu.memory_space<vmem>>, vector<128x128xbf16>
    %cst = arith.constant dense<0.000000e+00> : vector<128x128xf32>
    %6 = tpu.matmul %4, %5, %cst {dimension_numbers = #tpu.dot_dimension_numbers<[1], [0], [0], [1], [0, 0, 1, 1], [], []>} : vector<128x128xbf16>, vector<128x128xbf16>, vector<128x128xf32> -> vector<128x128xf32>
    %7 = arith.addf %3, %6 : vector<128x128xf32>
    %c0_6 = arith.constant 0 : index
    %c0_7 = arith.constant 0 : index
    %8 = vector.load %arg7[%c0_6, %c0_7] : memref<128x128xf32, #tpu.memory_space<vmem>>, vector<128x128xf32>
    tpu.vector_store %arg7[%c0_6, %c0_7], %7 {strides = array<i32>} : memref<128x128xf32, #tpu.memory_space<vmem>>, vector<128x128xf32>,
    %c0_i32_8 = arith.constant 0 : i32
    %9 = arith.cmpi eq, %arg2, %c0_i32_8 : i32
    %10 = arith.extui %9 : i1 to i32
    %c0_i32_9 = arith.constant 0 : i32
    %11 = arith.cmpi ne, %10, %c0_i32_9 : i32
    scf.if %11 {
      %c0_10 = arith.constant 0 : index
      %c0_11 = arith.constant 0 : index
      %12 = vector.load %arg7[%c0_10, %c0_11] : memref<128x128xf32, #tpu.memory_space<vmem>>, vector<128x128xf32>
      %cst_12 = arith.constant 0.000000e+00 : f32
      %13 = vector.broadcast %cst_12 : f32 to vector<128x128xf32>
      %14 = arith.cmpf oge, %12, %13 : vector<128x128xf32>
      %cst_13 = arith.constant 2.000000e-01 : f32
      %15 = vector.broadcast %cst_13 : f32 to vector<128x128xf32>
      %16 = arith.mulf %15, %12 : vector<128x128xf32>
      %17 = arith.select %14, %12, %16 : vector<128x128xi1>, vector<128x128xf32>
      %18 = arith.truncf %17 : vector<128x128xf32> to vector<128x128xbf16>
      %c0_14 = arith.constant 0 : index
      %c0_15 = arith.constant 0 : index
      %19 = vector.load %arg6[%c0_14, %c0_15] : memref<128x128xbf16, #tpu.memory_space<vmem>>, vector<128x128xbf16>
      tpu.vector_store %arg6[%c0_14, %c0_15], %18 {strides = array<i32>} : memref<128x128xbf16, #tpu.memory_space<vmem>>, vector<128x128xbf16>,
    } else {
    }
    return
  }
  func.func @transform_0(%arg0: i32, %arg1: i32, %arg2: i32) -> (i32, i32) {
    %c0_i32 = arith.constant 0 : i32
    return %arg0, %arg2 : i32, i32
  }
  func.func @transform_1(%arg0: i32, %arg1: i32, %arg2: i32) -> (i32, i32) {
    %c0_i32 = arith.constant 0 : i32
    return %arg2, %arg1 : i32, i32
  }
  func.func @transform_2(%arg0: i32, %arg1: i32, %arg2: i32) -> (i32, i32) {
    %c0_i32 = arith.constant 0 : i32
    %c0_i32_0 = arith.constant 0 : i32
    return %c0_i32, %arg1 : i32, i32
  }
  func.func @transform_3(%arg0: i32, %arg1: i32, %arg2: i32) -> (i32, i32) {
    %c0_i32 = arith.constant 0 : i32
    return %arg0, %arg1 : i32, i32
  }
}

module attributes {stable_mosaic.version = 11 : i64} {
  func.func @_mm_kernel(%arg0: i32, %arg1: i32, %arg2: i32, %arg3: memref<128x384xbf16, #tpu.memory_space<vmem>>, %arg4: memref<384x128xbf16, #tpu.memory_space<vmem>>, %arg5: memref<1x128xf32, #tpu.memory_space<vmem>>, %arg6: memref<128x128xbf16, #tpu.memory_space<vmem>>, %arg7: memref<128x128xf32, #tpu.memory_space<vmem>>) attributes {dimension_semantics = [#tpu.dimension_semantics<parallel>, #tpu.dimension_semantics<parallel>, #tpu.dimension_semantics<arbitrary>], iteration_bounds = array<i64: 2, 1, 3>, scalar_prefetch = 0 : i64, scratch_operands = 1 : i64, tpu.core_type = #tpu.core_type<tc>, window_params = [{transform_indices = @transform_0, window_bounds = array<i64: 128, 384>}, {transform_indices = @transform_1, window_bounds = array<i64: 384, 128>}, {transform_indices = @transform_2, window_bounds = array<i64: 1, 128>}, {transform_indices = @transform_3, window_bounds = array<i64: 128, 128>}]} {
    %c0_i32 = arith.constant 0 : i32
    %0 = arith.cmpi eq, %arg2, %c0_i32 : i32
    %1 = arith.extui %0 : i1 to i32
    %c0_i32_0 = arith.constant 0 : i32
    %2 = arith.cmpi ne, %1, %c0_i32_0 : i32
    scf.if %2 {
      %c0_9 = arith.constant 0 : index
      %c0_10 = arith.constant 0 : index
      %12 = vector.load %arg5[%c0_9, %c0_10] : memref<1x128xf32, #tpu.memory_space<vmem>>, vector<1x128xf32>
      %13 = vector.shape_cast %12 : vector<1x128xf32> to vector<1x128xf32>
      %14 = vector.broadcast %13 : vector<1x128xf32> to vector<128x128xf32>
      %c0_11 = arith.constant 0 : index
      %c0_12 = arith.constant 0 : index
      %15 = vector.load %arg7[%c0_11, %c0_12] : memref<128x128xf32, #tpu.memory_space<vmem>>, vector<128x128xf32>
      tpu.vector_store %arg7[%c0_11, %c0_12], %14 {strides = array<i32>} : memref<128x128xf32, #tpu.memory_space<vmem>>, vector<128x128xf32>,
    } else {
    }
    %c0 = arith.constant 0 : index
    %c0_1 = arith.constant 0 : index
    %3 = vector.load %arg7[%c0, %c0_1] : memref<128x128xf32, #tpu.memory_space<vmem>>, vector<128x128xf32>
    %c0_2 = arith.constant 0 : index
    %c0_3 = arith.constant 0 : index
    %4 = vector.load %arg3[%c0_2, %c0_3] : memref<128x384xbf16, #tpu.memory_space<vmem>>, vector<128x384xbf16>
    %c0_4 = arith.constant 0 : index
    %c0_5 = arith.constant 0 : index
    %5 = vector.load %arg4[%c0_4, %c0_5] : memref<384x128xbf16, #tpu.memory_space<vmem>>, vector<384x128xbf16>
    %cst = arith.constant dense<0.000000e+00> : vector<128x128xf32>
    %6 = tpu.matmul %4, %5, %cst {dimension_numbers = #tpu.dot_dimension_numbers<[1], [0], [0], [1], [0, 0, 1, 1], [], []>} : vector<128x384xbf16>, vector<384x128xbf16>, vector<128x128xf32> -> vector<128x128xf32>
    %7 = arith.addf %3, %6 : vector<128x128xf32>
    %c0_6 = arith.constant 0 : index
    %c0_7 = arith.constant 0 : index
    %8 = vector.load %arg7[%c0_6, %c0_7] : memref<128x128xf32, #tpu.memory_space<vmem>>, vector<128x128xf32>
    tpu.vector_store %arg7[%c0_6, %c0_7], %7 {strides = array<i32>} : memref<128x128xf32, #tpu.memory_space<vmem>>, vector<128x128xf32>,
    %c2_i32 = arith.constant 2 : i32
    %9 = arith.cmpi eq, %arg2, %c2_i32 : i32
    %10 = arith.extui %9 : i1 to i32
    %c0_i32_8 = arith.constant 0 : i32
    %11 = arith.cmpi ne, %10, %c0_i32_8 : i32
    scf.if %11 {
      %c0_9 = arith.constant 0 : index
      %c0_10 = arith.constant 0 : index
      %12 = vector.load %arg7[%c0_9, %c0_10] : memref<128x128xf32, #tpu.memory_space<vmem>>, vector<128x128xf32>
      %cst_11 = arith.constant 0.000000e+00 : f32
      %13 = vector.broadcast %cst_11 : f32 to vector<128x128xf32>
      %14 = arith.cmpf oge, %12, %13 : vector<128x128xf32>
      %cst_12 = arith.constant 2.000000e-01 : f32
      %15 = vector.broadcast %cst_12 : f32 to vector<128x128xf32>
      %16 = arith.mulf %15, %12 : vector<128x128xf32>
      %17 = arith.select %14, %12, %16 : vector<128x128xi1>, vector<128x128xf32>
      %18 = arith.truncf %17 : vector<128x128xf32> to vector<128x128xbf16>
      %c0_13 = arith.constant 0 : index
      %c0_14 = arith.constant 0 : index
      %19 = vector.load %arg6[%c0_13, %c0_14] : memref<128x128xbf16, #tpu.memory_space<vmem>>, vector<128x128xbf16>
      tpu.vector_store %arg6[%c0_13, %c0_14], %18 {strides = array<i32>} : memref<128x128xbf16, #tpu.memory_space<vmem>>, vector<128x128xbf16>,
    } else {
    }
    return
  }
  func.func @transform_0(%arg0: i32, %arg1: i32, %arg2: i32) -> (i32, i32) {
    %c0_i32 = arith.constant 0 : i32
    return %arg0, %arg2 : i32, i32
  }
  func.func @transform_1(%arg0: i32, %arg1: i32, %arg2: i32) -> (i32, i32) {
    %c0_i32 = arith.constant 0 : i32
    return %arg2, %arg1 : i32, i32
  }
  func.func @transform_2(%arg0: i32, %arg1: i32, %arg2: i32) -> (i32, i32) {
    %c0_i32 = arith.constant 0 : i32
    %c0_i32_0 = arith.constant 0 : i32
    return %c0_i32, %arg1 : i32, i32
  }
  func.func @transform_3(%arg0: i32, %arg1: i32, %arg2: i32) -> (i32, i32) {
    %c0_i32 = arith.constant 0 : i32
    return %arg0, %arg1 : i32, i32
  }
}

module attributes {stable_mosaic.version = 11 : i64} {
  func.func @_mm_kernel(%arg0: i32, %arg1: i32, %arg2: i32, %arg3: memref<64x384xbf16, #tpu.memory_space<vmem>>, %arg4: memref<384x128xbf16, #tpu.memory_space<vmem>>, %arg5: memref<1x128xf32, #tpu.memory_space<vmem>>, %arg6: memref<64x128xbf16, #tpu.memory_space<vmem>>, %arg7: memref<64x128xf32, #tpu.memory_space<vmem>>) attributes {dimension_semantics = [#tpu.dimension_semantics<parallel>, #tpu.dimension_semantics<parallel>, #tpu.dimension_semantics<arbitrary>], iteration_bounds = array<i64: 1, 1, 3>, scalar_prefetch = 0 : i64, scratch_operands = 1 : i64, tpu.core_type = #tpu.core_type<tc>, window_params = [{transform_indices = @transform_0, window_bounds = array<i64: 64, 384>}, {transform_indices = @transform_1, window_bounds = array<i64: 384, 128>}, {transform_indices = @transform_2, window_bounds = array<i64: 1, 128>}, {transform_indices = @transform_3, window_bounds = array<i64: 64, 128>}]} {
    %c0_i32 = arith.constant 0 : i32
    %0 = arith.cmpi eq, %arg2, %c0_i32 : i32
    %1 = arith.extui %0 : i1 to i32
    %c0_i32_0 = arith.constant 0 : i32
    %2 = arith.cmpi ne, %1, %c0_i32_0 : i32
    scf.if %2 {
      %c0_9 = arith.constant 0 : index
      %c0_10 = arith.constant 0 : index
      %12 = vector.load %arg5[%c0_9, %c0_10] : memref<1x128xf32, #tpu.memory_space<vmem>>, vector<1x128xf32>
      %13 = vector.shape_cast %12 : vector<1x128xf32> to vector<1x128xf32>
      %14 = vector.broadcast %13 : vector<1x128xf32> to vector<64x128xf32>
      %c0_11 = arith.constant 0 : index
      %c0_12 = arith.constant 0 : index
      %15 = vector.load %arg7[%c0_11, %c0_12] : memref<64x128xf32, #tpu.memory_space<vmem>>, vector<64x128xf32>
      tpu.vector_store %arg7[%c0_11, %c0_12], %14 {strides = array<i32>} : memref<64x128xf32, #tpu.memory_space<vmem>>, vector<64x128xf32>,
    } else {
    }
    %c0 = arith.constant 0 : index
    %c0_1 = arith.constant 0 : index
    %3 = vector.load %arg7[%c0, %c0_1] : memref<64x128xf32, #tpu.memory_space<vmem>>, vector<64x128xf32>
    %c0_2 = arith.constant 0 : index
    %c0_3 = arith.constant 0 : index
    %4 = vector.load %arg3[%c0_2, %c0_3] : memref<64x384xbf16, #tpu.memory_space<vmem>>, vector<64x384xbf16>
    %c0_4 = arith.constant 0 : index
    %c0_5 = arith.constant 0 : index
    %5 = vector.load %arg4[%c0_4, %c0_5] : memref<384x128xbf16, #tpu.memory_space<vmem>>, vector<384x128xbf16>
    %cst = arith.constant dense<0.000000e+00> : vector<64x128xf32>
    %6 = tpu.matmul %4, %5, %cst {dimension_numbers = #tpu.dot_dimension_numbers<[1], [0], [0], [1], [0, 0, 1, 1], [], []>} : vector<64x384xbf16>, vector<384x128xbf16>, vector<64x128xf32> -> vector<64x128xf32>
    %7 = arith.addf %3, %6 : vector<64x128xf32>
    %c0_6 = arith.constant 0 : index
    %c0_7 = arith.constant 0 : index
    %8 = vector.load %arg7[%c0_6, %c0_7] : memref<64x128xf32, #tpu.memory_space<vmem>>, vector<64x128xf32>
    tpu.vector_store %arg7[%c0_6, %c0_7], %7 {strides = array<i32>} : memref<64x128xf32, #tpu.memory_space<vmem>>, vector<64x128xf32>,
    %c2_i32 = arith.constant 2 : i32
    %9 = arith.cmpi eq, %arg2, %c2_i32 : i32
    %10 = arith.extui %9 : i1 to i32
    %c0_i32_8 = arith.constant 0 : i32
    %11 = arith.cmpi ne, %10, %c0_i32_8 : i32
    scf.if %11 {
      %c0_9 = arith.constant 0 : index
      %c0_10 = arith.constant 0 : index
      %12 = vector.load %arg7[%c0_9, %c0_10] : memref<64x128xf32, #tpu.memory_space<vmem>>, vector<64x128xf32>
      %cst_11 = arith.constant 0.000000e+00 : f32
      %13 = vector.broadcast %cst_11 : f32 to vector<64x128xf32>
      %14 = arith.cmpf oge, %12, %13 : vector<64x128xf32>
      %cst_12 = arith.constant 2.000000e-01 : f32
      %15 = vector.broadcast %cst_12 : f32 to vector<64x128xf32>
      %16 = arith.mulf %15, %12 : vector<64x128xf32>
      %17 = arith.select %14, %12, %16 : vector<64x128xi1>, vector<64x128xf32>
      %18 = arith.truncf %17 : vector<64x128xf32> to vector<64x128xbf16>
      %c0_13 = arith.constant 0 : index
      %c0_14 = arith.constant 0 : index
      %19 = vector.load %arg6[%c0_13, %c0_14] : memref<64x128xbf16, #tpu.memory_space<vmem>>, vector<64x128xbf16>
      tpu.vector_store %arg6[%c0_13, %c0_14], %18 {strides = array<i32>} : memref<64x128xbf16, #tpu.memory_space<vmem>>, vector<64x128xbf16>,
    } else {
    }
    return
  }
  func.func @transform_0(%arg0: i32, %arg1: i32, %arg2: i32) -> (i32, i32) {
    %c0_i32 = arith.constant 0 : i32
    return %arg0, %arg2 : i32, i32
  }
  func.func @transform_1(%arg0: i32, %arg1: i32, %arg2: i32) -> (i32, i32) {
    %c0_i32 = arith.constant 0 : i32
    return %arg2, %arg1 : i32, i32
  }
  func.func @transform_2(%arg0: i32, %arg1: i32, %arg2: i32) -> (i32, i32) {
    %c0_i32 = arith.constant 0 : i32
    %c0_i32_0 = arith.constant 0 : i32
    return %c0_i32, %arg1 : i32, i32
  }
  func.func @transform_3(%arg0: i32, %arg1: i32, %arg2: i32) -> (i32, i32) {
    %c0_i32 = arith.constant 0 : i32
    return %arg0, %arg1 : i32, i32
  }
}

module attributes {stable_mosaic.version = 11 : i64} {
  func.func @_mm_kernel(%arg0: i32, %arg1: i32, %arg2: i32, %arg3: memref<64x128xbf16, #tpu.memory_space<vmem>>, %arg4: memref<128x128xbf16, #tpu.memory_space<vmem>>, %arg5: memref<1x128xf32, #tpu.memory_space<vmem>>, %arg6: memref<64x128xbf16, #tpu.memory_space<vmem>>, %arg7: memref<64x128xf32, #tpu.memory_space<vmem>>) attributes {dimension_semantics = [#tpu.dimension_semantics<parallel>, #tpu.dimension_semantics<parallel>, #tpu.dimension_semantics<arbitrary>], iteration_bounds = array<i64: 1, 1, 1>, scalar_prefetch = 0 : i64, scratch_operands = 1 : i64, tpu.core_type = #tpu.core_type<tc>, window_params = [{transform_indices = @transform_0, window_bounds = array<i64: 64, 128>}, {transform_indices = @transform_1, window_bounds = array<i64: 128, 128>}, {transform_indices = @transform_2, window_bounds = array<i64: 1, 128>}, {transform_indices = @transform_3, window_bounds = array<i64: 64, 128>}]} {
    %c0_i32 = arith.constant 0 : i32
    %0 = arith.cmpi eq, %arg2, %c0_i32 : i32
    %1 = arith.extui %0 : i1 to i32
    %c0_i32_0 = arith.constant 0 : i32
    %2 = arith.cmpi ne, %1, %c0_i32_0 : i32
    scf.if %2 {
      %c0_10 = arith.constant 0 : index
      %c0_11 = arith.constant 0 : index
      %12 = vector.load %arg5[%c0_10, %c0_11] : memref<1x128xf32, #tpu.memory_space<vmem>>, vector<1x128xf32>
      %13 = vector.shape_cast %12 : vector<1x128xf32> to vector<1x128xf32>
      %14 = vector.broadcast %13 : vector<1x128xf32> to vector<64x128xf32>
      %c0_12 = arith.constant 0 : index
      %c0_13 = arith.constant 0 : index
      %15 = vector.load %arg7[%c0_12, %c0_13] : memref<64x128xf32, #tpu.memory_space<vmem>>, vector<64x128xf32>
      tpu.vector_store %arg7[%c0_12, %c0_13], %14 {strides = array<i32>} : memref<64x128xf32, #tpu.memory_space<vmem>>, vector<64x128xf32>,
    } else {
    }
    %c0 = arith.constant 0 : index
    %c0_1 = arith.constant 0 : index
    %3 = vector.load %arg7[%c0, %c0_1] : memref<64x128xf32, #tpu.memory_space<vmem>>, vector<64x128xf32>
    %c0_2 = arith.constant 0 : index
    %c0_3 = arith.constant 0 : index
    %4 = vector.load %arg3[%c0_2, %c0_3] : memref<64x128xbf16, #tpu.memory_space<vmem>>, vector<64x128xbf16>
    %c0_4 = arith.constant 0 : index
    %c0_5 = arith.constant 0 : index
    %5 = vector.load %arg4[%c0_4, %c0_5] : memref<128x128xbf16, #tpu.memory_space<vmem>>, vector<128x128xbf16>
    %cst = arith.constant dense<0.000000e+00> : vector<64x128xf32>
    %6 = tpu.matmul %4, %5, %cst {dimension_numbers = #tpu.dot_dimension_numbers<[1], [0], [0], [1], [0, 0, 1, 1], [], []>} : vector<64x128xbf16>, vector<128x128xbf16>, vector<64x128xf32> -> vector<64x128xf32>
    %7 = arith.addf %3, %6 : vector<64x128xf32>
    %c0_6 = arith.constant 0 : index
    %c0_7 = arith.constant 0 : index
    %8 = vector.load %arg7[%c0_6, %c0_7] : memref<64x128xf32, #tpu.memory_space<vmem>>, vector<64x128xf32>
    tpu.vector_store %arg7[%c0_6, %c0_7], %7 {strides = array<i32>} : memref<64x128xf32, #tpu.memory_space<vmem>>, vector<64x128xf32>,
    %c0_i32_8 = arith.constant 0 : i32
    %9 = arith.cmpi eq, %arg2, %c0_i32_8 : i32
    %10 = arith.extui %9 : i1 to i32
    %c0_i32_9 = arith.constant 0 : i32
    %11 = arith.cmpi ne, %10, %c0_i32_9 : i32
    scf.if %11 {
      %c0_10 = arith.constant 0 : index
      %c0_11 = arith.constant 0 : index
      %12 = vector.load %arg7[%c0_10, %c0_11] : memref<64x128xf32, #tpu.memory_space<vmem>>, vector<64x128xf32>
      %13 = arith.truncf %12 : vector<64x128xf32> to vector<64x128xbf16>
      %c0_12 = arith.constant 0 : index
      %c0_13 = arith.constant 0 : index
      %14 = vector.load %arg6[%c0_12, %c0_13] : memref<64x128xbf16, #tpu.memory_space<vmem>>, vector<64x128xbf16>
      tpu.vector_store %arg6[%c0_12, %c0_13], %13 {strides = array<i32>} : memref<64x128xbf16, #tpu.memory_space<vmem>>, vector<64x128xbf16>,
    } else {
    }
    return
  }
  func.func @transform_0(%arg0: i32, %arg1: i32, %arg2: i32) -> (i32, i32) {
    %c0_i32 = arith.constant 0 : i32
    return %arg0, %arg2 : i32, i32
  }
  func.func @transform_1(%arg0: i32, %arg1: i32, %arg2: i32) -> (i32, i32) {
    %c0_i32 = arith.constant 0 : i32
    return %arg2, %arg1 : i32, i32
  }
  func.func @transform_2(%arg0: i32, %arg1: i32, %arg2: i32) -> (i32, i32) {
    %c0_i32 = arith.constant 0 : i32
    %c0_i32_0 = arith.constant 0 : i32
    return %c0_i32, %arg1 : i32, i32
  }
  func.func @transform_3(%arg0: i32, %arg1: i32, %arg2: i32) -> (i32, i32) {
    %c0_i32 = arith.constant 0 : i32
    return %arg0, %arg1 : i32, i32
  }
}

module attributes {stable_mosaic.version = 11 : i64} {
  func.func @_attention_kernel(%arg0: i32, %arg1: memref<1x32x16xbf16, #tpu.memory_space<vmem>>, %arg2: memref<1x32x16xbf16, #tpu.memory_space<vmem>>, %arg3: memref<1x32x16xbf16, #tpu.memory_space<vmem>>, %arg4: memref<1x32x16xbf16, #tpu.memory_space<vmem>>) attributes {dimension_semantics = [#tpu.dimension_semantics<parallel>], iteration_bounds = array<i64: 2>, scalar_prefetch = 0 : i64, scratch_operands = 0 : i64, tpu.core_type = #tpu.core_type<tc>, window_params = [{transform_indices = @transform_0, window_bounds = array<i64: 1, 32, 16>}, {transform_indices = @transform_1, window_bounds = array<i64: 1, 32, 16>}, {transform_indices = @transform_2, window_bounds = array<i64: 1, 32, 16>}, {transform_indices = @transform_3, window_bounds = array<i64: 1, 32, 16>}]} {
    %c0 = arith.constant 0 : index
    %c0_0 = arith.constant 0 : index
    %c0_1 = arith.constant 0 : index
    %0 = vector.load %arg1[%c0, %c0_0, %c0_1] : memref<1x32x16xbf16, #tpu.memory_space<vmem>>, vector<1x32x16xbf16>
    %c0_2 = arith.constant 0 : index
    %c0_3 = arith.constant 0 : index
    %c0_4 = arith.constant 0 : index
    %1 = vector.load %arg2[%c0_2, %c0_3, %c0_4] : memref<1x32x16xbf16, #tpu.memory_space<vmem>>, vector<1x32x16xbf16>
    "tpu.trace_start"() <{level = 10 : i32, message = "bqd,bkd->bqk"}> : () -> ()
    %cst = arith.constant dense<0.000000e+00> : vector<1x32x32xf32>
    %2 = tpu.matmul %0, %1, %cst {dimension_numbers = #tpu.dot_dimension_numbers<[2], [2], [1], [1], [0, 0, 0, 1, 1, 1], [0], [0]>} : vector<1x32x16xbf16>, vector<1x32x16xbf16>, vector<1x32x32xf32> -> vector<1x32x32xf32>
    "tpu.trace_stop"() : () -> ()
    %cst_5 = arith.constant 2.500000e-01 : f32
    %3 = vector.broadcast %cst_5 : f32 to vector<1x32x32xf32>
    %4 = arith.mulf %2, %3 : vector<1x32x32xf32>
    %cst_6 = arith.constant dense<0xFF800000> : vector<1x32xf32>
    %5 = vector.multi_reduction <maximumf>, %4, %cst_6 [2] : vector<1x32x32xf32> to vector<1x32xf32>
    %6 = vector.shape_cast %5 : vector<1x32xf32> to vector<1x32x1xf32>
    %7 = vector.broadcast %6 : vector<1x32x1xf32> to vector<1x32x32xf32>
    %8 = arith.subf %4, %7 : vector<1x32x32xf32>
    %9 = math.exp %8 : vector<1x32x32xf32>
    %cst_7 = arith.constant dense<0.000000e+00> : vector<1x32xf32>
    %10 = vector.multi_reduction <add>, %9, %cst_7 [2] : vector<1x32x32xf32> to vector<1x32xf32>
    %11 = vector.shape_cast %10 : vector<1x32xf32> to vector<1x32x1xf32>
    %12 = arith.truncf %9 : vector<1x32x32xf32> to vector<1x32x32xbf16>
    %c0_8 = arith.constant 0 : index
    %c0_9 = arith.constant 0 : index
    %c0_10 = arith.constant 0 : index
    %13 = vector.load %arg3[%c0_8, %c0_9, %c0_10] : memref<1x32x16xbf16, #tpu.memory_space<vmem>>, vector<1x32x16xbf16>
    "tpu.trace_start"() <{level = 10 : i32, message = "bqk,bkd->bqd"}> : () -> ()
    %cst_11 = arith.constant dense<0.000000e+00> : vector<1x32x16xf32>
    %14 = tpu.matmul %12, %13, %cst_11 {dimension_numbers = #tpu.dot_dimension_numbers<[2], [1], [1], [2], [0, 0, 0, 1, 1, 2], [0], [0]>} : vector<1x32x32xbf16>, vector<1x32x16xbf16>, vector<1x32x16xf32> -> vector<1x32x16xf32>
    "tpu.trace_stop"() : () -> ()
    %15 = tpu.reciprocal %11 {approx = true} : vector<1x32x1xf32> -> vector<1x32x1xf32>
    %16 = vector.broadcast %15 : vector<1x32x1xf32> to vector<1x32x16xf32>
    %17 = arith.mulf %14, %16 : vector<1x32x16xf32>
    %18 = arith.truncf %17 : vector<1x32x16xf32> to vector<1x32x16xbf16>
    %c0_12 = arith.constant 0 : index
    %c0_13 = arith.constant 0 : index
    %c0_14 = arith.constant 0 : index
    %19 = vector.load %arg4[%c0_12, %c0_13, %c0_14] : memref<1x32x16xbf16, #tpu.memory_space<vmem>>, vector<1x32x16xbf16>
    tpu.vector_store %arg4[%c0_12, %c0_13, %c0_14], %18 {strides = array<i32>} : memref<1x32x16xbf16, #tpu.memory_space<vmem>>, vector<1x32x16xbf16>,
    return
  }
  func.func @transform_0(%arg0: i32) -> (i32, i32, i32) {
    %c0_i32 = arith.constant 0 : i32
    %c0_i32_0 = arith.constant 0 : i32
    %c0_i32_1 = arith.constant 0 : i32
    return %arg0, %c0_i32, %c0_i32_0 : i32, i32, i32
  }
  func.func @transform_1(%arg0: i32) -> (i32, i32, i32) {
    %c0_i32 = arith.constant 0 : i32
    %c0_i32_0 = arith.constant 0 : i32
    %c0_i32_1 = arith.constant 0 : i32
    return %arg0, %c0_i32, %c0_i32_0 : i32, i32, i32
  }
  func.func @transform_2(%arg0: i32) -> (i32, i32, i32) {
    %c0_i32 = arith.constant 0 : i32
    %c0_i32_0 = arith.constant 0 : i32
    %c0_i32_1 = arith.constant 0 : i32
    return %arg0, %c0_i32, %c0_i32_0 : i32, i32, i32
  }
  func.func @transform_3(%arg0: i32) -> (i32, i32, i32) {
    %c0_i32 = arith.constant 0 : i32
    %c0_i32_0 = arith.constant 0 : i32
    %c0_i32_1 = arith.constant 0 : i32
    return %arg0, %c0_i32, %c0_i32_0 : i32, i32, i32
  }
}

module attributes {stable_mosaic.version = 11 : i64} {
  func.func @_attention_kernel(%arg0: i32, %arg1: memref<1x8x64xbf16, #tpu.memory_space<vmem>>, %arg2: memref<1x8x64xbf16, #tpu.memory_space<vmem>>, %arg3: memref<1x8x64xbf16, #tpu.memory_space<vmem>>, %arg4: memref<1x8x64xbf16, #tpu.memory_space<vmem>>) attributes {dimension_semantics = [#tpu.dimension_semantics<parallel>], iteration_bounds = array<i64: 2>, scalar_prefetch = 0 : i64, scratch_operands = 0 : i64, tpu.core_type = #tpu.core_type<tc>, window_params = [{transform_indices = @transform_0, window_bounds = array<i64: 1, 8, 64>}, {transform_indices = @transform_1, window_bounds = array<i64: 1, 8, 64>}, {transform_indices = @transform_2, window_bounds = array<i64: 1, 8, 64>}, {transform_indices = @transform_3, window_bounds = array<i64: 1, 8, 64>}]} {
    %c0 = arith.constant 0 : index
    %c0_0 = arith.constant 0 : index
    %c0_1 = arith.constant 0 : index
    %0 = vector.load %arg1[%c0, %c0_0, %c0_1] : memref<1x8x64xbf16, #tpu.memory_space<vmem>>, vector<1x8x64xbf16>
    %c0_2 = arith.constant 0 : index
    %c0_3 = arith.constant 0 : index
    %c0_4 = arith.constant 0 : index
    %1 = vector.load %arg2[%c0_2, %c0_3, %c0_4] : memref<1x8x64xbf16, #tpu.memory_space<vmem>>, vector<1x8x64xbf16>
    "tpu.trace_start"() <{level = 10 : i32, message = "bqd,bkd->bqk"}> : () -> ()
    %cst = arith.constant dense<0.000000e+00> : vector<1x8x8xf32>
    %2 = tpu.matmul %0, %1, %cst {dimension_numbers = #tpu.dot_dimension_numbers<[2], [2], [1], [1], [0, 0, 0, 1, 1, 1], [0], [0]>} : vector<1x8x64xbf16>, vector<1x8x64xbf16>, vector<1x8x8xf32> -> vector<1x8x8xf32>
    "tpu.trace_stop"() : () -> ()
    %cst_5 = arith.constant 1.250000e-01 : f32
    %3 = vector.broadcast %cst_5 : f32 to vector<1x8x8xf32>
    %4 = arith.mulf %2, %3 : vector<1x8x8xf32>
    %cst_6 = arith.constant dense<0xFF800000> : vector<1x8xf32>
    %5 = vector.multi_reduction <maximumf>, %4, %cst_6 [2] : vector<1x8x8xf32> to vector<1x8xf32>
    %6 = vector.shape_cast %5 : vector<1x8xf32> to vector<1x8x1xf32>
    %7 = vector.broadcast %6 : vector<1x8x1xf32> to vector<1x8x8xf32>
    %8 = arith.subf %4, %7 : vector<1x8x8xf32>
    %9 = math.exp %8 : vector<1x8x8xf32>
    %cst_7 = arith.constant dense<0.000000e+00> : vector<1x8xf32>
    %10 = vector.multi_reduction <add>, %9, %cst_7 [2] : vector<1x8x8xf32> to vector<1x8xf32>
    %11 = vector.shape_cast %10 : vector<1x8xf32> to vector<1x8x1xf32>
    %12 = arith.truncf %9 : vector<1x8x8xf32> to vector<1x8x8xbf16>
    %c0_8 = arith.constant 0 : index
    %c0_9 = arith.constant 0 : index
    %c0_10 = arith.constant 0 : index
    %13 = vector.load %arg3[%c0_8, %c0_9, %c0_10] : memref<1x8x64xbf16, #tpu.memory_space<vmem>>, vector<1x8x64xbf16>
    "tpu.trace_start"() <{level = 10 : i32, message = "bqk,bkd->bqd"}> : () -> ()
    %cst_11 = arith.constant dense<0.000000e+00> : vector<1x8x64xf32>
    %14 = tpu.matmul %12, %13, %cst_11 {dimension_numbers = #tpu.dot_dimension_numbers<[2], [1], [1], [2], [0, 0, 0, 1, 1, 2], [0], [0]>} : vector<1x8x8xbf16>, vector<1x8x64xbf16>, vector<1x8x64xf32> -> vector<1x8x64xf32>
    "tpu.trace_stop"() : () -> ()
    %15 = tpu.reciprocal %11 {approx = true} : vector<1x8x1xf32> -> vector<1x8x1xf32>
    %16 = vector.broadcast %15 : vector<1x8x1xf32> to vector<1x8x64xf32>
    %17 = arith.mulf %14, %16 : vector<1x8x64xf32>
    %18 = arith.truncf %17 : vector<1x8x64xf32> to vector<1x8x64xbf16>
    %c0_12 = arith.constant 0 : index
    %c0_13 = arith.constant 0 : index
    %c0_14 = arith.constant 0 : index
    %19 = vector.load %arg4[%c0_12, %c0_13, %c0_14] : memref<1x8x64xbf16, #tpu.memory_space<vmem>>, vector<1x8x64xbf16>
    tpu.vector_store %arg4[%c0_12, %c0_13, %c0_14], %18 {strides = array<i32>} : memref<1x8x64xbf16, #tpu.memory_space<vmem>>, vector<1x8x64xbf16>,
    return
  }
  func.func @transform_0(%arg0: i32) -> (i32, i32, i32) {
    %c0_i32 = arith.constant 0 : i32
    %c0_i32_0 = arith.constant 0 : i32
    %c0_i32_1 = arith.constant 0 : i32
    return %arg0, %c0_i32, %c0_i32_0 : i32, i32, i32
  }
  func.func @transform_1(%arg0: i32) -> (i32, i32, i32) {
    %c0_i32 = arith.constant 0 : i32
    %c0_i32_0 = arith.constant 0 : i32
    %c0_i32_1 = arith.constant 0 : i32
    return %arg0, %c0_i32, %c0_i32_0 : i32, i32, i32
  }
  func.func @transform_2(%arg0: i32) -> (i32, i32, i32) {
    %c0_i32 = arith.constant 0 : i32
    %c0_i32_0 = arith.constant 0 : i32
    %c0_i32_1 = arith.constant 0 : i32
    return %arg0, %c0_i32, %c0_i32_0 : i32, i32, i32
  }
  func.func @transform_3(%arg0: i32) -> (i32, i32, i32) {
    %c0_i32 = arith.constant 0 : i32
    %c0_i32_0 = arith.constant 0 : i32
    %c0_i32_1 = arith.constant 0 : i32
    return %arg0, %c0_i32, %c0_i32_0 : i32, i32, i32
  }
}

module attributes {stable_mosaic.version = 11 : i64} {
  func.func @_mm_kernel(%arg0: i32, %arg1: i32, %arg2: i32, %arg3: memref<64x384xbf16, #tpu.memory_space<vmem>>, %arg4: memref<384x128xbf16, #tpu.memory_space<vmem>>, %arg5: memref<1x128xf32, #tpu.memory_space<vmem>>, %arg6: memref<64x128xbf16, #tpu.memory_space<vmem>>, %arg7: memref<64x128xbf16, #tpu.memory_space<vmem>>, %arg8: memref<64x128xf32, #tpu.memory_space<vmem>>) attributes {dimension_semantics = [#tpu.dimension_semantics<parallel>, #tpu.dimension_semantics<parallel>, #tpu.dimension_semantics<arbitrary>], iteration_bounds = array<i64: 1, 1, 1>, scalar_prefetch = 0 : i64, scratch_operands = 1 : i64, tpu.core_type = #tpu.core_type<tc>, window_params = [{transform_indices = @transform_0, window_bounds = array<i64: 64, 384>}, {transform_indices = @transform_1, window_bounds = array<i64: 384, 128>}, {transform_indices = @transform_2, window_bounds = array<i64: 1, 128>}, {transform_indices = @transform_3, window_bounds = array<i64: 64, 128>}, {transform_indices = @transform_4, window_bounds = array<i64: 64, 128>}]} {
    %c0_i32 = arith.constant 0 : i32
    %0 = arith.cmpi eq, %arg2, %c0_i32 : i32
    %1 = arith.extui %0 : i1 to i32
    %c0_i32_0 = arith.constant 0 : i32
    %2 = arith.cmpi ne, %1, %c0_i32_0 : i32
    scf.if %2 {
      %c0_10 = arith.constant 0 : index
      %c0_11 = arith.constant 0 : index
      %12 = vector.load %arg5[%c0_10, %c0_11] : memref<1x128xf32, #tpu.memory_space<vmem>>, vector<1x128xf32>
      %13 = vector.shape_cast %12 : vector<1x128xf32> to vector<1x128xf32>
      %14 = vector.broadcast %13 : vector<1x128xf32> to vector<64x128xf32>
      %c0_12 = arith.constant 0 : index
      %c0_13 = arith.constant 0 : index
      %15 = vector.load %arg8[%c0_12, %c0_13] : memref<64x128xf32, #tpu.memory_space<vmem>>, vector<64x128xf32>
      tpu.vector_store %arg8[%c0_12, %c0_13], %14 {strides = array<i32>} : memref<64x128xf32, #tpu.memory_space<vmem>>, vector<64x128xf32>,
    } else {
    }
    %c0 = arith.constant 0 : index
    %c0_1 = arith.constant 0 : index
    %3 = vector.load %arg8[%c0, %c0_1] : memref<64x128xf32, #tpu.memory_space<vmem>>, vector<64x128xf32>
    %c0_2 = arith.constant 0 : index
    %c0_3 = arith.constant 0 : index
    %4 = vector.load %arg3[%c0_2, %c0_3] : memref<64x384xbf16, #tpu.memory_space<vmem>>, vector<64x384xbf16>
    %c0_4 = arith.constant 0 : index
    %c0_5 = arith.constant 0 : index
    %5 = vector.load %arg4[%c0_4, %c0_5] : memref<384x128xbf16, #tpu.memory_space<vmem>>, vector<384x128xbf16>
    %cst = arith.constant dense<0.000000e+00> : vector<64x128xf32>
    %6 = tpu.matmul %4, %5, %cst {dimension_numbers = #tpu.dot_dimension_numbers<[1], [0], [0], [1], [0, 0, 1, 1], [], []>} : vector<64x384xbf16>, vector<384x128xbf16>, vector<64x128xf32> -> vector<64x128xf32>
    %7 = arith.addf %3, %6 : vector<64x128xf32>
    %c0_6 = arith.constant 0 : index
    %c0_7 = arith.constant 0 : index
    %8 = vector.load %arg8[%c0_6, %c0_7] : memref<64x128xf32, #tpu.memory_space<vmem>>, vector<64x128xf32>
    tpu.vector_store %arg8[%c0_6, %c0_7], %7 {strides = array<i32>} : memref<64x128xf32, #tpu.memory_space<vmem>>, vector<64x128xf32>,
    %c0_i32_8 = arith.constant 0 : i32
    %9 = arith.cmpi eq, %arg2, %c0_i32_8 : i32
    %10 = arith.extui %9 : i1 to i32
    %c0_i32_9 = arith.constant 0 : i32
    %11 = arith.cmpi ne, %10, %c0_i32_9 : i32
    scf.if %11 {
      %c0_10 = arith.constant 0 : index
      %c0_11 = arith.constant 0 : index
      %12 = vector.load %arg8[%c0_10, %c0_11] : memref<64x128xf32, #tpu.memory_space<vmem>>, vector<64x128xf32>
      %cst_12 = arith.constant 0.000000e+00 : f32
      %13 = vector.broadcast %cst_12 : f32 to vector<64x128xf32>
      %14 = arith.cmpf oge, %12, %13 : vector<64x128xf32>
      %cst_13 = arith.constant 2.000000e-01 : f32
      %15 = vector.broadcast %cst_13 : f32 to vector<64x128xf32>
      %16 = arith.mulf %15, %12 : vector<64x128xf32>
      %17 = arith.select %14, %12, %16 : vector<64x128xi1>, vector<64x128xf32>
      %c0_14 = arith.constant 0 : index
      %c0_15 = arith.constant 0 : index
      %18 = vector.load %arg6[%c0_14, %c0_15] : memref<64x128xbf16, #tpu.memory_space<vmem>>, vector<64x128xbf16>
      %19 = arith.extf %18 : vector<64x128xbf16> to vector<64x128xf32>
      %20 = arith.addf %17, %19 : vector<64x128xf32>
      %21 = arith.truncf %20 : vector<64x128xf32> to vector<64x128xbf16>
      %c0_16 = arith.constant 0 : index
      %c0_17 = arith.constant 0 : index
      %22 = vector.load %arg7[%c0_16, %c0_17] : memref<64x128xbf16, #tpu.memory_space<vmem>>, vector<64x128xbf16>
      tpu.vector_store %arg7[%c0_16, %c0_17], %21 {strides = array<i32>} : memref<64x128xbf16, #tpu.memory_space<vmem>>, vector<64x128xbf16>,
    } else {
    }
    return
  }
  func.func @transform_0(%arg0: i32, %arg1: i32, %arg2: i32) -> (i32, i32) {
    %c0_i32 = arith.constant 0 : i32
    return %arg0, %arg2 : i32, i32
  }
  func.func @transform_1(%arg0: i32, %arg1: i32, %arg2: i32) -> (i32, i32) {
    %c0_i32 = arith.constant 0 : i32
    return %arg2, %arg1 : i32, i32
  }
  func.func @transform_2(%arg0: i32, %arg1: i32, %arg2: i32) -> (i32, i32) {
    %c0_i32 = arith.constant 0 : i32
    %c0_i32_0 = arith.constant 0 : i32
    return %c0_i32, %arg1 : i32, i32
  }
  func.func @transform_3(%arg0: i32, %arg1: i32, %arg2: i32) -> (i32, i32) {
    %c0_i32 = arith.constant 0 : i32
    return %arg0, %arg1 : i32, i32
  }
  func.func @transform_4(%arg0: i32, %arg1: i32, %arg2: i32) -> (i32, i32) {
    %c0_i32 = arith.constant 0 : i32
    return %arg0, %arg1 : i32, i32
  }
}

module attributes {stable_mosaic.version = 11 : i64} {
  func.func @_mm_kernel(%arg0: i32, %arg1: i32, %arg2: i32, %arg3: memref<64x384xbf16, #tpu.memory_space<vmem>>, %arg4: memref<384x128xbf16, #tpu.memory_space<vmem>>, %arg5: memref<1x128xf32, #tpu.memory_space<vmem>>, %arg6: memref<64x128xbf16, #tpu.memory_space<vmem>>, %arg7: memref<64x128xbf16, #tpu.memory_space<vmem>>, %arg8: memref<64x128xf32, #tpu.memory_space<vmem>>) attributes {dimension_semantics = [#tpu.dimension_semantics<parallel>, #tpu.dimension_semantics<parallel>, #tpu.dimension_semantics<arbitrary>], iteration_bounds = array<i64: 1, 1, 3>, scalar_prefetch = 0 : i64, scratch_operands = 1 : i64, tpu.core_type = #tpu.core_type<tc>, window_params = [{transform_indices = @transform_0, window_bounds = array<i64: 64, 384>}, {transform_indices = @transform_1, window_bounds = array<i64: 384, 128>}, {transform_indices = @transform_2, window_bounds = array<i64: 1, 128>}, {transform_indices = @transform_3, window_bounds = array<i64: 64, 128>}, {transform_indices = @transform_4, window_bounds = array<i64: 64, 128>}]} {
    %c0_i32 = arith.constant 0 : i32
    %0 = arith.cmpi eq, %arg2, %c0_i32 : i32
    %1 = arith.extui %0 : i1 to i32
    %c0_i32_0 = arith.constant 0 : i32
    %2 = arith.cmpi ne, %1, %c0_i32_0 : i32
    scf.if %2 {
      %c0_9 = arith.constant 0 : index
      %c0_10 = arith.constant 0 : index
      %12 = vector.load %arg5[%c0_9, %c0_10] : memref<1x128xf32, #tpu.memory_space<vmem>>, vector<1x128xf32>
      %13 = vector.shape_cast %12 : vector<1x128xf32> to vector<1x128xf32>
      %14 = vector.broadcast %13 : vector<1x128xf32> to vector<64x128xf32>
      %c0_11 = arith.constant 0 : index
      %c0_12 = arith.constant 0 : index
      %15 = vector.load %arg8[%c0_11, %c0_12] : memref<64x128xf32, #tpu.memory_space<vmem>>, vector<64x128xf32>
      tpu.vector_store %arg8[%c0_11, %c0_12], %14 {strides = array<i32>} : memref<64x128xf32, #tpu.memory_space<vmem>>, vector<64x128xf32>,
    } else {
    }
    %c0 = arith.constant 0 : index
    %c0_1 = arith.constant 0 : index
    %3 = vector.load %arg8[%c0, %c0_1] : memref<64x128xf32, #tpu.memory_space<vmem>>, vector<64x128xf32>
    %c0_2 = arith.constant 0 : index
    %c0_3 = arith.constant 0 : index
    %4 = vector.load %arg3[%c0_2, %c0_3] : memref<64x384xbf16, #tpu.memory_space<vmem>>, vector<64x384xbf16>
    %c0_4 = arith.constant 0 : index
    %c0_5 = arith.constant 0 : index
    %5 = vector.load %arg4[%c0_4, %c0_5] : memref<384x128xbf16, #tpu.memory_space<vmem>>, vector<384x128xbf16>
    %cst = arith.constant dense<0.000000e+00> : vector<64x128xf32>
    %6 = tpu.matmul %4, %5, %cst {dimension_numbers = #tpu.dot_dimension_numbers<[1], [0], [0], [1], [0, 0, 1, 1], [], []>} : vector<64x384xbf16>, vector<384x128xbf16>, vector<64x128xf32> -> vector<64x128xf32>
    %7 = arith.addf %3, %6 : vector<64x128xf32>
    %c0_6 = arith.constant 0 : index
    %c0_7 = arith.constant 0 : index
    %8 = vector.load %arg8[%c0_6, %c0_7] : memref<64x128xf32, #tpu.memory_space<vmem>>, vector<64x128xf32>
    tpu.vector_store %arg8[%c0_6, %c0_7], %7 {strides = array<i32>} : memref<64x128xf32, #tpu.memory_space<vmem>>, vector<64x128xf32>,
    %c2_i32 = arith.constant 2 : i32
    %9 = arith.cmpi eq, %arg2, %c2_i32 : i32
    %10 = arith.extui %9 : i1 to i32
    %c0_i32_8 = arith.constant 0 : i32
    %11 = arith.cmpi ne, %10, %c0_i32_8 : i32
    scf.if %11 {
      %c0_9 = arith.constant 0 : index
      %c0_10 = arith.constant 0 : index
      %12 = vector.load %arg8[%c0_9, %c0_10] : memref<64x128xf32, #tpu.memory_space<vmem>>, vector<64x128xf32>
      %cst_11 = arith.constant 0.000000e+00 : f32
      %13 = vector.broadcast %cst_11 : f32 to vector<64x128xf32>
      %14 = arith.cmpf oge, %12, %13 : vector<64x128xf32>
      %cst_12 = arith.constant 2.000000e-01 : f32
      %15 = vector.broadcast %cst_12 : f32 to vector<64x128xf32>
      %16 = arith.mulf %15, %12 : vector<64x128xf32>
      %17 = arith.select %14, %12, %16 : vector<64x128xi1>, vector<64x128xf32>
      %c0_13 = arith.constant 0 : index
      %c0_14 = arith.constant 0 : index
      %18 = vector.load %arg6[%c0_13, %c0_14] : memref<64x128xbf16, #tpu.memory_space<vmem>>, vector<64x128xbf16>
      %19 = arith.extf %18 : vector<64x128xbf16> to vector<64x128xf32>
      %20 = arith.addf %17, %19 : vector<64x128xf32>
      %21 = arith.truncf %20 : vector<64x128xf32> to vector<64x128xbf16>
      %c0_15 = arith.constant 0 : index
      %c0_16 = arith.constant 0 : index
      %22 = vector.load %arg7[%c0_15, %c0_16] : memref<64x128xbf16, #tpu.memory_space<vmem>>, vector<64x128xbf16>
      tpu.vector_store %arg7[%c0_15, %c0_16], %21 {strides = array<i32>} : memref<64x128xbf16, #tpu.memory_space<vmem>>, vector<64x128xbf16>,
    } else {
    }
    return
  }
  func.func @transform_0(%arg0: i32, %arg1: i32, %arg2: i32) -> (i32, i32) {
    %c0_i32 = arith.constant 0 : i32
    return %arg0, %arg2 : i32, i32
  }
  func.func @transform_1(%arg0: i32, %arg1: i32, %arg2: i32) -> (i32, i32) {
    %c0_i32 = arith.constant 0 : i32
    return %arg2, %arg1 : i32, i32
  }
  func.func @transform_2(%arg0: i32, %arg1: i32, %arg2: i32) -> (i32, i32) {
    %c0_i32 = arith.constant 0 : i32
    %c0_i32_0 = arith.constant 0 : i32
    return %c0_i32, %arg1 : i32, i32
  }
  func.func @transform_3(%arg0: i32, %arg1: i32, %arg2: i32) -> (i32, i32) {
    %c0_i32 = arith.constant 0 : i32
    return %arg0, %arg1 : i32, i32
  }
  func.func @transform_4(%arg0: i32, %arg1: i32, %arg2: i32) -> (i32, i32) {
    %c0_i32 = arith.constant 0 : i32
    return %arg0, %arg1 : i32, i32
  }
}

module attributes {stable_mosaic.version = 11 : i64} {
  func.func @_head_kernel(%arg0: i32, %arg1: memref<16x512xbf16, #tpu.memory_space<vmem>>, %arg2: memref<512x1024xbf16, #tpu.memory_space<vmem>>, %arg3: memref<1x1024xf32, #tpu.memory_space<vmem>>, %arg4: memref<1024x128xbf16, #tpu.memory_space<vmem>>, %arg5: memref<1x128xf32, #tpu.memory_space<vmem>>, %arg6: memref<16x128xf32, #tpu.memory_space<vmem>>) attributes {dimension_semantics = [#tpu.dimension_semantics<arbitrary>], iteration_bounds = array<i64: 1>, scalar_prefetch = 0 : i64, scratch_operands = 0 : i64, tpu.core_type = #tpu.core_type<tc>, window_params = [{pipeline_mode = #tpu.pipeline_mode<synchronous>, transform_indices = @transform_0, window_bounds = array<i64: 16, 512>}, {pipeline_mode = #tpu.pipeline_mode<synchronous>, transform_indices = @transform_1, window_bounds = array<i64: 512, 1024>}, {pipeline_mode = #tpu.pipeline_mode<synchronous>, transform_indices = @transform_2, window_bounds = array<i64: 1, 1024>}, {pipeline_mode = #tpu.pipeline_mode<synchronous>, transform_indices = @transform_3, window_bounds = array<i64: 1024, 128>}, {pipeline_mode = #tpu.pipeline_mode<synchronous>, transform_indices = @transform_4, window_bounds = array<i64: 1, 128>}, {pipeline_mode = #tpu.pipeline_mode<synchronous>, transform_indices = @transform_5, window_bounds = array<i64: 16, 128>}]} {
    %c0 = arith.constant 0 : index
    %c0_0 = arith.constant 0 : index
    %0 = vector.load %arg1[%c0, %c0_0] : memref<16x512xbf16, #tpu.memory_space<vmem>>, vector<16x512xbf16>
    %c0_1 = arith.constant 0 : index
    %c0_2 = arith.constant 0 : index
    %1 = vector.load %arg2[%c0_1, %c0_2] : memref<512x1024xbf16, #tpu.memory_space<vmem>>, vector<512x1024xbf16>
    %cst = arith.constant dense<0.000000e+00> : vector<16x1024xf32>
    %2 = tpu.matmul %0, %1, %cst {dimension_numbers = #tpu.dot_dimension_numbers<[1], [0], [0], [1], [0, 0, 1, 1], [], []>} : vector<16x512xbf16>, vector<512x1024xbf16>, vector<16x1024xf32> -> vector<16x1024xf32>
    %c0_3 = arith.constant 0 : index
    %c0_4 = arith.constant 0 : index
    %3 = vector.load %arg3[%c0_3, %c0_4] : memref<1x1024xf32, #tpu.memory_space<vmem>>, vector<1x1024xf32>
    %4 = vector.broadcast %3 : vector<1x1024xf32> to vector<16x1024xf32>
    %5 = arith.addf %2, %4 : vector<16x1024xf32>
    %cst_5 = arith.constant 0.000000e+00 : f32
    %6 = vector.broadcast %cst_5 : f32 to vector<16x1024xf32>
    %7 = arith.cmpf oge, %5, %6 : vector<16x1024xf32>
    %cst_6 = arith.constant 0.00999999977 : f32
    %8 = vector.broadcast %cst_6 : f32 to vector<16x1024xf32>
    %9 = arith.mulf %8, %5 : vector<16x1024xf32>
    %10 = arith.select %7, %5, %9 : vector<16x1024xi1>, vector<16x1024xf32>
    %11 = arith.truncf %10 : vector<16x1024xf32> to vector<16x1024xbf16>
    %c0_7 = arith.constant 0 : index
    %c0_8 = arith.constant 0 : index
    %12 = vector.load %arg4[%c0_7, %c0_8] : memref<1024x128xbf16, #tpu.memory_space<vmem>>, vector<1024x128xbf16>
    %cst_9 = arith.constant dense<0.000000e+00> : vector<16x128xf32>
    %13 = tpu.matmul %11, %12, %cst_9 {dimension_numbers = #tpu.dot_dimension_numbers<[1], [0], [0], [1], [0, 0, 1, 1], [], []>} : vector<16x1024xbf16>, vector<1024x128xbf16>, vector<16x128xf32> -> vector<16x128xf32>
    %c0_10 = arith.constant 0 : index
    %c0_11 = arith.constant 0 : index
    %14 = vector.load %arg5[%c0_10, %c0_11] : memref<1x128xf32, #tpu.memory_space<vmem>>, vector<1x128xf32>
    %15 = vector.broadcast %14 : vector<1x128xf32> to vector<16x128xf32>
    %16 = arith.addf %13, %15 : vector<16x128xf32>
    %c0_12 = arith.constant 0 : index
    %c0_13 = arith.constant 0 : index
    %17 = vector.load %arg6[%c0_12, %c0_13] : memref<16x128xf32, #tpu.memory_space<vmem>>, vector<16x128xf32>
    tpu.vector_store %arg6[%c0_12, %c0_13], %16 {strides = array<i32>} : memref<16x128xf32, #tpu.memory_space<vmem>>, vector<16x128xf32>,
    return
  }
  func.func @transform_0(%arg0: i32) -> (i32, i32) {
    %c0_i32 = arith.constant 0 : i32
    %c0_i32_0 = arith.constant 0 : i32
    %c0_i32_1 = arith.constant 0 : i32
    return %c0_i32, %c0_i32_0 : i32, i32
  }
  func.func @transform_1(%arg0: i32) -> (i32, i32) {
    %c0_i32 = arith.constant 0 : i32
    %c0_i32_0 = arith.constant 0 : i32
    %c0_i32_1 = arith.constant 0 : i32
    return %c0_i32, %c0_i32_0 : i32, i32
  }
  func.func @transform_2(%arg0: i32) -> (i32, i32) {
    %c0_i32 = arith.constant 0 : i32
    %c0_i32_0 = arith.constant 0 : i32
    %c0_i32_1 = arith.constant 0 : i32
    return %c0_i32, %c0_i32_0 : i32, i32
  }
  func.func @transform_3(%arg0: i32) -> (i32, i32) {
    %c0_i32 = arith.constant 0 : i32
    %c0_i32_0 = arith.constant 0 : i32
    %c0_i32_1 = arith.constant 0 : i32
    return %c0_i32, %c0_i32_0 : i32, i32
  }
  func.func @transform_4(%arg0: i32) -> (i32, i32) {
    %c0_i32 = arith.constant 0 : i32
    %c0_i32_0 = arith.constant 0 : i32
    %c0_i32_1 = arith.constant 0 : i32
    return %c0_i32, %c0_i32_0 : i32, i32
  }
  func.func @transform_5(%arg0: i32) -> (i32, i32) {
    %c0_i32 = arith.constant 0 : i32
    %c0_i32_0 = arith.constant 0 : i32
    %c0_i32_1 = arith.constant 0 : i32
    return %c0_i32, %c0_i32_0 : i32, i32
  }
}

</mosaic_0001>

<llo_original>
// kernel: inpaint_generator_forward.17
$region0: #{inpaint_generator_forward.17}
  #allocation0 [shape = 'u32[]', space=smem, size = 0x4, offset = 0x4, fixed_abs, tag = 'smem constant byte address 0x4 - core index']
  #allocation1 [shape = 'u32[144,128]{1,0:T(1,128)}', space=vmem, size = 0x12000, scoped, tag = 'internal scratch']
  #allocation2 [shape = 'f32[128,128]{1,0:T(8,128)}', space=vmem, size = 0x10000, scoped, tag = 'scratch operand']
  %s0 = inlined_call_operand.vmem [shape: bf16[256,128], index: 0, kind: input, shape index: {}]
  %s1 = inlined_call_operand.vmem [shape: bf16[128,128], index: 1, kind: input, shape index: {}]
  %s2 = inlined_call_operand.vmem [shape: f32[1,128], index: 2, kind: input, shape index: {}]
  %s3 = inlined_call_operand.vmem [shape: bf16[256,128], index: 3, kind: output, shape index: {}]
  %s4 = sld [smem:[#allocation0]]
  $region53: #{inpaint_generator_forward.17} parent=0
    _
  %s6 = ssub.s32 1, %s4
  %s7 = scalar_select 0, %s6, %s4
  loop: start=0, step=1, limit=4
  $region2: #{inpaint_generator_forward.17} parent=0 // loop_pre_header
    _
  $region3: #{inpaint_generator_forward.17} parent=0 // loop_header
    %s9 = sphi 0, %s13
    %p10 = scmp.ge.s32.totalorder %s9, 4
    %s16 = sphi 0, %s35
    %s17 = sphi 0, %s31
    %s18 = sphi 0, %s27
    %s19 = sphi 0, %s16
    %s20 = sphi 0, %s17
    %s21 = sphi 0, %s18
    %s22 = sphi 0, %s19
    %s23 = sphi 0, %s20
    %s24 = sphi 0, %s21
    %s40 = sphi 0, %s42
    %s43 = sphi 0, %s40
    %s44 = sphi 0, %s43
    %s60 = sphi 0, %s44
    %s68 = sphi 0, %s70
    %s71 = sphi 0, %s68
    %s72 = sphi 0, %s71
    %s88 = sphi 0, %s72
    %s94 = sphi 0, %s96
    %s97 = sphi 0, %s94
    %s98 = sphi 0, %s97
    %s114 = sphi 0, %s98
    %s122 = sphi 0, %s124
    %s125 = sphi 0, %s122
    %s126 = sphi 0, %s125
    %s142 = sphi 0, %s126
  $region4: #{inpaint_generator_forward.17} parent=0 // loop_header_branch
    %12 = sbr.rel (%p10) target = $region8
  $region5: #{inpaint_generator_forward.17} parent=0 // loop_body
    %s14 = ssub.s32 %s9, 1
    %s15 = ssub.s32 %s9, 2
    %s25 = sadd.s32 1, %s18
    %p26 = scmp.ge.s32.totalorder %s25, 1
    %s27 = scalar_select %p26, 0, %s25
    %s28 = sadd.s32 1, %s17
    %s29 = scalar_select %p26, %s28, %s17
    %p30 = scmp.ge.s32.totalorder %s29, 1
    %s31 = scalar_select %p30, 0, %s29
    %s32 = sadd.s32 1, %s16
    %s33 = scalar_select %p30, %s32, %s16
    %p34 = scmp.ge.s32.totalorder %s33, 2
    %s35 = scalar_select %p34, 0, %s33
    %s36 = ssub.s32 %s16, %s35
    %s37 = ssub.s32 %s18, %s27
    %s38 = sor.u32 %s36, %s37
    %p39 = scmp.eq.s32.totalorder %s38, 0
    %s41 = sadd.s32 %s40, 1
    %s42 = scalar_select %p39, %s40, %s41
    %p45 = pneg %p39
    %p46 = scmp.eq.s32.totalorder %s9, 1
    %p47 = por %p45, %p46
    %p48 = scmp.ne.s32.totalorder %s40, %s43
    %p49 = scmp.eq.s32.totalorder %s9, 0
    %p50 = por %p48, %p49
    %p51 = scmp.ne.s32.totalorder %s40, %s43
    %p52 = scmp.eq.s32.totalorder %s14, 1
    %p53 = por %p51, %p52
    %p54 = scmp.ne.s32.totalorder %s43, %s44
    %p55 = scmp.eq.s32.totalorder %s14, 0
    %p56 = por %p54, %p55
    %p57 = scmp.ne.s32.totalorder %s43, %s44
    %p58 = scmp.eq.s32.totalorder %s15, 1
    %p59 = por %p57, %p58
    %p61 = scmp.ne.s32.totalorder %s44, %s60
    %p62 = scmp.eq.s32.totalorder %s15, 0
    %p63 = por %p61, %p62
    %s64 = ssub.s32 %s18, %s27
    %s65 = ssub.s32 %s17, %s31
    %s66 = sor.u32 %s64, %s65
    %p67 = scmp.eq.s32.totalorder %s66, 0
    %s69 = sadd.s32 %s68, 1
    %s70 = scalar_select %p67, %s68, %s69
    %p73 = pneg %p67
    %p74 = scmp.eq.s32.totalorder %s9, 1
    %p75 = por %p73, %p74
    %p76 = scmp.ne.s32.totalorder %s68, %s71
    %p77 = scmp.eq.s32.totalorder %s9, 0
    %p78 = por %p76, %p77
    %p79 = scmp.ne.s32.totalorder %s68, %s71
    %p80 = scmp.eq.s32.totalorder %s14, 1
    %p81 = por %p79, %p80
    %p82 = scmp.ne.s32.totalorder %s71, %s72
    %p83 = scmp.eq.s32.totalorder %s14, 0
    %p84 = por %p82, %p83
    %p85 = scmp.ne.s32.totalorder %s71, %s72
    %p86 = scmp.eq.s32.totalorder %s15, 1
    %p87 = por %p85, %p86
    %p89 = scmp.ne.s32.totalorder %s72, %s88
    %p90 = scmp.eq.s32.totalorder %s15, 0
    %p91 = por %p89, %p90
    %s92 = ssub.s32 %s17, %s31
    %p93 = scmp.eq.s32.totalorder %s92, 0
    %s95 = sadd.s32 %s94, 1
    %s96 = scalar_select %p93, %s94, %s95
    %p99 = pneg %p93
    %p100 = scmp.eq.s32.totalorder %s9, 1
    %p101 = por %p99, %p100
    %p102 = scmp.ne.s32.totalorder %s94, %s97
    %p103 = scmp.eq.s32.totalorder %s9, 0
    %p104 = por %p102, %p103
    %p105 = scmp.ne.s32.totalorder %s94, %s97
    %p106 = scmp.eq.s32.totalorder %s14, 1
    %p107 = por %p105, %p106
    %p108 = scmp.ne.s32.totalorder %s97, %s98
    %p109 = scmp.eq.s32.totalorder %s14, 0
    %p110 = por %p108, %p109
    %p111 = scmp.ne.s32.totalorder %s97, %s98
    %p112 = scmp.eq.s32.totalorder %s15, 1
    %p113 = por %p111, %p112
    %p115 = scmp.ne.s32.totalorder %s98, %s114
    %p116 = scmp.eq.s32.totalorder %s15, 0
    %p117 = por %p115, %p116
    %s118 = ssub.s32 %s16, %s35
    %s119 = ssub.s32 %s17, %s31
    %s120 = sor.u32 %s118, %s119
    %p121 = scmp.eq.s32.totalorder %s120, 0
    %s123 = sadd.s32 %s122, 1
    %s124 = scalar_select %p121, %s122, %s123
    %p127 = pneg %p121
    %p128 = scmp.eq.s32.totalorder %s9, 1
    %p129 = por %p127, %p128
    %p130 = scmp.ne.s32.totalorder %s122, %s125
    %p131 = scmp.eq.s32.totalorder %s9, 0
    %p132 = por %p130, %p131
    %p133 = scmp.ne.s32.totalorder %s122, %s125
    %p134 = scmp.eq.s32.totalorder %s14, 1
    %p135 = por %p133, %p134
    %p136 = scmp.ne.s32.totalorder %s125, %s126
    %p137 = scmp.eq.s32.totalorder %s14, 0
    %p138 = por %p136, %p137
    %p139 = scmp.ne.s32.totalorder %s125, %s126
    %p140 = scmp.eq.s32.totalorder %s15, 1
    %p141 = por %p139, %p140
    %p143 = scmp.ne.s32.totalorder %s126, %s142
    %p144 = scmp.eq.s32.totalorder %s15, 0
    %p145 = por %p143, %p144
    %p146 = scmp.le.s32.totalorder 1, %s9
    %p147 = scmp.lt.s32.totalorder %s9, 3
    %p148 = pnand %p146, %p147
    %p149 = pneg %p148
    // Predicated region
    $region9: #{inpaint_generator_forward.17} parent=5 // pred_check
      _
    $region10: #{inpaint_generator_forward.17} parent=5 // pred_check_branch
      %151 = sbr.rel (%p148) target = $region12
    $region11: #{inpaint_generator_forward.17} parent=5 // pred_region
      %s152 = ssub.s32 %s9, 1
      // Predicated region
      $region13: #{inpaint_generator_forward.17} parent=11 // pred_check
        %p153 = pneg %p84
      $region14: #{inpaint_generator_forward.17} parent=11 // pred_check_branch
        %155 = sbr.rel (%p153) target = $region16
      $region15: #{inpaint_generator_forward.17} parent=11 // pred_region
        %s156 = smul.u32 16, %s21
        %p157 = scmp.lt.s32.totalorder %s156, 15
        %s158 = scalar_select %p157, %s156, 15
        %p159 = scmp.lt.s32.totalorder %s20, 0
        %s160 = scalar_select %p159, %s20, 0
        %s161 = sadd.s32 %s160, %s158
        %s162 = smul.addr %s161, 4
        %s163 = scalar_lea.vmem %s1, %s162
        %s164 = smul.u32 16, %s21
      $region16: #{inpaint_generator_forward.17} parent=11 // pred_fallthru
        _
      // Predicated region
      $region17: #{inpaint_generator_forward.17} parent=11 // pred_check
        %p165 = pneg %p110
      $region18: #{inpaint_generator_forward.17} parent=11 // pred_check_branch
        %167 = sbr.rel (%p165) target = $region20
      $region19: #{inpaint_generator_forward.17} parent=11 // pred_region
        %p168 = scmp.lt.s32.totalorder %s20, 0
        %s169 = scalar_select %p168, %s20, 0
        %s170 = scalar_lea.vmem %s2, %s169
      $region20: #{inpaint_generator_forward.17} parent=11 // pred_fallthru
        _
    $region12: #{inpaint_generator_forward.17} parent=5 // pred_fallthru
      _
    %p171 = scmp.lt.s32.totalorder %s9, 2
    // Predicated region
    $region21: #{inpaint_generator_forward.17} parent=5 // pred_check
      %p172 = pneg %p171
    $region22: #{inpaint_generator_forward.17} parent=5 // pred_check_branch
      %174 = sbr.rel (%p172) target = $region24
    $region23: #{inpaint_generator_forward.17} parent=5 // pred_region
      // Predicated region
      $region25: #{inpaint_generator_forward.17} parent=23 // pred_check
        %p175 = pneg %p50
      $region26: #{inpaint_generator_forward.17} parent=23 // pred_check_branch
        %177 = sbr.rel (%p175) target = $region28
      $region27: #{inpaint_generator_forward.17} parent=23 // pred_region
        %s178 = smul.u32 16, %s16
        %p179 = scmp.lt.s32.totalorder %s178, 31
        %s180 = scalar_select %p179, %s178, 31
        %p181 = scmp.lt.s32.totalorder %s18, 0
        %s182 = scalar_select %p181, %s18, 0
        %s183 = sadd.s32 %s182, %s180
        %s184 = smul.addr %s183, 4
        %s185 = scalar_lea.vmem %s0, %s184
        %s186 = smul.u32 16, %s16
      $region28: #{inpaint_generator_forward.17} parent=23 // pred_fallthru
        _
    $region24: #{inpaint_generator_forward.17} parent=5 // pred_fallthru
      _
    %p187 = scmp.le.s32.totalorder 1, %s9
    %p188 = scmp.lt.s32.totalorder %s9, 3
    %p189 = pnand %p187, %p188
    %p190 = pneg %p189
    // Predicated region
    $region29: #{inpaint_generator_forward.17} parent=5 // pred_check
      _
    $region30: #{inpaint_generator_forward.17} parent=5 // pred_check_branch
      %192 = sbr.rel (%p189) target = $region32
    $region31: #{inpaint_generator_forward.17} parent=5 // pred_region
      %s193 = ssub.s32 %s9, 1
      %s194 = smul.u32 16, %s19
      %p195 = scmp.lt.s32.totalorder %s194, 31
      %s196 = scalar_select %p195, %s194, 31
      %p197 = scmp.lt.s32.totalorder %s21, 0
      %s198 = scalar_select %p197, %s21, 0
      %s199 = sadd.s32 %s198, %s196
      %s200 = smul.addr %s199, 4
      %s201 = scalar_lea.vmem %s0, %s200
      %p202 = pneg %p56
      %p203 = pneg %p53
      %s204 = smul.u32 16, %s21
      %p205 = scmp.lt.s32.totalorder %s204, 15
      %s206 = scalar_select %p205, %s204, 15
      %p207 = scmp.lt.s32.totalorder %s20, 0
      %s208 = scalar_select %p207, %s20, 0
      %s209 = sadd.s32 %s208, %s206
      %s210 = smul.addr %s209, 4
      %s211 = scalar_lea.vmem %s1, %s210
      %p212 = pneg %p84
      %p213 = pneg %p81
      %p214 = scmp.lt.s32.totalorder %s20, 0
      %s215 = scalar_select %p214, %s20, 0
      %s216 = scalar_lea.vmem %s2, %s215
      %p217 = pneg %p110
      %p218 = pneg %p107
      %p219 = pneg %p138
      %p220 = pneg %p135
      %s221 = smul.u32 16, %s19
      %p222 = scmp.lt.s32.totalorder %s221, 31
      %s223 = scalar_select %p222, %s221, 31
      %p224 = scmp.lt.s32.totalorder %s20, 0
      %s225 = scalar_select %p224, %s20, 0
      %s226 = sadd.s32 %s225, %s223
      %s227 = smul.addr %s226, 4
      %s228 = scalar_lea.vmem %s3, %s227
      %s229 = smul.u32 16, %s19
      %p230 = scmp.lt.s32.totalorder %s229, 31
      %s231 = scalar_select %p230, %s229, 31
      %p232 = scmp.lt.s32.totalorder %s21, 0
      %s233 = scalar_select %p232, %s21, 0
      %s234 = sadd.s32 %s233, %s231
      %s235 = smul.addr %s234, 4
      %s236 = scalar_lea.vmem %s0, %s235
      %s237 = smul.u32 16, %s19
      %s238 = smul.u32 16, %s21
      %p239 = scmp.lt.s32.totalorder %s238, 15
      %s240 = scalar_select %p239, %s238, 15
      %p241 = scmp.lt.s32.totalorder %s20, 0
      %s242 = scalar_select %p241, %s20, 0
      %s243 = sadd.s32 %s242, %s240
      %s244 = smul.addr %s243, 4
      %s245 = scalar_lea.vmem %s1, %s244
      %s246 = smul.u32 16, %s21
      %p247 = scmp.lt.s32.totalorder %s20, 0
      %s248 = scalar_select %p247, %s20, 0
      %s249 = scalar_lea.vmem %s2, %s248
      %s250 = smul.u32 16, %s19
      %p251 = scmp.lt.s32.totalorder %s250, 31
      %s252 = scalar_select %p251, %s250, 31
      %p253 = scmp.lt.s32.totalorder %s20, 0
      %s254 = scalar_select %p253, %s20, 0
      %s255 = sadd.s32 %s254, %s252
      %s256 = smul.addr %s255, 4
      %s257 = scalar_lea.vmem %s3, %s256
      %s258 = smul.u32 16, %s19
      %p260 = scmp.eq.s32.totalorder %s21, 0
      // Predicated region
      $region33: #{inpaint_generator_forward.17} parent=31 // pred_check
        %p261 = pneg %p260
      $region34: #{inpaint_generator_forward.17} parent=31 // pred_check_branch
        %263 = sbr.rel (%p261) target = $region36
      $region35: #{inpaint_generator_forward.17} parent=31 // pred_region
        %v264 = vld [vmem:[%s249] sm:$0x1]
        %v266 = vlaneseq
        %v267 = vshrl.u32 %v266, 7
        %v268 = vsub.s32 0, %v267
        %v269 = vrot.slane %v264, %v268
        %271 = vst [vmem:[#allocation2] sm:$0xff] %v269
        %272 = vst [vmem:[#allocation2 + $0x8] sm:$0xff] %v269
        %273 = vst [vmem:[#allocation2 + $0x10] sm:$0xff] %v269
        %274 = vst [vmem:[#allocation2 + $0x18] sm:$0xff] %v269
        %275 = vst [vmem:[#allocation2 + $0x20] sm:$0xff] %v269
        %276 = vst [vmem:[#allocation2 + $0x28] sm:$0xff] %v269
        %277 = vst [vmem:[#allocation2 + $0x30] sm:$0xff] %v269
        %278 = vst [vmem:[#allocation2 + $0x38] sm:$0xff] %v269
        %279 = vst [vmem:[#allocation2 + $0x40] sm:$0xff] %v269
        %280 = vst [vmem:[#allocation2 + $0x48] sm:$0xff] %v269
        %281 = vst [vmem:[#allocation2 + $0x50] sm:$0xff] %v269
        %282 = vst [vmem:[#allocation2 + $0x58] sm:$0xff] %v269
        %283 = vst [vmem:[#allocation2 + $0x60] sm:$0xff] %v269
        %284 = vst [vmem:[#allocation2 + $0x68] sm:$0xff] %v269
        %285 = vst [vmem:[#allocation2 + $0x70] sm:$0xff] %v269
        %286 = vst [vmem:[#allocation2 + $0x78] sm:$0xff] %v269
      $region36: #{inpaint_generator_forward.17} parent=31 // pred_fallthru
        _
      %v287 = vld [vmem:[#allocation2] sm:$0xff]
      %v288 = vld [vmem:[#allocation2 + $0x8] sm:$0xff]
      %v289 = vld [vmem:[#allocation2 + $0x10] sm:$0xff]
      %v290 = vld [vmem:[#allocation2 + $0x18] sm:$0xff]
      %v291 = vld [vmem:[#allocation2 + $0x20] sm:$0xff]
      %v292 = vld [vmem:[#allocation2 + $0x28] sm:$0xff]
      %v293 = vld [vmem:[#allocation2 + $0x30] sm:$0xff]
      %v294 = vld [vmem:[#allocation2 + $0x38] sm:$0xff]
      %v295 = vld [vmem:[#allocation2 + $0x40] sm:$0xff]
      %v296 = vld [vmem:[#allocation2 + $0x48] sm:$0xff]
      %v297 = vld [vmem:[#allocation2 + $0x50] sm:$0xff]
      %v298 = vld [vmem:[#allocation2 + $0x58] sm:$0xff]
      %v299 = vld [vmem:[#allocation2 + $0x60] sm:$0xff]
      %v300 = vld [vmem:[#allocation2 + $0x68] sm:$0xff]
      %v301 = vld [vmem:[#allocation2 + $0x70] sm:$0xff]
      %v302 = vld [vmem:[#allocation2 + $0x78] sm:$0xff]
      %v303 = vld [vmem:[%s236] sm:$0xf]
      %v304 = vld [vmem:[%s236 + $0x4] sm:$0xf]
      %v305 = vld [vmem:[%s236 + $0x8] sm:$0xf]
      %v306 = vld [vmem:[%s236 + $0xc] sm:$0xf]
      %v307 = vld [vmem:[%s236 + $0x10] sm:$0xf]
      %v308 = vld [vmem:[%s236 + $0x14] sm:$0xf]
      %v309 = vld [vmem:[%s236 + $0x18] sm:$0xf]
      %v310 = vld [vmem:[%s236 + $0x1c] sm:$0xf]
      %v311 = vld [vmem:[%s236 + $0x20] sm:$0xf]
      %v312 = vld [vmem:[%s236 + $0x24] sm:$0xf]
      %v313 = vld [vmem:[%s236 + $0x28] sm:$0xf]
      %v314 = vld [vmem:[%s236 + $0x2c] sm:$0xf]
      %v315 = vld [vmem:[%s236 + $0x30] sm:$0xf]
      %v316 = vld [vmem:[%s236 + $0x34] sm:$0xf]
      %v317 = vld [vmem:[%s236 + $0x38] sm:$0xf]
      %v318 = vld [vmem:[%s236 + $0x3c] sm:$0xf]
      %v319 = vld [vmem:[%s245] sm:$0xf]
      %v320 = vld [vmem:[%s245 + $0x4] sm:$0xf]
      %v321 = vld [vmem:[%s245 + $0x8] sm:$0xf]
      %v322 = vld [vmem:[%s245 + $0xc] sm:$0xf]
      %v323 = vld [vmem:[%s245 + $0x10] sm:$0xf]
      %v324 = vld [vmem:[%s245 + $0x14] sm:$0xf]
      %v325 = vld [vmem:[%s245 + $0x18] sm:$0xf]
      %v326 = vld [vmem:[%s245 + $0x1c] sm:$0xf]
      %v327 = vld [vmem:[%s245 + $0x20] sm:$0xf]
      %v328 = vld [vmem:[%s245 + $0x24] sm:$0xf]
      %v329 = vld [vmem:[%s245 + $0x28] sm:$0xf]
      %v330 = vld [vmem:[%s245 + $0x2c] sm:$0xf]
      %v331 = vld [vmem:[%s245 + $0x30] sm:$0xf]
      %v332 = vld [vmem:[%s245 + $0x34] sm:$0xf]
      %v333 = vld [vmem:[%s245 + $0x38] sm:$0xf]
      %v334 = vld [vmem:[%s245 + $0x3c] sm:$0xf]
      %v351 = vunpack.c.l.b16 %v303
      %v352 = vunpack.c.l.b16 %v304
      %v353 = vunpack.c.l.b16 %v305
      %v354 = vunpack.c.l.b16 %v306
      %v355 = vunpack.c.l.b16 %v307
      %v356 = vunpack.c.l.b16 %v308
      %v357 = vunpack.c.l.b16 %v309
      %v358 = vunpack.c.l.b16 %v310
      %v359 = vunpack.c.l.b16 %v311
      %v360 = vunpack.c.l.b16 %v312
      %v361 = vunpack.c.l.b16 %v313
      %v362 = vunpack.c.l.b16 %v314
      %v363 = vunpack.c.l.b16 %v315
      %v364 = vunpack.c.l.b16 %v316
      %v365 = vunpack.c.l.b16 %v317
      %v366 = vunpack.c.l.b16 %v318
      %v367 = vpack.c.b16 %v352, %v351
      %v368 = vpack.c.b16 %v354, %v353
      %v369 = vpack.c.b16 %v356, %v355
      %v370 = vpack.c.b16 %v358, %v357
      %v371 = vpack.c.b16 %v360, %v359
      %v372 = vpack.c.b16 %v362, %v361
      %v373 = vpack.c.b16 %v364, %v363
      %v374 = vpack.c.b16 %v366, %v365
      %v399 = vunpack.c.l.b16 %v319
      %v400 = vunpack.c.l.b16 %v320
      %v401 = vunpack.c.l.b16 %v321
      %v402 = vunpack.c.l.b16 %v322
      %v403 = vunpack.c.l.b16 %v323
      %v404 = vunpack.c.l.b16 %v324
      %v405 = vunpack.c.l.b16 %v325
      %v406 = vunpack.c.l.b16 %v326
      %v407 = vunpack.c.l.b16 %v327
      %v408 = vunpack.c.l.b16 %v328
      %v409 = vunpack.c.l.b16 %v329
      %v410 = vunpack.c.l.b16 %v330
      %v411 = vunpack.c.l.b16 %v331
      %v412 = vunpack.c.l.b16 %v332
      %v413 = vunpack.c.l.b16 %v333
      %v414 = vunpack.c.l.b16 %v334
      %v415 = vpack.c.b16 %v400, %v399
      %v416 = vpack.c.b16 %v402, %v401
      %v417 = vpack.c.b16 %v404, %v403
      %v418 = vpack.c.b16 %v406, %v405
      %v419 = vpack.c.b16 %v408, %v407
      %v420 = vpack.c.b16 %v410, %v409
      %v421 = vpack.c.b16 %v412, %v411
      %v422 = vpack.c.b16 %v414, %v413
      %431 = vmatprep.subr.bf16.mxu0 0
      %432 = vmatpush1.bf16.msra.mxu0 %v415
      %433 = vmatprep.subr.bf16.mxu0 0
      %434 = vmatpush1.bf16.msra.mxu0 %v416
      %435 = vmatprep.subr.bf16.mxu0 0
      %436 = vmatpush1.bf16.msra.mxu0 %v417
      %437 = vmatprep.subr.bf16.mxu0 0
      %438 = vmatpush1.bf16.msra.mxu0 %v418
      %439 = vmatprep.subr.bf16.mxu0 0
      %440 = vmatpush1.bf16.msra.mxu0 %v419
      %441 = vmatprep.subr.bf16.mxu0 0
      %442 = vmatpush1.bf16.msra.mxu0 %v420
      %443 = vmatprep.subr.bf16.mxu0 0
      %444 = vmatpush1.bf16.msra.mxu0 %v421
      %445 = vmatprep.subr.bf16.mxu0 0
      %446 = vmatpush1.bf16.msra.mxu0 %v422
      %447 = vmatprep.subr.bf16.mxu0 0
      %448 = vmatpush1.bf16.msra.mxu0 0
      %449 = vmatprep.subr.bf16.mxu0 0
      %450 = vmatpush1.bf16.msra.mxu0 0
      %451 = vmatprep.subr.bf16.mxu0 0
      %452 = vmatpush1.bf16.msra.mxu0 0
      %453 = vmatprep.subr.bf16.mxu0 0
      %454 = vmatpush1.bf16.msra.mxu0 0
      %455 = vmatprep.subr.bf16.mxu0 0
      %456 = vmatpush1.bf16.msra.mxu0 0
      %457 = vmatprep.subr.bf16.mxu0 0
      %458 = vmatpush1.bf16.msra.mxu0 0
      %459 = vmatprep.subr.bf16.mxu0 0
      %460 = vmatpush1.bf16.msra.mxu0 0
      %461 = vmatprep.subr.bf16.mxu0 0
      %462 = vmatpush1.bf16.msra.mxu0 0
      %463 = vmatprep.mubr.bf16.mxu0 0
      %464 = vmatmul.mubr.bf16.gmra.mrb[0].mxu0 %v367
      %v465 = vpop.f32.mrb[0].mxu0
      %v466 = vadd.f32 0.0, %v465
      %v467 = vpop.f32.mrb[0].mxu0
      %v468 = vpop.f32.mrb[0].mxu0
      %v469 = vadd.f32 0.0, %v468
      %v470 = vpop.f32.mrb[0].mxu0
      %471 = vmatprep.mubr.bf16.mxu0 0
      %472 = vmatmul.mubr.bf16.gmra.mrb[0].mxu0 %v368
      %v473 = vpop.f32.mrb[0].mxu0
      %v474 = vadd.f32 0.0, %v473
      %v475 = vpop.f32.mrb[0].mxu0
      %v476 = vpop.f32.mrb[0].mxu0
      %v477 = vadd.f32 0.0, %v476
      %v478 = vpop.f32.mrb[0].mxu0
      %479 = vmatprep.mubr.bf16.mxu0 0
      %480 = vmatmul.mubr.bf16.gmra.mrb[0].mxu0 %v369
      %v481 = vpop.f32.mrb[0].mxu0
      %v482 = vadd.f32 0.0, %v481
      %v483 = vpop.f32.mrb[0].mxu0
      %v484 = vpop.f32.mrb[0].mxu0
      %v485 = vadd.f32 0.0, %v484
      %v486 = vpop.f32.mrb[0].mxu0
      %487 = vmatprep.mubr.bf16.mxu0 0
      %488 = vmatmul.mubr.bf16.gmra.mrb[0].mxu0 %v370
      %v489 = vpop.f32.mrb[0].mxu0
      %v490 = vadd.f32 0.0, %v489
      %v491 = vpop.f32.mrb[0].mxu0
      %v492 = vpop.f32.mrb[0].mxu0
      %v493 = vadd.f32 0.0, %v492
      %v494 = vpop.f32.mrb[0].mxu0
      %495 = vmatprep.mubr.bf16.mxu0 0
      %496 = vmatmul.mubr.bf16.gmra.mrb[0].mxu0 %v371
      %v497 = vpop.f32.mrb[0].mxu0
      %v498 = vadd.f32 0.0, %v497
      %v499 = vpop.f32.mrb[0].mxu0
      %v500 = vpop.f32.mrb[0].mxu0
      %v501 = vadd.f32 0.0, %v500
      %v502 = vpop.f32.mrb[0].mxu0
      %503 = vmatprep.mubr.bf16.mxu0 0
      %504 = vmatmul.mubr.bf16.gmra.mrb[0].mxu0 %v372
      %v505 = vpop.f32.mrb[0].mxu0
      %v506 = vadd.f32 0.0, %v505
      %v507 = vpop.f32.mrb[0].mxu0
      %v508 = vpop.f32.mrb[0].mxu0
      %v509 = vadd.f32 0.0, %v508
      %v510 = vpop.f32.mrb[0].mxu0
      %511 = vmatprep.mubr.bf16.mxu0 0
      %512 = vmatmul.mubr.bf16.gmra.mrb[0].mxu0 %v373
      %v513 = vpop.f32.mrb[0].mxu0
      %v514 = vadd.f32 0.0, %v513
      %v515 = vpop.f32.mrb[0].mxu0
      %v516 = vpop.f32.mrb[0].mxu0
      %v517 = vadd.f32 0.0, %v516
      %v518 = vpop.f32.mrb[0].mxu0
      %519 = vmatprep.mubr.bf16.mxu0 0
      %520 = vmatmul.mubr.bf16.gmra.mrb[0].mxu0 %v374
      %v521 = vpop.f32.mrb[0].mxu0
      %v522 = vadd.f32 0.0, %v521
      %v523 = vpop.f32.mrb[0].mxu0
      %v524 = vpop.f32.mrb[0].mxu0
      %v525 = vadd.f32 0.0, %v524
      %v526 = vpop.f32.mrb[0].mxu0
      %527 = vdwg.mxu0
      %v528 = vadd.f32 %v287, %v466
      %v529 = vadd.f32 %v288, %v469
      %v530 = vadd.f32 %v289, %v474
      %v531 = vadd.f32 %v290, %v477
      %v532 = vadd.f32 %v291, %v482
      %v533 = vadd.f32 %v292, %v485
      %v534 = vadd.f32 %v293, %v490
      %v535 = vadd.f32 %v294, %v493
      %v536 = vadd.f32 %v295, %v498
      %v537 = vadd.f32 %v296, %v501
      %v538 = vadd.f32 %v297, %v506
      %v539 = vadd.f32 %v298, %v509
      %v540 = vadd.f32 %v299, %v514
      %v541 = vadd.f32 %v300, %v517
      %v542 = vadd.f32 %v301, %v522
      %v543 = vadd.f32 %v302, %v525
      %544 = vst [vmem:[#allocation2] sm:$0xff] %v528
      %545 = vst [vmem:[#allocation2 + $0x8] sm:$0xff] %v529
      %546 = vst [vmem:[#allocation2 + $0x10] sm:$0xff] %v530
      %547 = vst [vmem:[#allocation2 + $0x18] sm:$0xff] %v531
      %548 = vst [vmem:[#allocation2 + $0x20] sm:$0xff] %v532
      %549 = vst [vmem:[#allocation2 + $0x28] sm:$0xff] %v533
      %550 = vst [vmem:[#allocation2 + $0x30] sm:$0xff] %v534
      %551 = vst [vmem:[#allocation2 + $0x38] sm:$0xff] %v535
      %552 = vst [vmem:[#allocation2 + $0x40] sm:$0xff] %v536
      %553 = vst [vmem:[#allocation2 + $0x48] sm:$0xff] %v537
      %554 = vst [vmem:[#allocation2 + $0x50] sm:$0xff] %v538
      %555 = vst [vmem:[#allocation2 + $0x58] sm:$0xff] %v539
      %556 = vst [vmem:[#allocation2 + $0x60] sm:$0xff] %v540
      %557 = vst [vmem:[#allocation2 + $0x68] sm:$0xff] %v541
      %558 = vst [vmem:[#allocation2 + $0x70] sm:$0xff] %v542
      %559 = vst [vmem:[#allocation2 + $0x78] sm:$0xff] %v543
      // Predicated region
      $region37: #{inpaint_generator_forward.17} parent=31 // pred_check
        %p560 = pneg %p260
      $region38: #{inpaint_generator_forward.17} parent=31 // pred_check_branch
        %562 = sbr.rel (%p560) target = $region40
      $region39: #{inpaint_generator_forward.17} parent=31 // pred_region
        %v563 = vld [vmem:[#allocation2] sm:$0xff]
        %v564 = vld [vmem:[#allocation2 + $0x8] sm:$0xff]
        %v565 = vld [vmem:[#allocation2 + $0x10] sm:$0xff]
        %v566 = vld [vmem:[#allocation2 + $0x18] sm:$0xff]
        %v567 = vld [vmem:[#allocation2 + $0x20] sm:$0xff]
        %v568 = vld [vmem:[#allocation2 + $0x28] sm:$0xff]
        %v569 = vld [vmem:[#allocation2 + $0x30] sm:$0xff]
        %v570 = vld [vmem:[#allocation2 + $0x38] sm:$0xff]
        %v571 = vld [vmem:[#allocation2 + $0x40] sm:$0xff]
        %v572 = vld [vmem:[#allocation2 + $0x48] sm:$0xff]
        %v573 = vld [vmem:[#allocation2 + $0x50] sm:$0xff]
        %v574 = vld [vmem:[#allocation2 + $0x58] sm:$0xff]
        %v575 = vld [vmem:[#allocation2 + $0x60] sm:$0xff]
        %v576 = vld [vmem:[#allocation2 + $0x68] sm:$0xff]
        %v577 = vld [vmem:[#allocation2 + $0x70] sm:$0xff]
        %v578 = vld [vmem:[#allocation2 + $0x78] sm:$0xff]
        %vm579 = vcmp.ge.f32.partialorder %v563, 0.0
        %vm580 = vcmp.ge.f32.partialorder %v564, 0.0
        %vm581 = vcmp.ge.f32.partialorder %v565, 0.0
        %vm582 = vcmp.ge.f32.partialorder %v566, 0.0
        %vm583 = vcmp.ge.f32.partialorder %v567, 0.0
        %vm584 = vcmp.ge.f32.partialorder %v568, 0.0
        %vm585 = vcmp.ge.f32.partialorder %v569, 0.0
        %vm586 = vcmp.ge.f32.partialorder %v570, 0.0
        %vm587 = vcmp.ge.f32.partialorder %v571, 0.0
        %vm588 = vcmp.ge.f32.partialorder %v572, 0.0
        %vm589 = vcmp.ge.f32.partialorder %v573, 0.0
        %vm590 = vcmp.ge.f32.partialorder %v574, 0.0
        %vm591 = vcmp.ge.f32.partialorder %v575, 0.0
        %vm592 = vcmp.ge.f32.partialorder %v576, 0.0
        %vm593 = vcmp.ge.f32.partialorder %v577, 0.0
        %vm594 = vcmp.ge.f32.partialorder %v578, 0.0
        %v595 = vmul.f32 %v563, 0.2
        %v596 = vmul.f32 %v564, 0.2
        %v597 = vmul.f32 %v565, 0.2
        %v598 = vmul.f32 %v566, 0.2
        %v599 = vmul.f32 %v567, 0.2
        %v600 = vmul.f32 %v568, 0.2
        %v601 = vmul.f32 %v569, 0.2
        %v602 = vmul.f32 %v570, 0.2
        %v603 = vmul.f32 %v571, 0.2
        %v604 = vmul.f32 %v572, 0.2
        %v605 = vmul.f32 %v573, 0.2
        %v606 = vmul.f32 %v574, 0.2
        %v607 = vmul.f32 %v575, 0.2
        %v608 = vmul.f32 %v576, 0.2
        %v609 = vmul.f32 %v577, 0.2
        %v610 = vmul.f32 %v578, 0.2
        %v611 = vsel %vm579, %v563, %v595
        %v612 = vsel %vm580, %v564, %v596
        %v613 = vsel %vm581, %v565, %v597
        %v614 = vsel %vm582, %v566, %v598
        %v615 = vsel %vm583, %v567, %v599
        %v616 = vsel %vm584, %v568, %v600
        %v617 = vsel %vm585, %v569, %v601
        %v618 = vsel %vm586, %v570, %v602
        %v619 = vsel %vm587, %v571, %v603
        %v620 = vsel %vm588, %v572, %v604
        %v621 = vsel %vm589, %v573, %v605
        %v622 = vsel %vm590, %v574, %v606
        %v623 = vsel %vm591, %v575, %v607
        %v624 = vsel %vm592, %v576, %v608
        %v625 = vsel %vm593, %v577, %v609
        %v626 = vsel %vm594, %v578, %v610
        %v627 = vpack.c.bf16 %v612, %v611
        %v628 = vpack.c.bf16 %v614, %v613
        %v629 = vpack.c.bf16 %v616, %v615
        %v630 = vpack.c.bf16 %v618, %v617
        %v631 = vpack.c.bf16 %v620, %v619
        %v632 = vpack.c.bf16 %v622, %v621
        %v633 = vpack.c.bf16 %v624, %v623
        %v634 = vpack.c.bf16 %v626, %v625
        %v643 = vunpack.c.l.b16 %v627
        %v644 = vunpack.c.h.b16 %v627
        %v645 = vunpack.c.l.b16 %v628
        %v646 = vunpack.c.h.b16 %v628
        %v647 = vunpack.c.l.b16 %v629
        %v648 = vunpack.c.h.b16 %v629
        %v649 = vunpack.c.l.b16 %v630
        %v650 = vunpack.c.h.b16 %v630
        %v651 = vunpack.c.l.b16 %v631
        %v652 = vunpack.c.h.b16 %v631
        %v653 = vunpack.c.l.b16 %v632
        %v654 = vunpack.c.h.b16 %v632
        %v655 = vunpack.c.l.b16 %v633
        %v656 = vunpack.c.h.b16 %v633
        %v657 = vunpack.c.l.b16 %v634
        %v658 = vunpack.c.h.b16 %v634
        %v659 = vpack.c.b16 %v643, %v643
        %v660 = vpack.c.b16 %v644, %v644
        %v661 = vpack.c.b16 %v645, %v645
        %v662 = vpack.c.b16 %v646, %v646
        %v663 = vpack.c.b16 %v647, %v647
        %v664 = vpack.c.b16 %v648, %v648
        %v665 = vpack.c.b16 %v649, %v649
        %v666 = vpack.c.b16 %v650, %v650
        %v667 = vpack.c.b16 %v651, %v651
        %v668 = vpack.c.b16 %v652, %v652
        %v669 = vpack.c.b16 %v653, %v653
        %v670 = vpack.c.b16 %v654, %v654
        %v671 = vpack.c.b16 %v655, %v655
        %v672 = vpack.c.b16 %v656, %v656
        %v673 = vpack.c.b16 %v657, %v657
        %v674 = vpack.c.b16 %v658, %v658
        %691 = vst [vmem:[%s257] sm:$0xf] %v659
        %692 = vst [vmem:[%s257 + $0x4] sm:$0xf] %v660
        %693 = vst [vmem:[%s257 + $0x8] sm:$0xf] %v661
        %694 = vst [vmem:[%s257 + $0xc] sm:$0xf] %v662
        %695 = vst [vmem:[%s257 + $0x10] sm:$0xf] %v663
        %696 = vst [vmem:[%s257 + $0x14] sm:$0xf] %v664
        %697 = vst [vmem:[%s257 + $0x18] sm:$0xf] %v665
        %698 = vst [vmem:[%s257 + $0x1c] sm:$0xf] %v666
        %699 = vst [vmem:[%s257 + $0x20] sm:$0xf] %v667
        %700 = vst [vmem:[%s257 + $0x24] sm:$0xf] %v668
        %701 = vst [vmem:[%s257 + $0x28] sm:$0xf] %v669
        %702 = vst [vmem:[%s257 + $0x2c] sm:$0xf] %v670
        %703 = vst [vmem:[%s257 + $0x30] sm:$0xf] %v671
        %704 = vst [vmem:[%s257 + $0x34] sm:$0xf] %v672
        %705 = vst [vmem:[%s257 + $0x38] sm:$0xf] %v673
        %706 = vst [vmem:[%s257 + $0x3c] sm:$0xf] %v674
      $region40: #{inpaint_generator_forward.17} parent=31 // pred_fallthru
        _
      %s707 = smul.u32 16, %s19
      %p708 = scmp.lt.s32.totalorder %s707, 31
      %s709 = scalar_select %p708, %s707, 31
      %p710 = scmp.lt.s32.totalorder %s20, 0
      %s711 = scalar_select %p710, %s20, 0
      %s712 = sadd.s32 %s711, %s709
      %s713 = smul.addr %s712, 4
      %s714 = scalar_lea.vmem %s3, %s713
      // Predicated region
      $region41: #{inpaint_generator_forward.17} parent=31 // pred_check
        %p715 = pneg %p135
      $region42: #{inpaint_generator_forward.17} parent=31 // pred_check_branch
        %717 = sbr.rel (%p715) target = $region44
      $region43: #{inpaint_generator_forward.17} parent=31 // pred_region
        %s718 = smul.u32 16, %s19
      $region44: #{inpaint_generator_forward.17} parent=31 // pred_fallthru
        _
    $region32: #{inpaint_generator_forward.17} parent=5 // pred_fallthru
      _
    %p719 = scmp.le.s32.totalorder 2, %s9
    // Predicated region
    $region45: #{inpaint_generator_forward.17} parent=5 // pred_check
      %p720 = pneg %p719
    $region46: #{inpaint_generator_forward.17} parent=5 // pred_check_branch
      %722 = sbr.rel (%p720) target = $region48
    $region47: #{inpaint_generator_forward.17} parent=5 // pred_region
      %s723 = ssub.s32 %s9, 2
      // Predicated region
      $region49: #{inpaint_generator_forward.17} parent=47 // pred_check
        %p724 = pneg %p141
      $region50: #{inpaint_generator_forward.17} parent=47 // pred_check_branch
        %726 = sbr.rel (%p724) target = $region52
      $region51: #{inpaint_generator_forward.17} parent=47 // pred_region
        %s727 = smul.u32 16, %s22
        %p728 = scmp.lt.s32.totalorder %s727, 31
        %s729 = scalar_select %p728, %s727, 31
        %p730 = scmp.lt.s32.totalorder %s23, 0
        %s731 = scalar_select %p730, %s23, 0
        %s732 = sadd.s32 %s731, %s729
        %s733 = smul.addr %s732, 4
        %s734 = scalar_lea.vmem %s3, %s733
      $region52: #{inpaint_generator_forward.17} parent=47 // pred_fallthru
        _
    $region48: #{inpaint_generator_forward.17} parent=5 // pred_fallthru
      _
  $region6: #{inpaint_generator_forward.17} parent=0 // loop_footer
    %s13 = sadd.s32 1, %s9
  $region7: #{inpaint_generator_forward.17} parent=0 // loop_footer_branch
    %8 = sbr.rel target = $region3
  $region8: #{inpaint_generator_forward.17} parent=0 // loop_exit
    _

// kernel: inpaint_generator_forward.18
$region0: #{inpaint_generator_forward.18}
  #allocation0 [shape = 'u32[]', space=smem, size = 0x4, offset = 0x4, fixed_abs, tag = 'smem constant byte address 0x4 - core index']
  #allocation1 [shape = 'u32[144,128]{1,0:T(1,128)}', space=vmem, size = 0x12000, scoped, tag = 'internal scratch']
  #allocation2 [shape = 'f32[128,128]{1,0:T(8,128)}', space=vmem, size = 0x10000, scoped, tag = 'scratch operand']
  %s0 = inlined_call_operand.vmem [shape: bf16[256,1152], index: 0, kind: input, shape index: {}]
  %s1 = inlined_call_operand.vmem [shape: bf16[1152,128], index: 1, kind: input, shape index: {}]
  %s2 = inlined_call_operand.vmem [shape: f32[1,128], index: 2, kind: input, shape index: {}]
  %s3 = inlined_call_operand.vmem [shape: bf16[256,128], index: 3, kind: output, shape index: {}]
  %s4 = sld [smem:[#allocation0]]
  $region79: #{inpaint_generator_forward.18} parent=0
    _
  %s6 = ssub.s32 1, %s4
  %s7 = scalar_select 0, %s6, %s4
  $region1: #{inpaint_generator_forward.18} parent=0
    #allocation3 [shape = 'u8[196608]{0}', space=vmem, size = 0x30000, scoped, tag = 'input window, operand 0']
    loop: start=0, step=1, limit=8
    $region2: #{inpaint_generator_forward.18} parent=1 // loop_pre_header
      _
    $region3: #{inpaint_generator_forward.18} parent=1 // loop_header
      %s9 = sphi 0, %s13
      %p10 = scmp.ge.s32.totalorder %s9, 8
      %s16 = sphi 0, %s35
      %s17 = sphi 0, %s31
      %s18 = sphi 0, %s27
      %s19 = sphi 0, %s16
      %s20 = sphi 0, %s17
      %s21 = sphi 0, %s18
      %s22 = sphi 0, %s19
      %s23 = sphi 0, %s20
      %s24 = sphi 0, %s21
      %s40 = sphi 0, %s42
      %s43 = sphi 0, %s40
      %s44 = sphi 0, %s43
      %s60 = sphi 0, %s44
      %s68 = sphi 0, %s70
      %s71 = sphi 0, %s68
      %s72 = sphi 0, %s71
      %s88 = sphi 0, %s72
      %s94 = sphi 0, %s96
      %s97 = sphi 0, %s94
      %s98 = sphi 0, %s97
      %s114 = sphi 0, %s98
      %s122 = sphi 0, %s124
      %s125 = sphi 0, %s122
      %s126 = sphi 0, %s125
      %s142 = sphi 0, %s126
    $region4: #{inpaint_generator_forward.18} parent=1 // loop_header_branch
      %12 = sbr.rel (%p10) target = $region8
    $region5: #{inpaint_generator_forward.18} parent=1 // loop_body
      %s14 = ssub.s32 %s9, 1
      %s15 = ssub.s32 %s9, 2
      %s25 = sadd.s32 1, %s18
      %p26 = scmp.ge.s32.totalorder %s25, 3
      %s27 = scalar_select %p26, 0, %s25
      %s28 = sadd.s32 1, %s17
      %s29 = scalar_select %p26, %s28, %s17
      %p30 = scmp.ge.s32.totalorder %s29, 1
      %s31 = scalar_select %p30, 0, %s29
      %s32 = sadd.s32 1, %s16
      %s33 = scalar_select %p30, %s32, %s16
      %p34 = scmp.ge.s32.totalorder %s33, 2
      %s35 = scalar_select %p34, 0, %s33
      %s36 = ssub.s32 %s16, %s35
      %s37 = ssub.s32 %s18, %s27
      %s38 = sor.u32 %s36, %s37
      %p39 = scmp.eq.s32.totalorder %s38, 0
      %s41 = sadd.s32 %s40, 1
      %s42 = scalar_select %p39, %s40, %s41
      %p45 = pneg %p39
      %p46 = scmp.eq.s32.totalorder %s9, 5
      %p47 = por %p45, %p46
      %p48 = scmp.ne.s32.totalorder %s40, %s43
      %p49 = scmp.eq.s32.totalorder %s9, 0
      %p50 = por %p48, %p49
      %p51 = scmp.ne.s32.totalorder %s40, %s43
      %p52 = scmp.eq.s32.totalorder %s14, 5
      %p53 = por %p51, %p52
      %p54 = scmp.ne.s32.totalorder %s43, %s44
      %p55 = scmp.eq.s32.totalorder %s14, 0
      %p56 = por %p54, %p55
      %p57 = scmp.ne.s32.totalorder %s43, %s44
      %p58 = scmp.eq.s32.totalorder %s15, 5
      %p59 = por %p57, %p58
      %p61 = scmp.ne.s32.totalorder %s44, %s60
      %p62 = scmp.eq.s32.totalorder %s15, 0
      %p63 = por %p61, %p62
      %s64 = ssub.s32 %s18, %s27
      %s65 = ssub.s32 %s17, %s31
      %s66 = sor.u32 %s64, %s65
      %p67 = scmp.eq.s32.totalorder %s66, 0
      %s69 = sadd.s32 %s68, 1
      %s70 = scalar_select %p67, %s68, %s69
      %p73 = pneg %p67
      %p74 = scmp.eq.s32.totalorder %s9, 5
      %p75 = por %p73, %p74
      %p76 = scmp.ne.s32.totalorder %s68, %s71
      %p77 = scmp.eq.s32.totalorder %s9, 0
      %p78 = por %p76, %p77
      %p79 = scmp.ne.s32.totalorder %s68, %s71
      %p80 = scmp.eq.s32.totalorder %s14, 5
      %p81 = por %p79, %p80
      %p82 = scmp.ne.s32.totalorder %s71, %s72
      %p83 = scmp.eq.s32.totalorder %s14, 0
      %p84 = por %p82, %p83
      %p85 = scmp.ne.s32.totalorder %s71, %s72
      %p86 = scmp.eq.s32.totalorder %s15, 5
      %p87 = por %p85, %p86
      %p89 = scmp.ne.s32.totalorder %s72, %s88
      %p90 = scmp.eq.s32.totalorder %s15, 0
      %p91 = por %p89, %p90
      %s92 = ssub.s32 %s17, %s31
      %p93 = scmp.eq.s32.totalorder %s92, 0
      %s95 = sadd.s32 %s94, 1
      %s96 = scalar_select %p93, %s94, %s95
      %p99 = pneg %p93
      %p100 = scmp.eq.s32.totalorder %s9, 5
      %p101 = por %p99, %p100
      %p102 = scmp.ne.s32.totalorder %s94, %s97
      %p103 = scmp.eq.s32.totalorder %s9, 0
      %p104 = por %p102, %p103
      %p105 = scmp.ne.s32.totalorder %s94, %s97
      %p106 = scmp.eq.s32.totalorder %s14, 5
      %p107 = por %p105, %p106
      %p108 = scmp.ne.s32.totalorder %s97, %s98
      %p109 = scmp.eq.s32.totalorder %s14, 0
      %p110 = por %p108, %p109
      %p111 = scmp.ne.s32.totalorder %s97, %s98
      %p112 = scmp.eq.s32.totalorder %s15, 5
      %p113 = por %p111, %p112
      %p115 = scmp.ne.s32.totalorder %s98, %s114
      %p116 = scmp.eq.s32.totalorder %s15, 0
      %p117 = por %p115, %p116
      %s118 = ssub.s32 %s16, %s35
      %s119 = ssub.s32 %s17, %s31
      %s120 = sor.u32 %s118, %s119
      %p121 = scmp.eq.s32.totalorder %s120, 0
      %s123 = sadd.s32 %s122, 1
      %s124 = scalar_select %p121, %s122, %s123
      %p127 = pneg %p121
      %p128 = scmp.eq.s32.totalorder %s9, 5
      %p129 = por %p127, %p128
      %p130 = scmp.ne.s32.totalorder %s122, %s125
      %p131 = scmp.eq.s32.totalorder %s9, 0
      %p132 = por %p130, %p131
      %p133 = scmp.ne.s32.totalorder %s122, %s125
      %p134 = scmp.eq.s32.totalorder %s14, 5
      %p135 = por %p133, %p134
      %p136 = scmp.ne.s32.totalorder %s125, %s126
      %p137 = scmp.eq.s32.totalorder %s14, 0
      %p138 = por %p136, %p137
      %p139 = scmp.ne.s32.totalorder %s125, %s126
      %p140 = scmp.eq.s32.totalorder %s15, 5
      %p141 = por %p139, %p140
      %p143 = scmp.ne.s32.totalorder %s126, %s142
      %p144 = scmp.eq.s32.totalorder %s15, 0
      %p145 = por %p143, %p144
      %p146 = scmp.le.s32.totalorder 1, %s9
      %p147 = scmp.lt.s32.totalorder %s9, 7
      %p148 = pnand %p146, %p147
      %p149 = pneg %p148
      // Predicated region
      $region9: #{inpaint_generator_forward.18} parent=5 // pred_check
        _
      $region10: #{inpaint_generator_forward.18} parent=5 // pred_check_branch
        %151 = sbr.rel (%p148) target = $region12
      $region11: #{inpaint_generator_forward.18} parent=5 // pred_region
        %s152 = ssub.s32 %s9, 1
        // Predicated region
        $region13: #{inpaint_generator_forward.18} parent=11 // pred_check
          %p153 = pneg %p110
        $region14: #{inpaint_generator_forward.18} parent=11 // pred_check_branch
          %155 = sbr.rel (%p153) target = $region16
        $region15: #{inpaint_generator_forward.18} parent=11 // pred_region
          %p156 = scmp.lt.s32.totalorder %s20, 0
          %s157 = scalar_select %p156, %s20, 0
          %s158 = scalar_lea.vmem %s2, %s157
        $region16: #{inpaint_generator_forward.18} parent=11 // pred_fallthru
          _
      $region12: #{inpaint_generator_forward.18} parent=5 // pred_fallthru
        _
      %p159 = scmp.lt.s32.totalorder %s9, 6
      // Predicated region
      $region17: #{inpaint_generator_forward.18} parent=5 // pred_check
        %p160 = pneg %p159
      $region18: #{inpaint_generator_forward.18} parent=5 // pred_check_branch
        %162 = sbr.rel (%p160) target = $region20
      $region19: #{inpaint_generator_forward.18} parent=5 // pred_region
        // Predicated region
        $region21: #{inpaint_generator_forward.18} parent=19 // pred_check
          %p163 = pneg %p50
        $region22: #{inpaint_generator_forward.18} parent=19 // pred_check_branch
          %165 = sbr.rel (%p163) target = $region24
        $region23: #{inpaint_generator_forward.18} parent=19 // pred_region
          %s166 = sand.u32 %s40, 1
          %s167 = sand.u32 %s40, 1
          %s168 = smul.addr %s167, 192
          %s169 = scalar_lea.vmem [#allocation3], %s168
          %s170 = smul.u32 16, %s16
          %s171 = smul.u32 3, %s18
          %s172 = smul.addr %s170, 9
          %s173 = sadd.s32 %s171, %s172
          %s174 = smul.addr %s173, 4
          %s175 = scalar_lea.vmem %s0, %s174
          // Predicated region
          $region25: #{inpaint_generator_forward.18} parent=23 // pred_check
            _
          $region26: #{inpaint_generator_forward.18} parent=23 // pred_check_branch
            %177 = sbr.rel (0) target = $region28
          $region27: #{inpaint_generator_forward.18} parent=23 // pred_region
            // Predicated region
            $region29: #{inpaint_generator_forward.18} parent=27 // pred_check
              _
            $region30: #{inpaint_generator_forward.18} parent=27 // pred_check_branch
              %179 = sbr.rel (0) target = $region32
            $region31: #{inpaint_generator_forward.18} parent=27 // pred_region
              %s180 = scalar_lea.vmem %s175, 8
              %s181 = scalar_lea.vmem %s169, 8 [#allocation3]
              loop: start=0, step=1, limit=1
              $region33: #{inpaint_generator_forward.18} parent=31 // loop_pre_header
                _
              $region34: #{inpaint_generator_forward.18} parent=31 // loop_header
                %s183 = sphi 0, %s187
                %p184 = scmp.ge.s32.totalorder %s183, 1
                %s188 = sphi %s175, %s175
                %s189 = sphi %s169, %s169
              $region35: #{inpaint_generator_forward.18} parent=31 // loop_header_branch
                %186 = sbr.rel (%p184) target = $region39
              $region36: #{inpaint_generator_forward.18} parent=31 // loop_body
                %v190 = vld [vmem:[%s188] sm:$0xff]
                %191 = vst [vmem:[%s189] sm:$0xff] %v190
                %v192 = vld [vmem:[%s188 + $0x24] sm:$0xff]
                %193 = vst [vmem:[%s189 + $0xc] sm:$0xff] %v192
                %v194 = vld [vmem:[%s188 + $0x48] sm:$0xff]
                %195 = vst [vmem:[%s189 + $0x18] sm:$0xff] %v194
                %v196 = vld [vmem:[%s188 + $0x6c] sm:$0xff]
                %197 = vst [vmem:[%s189 + $0x24] sm:$0xff] %v196
                %v198 = vld [vmem:[%s188 + $0x90] sm:$0xff]
                %199 = vst [vmem:[%s189 + $0x30] sm:$0xff] %v198
                %v200 = vld [vmem:[%s188 + $0xb4] sm:$0xff]
                %201 = vst [vmem:[%s189 + $0x3c] sm:$0xff] %v200
                %v202 = vld [vmem:[%s188 + $0xd8] sm:$0xff]
                %203 = vst [vmem:[%s189 + $0x48] sm:$0xff] %v202
                %v204 = vld [vmem:[%s188 + $0xfc] sm:$0xff]
                %205 = vst [vmem:[%s189 + $0x54] sm:$0xff] %v204
                %v206 = vld [vmem:[%s188 + $0x120] sm:$0xff]
                %207 = vst [vmem:[%s189 + $0x60] sm:$0xff] %v206
                %v208 = vld [vmem:[%s188 + $0x144] sm:$0xff]
                %209 = vst [vmem:[%s189 + $0x6c] sm:$0xff] %v208
                %v210 = vld [vmem:[%s188 + $0x168] sm:$0xff]
                %211 = vst [vmem:[%s189 + $0x78] sm:$0xff] %v210
                %v212 = vld [vmem:[%s188 + $0x18c] sm:$0xff]
                %213 = vst [vmem:[%s189 + $0x84] sm:$0xff] %v212
                %v214 = vld [vmem:[%s188 + $0x1b0] sm:$0xff]
                %215 = vst [vmem:[%s189 + $0x90] sm:$0xff] %v214
                %v216 = vld [vmem:[%s188 + $0x1d4] sm:$0xff]
                %217 = vst [vmem:[%s189 + $0x9c] sm:$0xff] %v216
                %v218 = vld [vmem:[%s188 + $0x1f8] sm:$0xff]
                %219 = vst [vmem:[%s189 + $0xa8] sm:$0xff] %v218
                %v220 = vld [vmem:[%s188 + $0x21c] sm:$0xff]
                %221 = vst [vmem:[%s189 + $0xb4] sm:$0xff] %v220
              $region37: #{inpaint_generator_forward.18} parent=31 // loop_footer
                %s187 = sadd.s32 1, %s183
              $region38: #{inpaint_generator_forward.18} parent=31 // loop_footer_branch
                %182 = sbr.rel target = $region34
              $region39: #{inpaint_generator_forward.18} parent=31 // loop_exit
                _
              loop: start=0, step=1, limit=1
              $region40: #{inpaint_generator_forward.18} parent=31 // loop_pre_header
                _
              $region41: #{inpaint_generator_forward.18} parent=31 // loop_header
                %s224 = sphi 0, %s228
                %p225 = scmp.ge.s32.totalorder %s224, 1
                %s229 = sphi %s180, %s180
                %s230 = sphi %s181, %s181
              $region42: #{inpaint_generator_forward.18} parent=31 // loop_header_branch
                %227 = sbr.rel (%p225) target = $region46
              $region43: #{inpaint_generator_forward.18} parent=31 // loop_body
                %v231 = vld [vmem:[%s229] sm:$0xf]
                %232 = vst [vmem:[%s230] sm:$0xf] %v231
                %v233 = vld [vmem:[%s229 + $0x24] sm:$0xf]
                %234 = vst [vmem:[%s230 + $0xc] sm:$0xf] %v233
                %v235 = vld [vmem:[%s229 + $0x48] sm:$0xf]
                %236 = vst [vmem:[%s230 + $0x18] sm:$0xf] %v235
                %v237 = vld [vmem:[%s229 + $0x6c] sm:$0xf]
                %238 = vst [vmem:[%s230 + $0x24] sm:$0xf] %v237
                %v239 = vld [vmem:[%s229 + $0x90] sm:$0xf]
                %240 = vst [vmem:[%s230 + $0x30] sm:$0xf] %v239
                %v241 = vld [vmem:[%s229 + $0xb4] sm:$0xf]
                %242 = vst [vmem:[%s230 + $0x3c] sm:$0xf] %v241
                %v243 = vld [vmem:[%s229 + $0xd8] sm:$0xf]
                %244 = vst [vmem:[%s230 + $0x48] sm:$0xf] %v243
                %v245 = vld [vmem:[%s229 + $0xfc] sm:$0xf]
                %246 = vst [vmem:[%s230 + $0x54] sm:$0xf] %v245
                %v247 = vld [vmem:[%s229 + $0x120] sm:$0xf]
                %248 = vst [vmem:[%s230 + $0x60] sm:$0xf] %v247
                %v249 = vld [vmem:[%s229 + $0x144] sm:$0xf]
                %250 = vst [vmem:[%s230 + $0x6c] sm:$0xf] %v249
                %v251 = vld [vmem:[%s229 + $0x168] sm:$0xf]
                %252 = vst [vmem:[%s230 + $0x78] sm:$0xf] %v251
                %v253 = vld [vmem:[%s229 + $0x18c] sm:$0xf]
                %254 = vst [vmem:[%s230 + $0x84] sm:$0xf] %v253
                %v255 = vld [vmem:[%s229 + $0x1b0] sm:$0xf]
                %256 = vst [vmem:[%s230 + $0x90] sm:$0xf] %v255
                %v257 = vld [vmem:[%s229 + $0x1d4] sm:$0xf]
                %258 = vst [vmem:[%s230 + $0x9c] sm:$0xf] %v257
                %v259 = vld [vmem:[%s229 + $0x1f8] sm:$0xf]
                %260 = vst [vmem:[%s230 + $0xa8] sm:$0xf] %v259
                %v261 = vld [vmem:[%s229 + $0x21c] sm:$0xf]
                %262 = vst [vmem:[%s230 + $0xb4] sm:$0xf] %v261
              $region44: #{inpaint_generator_forward.18} parent=31 // loop_footer
                %s228 = sadd.s32 1, %s224
              $region45: #{inpaint_generator_forward.18} parent=31 // loop_footer_branch
                %223 = sbr.rel target = $region41
              $region46: #{inpaint_generator_forward.18} parent=31 // loop_exit
                _
            $region32: #{inpaint_generator_forward.18} parent=27 // pred_fallthru
              _
          $region28: #{inpaint_generator_forward.18} parent=23 // pred_fallthru
            _
          %263 = vnop
        $region24: #{inpaint_generator_forward.18} parent=19 // pred_fallthru
          _
        // Predicated region
        $region47: #{inpaint_generator_forward.18} parent=19 // pred_check
          %p264 = pneg %p78
        $region48: #{inpaint_generator_forward.18} parent=19 // pred_check_branch
          %266 = sbr.rel (%p264) target = $region50
        $region49: #{inpaint_generator_forward.18} parent=19 // pred_region
          %s267 = smul.u32 48, %s18
          %p268 = scmp.lt.s32.totalorder %s267, 143
          %s269 = scalar_select %p268, %s267, 143
          %p270 = scmp.lt.s32.totalorder %s17, 0
          %s271 = scalar_select %p270, %s17, 0
          %s272 = sadd.s32 %s271, %s269
          %s273 = smul.addr %s272, 4
          %s274 = scalar_lea.vmem %s1, %s273
          %s275 = smul.u32 48, %s18
        $region50: #{inpaint_generator_forward.18} parent=19 // pred_fallthru
          _
      $region20: #{inpaint_generator_forward.18} parent=5 // pred_fallthru
        _
      %p276 = scmp.le.s32.totalorder 1, %s9
      %p277 = scmp.lt.s32.totalorder %s9, 7
      %p278 = pnand %p276, %p277
      %p279 = pneg %p278
      // Predicated region
      $region51: #{inpaint_generator_forward.18} parent=5 // pred_check
        _
      $region52: #{inpaint_generator_forward.18} parent=5 // pred_check_branch
        %281 = sbr.rel (%p278) target = $region54
      $region53: #{inpaint_generator_forward.18} parent=5 // pred_region
        %s282 = ssub.s32 %s9, 1
        %s283 = sand.u32 %s43, 1
        %s284 = sand.u32 %s43, 1
        %s285 = smul.addr %s284, 192
        %s286 = scalar_lea.vmem [#allocation3], %s285
        // Predicated region
        $region55: #{inpaint_generator_forward.18} parent=53 // pred_check
          %p287 = pneg %p56
        $region56: #{inpaint_generator_forward.18} parent=53 // pred_check_branch
          %289 = sbr.rel (%p287) target = $region58
        $region57: #{inpaint_generator_forward.18} parent=53 // pred_region
          _
        $region58: #{inpaint_generator_forward.18} parent=53 // pred_fallthru
          _
        %s290 = sand.u32 %s43, 1
        %s291 = sand.u32 %s43, 1
        %s292 = smul.addr %s291, 192
        %s293 = scalar_lea.vmem [#allocation3], %s292
        %p294 = pneg %p56
        %p295 = pneg %p53
        %s296 = smul.u32 48, %s21
        %p297 = scmp.lt.s32.totalorder %s296, 143
        %s298 = scalar_select %p297, %s296, 143
        %p299 = scmp.lt.s32.totalorder %s20, 0
        %s300 = scalar_select %p299, %s20, 0
        %s301 = sadd.s32 %s300, %s298
        %s302 = smul.addr %s301, 4
        %s303 = scalar_lea.vmem %s1, %s302
        %p304 = pneg %p84
        %p305 = pneg %p81
        %p306 = scmp.lt.s32.totalorder %s20, 0
        %s307 = scalar_select %p306, %s20, 0
        %s308 = scalar_lea.vmem %s2, %s307
        %p309 = pneg %p110
        %p310 = pneg %p107
        %p311 = pneg %p138
        %p312 = pneg %p135
        %s313 = smul.u32 16, %s19
        %p314 = scmp.lt.s32.totalorder %s313, 31
        %s315 = scalar_select %p314, %s313, 31
        %p316 = scmp.lt.s32.totalorder %s20, 0
        %s317 = scalar_select %p316, %s20, 0
        %s318 = sadd.s32 %s317, %s315
        %s319 = smul.addr %s318, 4
        %s320 = scalar_lea.vmem %s3, %s319
        %s321 = smul.u32 16, %s19
        %s322 = smul.u32 3, %s21
        %s323 = smul.u32 48, %s21
        %p324 = scmp.lt.s32.totalorder %s323, 143
        %s325 = scalar_select %p324, %s323, 143
        %p326 = scmp.lt.s32.totalorder %s20, 0
        %s327 = scalar_select %p326, %s20, 0
        %s328 = sadd.s32 %s327, %s325
        %s329 = smul.addr %s328, 4
        %s330 = scalar_lea.vmem %s1, %s329
        %s331 = smul.u32 48, %s21
        %p332 = scmp.lt.s32.totalorder %s20, 0
        %s333 = scalar_select %p332, %s20, 0
        %s334 = scalar_lea.vmem %s2, %s333
        %s335 = smul.u32 16, %s19
        %p336 = scmp.lt.s32.totalorder %s335, 31
        %s337 = scalar_select %p336, %s335, 31
        %p338 = scmp.lt.s32.totalorder %s20, 0
        %s339 = scalar_select %p338, %s20, 0
        %s340 = sadd.s32 %s339, %s337
        %s341 = smul.addr %s340, 4
        %s342 = scalar_lea.vmem %s3, %s341
        %s343 = smul.u32 16, %s19
        %p345 = scmp.eq.s32.totalorder %s21, 0
        // Predicated region
        $region59: #{inpaint_generator_forward.18} parent=53 // pred_check
          %p346 = pneg %p345
        $region60: #{inpaint_generator_forward.18} parent=53 // pred_check_branch
          %348 = sbr.rel (%p346) target = $region62
        $region61: #{inpaint_generator_forward.18} parent=53 // pred_region
          %v349 = vld [vmem:[%s334] sm:$0x1]
          %v351 = vlaneseq
          %v352 = vshrl.u32 %v351, 7
          %v353 = vsub.s32 0, %v352
          %v354 = vrot.slane %v349, %v353
          %356 = vst [vmem:[#allocation2] sm:$0xff] %v354
          %357 = vst [vmem:[#allocation2 + $0x8] sm:$0xff] %v354
          %358 = vst [vmem:[#allocation2 + $0x10] sm:$0xff] %v354
          %359 = vst [vmem:[#allocation2 + $0x18] sm:$0xff] %v354
          %360 = vst [vmem:[#allocation2 + $0x20] sm:$0xff] %v354
          %361 = vst [vmem:[#allocation2 + $0x28] sm:$0xff] %v354
          %362 = vst [vmem:[#allocation2 + $0x30] sm:$0xff] %v354
          %363 = vst [vmem:[#allocation2 + $0x38] sm:$0xff] %v354
          %364 = vst [vmem:[#allocation2 + $0x40] sm:$0xff] %v354
          %365 = vst [vmem:[#allocation2 + $0x48] sm:$0xff] %v354
          %366 = vst [vmem:[#allocation2 + $0x50] sm:$0xff] %v354
          %367 = vst [vmem:[#allocation2 + $0x58] sm:$0xff] %v354
          %368 = vst [vmem:[#allocation2 + $0x60] sm:$0xff] %v354
          %369 = vst [vmem:[#allocation2 + $0x68] sm:$0xff] %v354
          %370 = vst [vmem:[#allocation2 + $0x70] sm:$0xff] %v354
          %371 = vst [vmem:[#allocation2 + $0x78] sm:$0xff] %v354
        $region62: #{inpaint_generator_forward.18} parent=53 // pred_fallthru
          _
        %v372 = vld [vmem:[#allocation2] sm:$0xff]
        %v373 = vld [vmem:[#allocation2 + $0x8] sm:$0xff]
        %v374 = vld [vmem:[#allocation2 + $0x10] sm:$0xff]
        %v375 = vld [vmem:[#allocation2 + $0x18] sm:$0xff]
        %v376 = vld [vmem:[#allocation2 + $0x20] sm:$0xff]
        %v377 = vld [vmem:[#allocation2 + $0x28] sm:$0xff]
        %v378 = vld [vmem:[#allocation2 + $0x30] sm:$0xff]
        %v379 = vld [vmem:[#allocation2 + $0x38] sm:$0xff]
        %v380 = vld [vmem:[#allocation2 + $0x40] sm:$0xff]
        %v381 = vld [vmem:[#allocation2 + $0x48] sm:$0xff]
        %v382 = vld [vmem:[#allocation2 + $0x50] sm:$0xff]
        %v383 = vld [vmem:[#allocation2 + $0x58] sm:$0xff]
        %v384 = vld [vmem:[#allocation2 + $0x60] sm:$0xff]
        %v385 = vld [vmem:[#allocation2 + $0x68] sm:$0xff]
        %v386 = vld [vmem:[#allocation2 + $0x70] sm:$0xff]
        %v387 = vld [vmem:[#allocation2 + $0x78] sm:$0xff]
        %v388 = vld [vmem:[%s286] sm:$0xff]
        %v389 = vld [vmem:[%s286 + $0x8] sm:$0xf]
        %v390 = vld [vmem:[%s286 + $0xc] sm:$0xff]
        %v391 = vld [vmem:[%s286 + $0x14] sm:$0xf]
        %v392 = vld [vmem:[%s286 + $0x18] sm:$0xff]
        %v393 = vld [vmem:[%s286 + $0x20] sm:$0xf]
        %v394 = vld [vmem:[%s286 + $0x24] sm:$0xff]
        %v395 = vld [vmem:[%s286 + $0x2c] sm:$0xf]
        %v396 = vld [vmem:[%s286 + $0x30] sm:$0xff]
        %v397 = vld [vmem:[%s286 + $0x38] sm:$0xf]
        %v398 = vld [vmem:[%s286 + $0x3c] sm:$0xff]
        %v399 = vld [vmem:[%s286 + $0x44] sm:$0xf]
        %v400 = vld [vmem:[%s286 + $0x48] sm:$0xff]
        %v401 = vld [vmem:[%s286 + $0x50] sm:$0xf]
        %v402 = vld [vmem:[%s286 + $0x54] sm:$0xff]
        %v403 = vld [vmem:[%s286 + $0x5c] sm:$0xf]
        %v404 = vld [vmem:[%s286 + $0x60] sm:$0xff]
        %v405 = vld [vmem:[%s286 + $0x68] sm:$0xf]
        %v406 = vld [vmem:[%s286 + $0x6c] sm:$0xff]
        %v407 = vld [vmem:[%s286 + $0x74] sm:$0xf]
        %v408 = vld [vmem:[%s286 + $0x78] sm:$0xff]
        %v409 = vld [vmem:[%s286 + $0x80] sm:$0xf]
        %v410 = vld [vmem:[%s286 + $0x84] sm:$0xff]
        %v411 = vld [vmem:[%s286 + $0x8c] sm:$0xf]
        %v412 = vld [vmem:[%s286 + $0x90] sm:$0xff]
        %v413 = vld [vmem:[%s286 + $0x98] sm:$0xf]
        %v414 = vld [vmem:[%s286 + $0x9c] sm:$0xff]
        %v415 = vld [vmem:[%s286 + $0xa4] sm:$0xf]
        %v416 = vld [vmem:[%s286 + $0xa8] sm:$0xff]
        %v417 = vld [vmem:[%s286 + $0xb0] sm:$0xf]
        %v418 = vld [vmem:[%s286 + $0xb4] sm:$0xff]
        %v419 = vld [vmem:[%s286 + $0xbc] sm:$0xf]
        %v420 = vld [vmem:[%s330] sm:$0xf]
        %v421 = vld [vmem:[%s330 + $0x4] sm:$0xf]
        %v422 = vld [vmem:[%s330 + $0x8] sm:$0xf]
        %v423 = vld [vmem:[%s330 + $0xc] sm:$0xf]
        %v424 = vld [vmem:[%s330 + $0x10] sm:$0xf]
        %v425 = vld [vmem:[%s330 + $0x14] sm:$0xf]
        %v426 = vld [vmem:[%s330 + $0x18] sm:$0xf]
        %v427 = vld [vmem:[%s330 + $0x1c] sm:$0xf]
        %v428 = vld [vmem:[%s330 + $0x20] sm:$0xf]
        %v429 = vld [vmem:[%s330 + $0x24] sm:$0xf]
        %v430 = vld [vmem:[%s330 + $0x28] sm:$0xf]
        %v431 = vld [vmem:[%s330 + $0x2c] sm:$0xf]
        %v432 = vld [vmem:[%s330 + $0x30] sm:$0xf]
        %v433 = vld [vmem:[%s330 + $0x34] sm:$0xf]
        %v434 = vld [vmem:[%s330 + $0x38] sm:$0xf]
        %v435 = vld [vmem:[%s330 + $0x3c] sm:$0xf]
        %v436 = vld [vmem:[%s330 + $0x40] sm:$0xf]
        %v437 = vld [vmem:[%s330 + $0x44] sm:$0xf]
        %v438 = vld [vmem:[%s330 + $0x48] sm:$0xf]
        %v439 = vld [vmem:[%s330 + $0x4c] sm:$0xf]
        %v440 = vld [vmem:[%s330 + $0x50] sm:$0xf]
        %v441 = vld [vmem:[%s330 + $0x54] sm:$0xf]
        %v442 = vld [vmem:[%s330 + $0x58] sm:$0xf]
        %v443 = vld [vmem:[%s330 + $0x5c] sm:$0xf]
        %v444 = vld [vmem:[%s330 + $0x60] sm:$0xf]
        %v445 = vld [vmem:[%s330 + $0x64] sm:$0xf]
        %v446 = vld [vmem:[%s330 + $0x68] sm:$0xf]
        %v447 = vld [vmem:[%s330 + $0x6c] sm:$0xf]
        %v448 = vld [vmem:[%s330 + $0x70] sm:$0xf]
        %v449 = vld [vmem:[%s330 + $0x74] sm:$0xf]
        %v450 = vld [vmem:[%s330 + $0x78] sm:$0xf]
        %v451 = vld [vmem:[%s330 + $0x7c] sm:$0xf]
        %v452 = vld [vmem:[%s330 + $0x80] sm:$0xf]
        %v453 = vld [vmem:[%s330 + $0x84] sm:$0xf]
        %v454 = vld [vmem:[%s330 + $0x88] sm:$0xf]
        %v455 = vld [vmem:[%s330 + $0x8c] sm:$0xf]
        %v456 = vld [vmem:[%s330 + $0x90] sm:$0xf]
        %v457 = vld [vmem:[%s330 + $0x94] sm:$0xf]
        %v458 = vld [vmem:[%s330 + $0x98] sm:$0xf]
        %v459 = vld [vmem:[%s330 + $0x9c] sm:$0xf]
        %v460 = vld [vmem:[%s330 + $0xa0] sm:$0xf]
        %v461 = vld [vmem:[%s330 + $0xa4] sm:$0xf]
        %v462 = vld [vmem:[%s330 + $0xa8] sm:$0xf]
        %v463 = vld [vmem:[%s330 + $0xac] sm:$0xf]
        %v464 = vld [vmem:[%s330 + $0xb0] sm:$0xf]
        %v465 = vld [vmem:[%s330 + $0xb4] sm:$0xf]
        %v466 = vld [vmem:[%s330 + $0xb8] sm:$0xf]
        %v467 = vld [vmem:[%s330 + $0xbc] sm:$0xf]
        %v500 = vunpack.c.l.b16 %v388
        %v501 = vunpack.c.h.b16 %v388
        %v502 = vunpack.c.l.b16 %v389
        %v503 = vunpack.c.l.b16 %v390
        %v504 = vunpack.c.h.b16 %v390
        %v505 = vunpack.c.l.b16 %v391
        %v506 = vunpack.c.l.b16 %v392
        %v507 = vunpack.c.h.b16 %v392
        %v508 = vunpack.c.l.b16 %v393
        %v509 = vunpack.c.l.b16 %v394
        %v510 = vunpack.c.h.b16 %v394
        %v511 = vunpack.c.l.b16 %v395
        %v512 = vunpack.c.l.b16 %v396
        %v513 = vunpack.c.h.b16 %v396
        %v514 = vunpack.c.l.b16 %v397
        %v515 = vunpack.c.l.b16 %v398
        %v516 = vunpack.c.h.b16 %v398
        %v517 = vunpack.c.l.b16 %v399
        %v518 = vunpack.c.l.b16 %v400
        %v519 = vunpack.c.h.b16 %v400
        %v520 = vunpack.c.l.b16 %v401
        %v521 = vunpack.c.l.b16 %v402
        %v522 = vunpack.c.h.b16 %v402
        %v523 = vunpack.c.l.b16 %v403
        %v524 = vunpack.c.l.b16 %v404
        %v525 = vunpack.c.h.b16 %v404
        %v526 = vunpack.c.l.b16 %v405
        %v527 = vunpack.c.l.b16 %v406
        %v528 = vunpack.c.h.b16 %v406
        %v529 = vunpack.c.l.b16 %v407
        %v530 = vunpack.c.l.b16 %v408
        %v531 = vunpack.c.h.b16 %v408
        %v532 = vunpack.c.l.b16 %v409
        %v533 = vunpack.c.l.b16 %v410
        %v534 = vunpack.c.h.b16 %v410
        %v535 = vunpack.c.l.b16 %v411
        %v536 = vunpack.c.l.b16 %v412
        %v537 = vunpack.c.h.b16 %v412
        %v538 = vunpack.c.l.b16 %v413
        %v539 = vunpack.c.l.b16 %v414
        %v540 = vunpack.c.h.b16 %v414
        %v541 = vunpack.c.l.b16 %v415
        %v542 = vunpack.c.l.b16 %v416
        %v543 = vunpack.c.h.b16 %v416
        %v544 = vunpack.c.l.b16 %v417
        %v545 = vunpack.c.l.b16 %v418
        %v546 = vunpack.c.h.b16 %v418
        %v547 = vunpack.c.l.b16 %v419
        %v548 = vpack.c.b16 %v503, %v500
        %v549 = vpack.c.b16 %v504, %v501
        %v550 = vpack.c.b16 %v505, %v502
        %v551 = vpack.c.b16 %v509, %v506
        %v552 = vpack.c.b16 %v510, %v507
        %v553 = vpack.c.b16 %v511, %v508
        %v554 = vpack.c.b16 %v515, %v512
        %v555 = vpack.c.b16 %v516, %v513
        %v556 = vpack.c.b16 %v517, %v514
        %v557 = vpack.c.b16 %v521, %v518
        %v558 = vpack.c.b16 %v522, %v519
        %v559 = vpack.c.b16 %v523, %v520
        %v560 = vpack.c.b16 %v527, %v524
        %v561 = vpack.c.b16 %v528, %v525
        %v562 = vpack.c.b16 %v529, %v526
        %v563 = vpack.c.b16 %v533, %v530
        %v564 = vpack.c.b16 %v534, %v531
        %v565 = vpack.c.b16 %v535, %v532
        %v566 = vpack.c.b16 %v539, %v536
        %v567 = vpack.c.b16 %v540, %v537
        %v568 = vpack.c.b16 %v541, %v538
        %v569 = vpack.c.b16 %v545, %v542
        %v570 = vpack.c.b16 %v546, %v543
        %v571 = vpack.c.b16 %v547, %v544
        %v644 = vunpack.c.l.b16 %v420
        %v645 = vunpack.c.l.b16 %v421
        %v646 = vunpack.c.l.b16 %v422
        %v647 = vunpack.c.l.b16 %v423
        %v648 = vunpack.c.l.b16 %v424
        %v649 = vunpack.c.l.b16 %v425
        %v650 = vunpack.c.l.b16 %v426
        %v651 = vunpack.c.l.b16 %v427
        %v652 = vunpack.c.l.b16 %v428
        %v653 = vunpack.c.l.b16 %v429
        %v654 = vunpack.c.l.b16 %v430
        %v655 = vunpack.c.l.b16 %v431
        %v656 = vunpack.c.l.b16 %v432
        %v657 = vunpack.c.l.b16 %v433
        %v658 = vunpack.c.l.b16 %v434
        %v659 = vunpack.c.l.b16 %v435
        %v660 = vunpack.c.l.b16 %v436
        %v661 = vunpack.c.l.b16 %v437
        %v662 = vunpack.c.l.b16 %v438
        %v663 = vunpack.c.l.b16 %v439
        %v664 = vunpack.c.l.b16 %v440
        %v665 = vunpack.c.l.b16 %v441
        %v666 = vunpack.c.l.b16 %v442
        %v667 = vunpack.c.l.b16 %v443
        %v668 = vunpack.c.l.b16 %v444
        %v669 = vunpack.c.l.b16 %v445
        %v670 = vunpack.c.l.b16 %v446
        %v671 = vunpack.c.l.b16 %v447
        %v672 = vunpack.c.l.b16 %v448
        %v673 = vunpack.c.l.b16 %v449
        %v674 = vunpack.c.l.b16 %v450
        %v675 = vunpack.c.l.b16 %v451
        %v676 = vunpack.c.l.b16 %v452
        %v677 = vunpack.c.l.b16 %v453
        %v678 = vunpack.c.l.b16 %v454
        %v679 = vunpack.c.l.b16 %v455
        %v680 = vunpack.c.l.b16 %v456
        %v681 = vunpack.c.l.b16 %v457
        %v682 = vunpack.c.l.b16 %v458
        %v683 = vunpack.c.l.b16 %v459
        %v684 = vunpack.c.l.b16 %v460
        %v685 = vunpack.c.l.b16 %v461
        %v686 = vunpack.c.l.b16 %v462
        %v687 = vunpack.c.l.b16 %v463
        %v688 = vunpack.c.l.b16 %v464
        %v689 = vunpack.c.l.b16 %v465
        %v690 = vunpack.c.l.b16 %v466
        %v691 = vunpack.c.l.b16 %v467
        %v692 = vpack.c.b16 %v645, %v644
        %v693 = vpack.c.b16 %v647, %v646
        %v694 = vpack.c.b16 %v649, %v648
        %v695 = vpack.c.b16 %v651, %v650
        %v696 = vpack.c.b16 %v653, %v652
        %v697 = vpack.c.b16 %v655, %v654
        %v698 = vpack.c.b16 %v657, %v656
        %v699 = vpack.c.b16 %v659, %v658
        %v700 = vpack.c.b16 %v661, %v660
        %v701 = vpack.c.b16 %v663, %v662
        %v702 = vpack.c.b16 %v665, %v664
        %v703 = vpack.c.b16 %v667, %v666
        %v704 = vpack.c.b16 %v669, %v668
        %v705 = vpack.c.b16 %v671, %v670
        %v706 = vpack.c.b16 %v673, %v672
        %v707 = vpack.c.b16 %v675, %v674
        %v708 = vpack.c.b16 %v677, %v676
        %v709 = vpack.c.b16 %v679, %v678
        %v710 = vpack.c.b16 %v681, %v680
        %v711 = vpack.c.b16 %v683, %v682
        %v712 = vpack.c.b16 %v685, %v684
        %v713 = vpack.c.b16 %v687, %v686
        %v714 = vpack.c.b16 %v689, %v688
        %v715 = vpack.c.b16 %v691, %v690
        %740 = vmatprep.subr.bf16.mxu0 0
        %741 = vmatpush1.bf16.msra.mxu0 %v692
        %742 = vmatprep.subr.bf16.mxu0 0
        %743 = vmatpush1.bf16.msra.mxu0 %v693
        %744 = vmatprep.subr.bf16.mxu0 0
        %745 = vmatpush1.bf16.msra.mxu0 %v694
        %746 = vmatprep.subr.bf16.mxu0 0
        %747 = vmatpush1.bf16.msra.mxu0 %v695
        %748 = vmatprep.subr.bf16.mxu0 0
        %749 = vmatpush1.bf16.msra.mxu0 %v696
        %750 = vmatprep.subr.bf16.mxu0 0
        %751 = vmatpush1.bf16.msra.mxu0 %v697
        %752 = vmatprep.subr.bf16.mxu0 0
        %753 = vmatpush1.bf16.msra.mxu0 %v698
        %754 = vmatprep.subr.bf16.mxu0 0
        %755 = vmatpush1.bf16.msra.mxu0 %v699
        %756 = vmatprep.subr.bf16.mxu0 0
        %757 = vmatpush1.bf16.msra.mxu0 %v700
        %758 = vmatprep.subr.bf16.mxu0 0
        %759 = vmatpush1.bf16.msra.mxu0 %v701
        %760 = vmatprep.subr.bf16.mxu0 0
        %761 = vmatpush1.bf16.msra.mxu0 %v702
        %762 = vmatprep.subr.bf16.mxu0 0
        %763 = vmatpush1.bf16.msra.mxu0 %v703
        %764 = vmatprep.subr.bf16.mxu0 0
        %765 = vmatpush1.bf16.msra.mxu0 %v704
        %766 = vmatprep.subr.bf16.mxu0 0
        %767 = vmatpush1.bf16.msra.mxu0 %v705
        %768 = vmatprep.subr.bf16.mxu0 0
        %769 = vmatpush1.bf16.msra.mxu0 %v706
        %770 = vmatprep.subr.bf16.mxu0 0
        %771 = vmatpush1.bf16.msra.mxu0 %v707
        %772 = vmatprep.mubr.bf16.mxu0 %v549
        %773 = vmatmul.mubr.bf16.gmra.mrb[0].mxu0 %v548
        %v774 = vpop.f32.mrb[0].mxu0
        %v775 = vadd.f32 0.0, %v774
        %v776 = vpop.f32.mrb[0].mxu0
        %v777 = vpop.f32.mrb[0].mxu0
        %v778 = vadd.f32 0.0, %v777
        %v779 = vpop.f32.mrb[0].mxu0
        %780 = vmatprep.mubr.bf16.mxu0 %v552
        %781 = vmatmul.mubr.bf16.gmra.mrb[0].mxu0 %v551
        %v782 = vpop.f32.mrb[0].mxu0
        %v783 = vadd.f32 0.0, %v782
        %v784 = vpop.f32.mrb[0].mxu0
        %v785 = vpop.f32.mrb[0].mxu0
        %v786 = vadd.f32 0.0, %v785
        %v787 = vpop.f32.mrb[0].mxu0
        %788 = vmatprep.mubr.bf16.mxu0 %v555
        %789 = vmatmul.mubr.bf16.gmra.mrb[0].mxu0 %v554
        %v790 = vpop.f32.mrb[0].mxu0
        %v791 = vadd.f32 0.0, %v790
        %v792 = vpop.f32.mrb[0].mxu0
        %v793 = vpop.f32.mrb[0].mxu0
        %v794 = vadd.f32 0.0, %v793
        %v795 = vpop.f32.mrb[0].mxu0
        %796 = vmatprep.mubr.bf16.mxu0 %v558
        %797 = vmatmul.mubr.bf16.gmra.mrb[0].mxu0 %v557
        %v798 = vpop.f32.mrb[0].mxu0
        %v799 = vadd.f32 0.0, %v798
        %v800 = vpop.f32.mrb[0].mxu0
        %v801 = vpop.f32.mrb[0].mxu0
        %v802 = vadd.f32 0.0, %v801
        %v803 = vpop.f32.mrb[0].mxu0
        %804 = vmatprep.mubr.bf16.mxu0 %v561
        %805 = vmatmul.mubr.bf16.gmra.mrb[0].mxu0 %v560
        %v806 = vpop.f32.mrb[0].mxu0
        %v807 = vadd.f32 0.0, %v806
        %v808 = vpop.f32.mrb[0].mxu0
        %v809 = vpop.f32.mrb[0].mxu0
        %v810 = vadd.f32 0.0, %v809
        %v811 = vpop.f32.mrb[0].mxu0
        %812 = vmatprep.mubr.bf16.mxu0 %v564
        %813 = vmatmul.mubr.bf16.gmra.mrb[0].mxu0 %v563
        %v814 = vpop.f32.mrb[0].mxu0
        %v815 = vadd.f32 0.0, %v814
        %v816 = vpop.f32.mrb[0].mxu0
        %v817 = vpop.f32.mrb[0].mxu0
        %v818 = vadd.f32 0.0, %v817
        %v819 = vpop.f32.mrb[0].mxu0
        %820 = vmatprep.mubr.bf16.mxu0 %v567
        %821 = vmatmul.mubr.bf16.gmra.mrb[0].mxu0 %v566
        %v822 = vpop.f32.mrb[0].mxu0
        %v823 = vadd.f32 0.0, %v822
        %v824 = vpop.f32.mrb[0].mxu0
        %v825 = vpop.f32.mrb[0].mxu0
        %v826 = vadd.f32 0.0, %v825
        %v827 = vpop.f32.mrb[0].mxu0
        %828 = vmatprep.mubr.bf16.mxu0 %v570
        %829 = vmatmul.mubr.bf16.gmra.mrb[0].mxu0 %v569
        %v830 = vpop.f32.mrb[0].mxu0
        %v831 = vadd.f32 0.0, %v830
        %v832 = vpop.f32.mrb[0].mxu0
        %v833 = vpop.f32.mrb[0].mxu0
        %v834 = vadd.f32 0.0, %v833
        %v835 = vpop.f32.mrb[0].mxu0
        %836 = vdwg.mxu0
        %837 = vmatprep.subr.bf16.mxu0 0
        %838 = vmatpush1.bf16.msra.mxu0 %v708
        %839 = vmatprep.subr.bf16.mxu0 0
        %840 = vmatpush1.bf16.msra.mxu0 %v709
        %841 = vmatprep.subr.bf16.mxu0 0
        %842 = vmatpush1.bf16.msra.mxu0 %v710
        %843 = vmatprep.subr.bf16.mxu0 0
        %844 = vmatpush1.bf16.msra.mxu0 %v711
        %845 = vmatprep.subr.bf16.mxu0 0
        %846 = vmatpush1.bf16.msra.mxu0 %v712
        %847 = vmatprep.subr.bf16.mxu0 0
        %848 = vmatpush1.bf16.msra.mxu0 %v713
        %849 = vmatprep.subr.bf16.mxu0 0
        %850 = vmatpush1.bf16.msra.mxu0 %v714
        %851 = vmatprep.subr.bf16.mxu0 0
        %852 = vmatpush1.bf16.msra.mxu0 %v715
        %853 = vmatprep.subr.bf16.mxu0 0
        %854 = vmatpush1.bf16.msra.mxu0 0
        %855 = vmatprep.subr.bf16.mxu0 0
        %856 = vmatpush1.bf16.msra.mxu0 0
        %857 = vmatprep.subr.bf16.mxu0 0
        %858 = vmatpush1.bf16.msra.mxu0 0
        %859 = vmatprep.subr.bf16.mxu0 0
        %860 = vmatpush1.bf16.msra.mxu0 0
        %861 = vmatprep.subr.bf16.mxu0 0
        %862 = vmatpush1.bf16.msra.mxu0 0
        %863 = vmatprep.subr.bf16.mxu0 0
        %864 = vmatpush1.bf16.msra.mxu0 0
        %865 = vmatprep.subr.bf16.mxu0 0
        %866 = vmatpush1.bf16.msra.mxu0 0
        %867 = vmatprep.subr.bf16.mxu0 0
        %868 = vmatpush1.bf16.msra.mxu0 0
        %869 = vmatprep.mubr.bf16.mxu0 0
        %870 = vmatmul.mubr.bf16.gmra.mrb[0].mxu0 %v550
        %v871 = vpop.f32.mrb[0].mxu0
        %v872 = vadd.f32 %v775, %v871
        %v873 = vpop.f32.mrb[0].mxu0
        %v874 = vpop.f32.mrb[0].mxu0
        %v875 = vadd.f32 %v778, %v874
        %v876 = vpop.f32.mrb[0].mxu0
        %877 = vmatprep.mubr.bf16.mxu0 0
        %878 = vmatmul.mubr.bf16.gmra.mrb[0].mxu0 %v553
        %v879 = vpop.f32.mrb[0].mxu0
        %v880 = vadd.f32 %v783, %v879
        %v881 = vpop.f32.mrb[0].mxu0
        %v882 = vpop.f32.mrb[0].mxu0
        %v883 = vadd.f32 %v786, %v882
        %v884 = vpop.f32.mrb[0].mxu0
        %885 = vmatprep.mubr.bf16.mxu0 0
        %886 = vmatmul.mubr.bf16.gmra.mrb[0].mxu0 %v556
        %v887 = vpop.f32.mrb[0].mxu0
        %v888 = vadd.f32 %v791, %v887
        %v889 = vpop.f32.mrb[0].mxu0
        %v890 = vpop.f32.mrb[0].mxu0
        %v891 = vadd.f32 %v794, %v890
        %v892 = vpop.f32.mrb[0].mxu0
        %893 = vmatprep.mubr.bf16.mxu0 0
        %894 = vmatmul.mubr.bf16.gmra.mrb[0].mxu0 %v559
        %v895 = vpop.f32.mrb[0].mxu0
        %v896 = vadd.f32 %v799, %v895
        %v897 = vpop.f32.mrb[0].mxu0
        %v898 = vpop.f32.mrb[0].mxu0
        %v899 = vadd.f32 %v802, %v898
        %v900 = vpop.f32.mrb[0].mxu0
        %901 = vmatprep.mubr.bf16.mxu0 0
        %902 = vmatmul.mubr.bf16.gmra.mrb[0].mxu0 %v562
        %v903 = vpop.f32.mrb[0].mxu0
        %v904 = vadd.f32 %v807, %v903
        %v905 = vpop.f32.mrb[0].mxu0
        %v906 = vpop.f32.mrb[0].mxu0
        %v907 = vadd.f32 %v810, %v906
        %v908 = vpop.f32.mrb[0].mxu0
        %909 = vmatprep.mubr.bf16.mxu0 0
        %910 = vmatmul.mubr.bf16.gmra.mrb[0].mxu0 %v565
        %v911 = vpop.f32.mrb[0].mxu0
        %v912 = vadd.f32 %v815, %v911
        %v913 = vpop.f32.mrb[0].mxu0
        %v914 = vpop.f32.mrb[0].mxu0
        %v915 = vadd.f32 %v818, %v914
        %v916 = vpop.f32.mrb[0].mxu0
        %917 = vmatprep.mubr.bf16.mxu0 0
        %918 = vmatmul.mubr.bf16.gmra.mrb[0].mxu0 %v568
        %v919 = vpop.f32.mrb[0].mxu0
        %v920 = vadd.f32 %v823, %v919
        %v921 = vpop.f32.mrb[0].mxu0
        %v922 = vpop.f32.mrb[0].mxu0
        %v923 = vadd.f32 %v826, %v922
        %v924 = vpop.f32.mrb[0].mxu0
        %925 = vmatprep.mubr.bf16.mxu0 0
        %926 = vmatmul.mubr.bf16.gmra.mrb[0].mxu0 %v571
        %v927 = vpop.f32.mrb[0].mxu0
        %v928 = vadd.f32 %v831, %v927
        %v929 = vpop.f32.mrb[0].mxu0
        %v930 = vpop.f32.mrb[0].mxu0
        %v931 = vadd.f32 %v834, %v930
        %v932 = vpop.f32.mrb[0].mxu0
        %933 = vdwg.mxu0
        %v934 = vadd.f32 %v372, %v872
        %v935 = vadd.f32 %v373, %v875
        %v936 = vadd.f32 %v374, %v880
        %v937 = vadd.f32 %v375, %v883
        %v938 = vadd.f32 %v376, %v888
        %v939 = vadd.f32 %v377, %v891
        %v940 = vadd.f32 %v378, %v896
        %v941 = vadd.f32 %v379, %v899
        %v942 = vadd.f32 %v380, %v904
        %v943 = vadd.f32 %v381, %v907
        %v944 = vadd.f32 %v382, %v912
        %v945 = vadd.f32 %v383, %v915
        %v946 = vadd.f32 %v384, %v920
        %v947 = vadd.f32 %v385, %v923
        %v948 = vadd.f32 %v386, %v928
        %v949 = vadd.f32 %v387, %v931
        %950 = vst [vmem:[#allocation2] sm:$0xff] %v934
        %951 = vst [vmem:[#allocation2 + $0x8] sm:$0xff] %v935
        %952 = vst [vmem:[#allocation2 + $0x10] sm:$0xff] %v936
        %953 = vst [vmem:[#allocation2 + $0x18] sm:$0xff] %v937
        %954 = vst [vmem:[#allocation2 + $0x20] sm:$0xff] %v938
        %955 = vst [vmem:[#allocation2 + $0x28] sm:$0xff] %v939
        %956 = vst [vmem:[#allocation2 + $0x30] sm:$0xff] %v940
        %957 = vst [vmem:[#allocation2 + $0x38] sm:$0xff] %v941
        %958 = vst [vmem:[#allocation2 + $0x40] sm:$0xff] %v942
        %959 = vst [vmem:[#allocation2 + $0x48] sm:$0xff] %v943
        %960 = vst [vmem:[#allocation2 + $0x50] sm:$0xff] %v944
        %961 = vst [vmem:[#allocation2 + $0x58] sm:$0xff] %v945
        %962 = vst [vmem:[#allocation2 + $0x60] sm:$0xff] %v946
        %963 = vst [vmem:[#allocation2 + $0x68] sm:$0xff] %v947
        %964 = vst [vmem:[#allocation2 + $0x70] sm:$0xff] %v948
        %965 = vst [vmem:[#allocation2 + $0x78] sm:$0xff] %v949
        %p966 = scmp.eq.s32.totalorder %s21, 2
        // Predicated region
        $region63: #{inpaint_generator_forward.18} parent=53 // pred_check
          %p967 = pneg %p966
        $region64: #{inpaint_generator_forward.18} parent=53 // pred_check_branch
          %969 = sbr.rel (%p967) target = $region66
        $region65: #{inpaint_generator_forward.18} parent=53 // pred_region
          %v970 = vld [vmem:[#allocation2] sm:$0xff]
          %v971 = vld [vmem:[#allocation2 + $0x8] sm:$0xff]
          %v972 = vld [vmem:[#allocation2 + $0x10] sm:$0xff]
          %v973 = vld [vmem:[#allocation2 + $0x18] sm:$0xff]
          %v974 = vld [vmem:[#allocation2 + $0x20] sm:$0xff]
          %v975 = vld [vmem:[#allocation2 + $0x28] sm:$0xff]
          %v976 = vld [vmem:[#allocation2 + $0x30] sm:$0xff]
          %v977 = vld [vmem:[#allocation2 + $0x38] sm:$0xff]
          %v978 = vld [vmem:[#allocation2 + $0x40] sm:$0xff]
          %v979 = vld [vmem:[#allocation2 + $0x48] sm:$0xff]
          %v980 = vld [vmem:[#allocation2 + $0x50] sm:$0xff]
          %v981 = vld [vmem:[#allocation2 + $0x58] sm:$0xff]
          %v982 = vld [vmem:[#allocation2 + $0x60] sm:$0xff]
          %v983 = vld [vmem:[#allocation2 + $0x68] sm:$0xff]
          %v984 = vld [vmem:[#allocation2 + $0x70] sm:$0xff]
          %v985 = vld [vmem:[#allocation2 + $0x78] sm:$0xff]
          %vm986 = vcmp.ge.f32.partialorder %v970, 0.0
          %vm987 = vcmp.ge.f32.partialorder %v971, 0.0
          %vm988 = vcmp.ge.f32.partialorder %v972, 0.0
          %vm989 = vcmp.ge.f32.partialorder %v973, 0.0
          %vm990 = vcmp.ge.f32.partialorder %v974, 0.0
          %vm991 = vcmp.ge.f32.partialorder %v975, 0.0
          %vm992 = vcmp.ge.f32.partialorder %v976, 0.0
          %vm993 = vcmp.ge.f32.partialorder %v977, 0.0
          %vm994 = vcmp.ge.f32.partialorder %v978, 0.0
          %vm995 = vcmp.ge.f32.partialorder %v979, 0.0
          %vm996 = vcmp.ge.f32.partialorder %v980, 0.0
          %vm997 = vcmp.ge.f32.partialorder %v981, 0.0
          %vm998 = vcmp.ge.f32.partialorder %v982, 0.0
          %vm999 = vcmp.ge.f32.partialorder %v983, 0.0
          %vm1000 = vcmp.ge.f32.partialorder %v984, 0.0
          %vm1001 = vcmp.ge.f32.partialorder %v985, 0.0
          %v1002 = vmul.f32 %v970, 0.2
          %v1003 = vmul.f32 %v971, 0.2
          %v1004 = vmul.f32 %v972, 0.2
          %v1005 = vmul.f32 %v973, 0.2
          %v1006 = vmul.f32 %v974, 0.2
          %v1007 = vmul.f32 %v975, 0.2
          %v1008 = vmul.f32 %v976, 0.2
          %v1009 = vmul.f32 %v977, 0.2
          %v1010 = vmul.f32 %v978, 0.2
          %v1011 = vmul.f32 %v979, 0.2
          %v1012 = vmul.f32 %v980, 0.2
          %v1013 = vmul.f32 %v981, 0.2
          %v1014 = vmul.f32 %v982, 0.2
          %v1015 = vmul.f32 %v983, 0.2
          %v1016 = vmul.f32 %v984, 0.2
          %v1017 = vmul.f32 %v985, 0.2
          %v1018 = vsel %vm986, %v970, %v1002
          %v1019 = vsel %vm987, %v971, %v1003
          %v1020 = vsel %vm988, %v972, %v1004
          %v1021 = vsel %vm989, %v973, %v1005
          %v1022 = vsel %vm990, %v974, %v1006
          %v1023 = vsel %vm991, %v975, %v1007
          %v1024 = vsel %vm992, %v976, %v1008
          %v1025 = vsel %vm993, %v977, %v1009
          %v1026 = vsel %vm994, %v978, %v1010
          %v1027 = vsel %vm995, %v979, %v1011
          %v1028 = vsel %vm996, %v980, %v1012
          %v1029 = vsel %vm997, %v981, %v1013
          %v1030 = vsel %vm998, %v982, %v1014
          %v1031 = vsel %vm999, %v983, %v1015
          %v1032 = vsel %vm1000, %v984, %v1016
          %v1033 = vsel %vm1001, %v985, %v1017
          %v1034 = vpack.c.bf16 %v1019, %v1018
          %v1035 = vpack.c.bf16 %v1021, %v1020
          %v1036 = vpack.c.bf16 %v1023, %v1022
          %v1037 = vpack.c.bf16 %v1025, %v1024
          %v1038 = vpack.c.bf16 %v1027, %v1026
          %v1039 = vpack.c.bf16 %v1029, %v1028
          %v1040 = vpack.c.bf16 %v1031, %v1030
          %v1041 = vpack.c.bf16 %v1033, %v1032
          %v1050 = vunpack.c.l.b16 %v1034
          %v1051 = vunpack.c.h.b16 %v1034
          %v1052 = vunpack.c.l.b16 %v1035
          %v1053 = vunpack.c.h.b16 %v1035
          %v1054 = vunpack.c.l.b16 %v1036
          %v1055 = vunpack.c.h.b16 %v1036
          %v1056 = vunpack.c.l.b16 %v1037
          %v1057 = vunpack.c.h.b16 %v1037
          %v1058 = vunpack.c.l.b16 %v1038
          %v1059 = vunpack.c.h.b16 %v1038
          %v1060 = vunpack.c.l.b16 %v1039
          %v1061 = vunpack.c.h.b16 %v1039
          %v1062 = vunpack.c.l.b16 %v1040
          %v1063 = vunpack.c.h.b16 %v1040
          %v1064 = vunpack.c.l.b16 %v1041
          %v1065 = vunpack.c.h.b16 %v1041
          %v1066 = vpack.c.b16 %v1050, %v1050
          %v1067 = vpack.c.b16 %v1051, %v1051
          %v1068 = vpack.c.b16 %v1052, %v1052
          %v1069 = vpack.c.b16 %v1053, %v1053
          %v1070 = vpack.c.b16 %v1054, %v1054
          %v1071 = vpack.c.b16 %v1055, %v1055
          %v1072 = vpack.c.b16 %v1056, %v1056
          %v1073 = vpack.c.b16 %v1057, %v1057
          %v1074 = vpack.c.b16 %v1058, %v1058
          %v1075 = vpack.c.b16 %v1059, %v1059
          %v1076 = vpack.c.b16 %v1060, %v1060
          %v1077 = vpack.c.b16 %v1061, %v1061
          %v1078 = vpack.c.b16 %v1062, %v1062
          %v1079 = vpack.c.b16 %v1063, %v1063
          %v1080 = vpack.c.b16 %v1064, %v1064
          %v1081 = vpack.c.b16 %v1065, %v1065
          %1098 = vst [vmem:[%s342] sm:$0xf] %v1066
          %1099 = vst [vmem:[%s342 + $0x4] sm:$0xf] %v1067
          %1100 = vst [vmem:[%s342 + $0x8] sm:$0xf] %v1068
          %1101 = vst [vmem:[%s342 + $0xc] sm:$0xf] %v1069
          %1102 = vst [vmem:[%s342 + $0x10] sm:$0xf] %v1070
          %1103 = vst [vmem:[%s342 + $0x14] sm:$0xf] %v1071
          %1104 = vst [vmem:[%s342 + $0x18] sm:$0xf] %v1072
          %1105 = vst [vmem:[%s342 + $0x1c] sm:$0xf] %v1073
          %1106 = vst [vmem:[%s342 + $0x20] sm:$0xf] %v1074
          %1107 = vst [vmem:[%s342 + $0x24] sm:$0xf] %v1075
          %1108 = vst [vmem:[%s342 + $0x28] sm:$0xf] %v1076
          %1109 = vst [vmem:[%s342 + $0x2c] sm:$0xf] %v1077
          %1110 = vst [vmem:[%s342 + $0x30] sm:$0xf] %v1078
          %1111 = vst [vmem:[%s342 + $0x34] sm:$0xf] %v1079
          %1112 = vst [vmem:[%s342 + $0x38] sm:$0xf] %v1080
          %1113 = vst [vmem:[%s342 + $0x3c] sm:$0xf] %v1081
        $region66: #{inpaint_generator_forward.18} parent=53 // pred_fallthru
          _
        %s1114 = smul.u32 16, %s19
        %p1115 = scmp.lt.s32.totalorder %s1114, 31
        %s1116 = scalar_select %p1115, %s1114, 31
        %p1117 = scmp.lt.s32.totalorder %s20, 0
        %s1118 = scalar_select %p1117, %s20, 0
        %s1119 = sadd.s32 %s1118, %s1116
        %s1120 = smul.addr %s1119, 4
        %s1121 = scalar_lea.vmem %s3, %s1120
        // Predicated region
        $region67: #{inpaint_generator_forward.18} parent=53 // pred_check
          %p1122 = pneg %p135
        $region68: #{inpaint_generator_forward.18} parent=53 // pred_check_branch
          %1124 = sbr.rel (%p1122) target = $region70
        $region69: #{inpaint_generator_forward.18} parent=53 // pred_region
          %s1125 = smul.u32 16, %s19
        $region70: #{inpaint_generator_forward.18} parent=53 // pred_fallthru
          _
      $region54: #{inpaint_generator_forward.18} parent=5 // pred_fallthru
        _
      %p1126 = scmp.le.s32.totalorder 2, %s9
      // Predicated region
      $region71: #{inpaint_generator_forward.18} parent=5 // pred_check
        %p1127 = pneg %p1126
      $region72: #{inpaint_generator_forward.18} parent=5 // pred_check_branch
        %1129 = sbr.rel (%p1127) target = $region74
      $region73: #{inpaint_generator_forward.18} parent=5 // pred_region
        %s1130 = ssub.s32 %s9, 2
        // Predicated region
        $region75: #{inpaint_generator_forward.18} parent=73 // pred_check
          %p1131 = pneg %p141
        $region76: #{inpaint_generator_forward.18} parent=73 // pred_check_branch
          %1133 = sbr.rel (%p1131) target = $region78
        $region77: #{inpaint_generator_forward.18} parent=73 // pred_region
          %s1134 = smul.u32 16, %s22
          %p1135 = scmp.lt.s32.totalorder %s1134, 31
          %s1136 = scalar_select %p1135, %s1134, 31
          %p1137 = scmp.lt.s32.totalorder %s23, 0
          %s1138 = scalar_select %p1137, %s23, 0
          %s1139 = sadd.s32 %s1138, %s1136
          %s1140 = smul.addr %s1139, 4
          %s1141 = scalar_lea.vmem %s3, %s1140
        $region78: #{inpaint_generator_forward.18} parent=73 // pred_fallthru
          _
      $region74: #{inpaint_generator_forward.18} parent=5 // pred_fallthru
        _
    $region6: #{inpaint_generator_forward.18} parent=1 // loop_footer
      %s13 = sadd.s32 1, %s9
    $region7: #{inpaint_generator_forward.18} parent=1 // loop_footer_branch
      %8 = sbr.rel target = $region3
    $region8: #{inpaint_generator_forward.18} parent=1 // loop_exit
      _

// kernel: inpaint_generator_forward.21
$region0: #{inpaint_generator_forward.21}
  #allocation0 [shape = 'u32[]', space=smem, size = 0x4, offset = 0x4, fixed_abs, tag = 'smem constant byte address 0x4 - core index']
  #allocation1 [shape = 'u32[144,128]{1,0:T(1,128)}', space=vmem, size = 0x12000, scoped, tag = 'internal scratch']
  #allocation2 [shape = 'f32[64,128]{1,0:T(8,128)}', space=vmem, size = 0x8000, scoped, tag = 'scratch operand']
  %s0 = inlined_call_operand.vmem [shape: bf16[64,128], index: 0, kind: input, shape index: {}]
  %s1 = inlined_call_operand.vmem [shape: bf16[128,128], index: 1, kind: input, shape index: {}]
  %s2 = inlined_call_operand.vmem [shape: f32[1,128], index: 2, kind: input, shape index: {}]
  %s3 = inlined_call_operand.vmem [shape: bf16[64,128], index: 3, kind: output, shape index: {}]
  %s4 = sld [smem:[#allocation0]]
  $region30: #{inpaint_generator_forward.21} parent=0
    _
  %s6 = ssub.s32 1, %s4
  %s7 = scalar_select 0, %s6, %s4
  // Predicated region
  $region2: #{inpaint_generator_forward.21} parent=0 // pred_check
    _
  $region3: #{inpaint_generator_forward.21} parent=0 // pred_check_branch
    %9 = sbr.rel (0) target = $region5
  $region4: #{inpaint_generator_forward.21} parent=0 // pred_region
    _
  $region5: #{inpaint_generator_forward.21} parent=0 // pred_fallthru
    _
  // Predicated region
  $region6: #{inpaint_generator_forward.21} parent=0 // pred_check
    _
  $region7: #{inpaint_generator_forward.21} parent=0 // pred_check_branch
    %11 = sbr.rel (0) target = $region9
  $region8: #{inpaint_generator_forward.21} parent=0 // pred_region
    _
  $region9: #{inpaint_generator_forward.21} parent=0 // pred_fallthru
    _
  // Predicated region
  $region10: #{inpaint_generator_forward.21} parent=0 // pred_check
    _
  $region11: #{inpaint_generator_forward.21} parent=0 // pred_check_branch
    %13 = sbr.rel (0) target = $region13
  $region12: #{inpaint_generator_forward.21} parent=0 // pred_region
    _
  $region13: #{inpaint_generator_forward.21} parent=0 // pred_fallthru
    _
  %p15 = scmp.eq.s32.totalorder 0, 0
  // Predicated region
  $region14: #{inpaint_generator_forward.21} parent=0 // pred_check
    %p16 = pneg %p15
  $region15: #{inpaint_generator_forward.21} parent=0 // pred_check_branch
    %18 = sbr.rel (%p16) target = $region17
  $region16: #{inpaint_generator_forward.21} parent=0 // pred_region
    %v19 = vld [vmem:[%s2] sm:$0x1]
    %v21 = vlaneseq
    %v22 = vshrl.u32 %v21, 7
    %v23 = vsub.s32 0, %v22
    %v24 = vrot.slane %v19, %v23
    %26 = vst [vmem:[#allocation2] sm:$0xff] %v24
    %27 = vst [vmem:[#allocation2 + $0x8] sm:$0xff] %v24
    %28 = vst [vmem:[#allocation2 + $0x10] sm:$0xff] %v24
    %29 = vst [vmem:[#allocation2 + $0x18] sm:$0xff] %v24
    %30 = vst [vmem:[#allocation2 + $0x20] sm:$0xff] %v24
    %31 = vst [vmem:[#allocation2 + $0x28] sm:$0xff] %v24
    %32 = vst [vmem:[#allocation2 + $0x30] sm:$0xff] %v24
    %33 = vst [vmem:[#allocation2 + $0x38] sm:$0xff] %v24
  $region17: #{inpaint_generator_forward.21} parent=0 // pred_fallthru
    _
  %v34 = vld [vmem:[#allocation2] sm:$0xff]
  %v35 = vld [vmem:[#allocation2 + $0x8] sm:$0xff]
  %v36 = vld [vmem:[#allocation2 + $0x10] sm:$0xff]
  %v37 = vld [vmem:[#allocation2 + $0x18] sm:$0xff]
  %v38 = vld [vmem:[#allocation2 + $0x20] sm:$0xff]
  %v39 = vld [vmem:[#allocation2 + $0x28] sm:$0xff]
  %v40 = vld [vmem:[#allocation2 + $0x30] sm:$0xff]
  %v41 = vld [vmem:[#allocation2 + $0x38] sm:$0xff]
  %v42 = vld [vmem:[%s0] sm:$0xf]
  %v43 = vld [vmem:[%s0 + $0x4] sm:$0xf]
  %v44 = vld [vmem:[%s0 + $0x8] sm:$0xf]
  %v45 = vld [vmem:[%s0 + $0xc] sm:$0xf]
  %v46 = vld [vmem:[%s0 + $0x10] sm:$0xf]
  %v47 = vld [vmem:[%s0 + $0x14] sm:$0xf]
  %v48 = vld [vmem:[%s0 + $0x18] sm:$0xf]
  %v49 = vld [vmem:[%s0 + $0x1c] sm:$0xf]
  %v50 = vld [vmem:[%s1] sm:$0xf]
  %v51 = vld [vmem:[%s1 + $0x4] sm:$0xf]
  %v52 = vld [vmem:[%s1 + $0x8] sm:$0xf]
  %v53 = vld [vmem:[%s1 + $0xc] sm:$0xf]
  %v54 = vld [vmem:[%s1 + $0x10] sm:$0xf]
  %v55 = vld [vmem:[%s1 + $0x14] sm:$0xf]
  %v56 = vld [vmem:[%s1 + $0x18] sm:$0xf]
  %v57 = vld [vmem:[%s1 + $0x1c] sm:$0xf]
  %v58 = vld [vmem:[%s1 + $0x20] sm:$0xf]
  %v59 = vld [vmem:[%s1 + $0x24] sm:$0xf]
  %v60 = vld [vmem:[%s1 + $0x28] sm:$0xf]
  %v61 = vld [vmem:[%s1 + $0x2c] sm:$0xf]
  %v62 = vld [vmem:[%s1 + $0x30] sm:$0xf]
  %v63 = vld [vmem:[%s1 + $0x34] sm:$0xf]
  %v64 = vld [vmem:[%s1 + $0x38] sm:$0xf]
  %v65 = vld [vmem:[%s1 + $0x3c] sm:$0xf]
  %v74 = vunpack.c.l.b16 %v42
  %v75 = vunpack.c.l.b16 %v43
  %v76 = vunpack.c.l.b16 %v44
  %v77 = vunpack.c.l.b16 %v45
  %v78 = vunpack.c.l.b16 %v46
  %v79 = vunpack.c.l.b16 %v47
  %v80 = vunpack.c.l.b16 %v48
  %v81 = vunpack.c.l.b16 %v49
  %v82 = vpack.c.b16 %v75, %v74
  %v83 = vpack.c.b16 %v77, %v76
  %v84 = vpack.c.b16 %v79, %v78
  %v85 = vpack.c.b16 %v81, %v80
  %v106 = vunpack.c.l.b16 %v50
  %v107 = vunpack.c.l.b16 %v51
  %v108 = vunpack.c.l.b16 %v52
  %v109 = vunpack.c.l.b16 %v53
  %v110 = vunpack.c.l.b16 %v54
  %v111 = vunpack.c.l.b16 %v55
  %v112 = vunpack.c.l.b16 %v56
  %v113 = vunpack.c.l.b16 %v57
  %v114 = vunpack.c.l.b16 %v58
  %v115 = vunpack.c.l.b16 %v59
  %v116 = vunpack.c.l.b16 %v60
  %v117 = vunpack.c.l.b16 %v61
  %v118 = vunpack.c.l.b16 %v62
  %v119 = vunpack.c.l.b16 %v63
  %v120 = vunpack.c.l.b16 %v64
  %v121 = vunpack.c.l.b16 %v65
  %v122 = vpack.c.b16 %v107, %v106
  %v123 = vpack.c.b16 %v109, %v108
  %v124 = vpack.c.b16 %v111, %v110
  %v125 = vpack.c.b16 %v113, %v112
  %v126 = vpack.c.b16 %v115, %v114
  %v127 = vpack.c.b16 %v117, %v116
  %v128 = vpack.c.b16 %v119, %v118
  %v129 = vpack.c.b16 %v121, %v120
  %138 = vmatprep.subr.bf16.mxu0 0
  %139 = vmatpush1.bf16.msra.mxu0 %v122
  %140 = vmatprep.subr.bf16.mxu0 0
  %141 = vmatpush1.bf16.msra.mxu0 %v123
  %142 = vmatprep.subr.bf16.mxu0 0
  %143 = vmatpush1.bf16.msra.mxu0 %v124
  %144 = vmatprep.subr.bf16.mxu0 0
  %145 = vmatpush1.bf16.msra.mxu0 %v125
  %146 = vmatprep.subr.bf16.mxu0 0
  %147 = vmatpush1.bf16.msra.mxu0 %v126
  %148 = vmatprep.subr.bf16.mxu0 0
  %149 = vmatpush1.bf16.msra.mxu0 %v127
  %150 = vmatprep.subr.bf16.mxu0 0
  %151 = vmatpush1.bf16.msra.mxu0 %v128
  %152 = vmatprep.subr.bf16.mxu0 0
  %153 = vmatpush1.bf16.msra.mxu0 %v129
  %154 = vmatprep.subr.bf16.mxu0 0
  %155 = vmatpush1.bf16.msra.mxu0 0
  %156 = vmatprep.subr.bf16.mxu0 0
  %157 = vmatpush1.bf16.msra.mxu0 0
  %158 = vmatprep.subr.bf16.mxu0 0
  %159 = vmatpush1.bf16.msra.mxu0 0
  %160 = vmatprep.subr.bf16.mxu0 0
  %161 = vmatpush1.bf16.msra.mxu0 0
  %162 = vmatprep.subr.bf16.mxu0 0
  %163 = vmatpush1.bf16.msra.mxu0 0
  %164 = vmatprep.subr.bf16.mxu0 0
  %165 = vmatpush1.bf16.msra.mxu0 0
  %166 = vmatprep.subr.bf16.mxu0 0
  %167 = vmatpush1.bf16.msra.mxu0 0
  %168 = vmatprep.subr.bf16.mxu0 0
  %169 = vmatpush1.bf16.msra.mxu0 0
  %170 = vmatprep.mubr.bf16.mxu0 0
  %171 = vmatmul.mubr.bf16.gmra.mrb[0].mxu0 %v82
  %v172 = vpop.f32.mrb[0].mxu0
  %v173 = vadd.f32 0.0, %v172
  %v174 = vpop.f32.mrb[0].mxu0
  %v175 = vpop.f32.mrb[0].mxu0
  %v176 = vadd.f32 0.0, %v175
  %v177 = vpop.f32.mrb[0].mxu0
  %178 = vmatprep.mubr.bf16.mxu0 0
  %179 = vmatmul.mubr.bf16.gmra.mrb[0].mxu0 %v83
  %v180 = vpop.f32.mrb[0].mxu0
  %v181 = vadd.f32 0.0, %v180
  %v182 = vpop.f32.mrb[0].mxu0
  %v183 = vpop.f32.mrb[0].mxu0
  %v184 = vadd.f32 0.0, %v183
  %v185 = vpop.f32.mrb[0].mxu0
  %186 = vmatprep.mubr.bf16.mxu0 0
  %187 = vmatmul.mubr.bf16.gmra.mrb[0].mxu0 %v84
  %v188 = vpop.f32.mrb[0].mxu0
  %v189 = vadd.f32 0.0, %v188
  %v190 = vpop.f32.mrb[0].mxu0
  %v191 = vpop.f32.mrb[0].mxu0
  %v192 = vadd.f32 0.0, %v191
  %v193 = vpop.f32.mrb[0].mxu0
  %194 = vmatprep.mubr.bf16.mxu0 0
  %195 = vmatmul.mubr.bf16.gmra.mrb[0].mxu0 %v85
  %v196 = vpop.f32.mrb[0].mxu0
  %v197 = vadd.f32 0.0, %v196
  %v198 = vpop.f32.mrb[0].mxu0
  %v199 = vpop.f32.mrb[0].mxu0
  %v200 = vadd.f32 0.0, %v199
  %v201 = vpop.f32.mrb[0].mxu0
  %202 = vdwg.mxu0
  %v203 = vadd.f32 %v34, %v173
  %v204 = vadd.f32 %v35, %v176
  %v205 = vadd.f32 %v36, %v181
  %v206 = vadd.f32 %v37, %v184
  %v207 = vadd.f32 %v38, %v189
  %v208 = vadd.f32 %v39, %v192
  %v209 = vadd.f32 %v40, %v197
  %v210 = vadd.f32 %v41, %v200
  %211 = vst [vmem:[#allocation2] sm:$0xff] %v203
  %212 = vst [vmem:[#allocation2 + $0x8] sm:$0xff] %v204
  %213 = vst [vmem:[#allocation2 + $0x10] sm:$0xff] %v205
  %214 = vst [vmem:[#allocation2 + $0x18] sm:$0xff] %v206
  %215 = vst [vmem:[#allocation2 + $0x20] sm:$0xff] %v207
  %216 = vst [vmem:[#allocation2 + $0x28] sm:$0xff] %v208
  %217 = vst [vmem:[#allocation2 + $0x30] sm:$0xff] %v209
  %218 = vst [vmem:[#allocation2 + $0x38] sm:$0xff] %v210
  // Predicated region
  $region18: #{inpaint_generator_forward.21} parent=0 // pred_check
    %p219 = pneg %p15
  $region19: #{inpaint_generator_forward.21} parent=0 // pred_check_branch
    %221 = sbr.rel (%p219) target = $region21
  $region20: #{inpaint_generator_forward.21} parent=0 // pred_region
    %v222 = vld [vmem:[#allocation2] sm:$0xff]
    %v223 = vld [vmem:[#allocation2 + $0x8] sm:$0xff]
    %v224 = vld [vmem:[#allocation2 + $0x10] sm:$0xff]
    %v225 = vld [vmem:[#allocation2 + $0x18] sm:$0xff]
    %v226 = vld [vmem:[#allocation2 + $0x20] sm:$0xff]
    %v227 = vld [vmem:[#allocation2 + $0x28] sm:$0xff]
    %v228 = vld [vmem:[#allocation2 + $0x30] sm:$0xff]
    %v229 = vld [vmem:[#allocation2 + $0x38] sm:$0xff]
    %v230 = vpack.c.bf16 %v223, %v222
    %v231 = vpack.c.bf16 %v225, %v224
    %v232 = vpack.c.bf16 %v227, %v226
    %v233 = vpack.c.bf16 %v229, %v228
    %v238 = vunpack.c.l.b16 %v230
    %v239 = vunpack.c.h.b16 %v230
    %v240 = vunpack.c.l.b16 %v231
    %v241 = vunpack.c.h.b16 %v231
    %v242 = vunpack.c.l.b16 %v232
    %v243 = vunpack.c.h.b16 %v232
    %v244 = vunpack.c.l.b16 %v233
    %v245 = vunpack.c.h.b16 %v233
    %v246 = vpack.c.b16 %v238, %v238
    %v247 = vpack.c.b16 %v239, %v239
    %v248 = vpack.c.b16 %v240, %v240
    %v249 = vpack.c.b16 %v241, %v241
    %v250 = vpack.c.b16 %v242, %v242
    %v251 = vpack.c.b16 %v243, %v243
    %v252 = vpack.c.b16 %v244, %v244
    %v253 = vpack.c.b16 %v245, %v245
    %262 = vst [vmem:[%s3] sm:$0xf] %v246
    %263 = vst [vmem:[%s3 + $0x4] sm:$0xf] %v247
    %264 = vst [vmem:[%s3 + $0x8] sm:$0xf] %v248
    %265 = vst [vmem:[%s3 + $0xc] sm:$0xf] %v249
    %266 = vst [vmem:[%s3 + $0x10] sm:$0xf] %v250
    %267 = vst [vmem:[%s3 + $0x14] sm:$0xf] %v251
    %268 = vst [vmem:[%s3 + $0x18] sm:$0xf] %v252
    %269 = vst [vmem:[%s3 + $0x1c] sm:$0xf] %v253
  $region21: #{inpaint_generator_forward.21} parent=0 // pred_fallthru
    _
  // Predicated region
  $region22: #{inpaint_generator_forward.21} parent=0 // pred_check
    _
  $region23: #{inpaint_generator_forward.21} parent=0 // pred_check_branch
    %271 = sbr.rel (0) target = $region25
  $region24: #{inpaint_generator_forward.21} parent=0 // pred_region
    _
  $region25: #{inpaint_generator_forward.21} parent=0 // pred_fallthru
    _
  // Predicated region
  $region26: #{inpaint_generator_forward.21} parent=0 // pred_check
    _
  $region27: #{inpaint_generator_forward.21} parent=0 // pred_check_branch
    %273 = sbr.rel (0) target = $region29
  $region28: #{inpaint_generator_forward.21} parent=0 // pred_region
    _
  $region29: #{inpaint_generator_forward.21} parent=0 // pred_fallthru
    _

// kernel: inpaint_generator_forward.19
$region0: #{inpaint_generator_forward.19}
  #allocation0 [shape = 'u32[]', space=smem, size = 0x4, offset = 0x4, fixed_abs, tag = 'smem constant byte address 0x4 - core index']
  #allocation1 [shape = 'u32[144,128]{1,0:T(1,128)}', space=vmem, size = 0x12000, scoped, tag = 'internal scratch']
  #allocation2 [shape = 'f32[64,128]{1,0:T(8,128)}', space=vmem, size = 0x8000, scoped, tag = 'scratch operand']
  %s0 = inlined_call_operand.vmem [shape: bf16[64,1152], index: 0, kind: input, shape index: {}]
  %s1 = inlined_call_operand.vmem [shape: bf16[1152,128], index: 1, kind: input, shape index: {}]
  %s2 = inlined_call_operand.vmem [shape: f32[1,128], index: 2, kind: input, shape index: {}]
  %s3 = inlined_call_operand.vmem [shape: bf16[64,128], index: 3, kind: output, shape index: {}]
  %s4 = sld [smem:[#allocation0]]
  $region79: #{inpaint_generator_forward.19} parent=0
    _
  %s6 = ssub.s32 1, %s4
  %s7 = scalar_select 0, %s6, %s4
  $region1: #{inpaint_generator_forward.19} parent=0
    #allocation3 [shape = 'u8[98304]{0}', space=vmem, size = 0x18000, scoped, tag = 'input window, operand 0']
    loop: start=0, step=1, limit=5
    $region2: #{inpaint_generator_forward.19} parent=1 // loop_pre_header
      _
    $region3: #{inpaint_generator_forward.19} parent=1 // loop_header
      %s9 = sphi 0, %s13
      %p10 = scmp.ge.s32.totalorder %s9, 5
      %s16 = sphi 0, %s35
      %s17 = sphi 0, %s31
      %s18 = sphi 0, %s27
      %s19 = sphi 0, %s16
      %s20 = sphi 0, %s17
      %s21 = sphi 0, %s18
      %s22 = sphi 0, %s19
      %s23 = sphi 0, %s20
      %s24 = sphi 0, %s21
      %s40 = sphi 0, %s42
      %s43 = sphi 0, %s40
      %s44 = sphi 0, %s43
      %s60 = sphi 0, %s44
      %s68 = sphi 0, %s70
      %s71 = sphi 0, %s68
      %s72 = sphi 0, %s71
      %s88 = sphi 0, %s72
      %s94 = sphi 0, %s96
      %s97 = sphi 0, %s94
      %s98 = sphi 0, %s97
      %s114 = sphi 0, %s98
      %s122 = sphi 0, %s124
      %s125 = sphi 0, %s122
      %s126 = sphi 0, %s125
      %s142 = sphi 0, %s126
    $region4: #{inpaint_generator_forward.19} parent=1 // loop_header_branch
      %12 = sbr.rel (%p10) target = $region8
    $region5: #{inpaint_generator_forward.19} parent=1 // loop_body
      %s14 = ssub.s32 %s9, 1
      %s15 = ssub.s32 %s9, 2
      %s25 = sadd.s32 1, %s18
      %p26 = scmp.ge.s32.totalorder %s25, 3
      %s27 = scalar_select %p26, 0, %s25
      %s28 = sadd.s32 1, %s17
      %s29 = scalar_select %p26, %s28, %s17
      %p30 = scmp.ge.s32.totalorder %s29, 1
      %s31 = scalar_select %p30, 0, %s29
      %s32 = sadd.s32 1, %s16
      %s33 = scalar_select %p30, %s32, %s16
      %p34 = scmp.ge.s32.totalorder %s33, 1
      %s35 = scalar_select %p34, 0, %s33
      %s36 = ssub.s32 %s16, %s35
      %s37 = ssub.s32 %s18, %s27
      %s38 = sor.u32 %s36, %s37
      %p39 = scmp.eq.s32.totalorder %s38, 0
      %s41 = sadd.s32 %s40, 1
      %s42 = scalar_select %p39, %s40, %s41
      %p45 = pneg %p39
      %p46 = scmp.eq.s32.totalorder %s9, 2
      %p47 = por %p45, %p46
      %p48 = scmp.ne.s32.totalorder %s40, %s43
      %p49 = scmp.eq.s32.totalorder %s9, 0
      %p50 = por %p48, %p49
      %p51 = scmp.ne.s32.totalorder %s40, %s43
      %p52 = scmp.eq.s32.totalorder %s14, 2
      %p53 = por %p51, %p52
      %p54 = scmp.ne.s32.totalorder %s43, %s44
      %p55 = scmp.eq.s32.totalorder %s14, 0
      %p56 = por %p54, %p55
      %p57 = scmp.ne.s32.totalorder %s43, %s44
      %p58 = scmp.eq.s32.totalorder %s15, 2
      %p59 = por %p57, %p58
      %p61 = scmp.ne.s32.totalorder %s44, %s60
      %p62 = scmp.eq.s32.totalorder %s15, 0
      %p63 = por %p61, %p62
      %s64 = ssub.s32 %s18, %s27
      %s65 = ssub.s32 %s17, %s31
      %s66 = sor.u32 %s64, %s65
      %p67 = scmp.eq.s32.totalorder %s66, 0
      %s69 = sadd.s32 %s68, 1
      %s70 = scalar_select %p67, %s68, %s69
      %p73 = pneg %p67
      %p74 = scmp.eq.s32.totalorder %s9, 2
      %p75 = por %p73, %p74
      %p76 = scmp.ne.s32.totalorder %s68, %s71
      %p77 = scmp.eq.s32.totalorder %s9, 0
      %p78 = por %p76, %p77
      %p79 = scmp.ne.s32.totalorder %s68, %s71
      %p80 = scmp.eq.s32.totalorder %s14, 2
      %p81 = por %p79, %p80
      %p82 = scmp.ne.s32.totalorder %s71, %s72
      %p83 = scmp.eq.s32.totalorder %s14, 0
      %p84 = por %p82, %p83
      %p85 = scmp.ne.s32.totalorder %s71, %s72
      %p86 = scmp.eq.s32.totalorder %s15, 2
      %p87 = por %p85, %p86
      %p89 = scmp.ne.s32.totalorder %s72, %s88
      %p90 = scmp.eq.s32.totalorder %s15, 0
      %p91 = por %p89, %p90
      %s92 = ssub.s32 %s17, %s31
      %p93 = scmp.eq.s32.totalorder %s92, 0
      %s95 = sadd.s32 %s94, 1
      %s96 = scalar_select %p93, %s94, %s95
      %p99 = pneg %p93
      %p100 = scmp.eq.s32.totalorder %s9, 2
      %p101 = por %p99, %p100
      %p102 = scmp.ne.s32.totalorder %s94, %s97
      %p103 = scmp.eq.s32.totalorder %s9, 0
      %p104 = por %p102, %p103
      %p105 = scmp.ne.s32.totalorder %s94, %s97
      %p106 = scmp.eq.s32.totalorder %s14, 2
      %p107 = por %p105, %p106
      %p108 = scmp.ne.s32.totalorder %s97, %s98
      %p109 = scmp.eq.s32.totalorder %s14, 0
      %p110 = por %p108, %p109
      %p111 = scmp.ne.s32.totalorder %s97, %s98
      %p112 = scmp.eq.s32.totalorder %s15, 2
      %p113 = por %p111, %p112
      %p115 = scmp.ne.s32.totalorder %s98, %s114
      %p116 = scmp.eq.s32.totalorder %s15, 0
      %p117 = por %p115, %p116
      %s118 = ssub.s32 %s16, %s35
      %s119 = ssub.s32 %s17, %s31
      %s120 = sor.u32 %s118, %s119
      %p121 = scmp.eq.s32.totalorder %s120, 0
      %s123 = sadd.s32 %s122, 1
      %s124 = scalar_select %p121, %s122, %s123
      %p127 = pneg %p121
      %p128 = scmp.eq.s32.totalorder %s9, 2
      %p129 = por %p127, %p128
      %p130 = scmp.ne.s32.totalorder %s122, %s125
      %p131 = scmp.eq.s32.totalorder %s9, 0
      %p132 = por %p130, %p131
      %p133 = scmp.ne.s32.totalorder %s122, %s125
      %p134 = scmp.eq.s32.totalorder %s14, 2
      %p135 = por %p133, %p134
      %p136 = scmp.ne.s32.totalorder %s125, %s126
      %p137 = scmp.eq.s32.totalorder %s14, 0
      %p138 = por %p136, %p137
      %p139 = scmp.ne.s32.totalorder %s125, %s126
      %p140 = scmp.eq.s32.totalorder %s15, 2
      %p141 = por %p139, %p140
      %p143 = scmp.ne.s32.totalorder %s126, %s142
      %p144 = scmp.eq.s32.totalorder %s15, 0
      %p145 = por %p143, %p144
      %p146 = scmp.le.s32.totalorder 1, %s9
      %p147 = scmp.lt.s32.totalorder %s9, 4
      %p148 = pnand %p146, %p147
      %p149 = pneg %p148
      // Predicated region
      $region9: #{inpaint_generator_forward.19} parent=5 // pred_check
        _
      $region10: #{inpaint_generator_forward.19} parent=5 // pred_check_branch
        %151 = sbr.rel (%p148) target = $region12
      $region11: #{inpaint_generator_forward.19} parent=5 // pred_region
        %s152 = ssub.s32 %s9, 1
        // Predicated region
        $region13: #{inpaint_generator_forward.19} parent=11 // pred_check
          %p153 = pneg %p110
        $region14: #{inpaint_generator_forward.19} parent=11 // pred_check_branch
          %155 = sbr.rel (%p153) target = $region16
        $region15: #{inpaint_generator_forward.19} parent=11 // pred_region
          %p156 = scmp.lt.s32.totalorder %s20, 0
          %s157 = scalar_select %p156, %s20, 0
          %s158 = scalar_lea.vmem %s2, %s157
        $region16: #{inpaint_generator_forward.19} parent=11 // pred_fallthru
          _
      $region12: #{inpaint_generator_forward.19} parent=5 // pred_fallthru
        _
      %p159 = scmp.lt.s32.totalorder %s9, 3
      // Predicated region
      $region17: #{inpaint_generator_forward.19} parent=5 // pred_check
        %p160 = pneg %p159
      $region18: #{inpaint_generator_forward.19} parent=5 // pred_check_branch
        %162 = sbr.rel (%p160) target = $region20
      $region19: #{inpaint_generator_forward.19} parent=5 // pred_region
        // Predicated region
        $region21: #{inpaint_generator_forward.19} parent=19 // pred_check
          %p163 = pneg %p50
        $region22: #{inpaint_generator_forward.19} parent=19 // pred_check_branch
          %165 = sbr.rel (%p163) target = $region24
        $region23: #{inpaint_generator_forward.19} parent=19 // pred_region
          %s166 = sand.u32 %s40, 1
          %s167 = sand.u32 %s40, 1
          %s168 = smul.addr %s167, 96
          %s169 = scalar_lea.vmem [#allocation3], %s168
          %s170 = smul.u32 8, %s16
          %s171 = smul.u32 3, %s18
          %s172 = smul.addr %s170, 9
          %s173 = sadd.s32 %s171, %s172
          %s174 = smul.addr %s173, 4
          %s175 = scalar_lea.vmem %s0, %s174
          // Predicated region
          $region25: #{inpaint_generator_forward.19} parent=23 // pred_check
            _
          $region26: #{inpaint_generator_forward.19} parent=23 // pred_check_branch
            %177 = sbr.rel (0) target = $region28
          $region27: #{inpaint_generator_forward.19} parent=23 // pred_region
            // Predicated region
            $region29: #{inpaint_generator_forward.19} parent=27 // pred_check
              _
            $region30: #{inpaint_generator_forward.19} parent=27 // pred_check_branch
              %179 = sbr.rel (0) target = $region32
            $region31: #{inpaint_generator_forward.19} parent=27 // pred_region
              %s180 = scalar_lea.vmem %s175, 8
              %s181 = scalar_lea.vmem %s169, 8 [#allocation3]
              loop: start=0, step=1, limit=1
              $region33: #{inpaint_generator_forward.19} parent=31 // loop_pre_header
                _
              $region34: #{inpaint_generator_forward.19} parent=31 // loop_header
                %s183 = sphi 0, %s187
                %p184 = scmp.ge.s32.totalorder %s183, 1
                %s188 = sphi %s175, %s175
                %s189 = sphi %s169, %s169
              $region35: #{inpaint_generator_forward.19} parent=31 // loop_header_branch
                %186 = sbr.rel (%p184) target = $region39
              $region36: #{inpaint_generator_forward.19} parent=31 // loop_body
                %v190 = vld [vmem:[%s188] sm:$0xff]
                %191 = vst [vmem:[%s189] sm:$0xff] %v190
                %v192 = vld [vmem:[%s188 + $0x24] sm:$0xff]
                %193 = vst [vmem:[%s189 + $0xc] sm:$0xff] %v192
                %v194 = vld [vmem:[%s188 + $0x48] sm:$0xff]
                %195 = vst [vmem:[%s189 + $0x18] sm:$0xff] %v194
                %v196 = vld [vmem:[%s188 + $0x6c] sm:$0xff]
                %197 = vst [vmem:[%s189 + $0x24] sm:$0xff] %v196
                %v198 = vld [vmem:[%s188 + $0x90] sm:$0xff]
                %199 = vst [vmem:[%s189 + $0x30] sm:$0xff] %v198
                %v200 = vld [vmem:[%s188 + $0xb4] sm:$0xff]
                %201 = vst [vmem:[%s189 + $0x3c] sm:$0xff] %v200
                %v202 = vld [vmem:[%s188 + $0xd8] sm:$0xff]
                %203 = vst [vmem:[%s189 + $0x48] sm:$0xff] %v202
                %v204 = vld [vmem:[%s188 + $0xfc] sm:$0xff]
                %205 = vst [vmem:[%s189 + $0x54] sm:$0xff] %v204
              $region37: #{inpaint_generator_forward.19} parent=31 // loop_footer
                %s187 = sadd.s32 1, %s183
              $region38: #{inpaint_generator_forward.19} parent=31 // loop_footer_branch
                %182 = sbr.rel target = $region34
              $region39: #{inpaint_generator_forward.19} parent=31 // loop_exit
                _
              loop: start=0, step=1, limit=1
              $region40: #{inpaint_generator_forward.19} parent=31 // loop_pre_header
                _
              $region41: #{inpaint_generator_forward.19} parent=31 // loop_header
                %s208 = sphi 0, %s212
                %p209 = scmp.ge.s32.totalorder %s208, 1
                %s213 = sphi %s180, %s180
                %s214 = sphi %s181, %s181
              $region42: #{inpaint_generator_forward.19} parent=31 // loop_header_branch
                %211 = sbr.rel (%p209) target = $region46
              $region43: #{inpaint_generator_forward.19} parent=31 // loop_body
                %v215 = vld [vmem:[%s213] sm:$0xf]
                %216 = vst [vmem:[%s214] sm:$0xf] %v215
                %v217 = vld [vmem:[%s213 + $0x24] sm:$0xf]
                %218 = vst [vmem:[%s214 + $0xc] sm:$0xf] %v217
                %v219 = vld [vmem:[%s213 + $0x48] sm:$0xf]
                %220 = vst [vmem:[%s214 + $0x18] sm:$0xf] %v219
                %v221 = vld [vmem:[%s213 + $0x6c] sm:$0xf]
                %222 = vst [vmem:[%s214 + $0x24] sm:$0xf] %v221
                %v223 = vld [vmem:[%s213 + $0x90] sm:$0xf]
                %224 = vst [vmem:[%s214 + $0x30] sm:$0xf] %v223
                %v225 = vld [vmem:[%s213 + $0xb4] sm:$0xf]
                %226 = vst [vmem:[%s214 + $0x3c] sm:$0xf] %v225
                %v227 = vld [vmem:[%s213 + $0xd8] sm:$0xf]
                %228 = vst [vmem:[%s214 + $0x48] sm:$0xf] %v227
                %v229 = vld [vmem:[%s213 + $0xfc] sm:$0xf]
                %230 = vst [vmem:[%s214 + $0x54] sm:$0xf] %v229
              $region44: #{inpaint_generator_forward.19} parent=31 // loop_footer
                %s212 = sadd.s32 1, %s208
              $region45: #{inpaint_generator_forward.19} parent=31 // loop_footer_branch
                %207 = sbr.rel target = $region41
              $region46: #{inpaint_generator_forward.19} parent=31 // loop_exit
                _
            $region32: #{inpaint_generator_forward.19} parent=27 // pred_fallthru
              _
          $region28: #{inpaint_generator_forward.19} parent=23 // pred_fallthru
            _
          %231 = vnop
        $region24: #{inpaint_generator_forward.19} parent=19 // pred_fallthru
          _
        // Predicated region
        $region47: #{inpaint_generator_forward.19} parent=19 // pred_check
          %p232 = pneg %p78
        $region48: #{inpaint_generator_forward.19} parent=19 // pred_check_branch
          %234 = sbr.rel (%p232) target = $region50
        $region49: #{inpaint_generator_forward.19} parent=19 // pred_region
          %s235 = smul.u32 48, %s18
          %p236 = scmp.lt.s32.totalorder %s235, 143
          %s237 = scalar_select %p236, %s235, 143
          %p238 = scmp.lt.s32.totalorder %s17, 0
          %s239 = scalar_select %p238, %s17, 0
          %s240 = sadd.s32 %s239, %s237
          %s241 = smul.addr %s240, 4
          %s242 = scalar_lea.vmem %s1, %s241
          %s243 = smul.u32 48, %s18
        $region50: #{inpaint_generator_forward.19} parent=19 // pred_fallthru
          _
      $region20: #{inpaint_generator_forward.19} parent=5 // pred_fallthru
        _
      %p244 = scmp.le.s32.totalorder 1, %s9
      %p245 = scmp.lt.s32.totalorder %s9, 4
      %p246 = pnand %p244, %p245
      %p247 = pneg %p246
      // Predicated region
      $region51: #{inpaint_generator_forward.19} parent=5 // pred_check
        _
      $region52: #{inpaint_generator_forward.19} parent=5 // pred_check_branch
        %249 = sbr.rel (%p246) target = $region54
      $region53: #{inpaint_generator_forward.19} parent=5 // pred_region
        %s250 = ssub.s32 %s9, 1
        %s251 = sand.u32 %s43, 1
        %s252 = sand.u32 %s43, 1
        %s253 = smul.addr %s252, 96
        %s254 = scalar_lea.vmem [#allocation3], %s253
        // Predicated region
        $region55: #{inpaint_generator_forward.19} parent=53 // pred_check
          %p255 = pneg %p56
        $region56: #{inpaint_generator_forward.19} parent=53 // pred_check_branch
          %257 = sbr.rel (%p255) target = $region58
        $region57: #{inpaint_generator_forward.19} parent=53 // pred_region
          _
        $region58: #{inpaint_generator_forward.19} parent=53 // pred_fallthru
          _
        %s258 = sand.u32 %s43, 1
        %s259 = sand.u32 %s43, 1
        %s260 = smul.addr %s259, 96
        %s261 = scalar_lea.vmem [#allocation3], %s260
        %p262 = pneg %p56
        %p263 = pneg %p53
        %s264 = smul.u32 48, %s21
        %p265 = scmp.lt.s32.totalorder %s264, 143
        %s266 = scalar_select %p265, %s264, 143
        %p267 = scmp.lt.s32.totalorder %s20, 0
        %s268 = scalar_select %p267, %s20, 0
        %s269 = sadd.s32 %s268, %s266
        %s270 = smul.addr %s269, 4
        %s271 = scalar_lea.vmem %s1, %s270
        %p272 = pneg %p84
        %p273 = pneg %p81
        %p274 = scmp.lt.s32.totalorder %s20, 0
        %s275 = scalar_select %p274, %s20, 0
        %s276 = scalar_lea.vmem %s2, %s275
        %p277 = pneg %p110
        %p278 = pneg %p107
        %p279 = pneg %p138
        %p280 = pneg %p135
        %s281 = smul.u32 8, %s19
        %p282 = scmp.lt.s32.totalorder %s281, 7
        %s283 = scalar_select %p282, %s281, 7
        %p284 = scmp.lt.s32.totalorder %s20, 0
        %s285 = scalar_select %p284, %s20, 0
        %s286 = sadd.s32 %s285, %s283
        %s287 = smul.addr %s286, 4
        %s288 = scalar_lea.vmem %s3, %s287
        %s289 = smul.u32 8, %s19
        %s290 = smul.u32 3, %s21
        %s291 = smul.u32 48, %s21
        %p292 = scmp.lt.s32.totalorder %s291, 143
        %s293 = scalar_select %p292, %s291, 143
        %p294 = scmp.lt.s32.totalorder %s20, 0
        %s295 = scalar_select %p294, %s20, 0
        %s296 = sadd.s32 %s295, %s293
        %s297 = smul.addr %s296, 4
        %s298 = scalar_lea.vmem %s1, %s297
        %s299 = smul.u32 48, %s21
        %p300 = scmp.lt.s32.totalorder %s20, 0
        %s301 = scalar_select %p300, %s20, 0
        %s302 = scalar_lea.vmem %s2, %s301
        %s303 = smul.u32 8, %s19
        %p304 = scmp.lt.s32.totalorder %s303, 7
        %s305 = scalar_select %p304, %s303, 7
        %p306 = scmp.lt.s32.totalorder %s20, 0
        %s307 = scalar_select %p306, %s20, 0
        %s308 = sadd.s32 %s307, %s305
        %s309 = smul.addr %s308, 4
        %s310 = scalar_lea.vmem %s3, %s309
        %s311 = smul.u32 8, %s19
        %p313 = scmp.eq.s32.totalorder %s21, 0
        // Predicated region
        $region59: #{inpaint_generator_forward.19} parent=53 // pred_check
          %p314 = pneg %p313
        $region60: #{inpaint_generator_forward.19} parent=53 // pred_check_branch
          %316 = sbr.rel (%p314) target = $region62
        $region61: #{inpaint_generator_forward.19} parent=53 // pred_region
          %v317 = vld [vmem:[%s302] sm:$0x1]
          %v319 = vlaneseq
          %v320 = vshrl.u32 %v319, 7
          %v321 = vsub.s32 0, %v320
          %v322 = vrot.slane %v317, %v321
          %324 = vst [vmem:[#allocation2] sm:$0xff] %v322
          %325 = vst [vmem:[#allocation2 + $0x8] sm:$0xff] %v322
          %326 = vst [vmem:[#allocation2 + $0x10] sm:$0xff] %v322
          %327 = vst [vmem:[#allocation2 + $0x18] sm:$0xff] %v322
          %328 = vst [vmem:[#allocation2 + $0x20] sm:$0xff] %v322
          %329 = vst [vmem:[#allocation2 + $0x28] sm:$0xff] %v322
          %330 = vst [vmem:[#allocation2 + $0x30] sm:$0xff] %v322
          %331 = vst [vmem:[#allocation2 + $0x38] sm:$0xff] %v322
        $region62: #{inpaint_generator_forward.19} parent=53 // pred_fallthru
          _
        %v332 = vld [vmem:[#allocation2] sm:$0xff]
        %v333 = vld [vmem:[#allocation2 + $0x8] sm:$0xff]
        %v334 = vld [vmem:[#allocation2 + $0x10] sm:$0xff]
        %v335 = vld [vmem:[#allocation2 + $0x18] sm:$0xff]
        %v336 = vld [vmem:[#allocation2 + $0x20] sm:$0xff]
        %v337 = vld [vmem:[#allocation2 + $0x28] sm:$0xff]
        %v338 = vld [vmem:[#allocation2 + $0x30] sm:$0xff]
        %v339 = vld [vmem:[#allocation2 + $0x38] sm:$0xff]
        %v340 = vld [vmem:[%s254] sm:$0xff]
        %v341 = vld [vmem:[%s254 + $0x8] sm:$0xf]
        %v342 = vld [vmem:[%s254 + $0xc] sm:$0xff]
        %v343 = vld [vmem:[%s254 + $0x14] sm:$0xf]
        %v344 = vld [vmem:[%s254 + $0x18] sm:$0xff]
        %v345 = vld [vmem:[%s254 + $0x20] sm:$0xf]
        %v346 = vld [vmem:[%s254 + $0x24] sm:$0xff]
        %v347 = vld [vmem:[%s254 + $0x2c] sm:$0xf]
        %v348 = vld [vmem:[%s254 + $0x30] sm:$0xff]
        %v349 = vld [vmem:[%s254 + $0x38] sm:$0xf]
        %v350 = vld [vmem:[%s254 + $0x3c] sm:$0xff]
        %v351 = vld [vmem:[%s254 + $0x44] sm:$0xf]
        %v352 = vld [vmem:[%s254 + $0x48] sm:$0xff]
        %v353 = vld [vmem:[%s254 + $0x50] sm:$0xf]
        %v354 = vld [vmem:[%s254 + $0x54] sm:$0xff]
        %v355 = vld [vmem:[%s254 + $0x5c] sm:$0xf]
        %v356 = vld [vmem:[%s298] sm:$0xf]
        %v357 = vld [vmem:[%s298 + $0x4] sm:$0xf]
        %v358 = vld [vmem:[%s298 + $0x8] sm:$0xf]
        %v359 = vld [vmem:[%s298 + $0xc] sm:$0xf]
        %v360 = vld [vmem:[%s298 + $0x10] sm:$0xf]
        %v361 = vld [vmem:[%s298 + $0x14] sm:$0xf]
        %v362 = vld [vmem:[%s298 + $0x18] sm:$0xf]
        %v363 = vld [vmem:[%s298 + $0x1c] sm:$0xf]
        %v364 = vld [vmem:[%s298 + $0x20] sm:$0xf]
        %v365 = vld [vmem:[%s298 + $0x24] sm:$0xf]
        %v366 = vld [vmem:[%s298 + $0x28] sm:$0xf]
        %v367 = vld [vmem:[%s298 + $0x2c] sm:$0xf]
        %v368 = vld [vmem:[%s298 + $0x30] sm:$0xf]
        %v369 = vld [vmem:[%s298 + $0x34] sm:$0xf]
        %v370 = vld [vmem:[%s298 + $0x38] sm:$0xf]
        %v371 = vld [vmem:[%s298 + $0x3c] sm:$0xf]
        %v372 = vld [vmem:[%s298 + $0x40] sm:$0xf]
        %v373 = vld [vmem:[%s298 + $0x44] sm:$0xf]
        %v374 = vld [vmem:[%s298 + $0x48] sm:$0xf]
        %v375 = vld [vmem:[%s298 + $0x4c] sm:$0xf]
        %v376 = vld [vmem:[%s298 + $0x50] sm:$0xf]
        %v377 = vld [vmem:[%s298 + $0x54] sm:$0xf]
        %v378 = vld [vmem:[%s298 + $0x58] sm:$0xf]
        %v379 = vld [vmem:[%s298 + $0x5c] sm:$0xf]
        %v380 = vld [vmem:[%s298 + $0x60] sm:$0xf]
        %v381 = vld [vmem:[%s298 + $0x64] sm:$0xf]
        %v382 = vld [vmem:[%s298 + $0x68] sm:$0xf]
        %v383 = vld [vmem:[%s298 + $0x6c] sm:$0xf]
        %v384 = vld [vmem:[%s298 + $0x70] sm:$0xf]
        %v385 = vld [vmem:[%s298 + $0x74] sm:$0xf]
        %v386 = vld [vmem:[%s298 + $0x78] sm:$0xf]
        %v387 = vld [vmem:[%s298 + $0x7c] sm:$0xf]
        %v388 = vld [vmem:[%s298 + $0x80] sm:$0xf]
        %v389 = vld [vmem:[%s298 + $0x84] sm:$0xf]
        %v390 = vld [vmem:[%s298 + $0x88] sm:$0xf]
        %v391 = vld [vmem:[%s298 + $0x8c] sm:$0xf]
        %v392 = vld [vmem:[%s298 + $0x90] sm:$0xf]
        %v393 = vld [vmem:[%s298 + $0x94] sm:$0xf]
        %v394 = vld [vmem:[%s298 + $0x98] sm:$0xf]
        %v395 = vld [vmem:[%s298 + $0x9c] sm:$0xf]
        %v396 = vld [vmem:[%s298 + $0xa0] sm:$0xf]
        %v397 = vld [vmem:[%s298 + $0xa4] sm:$0xf]
        %v398 = vld [vmem:[%s298 + $0xa8] sm:$0xf]
        %v399 = vld [vmem:[%s298 + $0xac] sm:$0xf]
        %v400 = vld [vmem:[%s298 + $0xb0] sm:$0xf]
        %v401 = vld [vmem:[%s298 + $0xb4] sm:$0xf]
        %v402 = vld [vmem:[%s298 + $0xb8] sm:$0xf]
        %v403 = vld [vmem:[%s298 + $0xbc] sm:$0xf]
        %v420 = vunpack.c.l.b16 %v340
        %v421 = vunpack.c.h.b16 %v340
        %v422 = vunpack.c.l.b16 %v341
        %v423 = vunpack.c.l.b16 %v342
        %v424 = vunpack.c.h.b16 %v342
        %v425 = vunpack.c.l.b16 %v343
        %v426 = vunpack.c.l.b16 %v344
        %v427 = vunpack.c.h.b16 %v344
        %v428 = vunpack.c.l.b16 %v345
        %v429 = vunpack.c.l.b16 %v346
        %v430 = vunpack.c.h.b16 %v346
        %v431 = vunpack.c.l.b16 %v347
        %v432 = vunpack.c.l.b16 %v348
        %v433 = vunpack.c.h.b16 %v348
        %v434 = vunpack.c.l.b16 %v349
        %v435 = vunpack.c.l.b16 %v350
        %v436 = vunpack.c.h.b16 %v350
        %v437 = vunpack.c.l.b16 %v351
        %v438 = vunpack.c.l.b16 %v352
        %v439 = vunpack.c.h.b16 %v352
        %v440 = vunpack.c.l.b16 %v353
        %v441 = vunpack.c.l.b16 %v354
        %v442 = vunpack.c.h.b16 %v354
        %v443 = vunpack.c.l.b16 %v355
        %v444 = vpack.c.b16 %v423, %v420
        %v445 = vpack.c.b16 %v424, %v421
        %v446 = vpack.c.b16 %v425, %v422
        %v447 = vpack.c.b16 %v429, %v426
        %v448 = vpack.c.b16 %v430, %v427
        %v449 = vpack.c.b16 %v431, %v428
        %v450 = vpack.c.b16 %v435, %v432
        %v451 = vpack.c.b16 %v436, %v433
        %v452 = vpack.c.b16 %v437, %v434
        %v453 = vpack.c.b16 %v441, %v438
        %v454 = vpack.c.b16 %v442, %v439
        %v455 = vpack.c.b16 %v443, %v440
        %v516 = vunpack.c.l.b16 %v356
        %v517 = vunpack.c.l.b16 %v357
        %v518 = vunpack.c.l.b16 %v358
        %v519 = vunpack.c.l.b16 %v359
        %v520 = vunpack.c.l.b16 %v360
        %v521 = vunpack.c.l.b16 %v361
        %v522 = vunpack.c.l.b16 %v362
        %v523 = vunpack.c.l.b16 %v363
        %v524 = vunpack.c.l.b16 %v364
        %v525 = vunpack.c.l.b16 %v365
        %v526 = vunpack.c.l.b16 %v366
        %v527 = vunpack.c.l.b16 %v367
        %v528 = vunpack.c.l.b16 %v368
        %v529 = vunpack.c.l.b16 %v369
        %v530 = vunpack.c.l.b16 %v370
        %v531 = vunpack.c.l.b16 %v371
        %v532 = vunpack.c.l.b16 %v372
        %v533 = vunpack.c.l.b16 %v373
        %v534 = vunpack.c.l.b16 %v374
        %v535 = vunpack.c.l.b16 %v375
        %v536 = vunpack.c.l.b16 %v376
        %v537 = vunpack.c.l.b16 %v377
        %v538 = vunpack.c.l.b16 %v378
        %v539 = vunpack.c.l.b16 %v379
        %v540 = vunpack.c.l.b16 %v380
        %v541 = vunpack.c.l.b16 %v381
        %v542 = vunpack.c.l.b16 %v382
        %v543 = vunpack.c.l.b16 %v383
        %v544 = vunpack.c.l.b16 %v384
        %v545 = vunpack.c.l.b16 %v385
        %v546 = vunpack.c.l.b16 %v386
        %v547 = vunpack.c.l.b16 %v387
        %v548 = vunpack.c.l.b16 %v388
        %v549 = vunpack.c.l.b16 %v389
        %v550 = vunpack.c.l.b16 %v390
        %v551 = vunpack.c.l.b16 %v391
        %v552 = vunpack.c.l.b16 %v392
        %v553 = vunpack.c.l.b16 %v393
        %v554 = vunpack.c.l.b16 %v394
        %v555 = vunpack.c.l.b16 %v395
        %v556 = vunpack.c.l.b16 %v396
        %v557 = vunpack.c.l.b16 %v397
        %v558 = vunpack.c.l.b16 %v398
        %v559 = vunpack.c.l.b16 %v399
        %v560 = vunpack.c.l.b16 %v400
        %v561 = vunpack.c.l.b16 %v401
        %v562 = vunpack.c.l.b16 %v402
        %v563 = vunpack.c.l.b16 %v403
        %v564 = vpack.c.b16 %v517, %v516
        %v565 = vpack.c.b16 %v519, %v518
        %v566 = vpack.c.b16 %v521, %v520
        %v567 = vpack.c.b16 %v523, %v522
        %v568 = vpack.c.b16 %v525, %v524
        %v569 = vpack.c.b16 %v527, %v526
        %v570 = vpack.c.b16 %v529, %v528
        %v571 = vpack.c.b16 %v531, %v530
        %v572 = vpack.c.b16 %v533, %v532
        %v573 = vpack.c.b16 %v535, %v534
        %v574 = vpack.c.b16 %v537, %v536
        %v575 = vpack.c.b16 %v539, %v538
        %v576 = vpack.c.b16 %v541, %v540
        %v577 = vpack.c.b16 %v543, %v542
        %v578 = vpack.c.b16 %v545, %v544
        %v579 = vpack.c.b16 %v547, %v546
        %v580 = vpack.c.b16 %v549, %v548
        %v581 = vpack.c.b16 %v551, %v550
        %v582 = vpack.c.b16 %v553, %v552
        %v583 = vpack.c.b16 %v555, %v554
        %v584 = vpack.c.b16 %v557, %v556
        %v585 = vpack.c.b16 %v559, %v558
        %v586 = vpack.c.b16 %v561, %v560
        %v587 = vpack.c.b16 %v563, %v562
        %612 = vmatprep.subr.bf16.mxu0 0
        %613 = vmatpush1.bf16.msra.mxu0 %v564
        %614 = vmatprep.subr.bf16.mxu0 0
        %615 = vmatpush1.bf16.msra.mxu0 %v565
        %616 = vmatprep.subr.bf16.mxu0 0
        %617 = vmatpush1.bf16.msra.mxu0 %v566
        %618 = vmatprep.subr.bf16.mxu0 0
        %619 = vmatpush1.bf16.msra.mxu0 %v567
        %620 = vmatprep.subr.bf16.mxu0 0
        %621 = vmatpush1.bf16.msra.mxu0 %v568
        %622 = vmatprep.subr.bf16.mxu0 0
        %623 = vmatpush1.bf16.msra.mxu0 %v569
        %624 = vmatprep.subr.bf16.mxu0 0
        %625 = vmatpush1.bf16.msra.mxu0 %v570
        %626 = vmatprep.subr.bf16.mxu0 0
        %627 = vmatpush1.bf16.msra.mxu0 %v571
        %628 = vmatprep.subr.bf16.mxu0 0
        %629 = vmatpush1.bf16.msra.mxu0 %v572
        %630 = vmatprep.subr.bf16.mxu0 0
        %631 = vmatpush1.bf16.msra.mxu0 %v573
        %632 = vmatprep.subr.bf16.mxu0 0
        %633 = vmatpush1.bf16.msra.mxu0 %v574
        %634 = vmatprep.subr.bf16.mxu0 0
        %635 = vmatpush1.bf16.msra.mxu0 %v575
        %636 = vmatprep.subr.bf16.mxu0 0
        %637 = vmatpush1.bf16.msra.mxu0 %v576
        %638 = vmatprep.subr.bf16.mxu0 0
        %639 = vmatpush1.bf16.msra.mxu0 %v577
        %640 = vmatprep.subr.bf16.mxu0 0
        %641 = vmatpush1.bf16.msra.mxu0 %v578
        %642 = vmatprep.subr.bf16.mxu0 0
        %643 = vmatpush1.bf16.msra.mxu0 %v579
        %644 = vmatprep.mubr.bf16.mxu0 %v445
        %645 = vmatmul.mubr.bf16.gmra.mrb[0].mxu0 %v444
        %v646 = vpop.f32.mrb[0].mxu0
        %v647 = vadd.f32 0.0, %v646
        %v648 = vpop.f32.mrb[0].mxu0
        %v649 = vpop.f32.mrb[0].mxu0
        %v650 = vadd.f32 0.0, %v649
        %v651 = vpop.f32.mrb[0].mxu0
        %652 = vmatprep.mubr.bf16.mxu0 %v448
        %653 = vmatmul.mubr.bf16.gmra.mrb[0].mxu0 %v447
        %v654 = vpop.f32.mrb[0].mxu0
        %v655 = vadd.f32 0.0, %v654
        %v656 = vpop.f32.mrb[0].mxu0
        %v657 = vpop.f32.mrb[0].mxu0
        %v658 = vadd.f32 0.0, %v657
        %v659 = vpop.f32.mrb[0].mxu0
        %660 = vmatprep.mubr.bf16.mxu0 %v451
        %661 = vmatmul.mubr.bf16.gmra.mrb[0].mxu0 %v450
        %v662 = vpop.f32.mrb[0].mxu0
        %v663 = vadd.f32 0.0, %v662
        %v664 = vpop.f32.mrb[0].mxu0
        %v665 = vpop.f32.mrb[0].mxu0
        %v666 = vadd.f32 0.0, %v665
        %v667 = vpop.f32.mrb[0].mxu0
        %668 = vmatprep.mubr.bf16.mxu0 %v454
        %669 = vmatmul.mubr.bf16.gmra.mrb[0].mxu0 %v453
        %v670 = vpop.f32.mrb[0].mxu0
        %v671 = vadd.f32 0.0, %v670
        %v672 = vpop.f32.mrb[0].mxu0
        %v673 = vpop.f32.mrb[0].mxu0
        %v674 = vadd.f32 0.0, %v673
        %v675 = vpop.f32.mrb[0].mxu0
        %676 = vdwg.mxu0
        %677 = vmatprep.subr.bf16.mxu0 0
        %678 = vmatpush1.bf16.msra.mxu0 %v580
        %679 = vmatprep.subr.bf16.mxu0 0
        %680 = vmatpush1.bf16.msra.mxu0 %v581
        %681 = vmatprep.subr.bf16.mxu0 0
        %682 = vmatpush1.bf16.msra.mxu0 %v582
        %683 = vmatprep.subr.bf16.mxu0 0
        %684 = vmatpush1.bf16.msra.mxu0 %v583
        %685 = vmatprep.subr.bf16.mxu0 0
        %686 = vmatpush1.bf16.msra.mxu0 %v584
        %687 = vmatprep.subr.bf16.mxu0 0
        %688 = vmatpush1.bf16.msra.mxu0 %v585
        %689 = vmatprep.subr.bf16.mxu0 0
        %690 = vmatpush1.bf16.msra.mxu0 %v586
        %691 = vmatprep.subr.bf16.mxu0 0
        %692 = vmatpush1.bf16.msra.mxu0 %v587
        %693 = vmatprep.subr.bf16.mxu0 0
        %694 = vmatpush1.bf16.msra.mxu0 0
        %695 = vmatprep.subr.bf16.mxu0 0
        %696 = vmatpush1.bf16.msra.mxu0 0
        %697 = vmatprep.subr.bf16.mxu0 0
        %698 = vmatpush1.bf16.msra.mxu0 0
        %699 = vmatprep.subr.bf16.mxu0 0
        %700 = vmatpush1.bf16.msra.mxu0 0
        %701 = vmatprep.subr.bf16.mxu0 0
        %702 = vmatpush1.bf16.msra.mxu0 0
        %703 = vmatprep.subr.bf16.mxu0 0
        %704 = vmatpush1.bf16.msra.mxu0 0
        %705 = vmatprep.subr.bf16.mxu0 0
        %706 = vmatpush1.bf16.msra.mxu0 0
        %707 = vmatprep.subr.bf16.mxu0 0
        %708 = vmatpush1.bf16.msra.mxu0 0
        %709 = vmatprep.mubr.bf16.mxu0 0
        %710 = vmatmul.mubr.bf16.gmra.mrb[0].mxu0 %v446
        %v711 = vpop.f32.mrb[0].mxu0
        %v712 = vadd.f32 %v647, %v711
        %v713 = vpop.f32.mrb[0].mxu0
        %v714 = vpop.f32.mrb[0].mxu0
        %v715 = vadd.f32 %v650, %v714
        %v716 = vpop.f32.mrb[0].mxu0
        %717 = vmatprep.mubr.bf16.mxu0 0
        %718 = vmatmul.mubr.bf16.gmra.mrb[0].mxu0 %v449
        %v719 = vpop.f32.mrb[0].mxu0
        %v720 = vadd.f32 %v655, %v719
        %v721 = vpop.f32.mrb[0].mxu0
        %v722 = vpop.f32.mrb[0].mxu0
        %v723 = vadd.f32 %v658, %v722
        %v724 = vpop.f32.mrb[0].mxu0
        %725 = vmatprep.mubr.bf16.mxu0 0
        %726 = vmatmul.mubr.bf16.gmra.mrb[0].mxu0 %v452
        %v727 = vpop.f32.mrb[0].mxu0
        %v728 = vadd.f32 %v663, %v727
        %v729 = vpop.f32.mrb[0].mxu0
        %v730 = vpop.f32.mrb[0].mxu0
        %v731 = vadd.f32 %v666, %v730
        %v732 = vpop.f32.mrb[0].mxu0
        %733 = vmatprep.mubr.bf16.mxu0 0
        %734 = vmatmul.mubr.bf16.gmra.mrb[0].mxu0 %v455
        %v735 = vpop.f32.mrb[0].mxu0
        %v736 = vadd.f32 %v671, %v735
        %v737 = vpop.f32.mrb[0].mxu0
        %v738 = vpop.f32.mrb[0].mxu0
        %v739 = vadd.f32 %v674, %v738
        %v740 = vpop.f32.mrb[0].mxu0
        %741 = vdwg.mxu0
        %v742 = vadd.f32 %v332, %v712
        %v743 = vadd.f32 %v333, %v715
        %v744 = vadd.f32 %v334, %v720
        %v745 = vadd.f32 %v335, %v723
        %v746 = vadd.f32 %v336, %v728
        %v747 = vadd.f32 %v337, %v731
        %v748 = vadd.f32 %v338, %v736
        %v749 = vadd.f32 %v339, %v739
        %750 = vst [vmem:[#allocation2] sm:$0xff] %v742
        %751 = vst [vmem:[#allocation2 + $0x8] sm:$0xff] %v743
        %752 = vst [vmem:[#allocation2 + $0x10] sm:$0xff] %v744
        %753 = vst [vmem:[#allocation2 + $0x18] sm:$0xff] %v745
        %754 = vst [vmem:[#allocation2 + $0x20] sm:$0xff] %v746
        %755 = vst [vmem:[#allocation2 + $0x28] sm:$0xff] %v747
        %756 = vst [vmem:[#allocation2 + $0x30] sm:$0xff] %v748
        %757 = vst [vmem:[#allocation2 + $0x38] sm:$0xff] %v749
        %p758 = scmp.eq.s32.totalorder %s21, 2
        // Predicated region
        $region63: #{inpaint_generator_forward.19} parent=53 // pred_check
          %p759 = pneg %p758
        $region64: #{inpaint_generator_forward.19} parent=53 // pred_check_branch
          %761 = sbr.rel (%p759) target = $region66
        $region65: #{inpaint_generator_forward.19} parent=53 // pred_region
          %v762 = vld [vmem:[#allocation2] sm:$0xff]
          %v763 = vld [vmem:[#allocation2 + $0x8] sm:$0xff]
          %v764 = vld [vmem:[#allocation2 + $0x10] sm:$0xff]
          %v765 = vld [vmem:[#allocation2 + $0x18] sm:$0xff]
          %v766 = vld [vmem:[#allocation2 + $0x20] sm:$0xff]
          %v767 = vld [vmem:[#allocation2 + $0x28] sm:$0xff]
          %v768 = vld [vmem:[#allocation2 + $0x30] sm:$0xff]
          %v769 = vld [vmem:[#allocation2 + $0x38] sm:$0xff]
          %vm770 = vcmp.ge.f32.partialorder %v762, 0.0
          %vm771 = vcmp.ge.f32.partialorder %v763, 0.0
          %vm772 = vcmp.ge.f32.partialorder %v764, 0.0
          %vm773 = vcmp.ge.f32.partialorder %v765, 0.0
          %vm774 = vcmp.ge.f32.partialorder %v766, 0.0
          %vm775 = vcmp.ge.f32.partialorder %v767, 0.0
          %vm776 = vcmp.ge.f32.partialorder %v768, 0.0
          %vm777 = vcmp.ge.f32.partialorder %v769, 0.0
          %v778 = vmul.f32 %v762, 0.2
          %v779 = vmul.f32 %v763, 0.2
          %v780 = vmul.f32 %v764, 0.2
          %v781 = vmul.f32 %v765, 0.2
          %v782 = vmul.f32 %v766, 0.2
          %v783 = vmul.f32 %v767, 0.2
          %v784 = vmul.f32 %v768, 0.2
          %v785 = vmul.f32 %v769, 0.2
          %v786 = vsel %vm770, %v762, %v778
          %v787 = vsel %vm771, %v763, %v779
          %v788 = vsel %vm772, %v764, %v780
          %v789 = vsel %vm773, %v765, %v781
          %v790 = vsel %vm774, %v766, %v782
          %v791 = vsel %vm775, %v767, %v783
          %v792 = vsel %vm776, %v768, %v784
          %v793 = vsel %vm777, %v769, %v785
          %v794 = vpack.c.bf16 %v787, %v786
          %v795 = vpack.c.bf16 %v789, %v788
          %v796 = vpack.c.bf16 %v791, %v790
          %v797 = vpack.c.bf16 %v793, %v792
          %v802 = vunpack.c.l.b16 %v794
          %v803 = vunpack.c.h.b16 %v794
          %v804 = vunpack.c.l.b16 %v795
          %v805 = vunpack.c.h.b16 %v795
          %v806 = vunpack.c.l.b16 %v796
          %v807 = vunpack.c.h.b16 %v796
          %v808 = vunpack.c.l.b16 %v797
          %v809 = vunpack.c.h.b16 %v797
          %v810 = vpack.c.b16 %v802, %v802
          %v811 = vpack.c.b16 %v803, %v803
          %v812 = vpack.c.b16 %v804, %v804
          %v813 = vpack.c.b16 %v805, %v805
          %v814 = vpack.c.b16 %v806, %v806
          %v815 = vpack.c.b16 %v807, %v807
          %v816 = vpack.c.b16 %v808, %v808
          %v817 = vpack.c.b16 %v809, %v809
          %826 = vst [vmem:[%s310] sm:$0xf] %v810
          %827 = vst [vmem:[%s310 + $0x4] sm:$0xf] %v811
          %828 = vst [vmem:[%s310 + $0x8] sm:$0xf] %v812
          %829 = vst [vmem:[%s310 + $0xc] sm:$0xf] %v813
          %830 = vst [vmem:[%s310 + $0x10] sm:$0xf] %v814
          %831 = vst [vmem:[%s310 + $0x14] sm:$0xf] %v815
          %832 = vst [vmem:[%s310 + $0x18] sm:$0xf] %v816
          %833 = vst [vmem:[%s310 + $0x1c] sm:$0xf] %v817
        $region66: #{inpaint_generator_forward.19} parent=53 // pred_fallthru
          _
        %s834 = smul.u32 8, %s19
        %p835 = scmp.lt.s32.totalorder %s834, 7
        %s836 = scalar_select %p835, %s834, 7
        %p837 = scmp.lt.s32.totalorder %s20, 0
        %s838 = scalar_select %p837, %s20, 0
        %s839 = sadd.s32 %s838, %s836
        %s840 = smul.addr %s839, 4
        %s841 = scalar_lea.vmem %s3, %s840
        // Predicated region
        $region67: #{inpaint_generator_forward.19} parent=53 // pred_check
          %p842 = pneg %p135
        $region68: #{inpaint_generator_forward.19} parent=53 // pred_check_branch
          %844 = sbr.rel (%p842) target = $region70
        $region69: #{inpaint_generator_forward.19} parent=53 // pred_region
          %s845 = smul.u32 8, %s19
        $region70: #{inpaint_generator_forward.19} parent=53 // pred_fallthru
          _
        // Predicated region
        $region71: #{inpaint_generator_forward.19} parent=53 // pred_check
          %p846 = pneg %p135
        $region72: #{inpaint_generator_forward.19} parent=53 // pred_check_branch
          %848 = sbr.rel (%p846) target = $region74
        $region73: #{inpaint_generator_forward.19} parent=53 // pred_region
          %s849 = smul.u32 8, %s19
          %p850 = scmp.lt.s32.totalorder %s849, 7
          %s851 = scalar_select %p850, %s849, 7
          %p852 = scmp.lt.s32.totalorder %s20, 0
          %s853 = scalar_select %p852, %s20, 0
          %s854 = sadd.s32 %s853, %s851
          %s855 = smul.addr %s854, 4
          %s856 = scalar_lea.vmem %s3, %s855
        $region74: #{inpaint_generator_forward.19} parent=53 // pred_fallthru
          _
      $region54: #{inpaint_generator_forward.19} parent=5 // pred_fallthru
        _
      %p857 = scmp.le.s32.totalorder 2, %s9
      // Predicated region
      $region75: #{inpaint_generator_forward.19} parent=5 // pred_check
        %p858 = pneg %p857
      $region76: #{inpaint_generator_forward.19} parent=5 // pred_check_branch
        %860 = sbr.rel (%p858) target = $region78
      $region77: #{inpaint_generator_forward.19} parent=5 // pred_region
        %s861 = ssub.s32 %s9, 2
      $region78: #{inpaint_generator_forward.19} parent=5 // pred_fallthru
        _
    $region6: #{inpaint_generator_forward.19} parent=1 // loop_footer
      %s13 = sadd.s32 1, %s9
    $region7: #{inpaint_generator_forward.19} parent=1 // loop_footer_branch
      %8 = sbr.rel target = $region3
    $region8: #{inpaint_generator_forward.19} parent=1 // loop_exit
      _

// kernel: inpaint_generator_forward.22
$region0: #{inpaint_generator_forward.22}
  #allocation0 [shape = 'u32[]', space=smem, size = 0x4, offset = 0x4, fixed_abs, tag = 'smem constant byte address 0x4 - core index']
  #allocation1 [shape = 'u32[144,128]{1,0:T(1,128)}', space=vmem, size = 0x12000, scoped, tag = 'internal scratch']
  %s0 = inlined_call_operand.vmem [shape: bf16[2,32,16], index: 0, kind: input, shape index: {}]
  %s1 = inlined_call_operand.vmem [shape: bf16[2,32,16], index: 1, kind: input, shape index: {}]
  %s2 = inlined_call_operand.vmem [shape: bf16[2,32,16], index: 2, kind: input, shape index: {}]
  %s3 = inlined_call_operand.vmem [shape: bf16[2,32,16], index: 3, kind: output, shape index: {}]
  %s4 = sld [smem:[#allocation0]]
  $region45: #{inpaint_generator_forward.22} parent=0
    _
  %s6 = ssub.s32 1, %s4
  %s7 = scalar_select 0, %s6, %s4
  loop: start=0, step=1, limit=4
  $region2: #{inpaint_generator_forward.22} parent=0 // loop_pre_header
    _
  $region3: #{inpaint_generator_forward.22} parent=0 // loop_header
    %s9 = sphi 0, %s13
    %p10 = scmp.ge.s32.totalorder %s9, 4
    %s19 = sphi 0, %s21
    %s22 = sphi 0, %s19
    %s23 = sphi 0, %s22
    %s39 = sphi 0, %s23
    %s45 = sphi 0, %s47
    %s48 = sphi 0, %s45
    %s49 = sphi 0, %s48
    %s65 = sphi 0, %s49
    %s71 = sphi 0, %s73
    %s74 = sphi 0, %s71
    %s75 = sphi 0, %s74
    %s91 = sphi 0, %s75
    %s97 = sphi 0, %s99
    %s100 = sphi 0, %s97
    %s101 = sphi 0, %s100
    %s117 = sphi 0, %s101
  $region4: #{inpaint_generator_forward.22} parent=0 // loop_header_branch
    %12 = sbr.rel (%p10) target = $region8
  $region5: #{inpaint_generator_forward.22} parent=0 // loop_body
    %s14 = ssub.s32 %s9, 1
    %s15 = ssub.s32 %s9, 2
    %s16 = sadd.s32 %s9, 1
    %s17 = ssub.s32 %s9, %s16
    %p18 = scmp.eq.s32.totalorder %s17, 0
    %s20 = sadd.s32 %s19, 1
    %s21 = scalar_select %p18, %s19, %s20
    %p24 = pneg %p18
    %p25 = scmp.eq.s32.totalorder %s9, 1
    %p26 = por %p24, %p25
    %p27 = scmp.ne.s32.totalorder %s19, %s22
    %p28 = scmp.eq.s32.totalorder %s9, 0
    %p29 = por %p27, %p28
    %p30 = scmp.ne.s32.totalorder %s19, %s22
    %p31 = scmp.eq.s32.totalorder %s14, 1
    %p32 = por %p30, %p31
    %p33 = scmp.ne.s32.totalorder %s22, %s23
    %p34 = scmp.eq.s32.totalorder %s14, 0
    %p35 = por %p33, %p34
    %p36 = scmp.ne.s32.totalorder %s22, %s23
    %p37 = scmp.eq.s32.totalorder %s15, 1
    %p38 = por %p36, %p37
    %p40 = scmp.ne.s32.totalorder %s23, %s39
    %p41 = scmp.eq.s32.totalorder %s15, 0
    %p42 = por %p40, %p41
    %s43 = ssub.s32 %s9, %s16
    %p44 = scmp.eq.s32.totalorder %s43, 0
    %s46 = sadd.s32 %s45, 1
    %s47 = scalar_select %p44, %s45, %s46
    %p50 = pneg %p44
    %p51 = scmp.eq.s32.totalorder %s9, 1
    %p52 = por %p50, %p51
    %p53 = scmp.ne.s32.totalorder %s45, %s48
    %p54 = scmp.eq.s32.totalorder %s9, 0
    %p55 = por %p53, %p54
    %p56 = scmp.ne.s32.totalorder %s45, %s48
    %p57 = scmp.eq.s32.totalorder %s14, 1
    %p58 = por %p56, %p57
    %p59 = scmp.ne.s32.totalorder %s48, %s49
    %p60 = scmp.eq.s32.totalorder %s14, 0
    %p61 = por %p59, %p60
    %p62 = scmp.ne.s32.totalorder %s48, %s49
    %p63 = scmp.eq.s32.totalorder %s15, 1
    %p64 = por %p62, %p63
    %p66 = scmp.ne.s32.totalorder %s49, %s65
    %p67 = scmp.eq.s32.totalorder %s15, 0
    %p68 = por %p66, %p67
    %s69 = ssub.s32 %s9, %s16
    %p70 = scmp.eq.s32.totalorder %s69, 0
    %s72 = sadd.s32 %s71, 1
    %s73 = scalar_select %p70, %s71, %s72
    %p76 = pneg %p70
    %p77 = scmp.eq.s32.totalorder %s9, 1
    %p78 = por %p76, %p77
    %p79 = scmp.ne.s32.totalorder %s71, %s74
    %p80 = scmp.eq.s32.totalorder %s9, 0
    %p81 = por %p79, %p80
    %p82 = scmp.ne.s32.totalorder %s71, %s74
    %p83 = scmp.eq.s32.totalorder %s14, 1
    %p84 = por %p82, %p83
    %p85 = scmp.ne.s32.totalorder %s74, %s75
    %p86 = scmp.eq.s32.totalorder %s14, 0
    %p87 = por %p85, %p86
    %p88 = scmp.ne.s32.totalorder %s74, %s75
    %p89 = scmp.eq.s32.totalorder %s15, 1
    %p90 = por %p88, %p89
    %p92 = scmp.ne.s32.totalorder %s75, %s91
    %p93 = scmp.eq.s32.totalorder %s15, 0
    %p94 = por %p92, %p93
    %s95 = ssub.s32 %s9, %s16
    %p96 = scmp.eq.s32.totalorder %s95, 0
    %s98 = sadd.s32 %s97, 1
    %s99 = scalar_select %p96, %s97, %s98
    %p102 = pneg %p96
    %p103 = scmp.eq.s32.totalorder %s9, 1
    %p104 = por %p102, %p103
    %p105 = scmp.ne.s32.totalorder %s97, %s100
    %p106 = scmp.eq.s32.totalorder %s9, 0
    %p107 = por %p105, %p106
    %p108 = scmp.ne.s32.totalorder %s97, %s100
    %p109 = scmp.eq.s32.totalorder %s14, 1
    %p110 = por %p108, %p109
    %p111 = scmp.ne.s32.totalorder %s100, %s101
    %p112 = scmp.eq.s32.totalorder %s14, 0
    %p113 = por %p111, %p112
    %p114 = scmp.ne.s32.totalorder %s100, %s101
    %p115 = scmp.eq.s32.totalorder %s15, 1
    %p116 = por %p114, %p115
    %p118 = scmp.ne.s32.totalorder %s101, %s117
    %p119 = scmp.eq.s32.totalorder %s15, 0
    %p120 = por %p118, %p119
    %p121 = scmp.le.s32.totalorder 1, %s9
    %p122 = scmp.lt.s32.totalorder %s9, 3
    %p123 = pnand %p121, %p122
    %p124 = pneg %p123
    // Predicated region
    $region9: #{inpaint_generator_forward.22} parent=5 // pred_check
      _
    $region10: #{inpaint_generator_forward.22} parent=5 // pred_check_branch
      %126 = sbr.rel (%p123) target = $region12
    $region11: #{inpaint_generator_forward.22} parent=5 // pred_region
      %s127 = ssub.s32 %s9, 1
    $region12: #{inpaint_generator_forward.22} parent=5 // pred_fallthru
      _
    %p128 = scmp.lt.s32.totalorder %s9, 2
    // Predicated region
    $region13: #{inpaint_generator_forward.22} parent=5 // pred_check
      %p129 = pneg %p128
    $region14: #{inpaint_generator_forward.22} parent=5 // pred_check_branch
      %131 = sbr.rel (%p129) target = $region16
    $region15: #{inpaint_generator_forward.22} parent=5 // pred_region
      // Predicated region
      $region17: #{inpaint_generator_forward.22} parent=15 // pred_check
        %p132 = pneg %p29
      $region18: #{inpaint_generator_forward.22} parent=15 // pred_check_branch
        %134 = sbr.rel (%p132) target = $region20
      $region19: #{inpaint_generator_forward.22} parent=15 // pred_region
        %p135 = scmp.lt.s32.totalorder %s9, 1
        %s136 = scalar_select %p135, %s9, 1
        %s137 = smul.addr %s136, 4
        %s138 = smul.addr %s137, 4
        %s139 = scalar_lea.vmem %s0, %s138
      $region20: #{inpaint_generator_forward.22} parent=15 // pred_fallthru
        _
      // Predicated region
      $region21: #{inpaint_generator_forward.22} parent=15 // pred_check
        %p140 = pneg %p55
      $region22: #{inpaint_generator_forward.22} parent=15 // pred_check_branch
        %142 = sbr.rel (%p140) target = $region24
      $region23: #{inpaint_generator_forward.22} parent=15 // pred_region
        %p143 = scmp.lt.s32.totalorder %s9, 1
        %s144 = scalar_select %p143, %s9, 1
        %s145 = smul.addr %s144, 4
        %s146 = smul.addr %s145, 4
        %s147 = scalar_lea.vmem %s1, %s146
      $region24: #{inpaint_generator_forward.22} parent=15 // pred_fallthru
        _
      // Predicated region
      $region25: #{inpaint_generator_forward.22} parent=15 // pred_check
        %p148 = pneg %p81
      $region26: #{inpaint_generator_forward.22} parent=15 // pred_check_branch
        %150 = sbr.rel (%p148) target = $region28
      $region27: #{inpaint_generator_forward.22} parent=15 // pred_region
        %p151 = scmp.lt.s32.totalorder %s9, 1
        %s152 = scalar_select %p151, %s9, 1
        %s153 = smul.addr %s152, 4
        %s154 = smul.addr %s153, 4
        %s155 = scalar_lea.vmem %s2, %s154
      $region28: #{inpaint_generator_forward.22} parent=15 // pred_fallthru
        _
    $region16: #{inpaint_generator_forward.22} parent=5 // pred_fallthru
      _
    %p156 = scmp.le.s32.totalorder 1, %s9
    %p157 = scmp.lt.s32.totalorder %s9, 3
    %p158 = pnand %p156, %p157
    %p159 = pneg %p158
    // Predicated region
    $region29: #{inpaint_generator_forward.22} parent=5 // pred_check
      _
    $region30: #{inpaint_generator_forward.22} parent=5 // pred_check_branch
      %161 = sbr.rel (%p158) target = $region32
    $region31: #{inpaint_generator_forward.22} parent=5 // pred_region
      %s162 = ssub.s32 %s9, 1
      %p163 = scmp.lt.s32.totalorder %s14, 1
      %s164 = scalar_select %p163, %s14, 1
      %s165 = smul.addr %s164, 4
      %s166 = smul.addr %s165, 4
      %s167 = scalar_lea.vmem %s0, %s166
      %p168 = pneg %p35
      %p169 = pneg %p32
      %p170 = scmp.lt.s32.totalorder %s14, 1
      %s171 = scalar_select %p170, %s14, 1
      %s172 = smul.addr %s171, 4
      %s173 = smul.addr %s172, 4
      %s174 = scalar_lea.vmem %s1, %s173
      %p175 = pneg %p61
      %p176 = pneg %p58
      %p177 = scmp.lt.s32.totalorder %s14, 1
      %s178 = scalar_select %p177, %s14, 1
      %s179 = smul.addr %s178, 4
      %s180 = smul.addr %s179, 4
      %s181 = scalar_lea.vmem %s2, %s180
      %p182 = pneg %p87
      %p183 = pneg %p84
      %p184 = pneg %p113
      %p185 = pneg %p110
      %p186 = scmp.lt.s32.totalorder %s14, 1
      %s187 = scalar_select %p186, %s14, 1
      %s188 = smul.addr %s187, 4
      %s189 = smul.addr %s188, 4
      %s190 = scalar_lea.vmem %s3, %s189
      %p191 = scmp.lt.s32.totalorder %s14, 1
      %s192 = scalar_select %p191, %s14, 1
      %s193 = smul.addr %s192, 4
      %s194 = smul.addr %s193, 4
      %s195 = scalar_lea.vmem %s0, %s194
      %p196 = scmp.lt.s32.totalorder %s14, 1
      %s197 = scalar_select %p196, %s14, 1
      %s198 = smul.addr %s197, 4
      %s199 = smul.addr %s198, 4
      %s200 = scalar_lea.vmem %s1, %s199
      %p201 = scmp.lt.s32.totalorder %s14, 1
      %s202 = scalar_select %p201, %s14, 1
      %s203 = smul.addr %s202, 4
      %s204 = smul.addr %s203, 4
      %s205 = scalar_lea.vmem %s2, %s204
      %p206 = scmp.lt.s32.totalorder %s14, 1
      %s207 = scalar_select %p206, %s14, 1
      %s208 = smul.addr %s207, 4
      %s209 = smul.addr %s208, 4
      %s210 = scalar_lea.vmem %s3, %s209
      %v212 = vld [vmem:[%s195] sm:$0xf]
      %v213 = vld [vmem:[%s195 + $0x4] sm:$0xf]
      %v214 = vld [vmem:[%s195 + $0x8] sm:$0xf]
      %v215 = vld [vmem:[%s195 + $0xc] sm:$0xf]
      %v216 = vld [vmem:[%s200] sm:$0xf]
      %v217 = vld [vmem:[%s200 + $0x4] sm:$0xf]
      %v218 = vld [vmem:[%s200 + $0x8] sm:$0xf]
      %v219 = vld [vmem:[%s200 + $0xc] sm:$0xf]
      %v224 = vunpack.c.l.b16 %v212
      %v225 = vunpack.c.l.b16 %v213
      %v226 = vunpack.c.l.b16 %v214
      %v227 = vunpack.c.l.b16 %v215
      %v228 = vpack.c.b16 %v225, %v224
      %v229 = vpack.c.b16 %v227, %v226
      %v234 = vunpack.c.l.b16 %v216
      %v235 = vunpack.c.l.b16 %v217
      %v236 = vunpack.c.l.b16 %v218
      %v237 = vunpack.c.l.b16 %v219
      %v238 = vpack.c.b16 %v235, %v234
      %v239 = vpack.c.b16 %v237, %v236
      %vm240 = vcmask 130048
      %v242 = vsel %vm240, %v228, 0
      %v245 = vsel %vm240, %v229, 0
      %v248 = vsel %vm240, %v238, 0
      %v251 = vsel %vm240, %v239, 0
      %253 = vmatprep.subr.bf16.mxu0 0
      %254 = vmatpush1.bf16.xpose.msra.mxu0 %v248
      %255 = vmatprep.subr.bf16.mxu0 0
      %256 = vmatpush1.bf16.xpose.msra.mxu0 %v251
      %257 = vmatprep.subr.bf16.mxu0 0
      %258 = vmatpush1.bf16.xpose.msra.mxu0 0
      %259 = vmatprep.subr.bf16.mxu0 0
      %260 = vmatpush1.bf16.xpose.msra.mxu0 0
      %261 = vmatprep.subr.bf16.mxu0 0
      %262 = vmatpush1.bf16.xpose.msra.mxu0 0
      %263 = vmatprep.subr.bf16.mxu0 0
      %264 = vmatpush1.bf16.xpose.msra.mxu0 0
      %265 = vmatprep.subr.bf16.mxu0 0
      %266 = vmatpush1.bf16.xpose.msra.mxu0 0
      %267 = vmatprep.subr.bf16.mxu0 0
      %268 = vmatpush1.bf16.xpose.msra.mxu0 0
      %269 = vmatprep.subr.bf16.mxu0 0
      %270 = vmatpush1.bf16.xpose.msra.mxu0 0
      %271 = vmatprep.subr.bf16.mxu0 0
      %272 = vmatpush1.bf16.xpose.msra.mxu0 0
      %273 = vmatprep.subr.bf16.mxu0 0
      %274 = vmatpush1.bf16.xpose.msra.mxu0 0
      %275 = vmatprep.subr.bf16.mxu0 0
      %276 = vmatpush1.bf16.xpose.msra.mxu0 0
      %277 = vmatprep.subr.bf16.mxu0 0
      %278 = vmatpush1.bf16.xpose.msra.mxu0 0
      %279 = vmatprep.subr.bf16.mxu0 0
      %280 = vmatpush1.bf16.xpose.msra.mxu0 0
      %281 = vmatprep.subr.bf16.mxu0 0
      %282 = vmatpush1.bf16.xpose.msra.mxu0 0
      %283 = vmatprep.subr.bf16.mxu0 0
      %284 = vmatpush1.bf16.xpose.msra.mxu0 0
      %285 = vmatprep.mubr.bf16.mxu0 0
      %286 = vmatmul.mubr.bf16.gmra.mrb[0].mxu0 %v242
      %v287 = vpop.f32.mrb[0].mxu0
      %v288 = vadd.f32 0.0, %v287
      %v289 = vpop.f32.mrb[0].mxu0
      %v290 = vpop.f32.mrb[0].mxu0
      %v291 = vadd.f32 0.0, %v290
      %v292 = vpop.f32.mrb[0].mxu0
      %293 = vmatprep.mubr.bf16.mxu0 0
      %294 = vmatmul.mubr.bf16.gmra.mrb[0].mxu0 %v245
      %v295 = vpop.f32.mrb[0].mxu0
      %v296 = vadd.f32 0.0, %v295
      %v297 = vpop.f32.mrb[0].mxu0
      %v298 = vpop.f32.mrb[0].mxu0
      %v299 = vadd.f32 0.0, %v298
      %v300 = vpop.f32.mrb[0].mxu0
      %301 = vdwg.mxu0
      %v302 = vmul.f32 %v288, 0.25
      %v303 = vmul.f32 %v291, 0.25
      %v304 = vmul.f32 %v296, 0.25
      %v305 = vmul.f32 %v299, 0.25
      %vm306 = vcmask 261120
      %v307 = vsel %vm306, %v302, -inf
      %308 = vmax.xlane.f32.xlu0 %v307
      %v309 = vpop.xlane.xlu0 %308
      %v310 = vsel %vm306, %v303, -inf
      %311 = vmax.xlane.f32.xlu0 %v310
      %v312 = vpop.xlane.xlu0 %311
      %v313 = vsel %vm306, %v304, -inf
      %314 = vmax.xlane.f32.xlu0 %v313
      %v315 = vpop.xlane.xlu0 %314
      %v316 = vsel %vm306, %v305, -inf
      %317 = vmax.xlane.f32.xlu0 %v316
      %v318 = vpop.xlane.xlu0 %317
      %v319 = vsub.f32 %v302, %v309
      %v320 = vsub.f32 %v303, %v312
      %v321 = vsub.f32 %v304, %v315
      %v322 = vsub.f32 %v305, %v318
      %v323 = vmul.f32 %v319, 1.442695
      %v324 = vpow.pop %v323
      %v325 = vmul.f32 %v320, 1.442695
      %v326 = vpow.pop %v325
      %v327 = vmul.f32 %v321, 1.442695
      %v328 = vpow.pop %v327
      %v329 = vmul.f32 %v322, 1.442695
      %v330 = vpow.pop %v329
      %v331 = vsel %vm306, %v324, 0.0
      %332 = vadd.xlane.f32.xlu0 %v331
      %v333 = vpop.xlane.xlu0 %332
      %v334 = vsel %vm306, %v326, 0.0
      %335 = vadd.xlane.f32.xlu0 %v334
      %v336 = vpop.xlane.xlu0 %335
      %v337 = vsel %vm306, %v328, 0.0
      %338 = vadd.xlane.f32.xlu0 %v337
      %v339 = vpop.xlane.xlu0 %338
      %v340 = vsel %vm306, %v330, 0.0
      %341 = vadd.xlane.f32.xlu0 %v340
      %v342 = vpop.xlane.xlu0 %341
      %v343 = vpack.c.bf16 %v326, %v324
      %v344 = vpack.c.bf16 %v330, %v328
      %v345 = vld [vmem:[%s205] sm:$0xf]
      %v346 = vld [vmem:[%s205 + $0x4] sm:$0xf]
      %v347 = vld [vmem:[%s205 + $0x8] sm:$0xf]
      %v348 = vld [vmem:[%s205 + $0xc] sm:$0xf]
      %v353 = vunpack.c.l.b16 %v345
      %v354 = vunpack.c.l.b16 %v346
      %v355 = vunpack.c.l.b16 %v347
      %v356 = vunpack.c.l.b16 %v348
      %v357 = vpack.c.b16 %v354, %v353
      %v358 = vpack.c.b16 %v356, %v355
      %v362 = vsel %vm306, %v343, 0
      %v365 = vsel %vm306, %v344, 0
      %367 = vmatprep.subr.bf16.mxu0 0
      %368 = vmatpush1.bf16.msra.mxu0 %v357
      %369 = vmatprep.subr.bf16.mxu0 0
      %370 = vmatpush1.bf16.msra.mxu0 %v358
      %371 = vmatprep.subr.bf16.mxu0 0
      %372 = vmatpush1.bf16.msra.mxu0 0
      %373 = vmatprep.subr.bf16.mxu0 0
      %374 = vmatpush1.bf16.msra.mxu0 0
      %375 = vmatprep.subr.bf16.mxu0 0
      %376 = vmatpush1.bf16.msra.mxu0 0
      %377 = vmatprep.subr.bf16.mxu0 0
      %378 = vmatpush1.bf16.msra.mxu0 0
      %379 = vmatprep.subr.bf16.mxu0 0
      %380 = vmatpush1.bf16.msra.mxu0 0
      %381 = vmatprep.subr.bf16.mxu0 0
      %382 = vmatpush1.bf16.msra.mxu0 0
      %383 = vmatprep.subr.bf16.mxu0 0
      %384 = vmatpush1.bf16.msra.mxu0 0
      %385 = vmatprep.subr.bf16.mxu0 0
      %386 = vmatpush1.bf16.msra.mxu0 0
      %387 = vmatprep.subr.bf16.mxu0 0
      %388 = vmatpush1.bf16.msra.mxu0 0
      %389 = vmatprep.subr.bf16.mxu0 0
      %390 = vmatpush1.bf16.msra.mxu0 0
      %391 = vmatprep.subr.bf16.mxu0 0
      %392 = vmatpush1.bf16.msra.mxu0 0
      %393 = vmatprep.subr.bf16.mxu0 0
      %394 = vmatpush1.bf16.msra.mxu0 0
      %395 = vmatprep.subr.bf16.mxu0 0
      %396 = vmatpush1.bf16.msra.mxu0 0
      %397 = vmatprep.subr.bf16.mxu0 0
      %398 = vmatpush1.bf16.msra.mxu0 0
      %399 = vmatprep.mubr.bf16.mxu0 0
      %400 = vmatmul.mubr.bf16.gmra.mrb[0].mxu0 %v362
      %v401 = vpop.f32.mrb[0].mxu0
      %v402 = vadd.f32 0.0, %v401
      %v403 = vpop.f32.mrb[0].mxu0
      %v404 = vpop.f32.mrb[0].mxu0
      %v405 = vadd.f32 0.0, %v404
      %v406 = vpop.f32.mrb[0].mxu0
      %407 = vmatprep.mubr.bf16.mxu0 0
      %408 = vmatmul.mubr.bf16.gmra.mrb[0].mxu0 %v365
      %v409 = vpop.f32.mrb[0].mxu0
      %v410 = vadd.f32 0.0, %v409
      %v411 = vpop.f32.mrb[0].mxu0
      %v412 = vpop.f32.mrb[0].mxu0
      %v413 = vadd.f32 0.0, %v412
      %v414 = vpop.f32.mrb[0].mxu0
      %415 = vdwg.mxu0
      %v416 = vrcp.pop %v333
      %v417 = vrcp.pop %v336
      %v418 = vrcp.pop %v339
      %v419 = vrcp.pop %v342
      %v420 = vmul.f32 %v402, %v416
      %v421 = vmul.f32 %v405, %v417
      %v422 = vmul.f32 %v410, %v418
      %v423 = vmul.f32 %v413, %v419
      %v424 = vpack.c.bf16 %v421, %v420
      %v425 = vpack.c.bf16 %v423, %v422
      %v428 = vunpack.c.l.b16 %v424
      %v429 = vunpack.c.h.b16 %v424
      %v430 = vunpack.c.l.b16 %v425
      %v431 = vunpack.c.h.b16 %v425
      %v432 = vpack.c.b16 %v428, %v428
      %v433 = vpack.c.b16 %v429, %v429
      %v434 = vpack.c.b16 %v430, %v430
      %v435 = vpack.c.b16 %v431, %v431
      %vm440 = vcmask 125952
      %441 = vst.msk [vmem:[%s210] sm:$0xf] %vm440, %v432
      %442 = vst.msk [vmem:[%s210 + $0x4] sm:$0xf] %vm440, %v433
      %443 = vst.msk [vmem:[%s210 + $0x8] sm:$0xf] %vm440, %v434
      %444 = vst.msk [vmem:[%s210 + $0xc] sm:$0xf] %vm440, %v435
      %p445 = scmp.lt.s32.totalorder %s14, 1
      %s446 = scalar_select %p445, %s14, 1
      %s447 = smul.addr %s446, 4
      %s448 = smul.addr %s447, 4
      %s449 = scalar_lea.vmem %s3, %s448
      // Predicated region
      $region33: #{inpaint_generator_forward.22} parent=31 // pred_check
        %p450 = pneg %p110
      $region34: #{inpaint_generator_forward.22} parent=31 // pred_check_branch
        %452 = sbr.rel (%p450) target = $region36
      $region35: #{inpaint_generator_forward.22} parent=31 // pred_region
        _
      $region36: #{inpaint_generator_forward.22} parent=31 // pred_fallthru
        _
    $region32: #{inpaint_generator_forward.22} parent=5 // pred_fallthru
      _
    %p453 = scmp.le.s32.totalorder 2, %s9
    // Predicated region
    $region37: #{inpaint_generator_forward.22} parent=5 // pred_check
      %p454 = pneg %p453
    $region38: #{inpaint_generator_forward.22} parent=5 // pred_check_branch
      %456 = sbr.rel (%p454) target = $region40
    $region39: #{inpaint_generator_forward.22} parent=5 // pred_region
      %s457 = ssub.s32 %s9, 2
      // Predicated region
      $region41: #{inpaint_generator_forward.22} parent=39 // pred_check
        %p458 = pneg %p116
      $region42: #{inpaint_generator_forward.22} parent=39 // pred_check_branch
        %460 = sbr.rel (%p458) target = $region44
      $region43: #{inpaint_generator_forward.22} parent=39 // pred_region
        %p461 = scmp.lt.s32.totalorder %s15, 1
        %s462 = scalar_select %p461, %s15, 1
        %s463 = smul.addr %s462, 4
        %s464 = smul.addr %s463, 4
        %s465 = scalar_lea.vmem %s3, %s464
      $region44: #{inpaint_generator_forward.22} parent=39 // pred_fallthru
        _
    $region40: #{inpaint_generator_forward.22} parent=5 // pred_fallthru
      _
  $region6: #{inpaint_generator_forward.22} parent=0 // loop_footer
    %s13 = sadd.s32 1, %s9
  $region7: #{inpaint_generator_forward.22} parent=0 // loop_footer_branch
    %8 = sbr.rel target = $region3
  $region8: #{inpaint_generator_forward.22} parent=0 // loop_exit
    _

// kernel: inpaint_generator_forward.23
$region0: #{inpaint_generator_forward.23}
  #allocation0 [shape = 'u32[]', space=smem, size = 0x4, offset = 0x4, fixed_abs, tag = 'smem constant byte address 0x4 - core index']
  #allocation1 [shape = 'u32[144,128]{1,0:T(1,128)}', space=vmem, size = 0x12000, scoped, tag = 'internal scratch']
  %s0 = inlined_call_operand.vmem [shape: bf16[2,8,64], index: 0, kind: input, shape index: {}]
  %s1 = inlined_call_operand.vmem [shape: bf16[2,8,64], index: 1, kind: input, shape index: {}]
  %s2 = inlined_call_operand.vmem [shape: bf16[2,8,64], index: 2, kind: input, shape index: {}]
  %s3 = inlined_call_operand.vmem [shape: bf16[2,8,64], index: 3, kind: output, shape index: {}]
  %s4 = sld [smem:[#allocation0]]
  $region45: #{inpaint_generator_forward.23} parent=0
    _
  %s6 = ssub.s32 1, %s4
  %s7 = scalar_select 0, %s6, %s4
  loop: start=0, step=1, limit=4
  $region2: #{inpaint_generator_forward.23} parent=0 // loop_pre_header
    _
  $region3: #{inpaint_generator_forward.23} parent=0 // loop_header
    %s9 = sphi 0, %s13
    %p10 = scmp.ge.s32.totalorder %s9, 4
    %s19 = sphi 0, %s21
    %s22 = sphi 0, %s19
    %s23 = sphi 0, %s22
    %s39 = sphi 0, %s23
    %s45 = sphi 0, %s47
    %s48 = sphi 0, %s45
    %s49 = sphi 0, %s48
    %s65 = sphi 0, %s49
    %s71 = sphi 0, %s73
    %s74 = sphi 0, %s71
    %s75 = sphi 0, %s74
    %s91 = sphi 0, %s75
    %s97 = sphi 0, %s99
    %s100 = sphi 0, %s97
    %s101 = sphi 0, %s100
    %s117 = sphi 0, %s101
  $region4: #{inpaint_generator_forward.23} parent=0 // loop_header_branch
    %12 = sbr.rel (%p10) target = $region8
  $region5: #{inpaint_generator_forward.23} parent=0 // loop_body
    %s14 = ssub.s32 %s9, 1
    %s15 = ssub.s32 %s9, 2
    %s16 = sadd.s32 %s9, 1
    %s17 = ssub.s32 %s9, %s16
    %p18 = scmp.eq.s32.totalorder %s17, 0
    %s20 = sadd.s32 %s19, 1
    %s21 = scalar_select %p18, %s19, %s20
    %p24 = pneg %p18
    %p25 = scmp.eq.s32.totalorder %s9, 1
    %p26 = por %p24, %p25
    %p27 = scmp.ne.s32.totalorder %s19, %s22
    %p28 = scmp.eq.s32.totalorder %s9, 0
    %p29 = por %p27, %p28
    %p30 = scmp.ne.s32.totalorder %s19, %s22
    %p31 = scmp.eq.s32.totalorder %s14, 1
    %p32 = por %p30, %p31
    %p33 = scmp.ne.s32.totalorder %s22, %s23
    %p34 = scmp.eq.s32.totalorder %s14, 0
    %p35 = por %p33, %p34
    %p36 = scmp.ne.s32.totalorder %s22, %s23
    %p37 = scmp.eq.s32.totalorder %s15, 1
    %p38 = por %p36, %p37
    %p40 = scmp.ne.s32.totalorder %s23, %s39
    %p41 = scmp.eq.s32.totalorder %s15, 0
    %p42 = por %p40, %p41
    %s43 = ssub.s32 %s9, %s16
    %p44 = scmp.eq.s32.totalorder %s43, 0
    %s46 = sadd.s32 %s45, 1
    %s47 = scalar_select %p44, %s45, %s46
    %p50 = pneg %p44
    %p51 = scmp.eq.s32.totalorder %s9, 1
    %p52 = por %p50, %p51
    %p53 = scmp.ne.s32.totalorder %s45, %s48
    %p54 = scmp.eq.s32.totalorder %s9, 0
    %p55 = por %p53, %p54
    %p56 = scmp.ne.s32.totalorder %s45, %s48
    %p57 = scmp.eq.s32.totalorder %s14, 1
    %p58 = por %p56, %p57
    %p59 = scmp.ne.s32.totalorder %s48, %s49
    %p60 = scmp.eq.s32.totalorder %s14, 0
    %p61 = por %p59, %p60
    %p62 = scmp.ne.s32.totalorder %s48, %s49
    %p63 = scmp.eq.s32.totalorder %s15, 1
    %p64 = por %p62, %p63
    %p66 = scmp.ne.s32.totalorder %s49, %s65
    %p67 = scmp.eq.s32.totalorder %s15, 0
    %p68 = por %p66, %p67
    %s69 = ssub.s32 %s9, %s16
    %p70 = scmp.eq.s32.totalorder %s69, 0
    %s72 = sadd.s32 %s71, 1
    %s73 = scalar_select %p70, %s71, %s72
    %p76 = pneg %p70
    %p77 = scmp.eq.s32.totalorder %s9, 1
    %p78 = por %p76, %p77
    %p79 = scmp.ne.s32.totalorder %s71, %s74
    %p80 = scmp.eq.s32.totalorder %s9, 0
    %p81 = por %p79, %p80
    %p82 = scmp.ne.s32.totalorder %s71, %s74
    %p83 = scmp.eq.s32.totalorder %s14, 1
    %p84 = por %p82, %p83
    %p85 = scmp.ne.s32.totalorder %s74, %s75
    %p86 = scmp.eq.s32.totalorder %s14, 0
    %p87 = por %p85, %p86
    %p88 = scmp.ne.s32.totalorder %s74, %s75
    %p89 = scmp.eq.s32.totalorder %s15, 1
    %p90 = por %p88, %p89
    %p92 = scmp.ne.s32.totalorder %s75, %s91
    %p93 = scmp.eq.s32.totalorder %s15, 0
    %p94 = por %p92, %p93
    %s95 = ssub.s32 %s9, %s16
    %p96 = scmp.eq.s32.totalorder %s95, 0
    %s98 = sadd.s32 %s97, 1
    %s99 = scalar_select %p96, %s97, %s98
    %p102 = pneg %p96
    %p103 = scmp.eq.s32.totalorder %s9, 1
    %p104 = por %p102, %p103
    %p105 = scmp.ne.s32.totalorder %s97, %s100
    %p106 = scmp.eq.s32.totalorder %s9, 0
    %p107 = por %p105, %p106
    %p108 = scmp.ne.s32.totalorder %s97, %s100
    %p109 = scmp.eq.s32.totalorder %s14, 1
    %p110 = por %p108, %p109
    %p111 = scmp.ne.s32.totalorder %s100, %s101
    %p112 = scmp.eq.s32.totalorder %s14, 0
    %p113 = por %p111, %p112
    %p114 = scmp.ne.s32.totalorder %s100, %s101
    %p115 = scmp.eq.s32.totalorder %s15, 1
    %p116 = por %p114, %p115
    %p118 = scmp.ne.s32.totalorder %s101, %s117
    %p119 = scmp.eq.s32.totalorder %s15, 0
    %p120 = por %p118, %p119
    %p121 = scmp.le.s32.totalorder 1, %s9
    %p122 = scmp.lt.s32.totalorder %s9, 3
    %p123 = pnand %p121, %p122
    %p124 = pneg %p123
    // Predicated region
    $region9: #{inpaint_generator_forward.23} parent=5 // pred_check
      _
    $region10: #{inpaint_generator_forward.23} parent=5 // pred_check_branch
      %126 = sbr.rel (%p123) target = $region12
    $region11: #{inpaint_generator_forward.23} parent=5 // pred_region
      %s127 = ssub.s32 %s9, 1
    $region12: #{inpaint_generator_forward.23} parent=5 // pred_fallthru
      _
    %p128 = scmp.lt.s32.totalorder %s9, 2
    // Predicated region
    $region13: #{inpaint_generator_forward.23} parent=5 // pred_check
      %p129 = pneg %p128
    $region14: #{inpaint_generator_forward.23} parent=5 // pred_check_branch
      %131 = sbr.rel (%p129) target = $region16
    $region15: #{inpaint_generator_forward.23} parent=5 // pred_region
      // Predicated region
      $region17: #{inpaint_generator_forward.23} parent=15 // pred_check
        %p132 = pneg %p29
      $region18: #{inpaint_generator_forward.23} parent=15 // pred_check_branch
        %134 = sbr.rel (%p132) target = $region20
      $region19: #{inpaint_generator_forward.23} parent=15 // pred_region
        %p135 = scmp.lt.s32.totalorder %s9, 1
        %s136 = scalar_select %p135, %s9, 1
        %s137 = smul.addr %s136, 4
        %s138 = scalar_lea.vmem %s0, %s137
      $region20: #{inpaint_generator_forward.23} parent=15 // pred_fallthru
        _
      // Predicated region
      $region21: #{inpaint_generator_forward.23} parent=15 // pred_check
        %p139 = pneg %p55
      $region22: #{inpaint_generator_forward.23} parent=15 // pred_check_branch
        %141 = sbr.rel (%p139) target = $region24
      $region23: #{inpaint_generator_forward.23} parent=15 // pred_region
        %p142 = scmp.lt.s32.totalorder %s9, 1
        %s143 = scalar_select %p142, %s9, 1
        %s144 = smul.addr %s143, 4
        %s145 = scalar_lea.vmem %s1, %s144
      $region24: #{inpaint_generator_forward.23} parent=15 // pred_fallthru
        _
      // Predicated region
      $region25: #{inpaint_generator_forward.23} parent=15 // pred_check
        %p146 = pneg %p81
      $region26: #{inpaint_generator_forward.23} parent=15 // pred_check_branch
        %148 = sbr.rel (%p146) target = $region28
      $region27: #{inpaint_generator_forward.23} parent=15 // pred_region
        %p149 = scmp.lt.s32.totalorder %s9, 1
        %s150 = scalar_select %p149, %s9, 1
        %s151 = smul.addr %s150, 4
        %s152 = scalar_lea.vmem %s2, %s151
      $region28: #{inpaint_generator_forward.23} parent=15 // pred_fallthru
        _
    $region16: #{inpaint_generator_forward.23} parent=5 // pred_fallthru
      _
    %p153 = scmp.le.s32.totalorder 1, %s9
    %p154 = scmp.lt.s32.totalorder %s9, 3
    %p155 = pnand %p153, %p154
    %p156 = pneg %p155
    // Predicated region
    $region29: #{inpaint_generator_forward.23} parent=5 // pred_check
      _
    $region30: #{inpaint_generator_forward.23} parent=5 // pred_check_branch
      %158 = sbr.rel (%p155) target = $region32
    $region31: #{inpaint_generator_forward.23} parent=5 // pred_region
      %s159 = ssub.s32 %s9, 1
      %p160 = scmp.lt.s32.totalorder %s14, 1
      %s161 = scalar_select %p160, %s14, 1
      %s162 = smul.addr %s161, 4
      %s163 = scalar_lea.vmem %s0, %s162
      %p164 = pneg %p35
      %p165 = pneg %p32
      %p166 = scmp.lt.s32.totalorder %s14, 1
      %s167 = scalar_select %p166, %s14, 1
      %s168 = smul.addr %s167, 4
      %s169 = scalar_lea.vmem %s1, %s168
      %p170 = pneg %p61
      %p171 = pneg %p58
      %p172 = scmp.lt.s32.totalorder %s14, 1
      %s173 = scalar_select %p172, %s14, 1
      %s174 = smul.addr %s173, 4
      %s175 = scalar_lea.vmem %s2, %s174
      %p176 = pneg %p87
      %p177 = pneg %p84
      %p178 = pneg %p113
      %p179 = pneg %p110
      %p180 = scmp.lt.s32.totalorder %s14, 1
      %s181 = scalar_select %p180, %s14, 1
      %s182 = smul.addr %s181, 4
      %s183 = scalar_lea.vmem %s3, %s182
      %p184 = scmp.lt.s32.totalorder %s14, 1
      %s185 = scalar_select %p184, %s14, 1
      %s186 = smul.addr %s185, 4
      %s187 = scalar_lea.vmem %s0, %s186
      %p188 = scmp.lt.s32.totalorder %s14, 1
      %s189 = scalar_select %p188, %s14, 1
      %s190 = smul.addr %s189, 4
      %s191 = scalar_lea.vmem %s1, %s190
      %p192 = scmp.lt.s32.totalorder %s14, 1
      %s193 = scalar_select %p192, %s14, 1
      %s194 = smul.addr %s193, 4
      %s195 = scalar_lea.vmem %s2, %s194
      %p196 = scmp.lt.s32.totalorder %s14, 1
      %s197 = scalar_select %p196, %s14, 1
      %s198 = smul.addr %s197, 4
      %s199 = scalar_lea.vmem %s3, %s198
      %v201 = vld [vmem:[%s187] sm:$0xf]
      %v202 = vld [vmem:[%s191] sm:$0xf]
      %vm203 = vcmask 523264
      %v205 = vsel %vm203, %v201, 0
      %v208 = vsel %vm203, %v202, 0
      %210 = vmatprep.subr.bf16.mxu0 0
      %211 = vmatpush1.bf16.xpose.msra.mxu0 %v208
      %212 = vmatprep.subr.bf16.mxu0 0
      %213 = vmatpush1.bf16.xpose.msra.mxu0 0
      %214 = vmatprep.subr.bf16.mxu0 0
      %215 = vmatpush1.bf16.xpose.msra.mxu0 0
      %216 = vmatprep.subr.bf16.mxu0 0
      %217 = vmatpush1.bf16.xpose.msra.mxu0 0
      %218 = vmatprep.subr.bf16.mxu0 0
      %219 = vmatpush1.bf16.xpose.msra.mxu0 0
      %220 = vmatprep.subr.bf16.mxu0 0
      %221 = vmatpush1.bf16.xpose.msra.mxu0 0
      %222 = vmatprep.subr.bf16.mxu0 0
      %223 = vmatpush1.bf16.xpose.msra.mxu0 0
      %224 = vmatprep.subr.bf16.mxu0 0
      %225 = vmatpush1.bf16.xpose.msra.mxu0 0
      %226 = vmatprep.subr.bf16.mxu0 0
      %227 = vmatpush1.bf16.xpose.msra.mxu0 0
      %228 = vmatprep.subr.bf16.mxu0 0
      %229 = vmatpush1.bf16.xpose.msra.mxu0 0
      %230 = vmatprep.subr.bf16.mxu0 0
      %231 = vmatpush1.bf16.xpose.msra.mxu0 0
      %232 = vmatprep.subr.bf16.mxu0 0
      %233 = vmatpush1.bf16.xpose.msra.mxu0 0
      %234 = vmatprep.subr.bf16.mxu0 0
      %235 = vmatpush1.bf16.xpose.msra.mxu0 0
      %236 = vmatprep.subr.bf16.mxu0 0
      %237 = vmatpush1.bf16.xpose.msra.mxu0 0
      %238 = vmatprep.subr.bf16.mxu0 0
      %239 = vmatpush1.bf16.xpose.msra.mxu0 0
      %240 = vmatprep.subr.bf16.mxu0 0
      %241 = vmatpush1.bf16.xpose.msra.mxu0 0
      %242 = vmatprep.mubr.bf16.mxu0 0
      %243 = vmatmul.mubr.bf16.gmra.mrb[0].mxu0 %v205
      %v244 = vpop.f32.mrb[0].mxu0
      %v245 = vadd.f32 0.0, %v244
      %v246 = vpop.f32.mrb[0].mxu0
      %v247 = vpop.f32.mrb[0].mxu0
      %v248 = vpop.f32.mrb[0].mxu0
      %249 = vdwg.mxu0
      %v250 = vmul.f32 %v245, 0.125
      %vm251 = vcmask 64512
      %v252 = vsel %vm251, %v250, -inf
      %253 = vmax.xlane.f32.xlu0 %v252
      %v254 = vpop.xlane.xlu0 %253
      %v255 = vsub.f32 %v250, %v254
      %v256 = vmul.f32 %v255, 1.442695
      %v257 = vpow.pop %v256
      %v258 = vsel %vm251, %v257, 0.0
      %259 = vadd.xlane.f32.xlu0 %v258
      %v260 = vpop.xlane.xlu0 %259
      %v261 = vpack.c.bf16 %v257, %v257
      %v262 = vld [vmem:[%s195] sm:$0xf]
      %v264 = vsel %vm251, %v261, 0
      %vm266 = vcmask 1043456
      %v268 = vsel %vm266, %v262, 0
      %270 = vmatprep.subr.bf16.mxu0 0
      %271 = vmatpush1.bf16.msra.mxu0 %v268
      %272 = vmatprep.subr.bf16.mxu0 0
      %273 = vmatpush1.bf16.msra.mxu0 0
      %274 = vmatprep.subr.bf16.mxu0 0
      %275 = vmatpush1.bf16.msra.mxu0 0
      %276 = vmatprep.subr.bf16.mxu0 0
      %277 = vmatpush1.bf16.msra.mxu0 0
      %278 = vmatprep.subr.bf16.mxu0 0
      %279 = vmatpush1.bf16.msra.mxu0 0
      %280 = vmatprep.subr.bf16.mxu0 0
      %281 = vmatpush1.bf16.msra.mxu0 0
      %282 = vmatprep.subr.bf16.mxu0 0
      %283 = vmatpush1.bf16.msra.mxu0 0
      %284 = vmatprep.subr.bf16.mxu0 0
      %285 = vmatpush1.bf16.msra.mxu0 0
      %286 = vmatprep.subr.bf16.mxu0 0
      %287 = vmatpush1.bf16.msra.mxu0 0
      %288 = vmatprep.subr.bf16.mxu0 0
      %289 = vmatpush1.bf16.msra.mxu0 0
      %290 = vmatprep.subr.bf16.mxu0 0
      %291 = vmatpush1.bf16.msra.mxu0 0
      %292 = vmatprep.subr.bf16.mxu0 0
      %293 = vmatpush1.bf16.msra.mxu0 0
      %294 = vmatprep.subr.bf16.mxu0 0
      %295 = vmatpush1.bf16.msra.mxu0 0
      %296 = vmatprep.subr.bf16.mxu0 0
      %297 = vmatpush1.bf16.msra.mxu0 0
      %298 = vmatprep.subr.bf16.mxu0 0
      %299 = vmatpush1.bf16.msra.mxu0 0
      %300 = vmatprep.subr.bf16.mxu0 0
      %301 = vmatpush1.bf16.msra.mxu0 0
      %302 = vmatprep.mubr.bf16.mxu0 0
      %303 = vmatmul.mubr.bf16.gmra.mrb[0].mxu0 %v264
      %v304 = vpop.f32.mrb[0].mxu0
      %v305 = vadd.f32 0.0, %v304
      %v306 = vpop.f32.mrb[0].mxu0
      %v307 = vpop.f32.mrb[0].mxu0
      %v308 = vpop.f32.mrb[0].mxu0
      %309 = vdwg.mxu0
      %v310 = vrcp.pop %v260
      %v311 = vmul.f32 %v305, %v310
      %v312 = vpack.c.bf16 %v311, %v311
      %vm313 = vcmask 519168
      %314 = vst.msk [vmem:[%s199] sm:$0xf] %vm313, %v312
      %p315 = scmp.lt.s32.totalorder %s14, 1
      %s316 = scalar_select %p315, %s14, 1
      %s317 = smul.addr %s316, 4
      %s318 = scalar_lea.vmem %s3, %s317
      // Predicated region
      $region33: #{inpaint_generator_forward.23} parent=31 // pred_check
        %p319 = pneg %p110
      $region34: #{inpaint_generator_forward.23} parent=31 // pred_check_branch
        %321 = sbr.rel (%p319) target = $region36
      $region35: #{inpaint_generator_forward.23} parent=31 // pred_region
        _
      $region36: #{inpaint_generator_forward.23} parent=31 // pred_fallthru
        _
    $region32: #{inpaint_generator_forward.23} parent=5 // pred_fallthru
      _
    %p322 = scmp.le.s32.totalorder 2, %s9
    // Predicated region
    $region37: #{inpaint_generator_forward.23} parent=5 // pred_check
      %p323 = pneg %p322
    $region38: #{inpaint_generator_forward.23} parent=5 // pred_check_branch
      %325 = sbr.rel (%p323) target = $region40
    $region39: #{inpaint_generator_forward.23} parent=5 // pred_region
      %s326 = ssub.s32 %s9, 2
      // Predicated region
      $region41: #{inpaint_generator_forward.23} parent=39 // pred_check
        %p327 = pneg %p116
      $region42: #{inpaint_generator_forward.23} parent=39 // pred_check_branch
        %329 = sbr.rel (%p327) target = $region44
      $region43: #{inpaint_generator_forward.23} parent=39 // pred_region
        %p330 = scmp.lt.s32.totalorder %s15, 1
        %s331 = scalar_select %p330, %s15, 1
        %s332 = smul.addr %s331, 4
        %s333 = scalar_lea.vmem %s3, %s332
      $region44: #{inpaint_generator_forward.23} parent=39 // pred_fallthru
        _
    $region40: #{inpaint_generator_forward.23} parent=5 // pred_fallthru
      _
  $region6: #{inpaint_generator_forward.23} parent=0 // loop_footer
    %s13 = sadd.s32 1, %s9
  $region7: #{inpaint_generator_forward.23} parent=0 // loop_footer_branch
    %8 = sbr.rel target = $region3
  $region8: #{inpaint_generator_forward.23} parent=0 // loop_exit
    _

// kernel: inpaint_generator_forward.24
$region0: #{inpaint_generator_forward.24}
  #allocation0 [shape = 'u32[]', space=smem, size = 0x4, offset = 0x4, fixed_abs, tag = 'smem constant byte address 0x4 - core index']
  #allocation1 [shape = 'u32[144,128]{1,0:T(1,128)}', space=vmem, size = 0x12000, scoped, tag = 'internal scratch']
  #allocation2 [shape = 'f32[64,128]{1,0:T(8,128)}', space=vmem, size = 0x8000, scoped, tag = 'scratch operand']
  %s0 = inlined_call_operand.vmem [shape: bf16[64,384], index: 0, kind: input, shape index: {}]
  %s1 = inlined_call_operand.vmem [shape: bf16[384,128], index: 1, kind: input, shape index: {}]
  %s2 = inlined_call_operand.vmem [shape: f32[1,128], index: 2, kind: input, shape index: {}]
  %s3 = inlined_call_operand.vmem [shape: bf16[64,128], index: 3, kind: input, shape index: {}, may-alias: {3,4}]
  %s4 = inlined_call_operand.vmem [shape: bf16[64,128], index: 4, kind: output, shape index: {}, may-alias: {3,4}]
  %s5 = sld [smem:[#allocation0]]
  $region34: #{inpaint_generator_forward.24} parent=0
    _
  %s7 = ssub.s32 1, %s5
  %s8 = scalar_select 0, %s7, %s5
  // Predicated region
  $region2: #{inpaint_generator_forward.24} parent=0 // pred_check
    _
  $region3: #{inpaint_generator_forward.24} parent=0 // pred_check_branch
    %10 = sbr.rel (0) target = $region5
  $region4: #{inpaint_generator_forward.24} parent=0 // pred_region
    _
  $region5: #{inpaint_generator_forward.24} parent=0 // pred_fallthru
    _
  // Predicated region
  $region6: #{inpaint_generator_forward.24} parent=0 // pred_check
    _
  $region7: #{inpaint_generator_forward.24} parent=0 // pred_check_branch
    %12 = sbr.rel (0) target = $region9
  $region8: #{inpaint_generator_forward.24} parent=0 // pred_region
    _
  $region9: #{inpaint_generator_forward.24} parent=0 // pred_fallthru
    _
  // Predicated region
  $region10: #{inpaint_generator_forward.24} parent=0 // pred_check
    _
  $region11: #{inpaint_generator_forward.24} parent=0 // pred_check_branch
    %14 = sbr.rel (0) target = $region13
  $region12: #{inpaint_generator_forward.24} parent=0 // pred_region
    _
  $region13: #{inpaint_generator_forward.24} parent=0 // pred_fallthru
    _
  // Predicated region
  $region14: #{inpaint_generator_forward.24} parent=0 // pred_check
    _
  $region15: #{inpaint_generator_forward.24} parent=0 // pred_check_branch
    %16 = sbr.rel (0) target = $region17
  $region16: #{inpaint_generator_forward.24} parent=0 // pred_region
    _
  $region17: #{inpaint_generator_forward.24} parent=0 // pred_fallthru
    _
  %p18 = scmp.eq.s32.totalorder 0, 0
  // Predicated region
  $region18: #{inpaint_generator_forward.24} parent=0 // pred_check
    %p19 = pneg %p18
  $region19: #{inpaint_generator_forward.24} parent=0 // pred_check_branch
    %21 = sbr.rel (%p19) target = $region21
  $region20: #{inpaint_generator_forward.24} parent=0 // pred_region
    %v22 = vld [vmem:[%s2] sm:$0x1]
    %v24 = vlaneseq
    %v25 = vshrl.u32 %v24, 7
    %v26 = vsub.s32 0, %v25
    %v27 = vrot.slane %v22, %v26
    %29 = vst [vmem:[#allocation2] sm:$0xff] %v27
    %30 = vst [vmem:[#allocation2 + $0x8] sm:$0xff] %v27
    %31 = vst [vmem:[#allocation2 + $0x10] sm:$0xff] %v27
    %32 = vst [vmem:[#allocation2 + $0x18] sm:$0xff] %v27
    %33 = vst [vmem:[#allocation2 + $0x20] sm:$0xff] %v27
    %34 = vst [vmem:[#allocation2 + $0x28] sm:$0xff] %v27
    %35 = vst [vmem:[#allocation2 + $0x30] sm:$0xff] %v27
    %36 = vst [vmem:[#allocation2 + $0x38] sm:$0xff] %v27
  $region21: #{inpaint_generator_forward.24} parent=0 // pred_fallthru
    _
  %v37 = vld [vmem:[#allocation2] sm:$0xff]
  %v38 = vld [vmem:[#allocation2 + $0x8] sm:$0xff]
  %v39 = vld [vmem:[#allocation2 + $0x10] sm:$0xff]
  %v40 = vld [vmem:[#allocation2 + $0x18] sm:$0xff]
  %v41 = vld [vmem:[#allocation2 + $0x20] sm:$0xff]
  %v42 = vld [vmem:[#allocation2 + $0x28] sm:$0xff]
  %v43 = vld [vmem:[#allocation2 + $0x30] sm:$0xff]
  %v44 = vld [vmem:[#allocation2 + $0x38] sm:$0xff]
  %v45 = vld [vmem:[%s0] sm:$0xff]
  %v46 = vld [vmem:[%s0 + $0x8] sm:$0xf]
  %v47 = vld [vmem:[%s0 + $0xc] sm:$0xff]
  %v48 = vld [vmem:[%s0 + $0x14] sm:$0xf]
  %v49 = vld [vmem:[%s0 + $0x18] sm:$0xff]
  %v50 = vld [vmem:[%s0 + $0x20] sm:$0xf]
  %v51 = vld [vmem:[%s0 + $0x24] sm:$0xff]
  %v52 = vld [vmem:[%s0 + $0x2c] sm:$0xf]
  %v53 = vld [vmem:[%s0 + $0x30] sm:$0xff]
  %v54 = vld [vmem:[%s0 + $0x38] sm:$0xf]
  %v55 = vld [vmem:[%s0 + $0x3c] sm:$0xff]
  %v56 = vld [vmem:[%s0 + $0x44] sm:$0xf]
  %v57 = vld [vmem:[%s0 + $0x48] sm:$0xff]
  %v58 = vld [vmem:[%s0 + $0x50] sm:$0xf]
  %v59 = vld [vmem:[%s0 + $0x54] sm:$0xff]
  %v60 = vld [vmem:[%s0 + $0x5c] sm:$0xf]
  %v61 = vld [vmem:[%s1] sm:$0xf]
  %v62 = vld [vmem:[%s1 + $0x4] sm:$0xf]
  %v63 = vld [vmem:[%s1 + $0x8] sm:$0xf]
  %v64 = vld [vmem:[%s1 + $0xc] sm:$0xf]
  %v65 = vld [vmem:[%s1 + $0x10] sm:$0xf]
  %v66 = vld [vmem:[%s1 + $0x14] sm:$0xf]
  %v67 = vld [vmem:[%s1 + $0x18] sm:$0xf]
  %v68 = vld [vmem:[%s1 + $0x1c] sm:$0xf]
  %v69 = vld [vmem:[%s1 + $0x20] sm:$0xf]
  %v70 = vld [vmem:[%s1 + $0x24] sm:$0xf]
  %v71 = vld [vmem:[%s1 + $0x28] sm:$0xf]
  %v72 = vld [vmem:[%s1 + $0x2c] sm:$0xf]
  %v73 = vld [vmem:[%s1 + $0x30] sm:$0xf]
  %v74 = vld [vmem:[%s1 + $0x34] sm:$0xf]
  %v75 = vld [vmem:[%s1 + $0x38] sm:$0xf]
  %v76 = vld [vmem:[%s1 + $0x3c] sm:$0xf]
  %v77 = vld [vmem:[%s1 + $0x40] sm:$0xf]
  %v78 = vld [vmem:[%s1 + $0x44] sm:$0xf]
  %v79 = vld [vmem:[%s1 + $0x48] sm:$0xf]
  %v80 = vld [vmem:[%s1 + $0x4c] sm:$0xf]
  %v81 = vld [vmem:[%s1 + $0x50] sm:$0xf]
  %v82 = vld [vmem:[%s1 + $0x54] sm:$0xf]
  %v83 = vld [vmem:[%s1 + $0x58] sm:$0xf]
  %v84 = vld [vmem:[%s1 + $0x5c] sm:$0xf]
  %v85 = vld [vmem:[%s1 + $0x60] sm:$0xf]
  %v86 = vld [vmem:[%s1 + $0x64] sm:$0xf]
  %v87 = vld [vmem:[%s1 + $0x68] sm:$0xf]
  %v88 = vld [vmem:[%s1 + $0x6c] sm:$0xf]
  %v89 = vld [vmem:[%s1 + $0x70] sm:$0xf]
  %v90 = vld [vmem:[%s1 + $0x74] sm:$0xf]
  %v91 = vld [vmem:[%s1 + $0x78] sm:$0xf]
  %v92 = vld [vmem:[%s1 + $0x7c] sm:$0xf]
  %v93 = vld [vmem:[%s1 + $0x80] sm:$0xf]
  %v94 = vld [vmem:[%s1 + $0x84] sm:$0xf]
  %v95 = vld [vmem:[%s1 + $0x88] sm:$0xf]
  %v96 = vld [vmem:[%s1 + $0x8c] sm:$0xf]
  %v97 = vld [vmem:[%s1 + $0x90] sm:$0xf]
  %v98 = vld [vmem:[%s1 + $0x94] sm:$0xf]
  %v99 = vld [vmem:[%s1 + $0x98] sm:$0xf]
  %v100 = vld [vmem:[%s1 + $0x9c] sm:$0xf]
  %v101 = vld [vmem:[%s1 + $0xa0] sm:$0xf]
  %v102 = vld [vmem:[%s1 + $0xa4] sm:$0xf]
  %v103 = vld [vmem:[%s1 + $0xa8] sm:$0xf]
  %v104 = vld [vmem:[%s1 + $0xac] sm:$0xf]
  %v105 = vld [vmem:[%s1 + $0xb0] sm:$0xf]
  %v106 = vld [vmem:[%s1 + $0xb4] sm:$0xf]
  %v107 = vld [vmem:[%s1 + $0xb8] sm:$0xf]
  %v108 = vld [vmem:[%s1 + $0xbc] sm:$0xf]
  %v125 = vunpack.c.l.b16 %v45
  %v126 = vunpack.c.h.b16 %v45
  %v127 = vunpack.c.l.b16 %v46
  %v128 = vunpack.c.l.b16 %v47
  %v129 = vunpack.c.h.b16 %v47
  %v130 = vunpack.c.l.b16 %v48
  %v131 = vunpack.c.l.b16 %v49
  %v132 = vunpack.c.h.b16 %v49
  %v133 = vunpack.c.l.b16 %v50
  %v134 = vunpack.c.l.b16 %v51
  %v135 = vunpack.c.h.b16 %v51
  %v136 = vunpack.c.l.b16 %v52
  %v137 = vunpack.c.l.b16 %v53
  %v138 = vunpack.c.h.b16 %v53
  %v139 = vunpack.c.l.b16 %v54
  %v140 = vunpack.c.l.b16 %v55
  %v141 = vunpack.c.h.b16 %v55
  %v142 = vunpack.c.l.b16 %v56
  %v143 = vunpack.c.l.b16 %v57
  %v144 = vunpack.c.h.b16 %v57
  %v145 = vunpack.c.l.b16 %v58
  %v146 = vunpack.c.l.b16 %v59
  %v147 = vunpack.c.h.b16 %v59
  %v148 = vunpack.c.l.b16 %v60
  %v149 = vpack.c.b16 %v128, %v125
  %v150 = vpack.c.b16 %v129, %v126
  %v151 = vpack.c.b16 %v130, %v127
  %v152 = vpack.c.b16 %v134, %v131
  %v153 = vpack.c.b16 %v135, %v132
  %v154 = vpack.c.b16 %v136, %v133
  %v155 = vpack.c.b16 %v140, %v137
  %v156 = vpack.c.b16 %v141, %v138
  %v157 = vpack.c.b16 %v142, %v139
  %v158 = vpack.c.b16 %v146, %v143
  %v159 = vpack.c.b16 %v147, %v144
  %v160 = vpack.c.b16 %v148, %v145
  %v221 = vunpack.c.l.b16 %v61
  %v222 = vunpack.c.l.b16 %v62
  %v223 = vunpack.c.l.b16 %v63
  %v224 = vunpack.c.l.b16 %v64
  %v225 = vunpack.c.l.b16 %v65
  %v226 = vunpack.c.l.b16 %v66
  %v227 = vunpack.c.l.b16 %v67
  %v228 = vunpack.c.l.b16 %v68
  %v229 = vunpack.c.l.b16 %v69
  %v230 = vunpack.c.l.b16 %v70
  %v231 = vunpack.c.l.b16 %v71
  %v232 = vunpack.c.l.b16 %v72
  %v233 = vunpack.c.l.b16 %v73
  %v234 = vunpack.c.l.b16 %v74
  %v235 = vunpack.c.l.b16 %v75
  %v236 = vunpack.c.l.b16 %v76
  %v237 = vunpack.c.l.b16 %v77
  %v238 = vunpack.c.l.b16 %v78
  %v239 = vunpack.c.l.b16 %v79
  %v240 = vunpack.c.l.b16 %v80
  %v241 = vunpack.c.l.b16 %v81
  %v242 = vunpack.c.l.b16 %v82
  %v243 = vunpack.c.l.b16 %v83
  %v244 = vunpack.c.l.b16 %v84
  %v245 = vunpack.c.l.b16 %v85
  %v246 = vunpack.c.l.b16 %v86
  %v247 = vunpack.c.l.b16 %v87
  %v248 = vunpack.c.l.b16 %v88
  %v249 = vunpack.c.l.b16 %v89
  %v250 = vunpack.c.l.b16 %v90
  %v251 = vunpack.c.l.b16 %v91
  %v252 = vunpack.c.l.b16 %v92
  %v253 = vunpack.c.l.b16 %v93
  %v254 = vunpack.c.l.b16 %v94
  %v255 = vunpack.c.l.b16 %v95
  %v256 = vunpack.c.l.b16 %v96
  %v257 = vunpack.c.l.b16 %v97
  %v258 = vunpack.c.l.b16 %v98
  %v259 = vunpack.c.l.b16 %v99
  %v260 = vunpack.c.l.b16 %v100
  %v261 = vunpack.c.l.b16 %v101
  %v262 = vunpack.c.l.b16 %v102
  %v263 = vunpack.c.l.b16 %v103
  %v264 = vunpack.c.l.b16 %v104
  %v265 = vunpack.c.l.b16 %v105
  %v266 = vunpack.c.l.b16 %v106
  %v267 = vunpack.c.l.b16 %v107
  %v268 = vunpack.c.l.b16 %v108
  %v269 = vpack.c.b16 %v222, %v221
  %v270 = vpack.c.b16 %v224, %v223
  %v271 = vpack.c.b16 %v226, %v225
  %v272 = vpack.c.b16 %v228, %v227
  %v273 = vpack.c.b16 %v230, %v229
  %v274 = vpack.c.b16 %v232, %v231
  %v275 = vpack.c.b16 %v234, %v233
  %v276 = vpack.c.b16 %v236, %v235
  %v277 = vpack.c.b16 %v238, %v237
  %v278 = vpack.c.b16 %v240, %v239
  %v279 = vpack.c.b16 %v242, %v241
  %v280 = vpack.c.b16 %v244, %v243
  %v281 = vpack.c.b16 %v246, %v245
  %v282 = vpack.c.b16 %v248, %v247
  %v283 = vpack.c.b16 %v250, %v249
  %v284 = vpack.c.b16 %v252, %v251
  %v285 = vpack.c.b16 %v254, %v253
  %v286 = vpack.c.b16 %v256, %v255
  %v287 = vpack.c.b16 %v258, %v257
  %v288 = vpack.c.b16 %v260, %v259
  %v289 = vpack.c.b16 %v262, %v261
  %v290 = vpack.c.b16 %v264, %v263
  %v291 = vpack.c.b16 %v266, %v265
  %v292 = vpack.c.b16 %v268, %v267
  %317 = vmatprep.subr.bf16.mxu0 0
  %318 = vmatpush1.bf16.msra.mxu0 %v269
  %319 = vmatprep.subr.bf16.mxu0 0
  %320 = vmatpush1.bf16.msra.mxu0 %v270
  %321 = vmatprep.subr.bf16.mxu0 0
  %322 = vmatpush1.bf16.msra.mxu0 %v271
  %323 = vmatprep.subr.bf16.mxu0 0
  %324 = vmatpush1.bf16.msra.mxu0 %v272
  %325 = vmatprep.subr.bf16.mxu0 0
  %326 = vmatpush1.bf16.msra.mxu0 %v273
  %327 = vmatprep.subr.bf16.mxu0 0
  %328 = vmatpush1.bf16.msra.mxu0 %v274
  %329 = vmatprep.subr.bf16.mxu0 0
  %330 = vmatpush1.bf16.msra.mxu0 %v275
  %331 = vmatprep.subr.bf16.mxu0 0
  %332 = vmatpush1.bf16.msra.mxu0 %v276
  %333 = vmatprep.subr.bf16.mxu0 0
  %334 = vmatpush1.bf16.msra.mxu0 %v277
  %335 = vmatprep.subr.bf16.mxu0 0
  %336 = vmatpush1.bf16.msra.mxu0 %v278
  %337 = vmatprep.subr.bf16.mxu0 0
  %338 = vmatpush1.bf16.msra.mxu0 %v279
  %339 = vmatprep.subr.bf16.mxu0 0
  %340 = vmatpush1.bf16.msra.mxu0 %v280
  %341 = vmatprep.subr.bf16.mxu0 0
  %342 = vmatpush1.bf16.msra.mxu0 %v281
  %343 = vmatprep.subr.bf16.mxu0 0
  %344 = vmatpush1.bf16.msra.mxu0 %v282
  %345 = vmatprep.subr.bf16.mxu0 0
  %346 = vmatpush1.bf16.msra.mxu0 %v283
  %347 = vmatprep.subr.bf16.mxu0 0
  %348 = vmatpush1.bf16.msra.mxu0 %v284
  %349 = vmatprep.mubr.bf16.mxu0 %v150
  %350 = vmatmul.mubr.bf16.gmra.mrb[0].mxu0 %v149
  %v351 = vpop.f32.mrb[0].mxu0
  %v352 = vadd.f32 0.0, %v351
  %v353 = vpop.f32.mrb[0].mxu0
  %v354 = vpop.f32.mrb[0].mxu0
  %v355 = vadd.f32 0.0, %v354
  %v356 = vpop.f32.mrb[0].mxu0
  %357 = vmatprep.mubr.bf16.mxu0 %v153
  %358 = vmatmul.mubr.bf16.gmra.mrb[0].mxu0 %v152
  %v359 = vpop.f32.mrb[0].mxu0
  %v360 = vadd.f32 0.0, %v359
  %v361 = vpop.f32.mrb[0].mxu0
  %v362 = vpop.f32.mrb[0].mxu0
  %v363 = vadd.f32 0.0, %v362
  %v364 = vpop.f32.mrb[0].mxu0
  %365 = vmatprep.mubr.bf16.mxu0 %v156
  %366 = vmatmul.mubr.bf16.gmra.mrb[0].mxu0 %v155
  %v367 = vpop.f32.mrb[0].mxu0
  %v368 = vadd.f32 0.0, %v367
  %v369 = vpop.f32.mrb[0].mxu0
  %v370 = vpop.f32.mrb[0].mxu0
  %v371 = vadd.f32 0.0, %v370
  %v372 = vpop.f32.mrb[0].mxu0
  %373 = vmatprep.mubr.bf16.mxu0 %v159
  %374 = vmatmul.mubr.bf16.gmra.mrb[0].mxu0 %v158
  %v375 = vpop.f32.mrb[0].mxu0
  %v376 = vadd.f32 0.0, %v375
  %v377 = vpop.f32.mrb[0].mxu0
  %v378 = vpop.f32.mrb[0].mxu0
  %v379 = vadd.f32 0.0, %v378
  %v380 = vpop.f32.mrb[0].mxu0
  %381 = vdwg.mxu0
  %382 = vmatprep.subr.bf16.mxu0 0
  %383 = vmatpush1.bf16.msra.mxu0 %v285
  %384 = vmatprep.subr.bf16.mxu0 0
  %385 = vmatpush1.bf16.msra.mxu0 %v286
  %386 = vmatprep.subr.bf16.mxu0 0
  %387 = vmatpush1.bf16.msra.mxu0 %v287
  %388 = vmatprep.subr.bf16.mxu0 0
  %389 = vmatpush1.bf16.msra.mxu0 %v288
  %390 = vmatprep.subr.bf16.mxu0 0
  %391 = vmatpush1.bf16.msra.mxu0 %v289
  %392 = vmatprep.subr.bf16.mxu0 0
  %393 = vmatpush1.bf16.msra.mxu0 %v290
  %394 = vmatprep.subr.bf16.mxu0 0
  %395 = vmatpush1.bf16.msra.mxu0 %v291
  %396 = vmatprep.subr.bf16.mxu0 0
  %397 = vmatpush1.bf16.msra.mxu0 %v292
  %398 = vmatprep.subr.bf16.mxu0 0
  %399 = vmatpush1.bf16.msra.mxu0 0
  %400 = vmatprep.subr.bf16.mxu0 0
  %401 = vmatpush1.bf16.msra.mxu0 0
  %402 = vmatprep.subr.bf16.mxu0 0
  %403 = vmatpush1.bf16.msra.mxu0 0
  %404 = vmatprep.subr.bf16.mxu0 0
  %405 = vmatpush1.bf16.msra.mxu0 0
  %406 = vmatprep.subr.bf16.mxu0 0
  %407 = vmatpush1.bf16.msra.mxu0 0
  %408 = vmatprep.subr.bf16.mxu0 0
  %409 = vmatpush1.bf16.msra.mxu0 0
  %410 = vmatprep.subr.bf16.mxu0 0
  %411 = vmatpush1.bf16.msra.mxu0 0
  %412 = vmatprep.subr.bf16.mxu0 0
  %413 = vmatpush1.bf16.msra.mxu0 0
  %414 = vmatprep.mubr.bf16.mxu0 0
  %415 = vmatmul.mubr.bf16.gmra.mrb[0].mxu0 %v151
  %v416 = vpop.f32.mrb[0].mxu0
  %v417 = vadd.f32 %v352, %v416
  %v418 = vpop.f32.mrb[0].mxu0
  %v419 = vpop.f32.mrb[0].mxu0
  %v420 = vadd.f32 %v355, %v419
  %v421 = vpop.f32.mrb[0].mxu0
  %422 = vmatprep.mubr.bf16.mxu0 0
  %423 = vmatmul.mubr.bf16.gmra.mrb[0].mxu0 %v154
  %v424 = vpop.f32.mrb[0].mxu0
  %v425 = vadd.f32 %v360, %v424
  %v426 = vpop.f32.mrb[0].mxu0
  %v427 = vpop.f32.mrb[0].mxu0
  %v428 = vadd.f32 %v363, %v427
  %v429 = vpop.f32.mrb[0].mxu0
  %430 = vmatprep.mubr.bf16.mxu0 0
  %431 = vmatmul.mubr.bf16.gmra.mrb[0].mxu0 %v157
  %v432 = vpop.f32.mrb[0].mxu0
  %v433 = vadd.f32 %v368, %v432
  %v434 = vpop.f32.mrb[0].mxu0
  %v435 = vpop.f32.mrb[0].mxu0
  %v436 = vadd.f32 %v371, %v435
  %v437 = vpop.f32.mrb[0].mxu0
  %438 = vmatprep.mubr.bf16.mxu0 0
  %439 = vmatmul.mubr.bf16.gmra.mrb[0].mxu0 %v160
  %v440 = vpop.f32.mrb[0].mxu0
  %v441 = vadd.f32 %v376, %v440
  %v442 = vpop.f32.mrb[0].mxu0
  %v443 = vpop.f32.mrb[0].mxu0
  %v444 = vadd.f32 %v379, %v443
  %v445 = vpop.f32.mrb[0].mxu0
  %446 = vdwg.mxu0
  %v447 = vadd.f32 %v37, %v417
  %v448 = vadd.f32 %v38, %v420
  %v449 = vadd.f32 %v39, %v425
  %v450 = vadd.f32 %v40, %v428
  %v451 = vadd.f32 %v41, %v433
  %v452 = vadd.f32 %v42, %v436
  %v453 = vadd.f32 %v43, %v441
  %v454 = vadd.f32 %v44, %v444
  %455 = vst [vmem:[#allocation2] sm:$0xff] %v447
  %456 = vst [vmem:[#allocation2 + $0x8] sm:$0xff] %v448
  %457 = vst [vmem:[#allocation2 + $0x10] sm:$0xff] %v449
  %458 = vst [vmem:[#allocation2 + $0x18] sm:$0xff] %v450
  %459 = vst [vmem:[#allocation2 + $0x20] sm:$0xff] %v451
  %460 = vst [vmem:[#allocation2 + $0x28] sm:$0xff] %v452
  %461 = vst [vmem:[#allocation2 + $0x30] sm:$0xff] %v453
  %462 = vst [vmem:[#allocation2 + $0x38] sm:$0xff] %v454
  // Predicated region
  $region22: #{inpaint_generator_forward.24} parent=0 // pred_check
    %p463 = pneg %p18
  $region23: #{inpaint_generator_forward.24} parent=0 // pred_check_branch
    %465 = sbr.rel (%p463) target = $region25
  $region24: #{inpaint_generator_forward.24} parent=0 // pred_region
    %v466 = vld [vmem:[#allocation2] sm:$0xff]
    %v467 = vld [vmem:[#allocation2 + $0x8] sm:$0xff]
    %v468 = vld [vmem:[#allocation2 + $0x10] sm:$0xff]
    %v469 = vld [vmem:[#allocation2 + $0x18] sm:$0xff]
    %v470 = vld [vmem:[#allocation2 + $0x20] sm:$0xff]
    %v471 = vld [vmem:[#allocation2 + $0x28] sm:$0xff]
    %v472 = vld [vmem:[#allocation2 + $0x30] sm:$0xff]
    %v473 = vld [vmem:[#allocation2 + $0x38] sm:$0xff]
    %vm474 = vcmp.ge.f32.partialorder %v466, 0.0
    %vm475 = vcmp.ge.f32.partialorder %v467, 0.0
    %vm476 = vcmp.ge.f32.partialorder %v468, 0.0
    %vm477 = vcmp.ge.f32.partialorder %v469, 0.0
    %vm478 = vcmp.ge.f32.partialorder %v470, 0.0
    %vm479 = vcmp.ge.f32.partialorder %v471, 0.0
    %vm480 = vcmp.ge.f32.partialorder %v472, 0.0
    %vm481 = vcmp.ge.f32.partialorder %v473, 0.0
    %v482 = vmul.f32 %v466, 0.2
    %v483 = vmul.f32 %v467, 0.2
    %v484 = vmul.f32 %v468, 0.2
    %v485 = vmul.f32 %v469, 0.2
    %v486 = vmul.f32 %v470, 0.2
    %v487 = vmul.f32 %v471, 0.2
    %v488 = vmul.f32 %v472, 0.2
    %v489 = vmul.f32 %v473, 0.2
    %v490 = vsel %vm474, %v466, %v482
    %v491 = vsel %vm475, %v467, %v483
    %v492 = vsel %vm476, %v468, %v484
    %v493 = vsel %vm477, %v469, %v485
    %v494 = vsel %vm478, %v470, %v486
    %v495 = vsel %vm479, %v471, %v487
    %v496 = vsel %vm480, %v472, %v488
    %v497 = vsel %vm481, %v473, %v489
    %v498 = vld [vmem:[%s3] sm:$0xf]
    %v499 = vld [vmem:[%s3 + $0x4] sm:$0xf]
    %v500 = vld [vmem:[%s3 + $0x8] sm:$0xf]
    %v501 = vld [vmem:[%s3 + $0xc] sm:$0xf]
    %v502 = vld [vmem:[%s3 + $0x10] sm:$0xf]
    %v503 = vld [vmem:[%s3 + $0x14] sm:$0xf]
    %v504 = vld [vmem:[%s3 + $0x18] sm:$0xf]
    %v505 = vld [vmem:[%s3 + $0x1c] sm:$0xf]
    %v506 = vunpack.c.l.bf16 %v498
    %v507 = vunpack.c.l.bf16 %v499
    %v508 = vunpack.c.l.bf16 %v500
    %v509 = vunpack.c.l.bf16 %v501
    %v510 = vunpack.c.l.bf16 %v502
    %v511 = vunpack.c.l.bf16 %v503
    %v512 = vunpack.c.l.bf16 %v504
    %v513 = vunpack.c.l.bf16 %v505
    %v514 = vadd.f32 %v490, %v506
    %v515 = vadd.f32 %v491, %v507
    %v516 = vadd.f32 %v492, %v508
    %v517 = vadd.f32 %v493, %v509
    %v518 = vadd.f32 %v494, %v510
    %v519 = vadd.f32 %v495, %v511
    %v520 = vadd.f32 %v496, %v512
    %v521 = vadd.f32 %v497, %v513
    %v522 = vpack.c.bf16 %v515, %v514
    %v523 = vpack.c.bf16 %v517, %v516
    %v524 = vpack.c.bf16 %v519, %v518
    %v525 = vpack.c.bf16 %v521, %v520
    %v530 = vunpack.c.l.b16 %v522
    %v531 = vunpack.c.h.b16 %v522
    %v532 = vunpack.c.l.b16 %v523
    %v533 = vunpack.c.h.b16 %v523
    %v534 = vunpack.c.l.b16 %v524
    %v535 = vunpack.c.h.b16 %v524
    %v536 = vunpack.c.l.b16 %v525
    %v537 = vunpack.c.h.b16 %v525
    %v538 = vpack.c.b16 %v530, %v530
    %v539 = vpack.c.b16 %v531, %v531
    %v540 = vpack.c.b16 %v532, %v532
    %v541 = vpack.c.b16 %v533, %v533
    %v542 = vpack.c.b16 %v534, %v534
    %v543 = vpack.c.b16 %v535, %v535
    %v544 = vpack.c.b16 %v536, %v536
    %v545 = vpack.c.b16 %v537, %v537
    %554 = vst [vmem:[%s4] sm:$0xf] %v538
    %555 = vst [vmem:[%s4 + $0x4] sm:$0xf] %v539
    %556 = vst [vmem:[%s4 + $0x8] sm:$0xf] %v540
    %557 = vst [vmem:[%s4 + $0xc] sm:$0xf] %v541
    %558 = vst [vmem:[%s4 + $0x10] sm:$0xf] %v542
    %559 = vst [vmem:[%s4 + $0x14] sm:$0xf] %v543
    %560 = vst [vmem:[%s4 + $0x18] sm:$0xf] %v544
    %561 = vst [vmem:[%s4 + $0x1c] sm:$0xf] %v545
  $region25: #{inpaint_generator_forward.24} parent=0 // pred_fallthru
    _
  // Predicated region
  $region26: #{inpaint_generator_forward.24} parent=0 // pred_check
    _
  $region27: #{inpaint_generator_forward.24} parent=0 // pred_check_branch
    %563 = sbr.rel (0) target = $region29
  $region28: #{inpaint_generator_forward.24} parent=0 // pred_region
    _
  $region29: #{inpaint_generator_forward.24} parent=0 // pred_fallthru
    _
  // Predicated region
  $region30: #{inpaint_generator_forward.24} parent=0 // pred_check
    _
  $region31: #{inpaint_generator_forward.24} parent=0 // pred_check_branch
    %565 = sbr.rel (0) target = $region33
  $region32: #{inpaint_generator_forward.24} parent=0 // pred_region
    _
  $region33: #{inpaint_generator_forward.24} parent=0 // pred_fallthru
    _

// kernel: inpaint_generator_forward.26
$region0: #{inpaint_generator_forward.26}
  #allocation0 [shape = 'u32[]', space=smem, size = 0x4, offset = 0x4, fixed_abs, tag = 'smem constant byte address 0x4 - core index']
  #allocation1 [shape = 'u32[144,128]{1,0:T(1,128)}', space=vmem, size = 0x12000, scoped, tag = 'internal scratch']
  #allocation2 [shape = 'f32[64,128]{1,0:T(8,128)}', space=vmem, size = 0x8000, scoped, tag = 'scratch operand']
  %s0 = inlined_call_operand.vmem [shape: bf16[64,1152], index: 0, kind: input, shape index: {}]
  %s1 = inlined_call_operand.vmem [shape: bf16[1152,128], index: 1, kind: input, shape index: {}]
  %s2 = inlined_call_operand.vmem [shape: f32[1,128], index: 2, kind: input, shape index: {}]
  %s3 = inlined_call_operand.vmem [shape: bf16[64,128], index: 3, kind: input, shape index: {}, may-alias: {3,4}]
  %s4 = inlined_call_operand.vmem [shape: bf16[64,128], index: 4, kind: output, shape index: {}, may-alias: {3,4}]
  %s5 = sld [smem:[#allocation0]]
  $region83: #{inpaint_generator_forward.26} parent=0
    _
  %s7 = ssub.s32 1, %s5
  %s8 = scalar_select 0, %s7, %s5
  $region1: #{inpaint_generator_forward.26} parent=0
    #allocation3 [shape = 'u8[98304]{0}', space=vmem, size = 0x18000, scoped, tag = 'input window, operand 0']
    loop: start=0, step=1, limit=5
    $region2: #{inpaint_generator_forward.26} parent=1 // loop_pre_header
      _
    $region3: #{inpaint_generator_forward.26} parent=1 // loop_header
      %s10 = sphi 0, %s14
      %p11 = scmp.ge.s32.totalorder %s10, 5
      %s17 = sphi 0, %s36
      %s18 = sphi 0, %s32
      %s19 = sphi 0, %s28
      %s20 = sphi 0, %s17
      %s21 = sphi 0, %s18
      %s22 = sphi 0, %s19
      %s23 = sphi 0, %s20
      %s24 = sphi 0, %s21
      %s25 = sphi 0, %s22
      %s41 = sphi 0, %s43
      %s44 = sphi 0, %s41
      %s45 = sphi 0, %s44
      %s61 = sphi 0, %s45
      %s69 = sphi 0, %s71
      %s72 = sphi 0, %s69
      %s73 = sphi 0, %s72
      %s89 = sphi 0, %s73
      %s95 = sphi 0, %s97
      %s98 = sphi 0, %s95
      %s99 = sphi 0, %s98
      %s115 = sphi 0, %s99
      %s123 = sphi 0, %s125
      %s126 = sphi 0, %s123
      %s127 = sphi 0, %s126
      %s143 = sphi 0, %s127
      %s151 = sphi 0, %s153
      %s154 = sphi 0, %s151
      %s155 = sphi 0, %s154
      %s171 = sphi 0, %s155
    $region4: #{inpaint_generator_forward.26} parent=1 // loop_header_branch
      %13 = sbr.rel (%p11) target = $region8
    $region5: #{inpaint_generator_forward.26} parent=1 // loop_body
      %s15 = ssub.s32 %s10, 1
      %s16 = ssub.s32 %s10, 2
      %s26 = sadd.s32 1, %s19
      %p27 = scmp.ge.s32.totalorder %s26, 3
      %s28 = scalar_select %p27, 0, %s26
      %s29 = sadd.s32 1, %s18
      %s30 = scalar_select %p27, %s29, %s18
      %p31 = scmp.ge.s32.totalorder %s30, 1
      %s32 = scalar_select %p31, 0, %s30
      %s33 = sadd.s32 1, %s17
      %s34 = scalar_select %p31, %s33, %s17
      %p35 = scmp.ge.s32.totalorder %s34, 1
      %s36 = scalar_select %p35, 0, %s34
      %s37 = ssub.s32 %s17, %s36
      %s38 = ssub.s32 %s19, %s28
      %s39 = sor.u32 %s37, %s38
      %p40 = scmp.eq.s32.totalorder %s39, 0
      %s42 = sadd.s32 %s41, 1
      %s43 = scalar_select %p40, %s41, %s42
      %p46 = pneg %p40
      %p47 = scmp.eq.s32.totalorder %s10, 2
      %p48 = por %p46, %p47
      %p49 = scmp.ne.s32.totalorder %s41, %s44
      %p50 = scmp.eq.s32.totalorder %s10, 0
      %p51 = por %p49, %p50
      %p52 = scmp.ne.s32.totalorder %s41, %s44
      %p53 = scmp.eq.s32.totalorder %s15, 2
      %p54 = por %p52, %p53
      %p55 = scmp.ne.s32.totalorder %s44, %s45
      %p56 = scmp.eq.s32.totalorder %s15, 0
      %p57 = por %p55, %p56
      %p58 = scmp.ne.s32.totalorder %s44, %s45
      %p59 = scmp.eq.s32.totalorder %s16, 2
      %p60 = por %p58, %p59
      %p62 = scmp.ne.s32.totalorder %s45, %s61
      %p63 = scmp.eq.s32.totalorder %s16, 0
      %p64 = por %p62, %p63
      %s65 = ssub.s32 %s19, %s28
      %s66 = ssub.s32 %s18, %s32
      %s67 = sor.u32 %s65, %s66
      %p68 = scmp.eq.s32.totalorder %s67, 0
      %s70 = sadd.s32 %s69, 1
      %s71 = scalar_select %p68, %s69, %s70
      %p74 = pneg %p68
      %p75 = scmp.eq.s32.totalorder %s10, 2
      %p76 = por %p74, %p75
      %p77 = scmp.ne.s32.totalorder %s69, %s72
      %p78 = scmp.eq.s32.totalorder %s10, 0
      %p79 = por %p77, %p78
      %p80 = scmp.ne.s32.totalorder %s69, %s72
      %p81 = scmp.eq.s32.totalorder %s15, 2
      %p82 = por %p80, %p81
      %p83 = scmp.ne.s32.totalorder %s72, %s73
      %p84 = scmp.eq.s32.totalorder %s15, 0
      %p85 = por %p83, %p84
      %p86 = scmp.ne.s32.totalorder %s72, %s73
      %p87 = scmp.eq.s32.totalorder %s16, 2
      %p88 = por %p86, %p87
      %p90 = scmp.ne.s32.totalorder %s73, %s89
      %p91 = scmp.eq.s32.totalorder %s16, 0
      %p92 = por %p90, %p91
      %s93 = ssub.s32 %s18, %s32
      %p94 = scmp.eq.s32.totalorder %s93, 0
      %s96 = sadd.s32 %s95, 1
      %s97 = scalar_select %p94, %s95, %s96
      %p100 = pneg %p94
      %p101 = scmp.eq.s32.totalorder %s10, 2
      %p102 = por %p100, %p101
      %p103 = scmp.ne.s32.totalorder %s95, %s98
      %p104 = scmp.eq.s32.totalorder %s10, 0
      %p105 = por %p103, %p104
      %p106 = scmp.ne.s32.totalorder %s95, %s98
      %p107 = scmp.eq.s32.totalorder %s15, 2
      %p108 = por %p106, %p107
      %p109 = scmp.ne.s32.totalorder %s98, %s99
      %p110 = scmp.eq.s32.totalorder %s15, 0
      %p111 = por %p109, %p110
      %p112 = scmp.ne.s32.totalorder %s98, %s99
      %p113 = scmp.eq.s32.totalorder %s16, 2
      %p114 = por %p112, %p113
      %p116 = scmp.ne.s32.totalorder %s99, %s115
      %p117 = scmp.eq.s32.totalorder %s16, 0
      %p118 = por %p116, %p117
      %s119 = ssub.s32 %s17, %s36
      %s120 = ssub.s32 %s18, %s32
      %s121 = sor.u32 %s119, %s120
      %p122 = scmp.eq.s32.totalorder %s121, 0
      %s124 = sadd.s32 %s123, 1
      %s125 = scalar_select %p122, %s123, %s124
      %p128 = pneg %p122
      %p129 = scmp.eq.s32.totalorder %s10, 2
      %p130 = por %p128, %p129
      %p131 = scmp.ne.s32.totalorder %s123, %s126
      %p132 = scmp.eq.s32.totalorder %s10, 0
      %p133 = por %p131, %p132
      %p134 = scmp.ne.s32.totalorder %s123, %s126
      %p135 = scmp.eq.s32.totalorder %s15, 2
      %p136 = por %p134, %p135
      %p137 = scmp.ne.s32.totalorder %s126, %s127
      %p138 = scmp.eq.s32.totalorder %s15, 0
      %p139 = por %p137, %p138
      %p140 = scmp.ne.s32.totalorder %s126, %s127
      %p141 = scmp.eq.s32.totalorder %s16, 2
      %p142 = por %p140, %p141
      %p144 = scmp.ne.s32.totalorder %s127, %s143
      %p145 = scmp.eq.s32.totalorder %s16, 0
      %p146 = por %p144, %p145
      %s147 = ssub.s32 %s17, %s36
      %s148 = ssub.s32 %s18, %s32
      %s149 = sor.u32 %s147, %s148
      %p150 = scmp.eq.s32.totalorder %s149, 0
      %s152 = sadd.s32 %s151, 1
      %s153 = scalar_select %p150, %s151, %s152
      %p156 = pneg %p150
      %p157 = scmp.eq.s32.totalorder %s10, 2
      %p158 = por %p156, %p157
      %p159 = scmp.ne.s32.totalorder %s151, %s154
      %p160 = scmp.eq.s32.totalorder %s10, 0
      %p161 = por %p159, %p160
      %p162 = scmp.ne.s32.totalorder %s151, %s154
      %p163 = scmp.eq.s32.totalorder %s15, 2
      %p164 = por %p162, %p163
      %p165 = scmp.ne.s32.totalorder %s154, %s155
      %p166 = scmp.eq.s32.totalorder %s15, 0
      %p167 = por %p165, %p166
      %p168 = scmp.ne.s32.totalorder %s154, %s155
      %p169 = scmp.eq.s32.totalorder %s16, 2
      %p170 = por %p168, %p169
      %p172 = scmp.ne.s32.totalorder %s155, %s171
      %p173 = scmp.eq.s32.totalorder %s16, 0
      %p174 = por %p172, %p173
      %p175 = scmp.le.s32.totalorder 1, %s10
      %p176 = scmp.lt.s32.totalorder %s10, 4
      %p177 = pnand %p175, %p176
      %p178 = pneg %p177
      // Predicated region
      $region9: #{inpaint_generator_forward.26} parent=5 // pred_check
        _
      $region10: #{inpaint_generator_forward.26} parent=5 // pred_check_branch
        %180 = sbr.rel (%p177) target = $region12
      $region11: #{inpaint_generator_forward.26} parent=5 // pred_region
        %s181 = ssub.s32 %s10, 1
        // Predicated region
        $region13: #{inpaint_generator_forward.26} parent=11 // pred_check
          %p182 = pneg %p111
        $region14: #{inpaint_generator_forward.26} parent=11 // pred_check_branch
          %184 = sbr.rel (%p182) target = $region16
        $region15: #{inpaint_generator_forward.26} parent=11 // pred_region
          %p185 = scmp.lt.s32.totalorder %s21, 0
          %s186 = scalar_select %p185, %s21, 0
          %s187 = scalar_lea.vmem %s2, %s186
        $region16: #{inpaint_generator_forward.26} parent=11 // pred_fallthru
          _
        // Predicated region
        $region17: #{inpaint_generator_forward.26} parent=11 // pred_check
          %p188 = pneg %p139
        $region18: #{inpaint_generator_forward.26} parent=11 // pred_check_branch
          %190 = sbr.rel (%p188) target = $region20
        $region19: #{inpaint_generator_forward.26} parent=11 // pred_region
          %s191 = smul.u32 8, %s20
          %p192 = scmp.lt.s32.totalorder %s191, 7
          %s193 = scalar_select %p192, %s191, 7
          %p194 = scmp.lt.s32.totalorder %s21, 0
          %s195 = scalar_select %p194, %s21, 0
          %s196 = sadd.s32 %s195, %s193
          %s197 = smul.addr %s196, 4
          %s198 = scalar_lea.vmem %s3, %s197
          %s199 = smul.u32 8, %s20
        $region20: #{inpaint_generator_forward.26} parent=11 // pred_fallthru
          _
      $region12: #{inpaint_generator_forward.26} parent=5 // pred_fallthru
        _
      %p200 = scmp.lt.s32.totalorder %s10, 3
      // Predicated region
      $region21: #{inpaint_generator_forward.26} parent=5 // pred_check
        %p201 = pneg %p200
      $region22: #{inpaint_generator_forward.26} parent=5 // pred_check_branch
        %203 = sbr.rel (%p201) target = $region24
      $region23: #{inpaint_generator_forward.26} parent=5 // pred_region
        // Predicated region
        $region25: #{inpaint_generator_forward.26} parent=23 // pred_check
          %p204 = pneg %p51
        $region26: #{inpaint_generator_forward.26} parent=23 // pred_check_branch
          %206 = sbr.rel (%p204) target = $region28
        $region27: #{inpaint_generator_forward.26} parent=23 // pred_region
          %s207 = sand.u32 %s41, 1
          %s208 = sand.u32 %s41, 1
          %s209 = smul.addr %s208, 96
          %s210 = scalar_lea.vmem [#allocation3], %s209
          %s211 = smul.u32 8, %s17
          %s212 = smul.u32 3, %s19
          %s213 = smul.addr %s211, 9
          %s214 = sadd.s32 %s212, %s213
          %s215 = smul.addr %s214, 4
          %s216 = scalar_lea.vmem %s0, %s215
          // Predicated region
          $region29: #{inpaint_generator_forward.26} parent=27 // pred_check
            _
          $region30: #{inpaint_generator_forward.26} parent=27 // pred_check_branch
            %218 = sbr.rel (0) target = $region32
          $region31: #{inpaint_generator_forward.26} parent=27 // pred_region
            // Predicated region
            $region33: #{inpaint_generator_forward.26} parent=31 // pred_check
              _
            $region34: #{inpaint_generator_forward.26} parent=31 // pred_check_branch
              %220 = sbr.rel (0) target = $region36
            $region35: #{inpaint_generator_forward.26} parent=31 // pred_region
              %s221 = scalar_lea.vmem %s216, 8
              %s222 = scalar_lea.vmem %s210, 8 [#allocation3]
              loop: start=0, step=1, limit=1
              $region37: #{inpaint_generator_forward.26} parent=35 // loop_pre_header
                _
              $region38: #{inpaint_generator_forward.26} parent=35 // loop_header
                %s224 = sphi 0, %s228
                %p225 = scmp.ge.s32.totalorder %s224, 1
                %s229 = sphi %s216, %s216
                %s230 = sphi %s210, %s210
              $region39: #{inpaint_generator_forward.26} parent=35 // loop_header_branch
                %227 = sbr.rel (%p225) target = $region43
              $region40: #{inpaint_generator_forward.26} parent=35 // loop_body
                %v231 = vld [vmem:[%s229] sm:$0xff]
                %232 = vst [vmem:[%s230] sm:$0xff] %v231
                %v233 = vld [vmem:[%s229 + $0x24] sm:$0xff]
                %234 = vst [vmem:[%s230 + $0xc] sm:$0xff] %v233
                %v235 = vld [vmem:[%s229 + $0x48] sm:$0xff]
                %236 = vst [vmem:[%s230 + $0x18] sm:$0xff] %v235
                %v237 = vld [vmem:[%s229 + $0x6c] sm:$0xff]
                %238 = vst [vmem:[%s230 + $0x24] sm:$0xff] %v237
                %v239 = vld [vmem:[%s229 + $0x90] sm:$0xff]
                %240 = vst [vmem:[%s230 + $0x30] sm:$0xff] %v239
                %v241 = vld [vmem:[%s229 + $0xb4] sm:$0xff]
                %242 = vst [vmem:[%s230 + $0x3c] sm:$0xff] %v241
                %v243 = vld [vmem:[%s229 + $0xd8] sm:$0xff]
                %244 = vst [vmem:[%s230 + $0x48] sm:$0xff] %v243
                %v245 = vld [vmem:[%s229 + $0xfc] sm:$0xff]
                %246 = vst [vmem:[%s230 + $0x54] sm:$0xff] %v245
              $region41: #{inpaint_generator_forward.26} parent=35 // loop_footer
                %s228 = sadd.s32 1, %s224
              $region42: #{inpaint_generator_forward.26} parent=35 // loop_footer_branch
                %223 = sbr.rel target = $region38
              $region43: #{inpaint_generator_forward.26} parent=35 // loop_exit
                _
              loop: start=0, step=1, limit=1
              $region44: #{inpaint_generator_forward.26} parent=35 // loop_pre_header
                _
              $region45: #{inpaint_generator_forward.26} parent=35 // loop_header
                %s249 = sphi 0, %s253
                %p250 = scmp.ge.s32.totalorder %s249, 1
                %s254 = sphi %s221, %s221
                %s255 = sphi %s222, %s222
              $region46: #{inpaint_generator_forward.26} parent=35 // loop_header_branch
                %252 = sbr.rel (%p250) target = $region50
              $region47: #{inpaint_generator_forward.26} parent=35 // loop_body
                %v256 = vld [vmem:[%s254] sm:$0xf]
                %257 = vst [vmem:[%s255] sm:$0xf] %v256
                %v258 = vld [vmem:[%s254 + $0x24] sm:$0xf]
                %259 = vst [vmem:[%s255 + $0xc] sm:$0xf] %v258
                %v260 = vld [vmem:[%s254 + $0x48] sm:$0xf]
                %261 = vst [vmem:[%s255 + $0x18] sm:$0xf] %v260
                %v262 = vld [vmem:[%s254 + $0x6c] sm:$0xf]
                %263 = vst [vmem:[%s255 + $0x24] sm:$0xf] %v262
                %v264 = vld [vmem:[%s254 + $0x90] sm:$0xf]
                %265 = vst [vmem:[%s255 + $0x30] sm:$0xf] %v264
                %v266 = vld [vmem:[%s254 + $0xb4] sm:$0xf]
                %267 = vst [vmem:[%s255 + $0x3c] sm:$0xf] %v266
                %v268 = vld [vmem:[%s254 + $0xd8] sm:$0xf]
                %269 = vst [vmem:[%s255 + $0x48] sm:$0xf] %v268
                %v270 = vld [vmem:[%s254 + $0xfc] sm:$0xf]
                %271 = vst [vmem:[%s255 + $0x54] sm:$0xf] %v270
              $region48: #{inpaint_generator_forward.26} parent=35 // loop_footer
                %s253 = sadd.s32 1, %s249
              $region49: #{inpaint_generator_forward.26} parent=35 // loop_footer_branch
                %248 = sbr.rel target = $region45
              $region50: #{inpaint_generator_forward.26} parent=35 // loop_exit
                _
            $region36: #{inpaint_generator_forward.26} parent=31 // pred_fallthru
              _
          $region32: #{inpaint_generator_forward.26} parent=27 // pred_fallthru
            _
          %272 = vnop
        $region28: #{inpaint_generator_forward.26} parent=23 // pred_fallthru
          _
        // Predicated region
        $region51: #{inpaint_generator_forward.26} parent=23 // pred_check
          %p273 = pneg %p79
        $region52: #{inpaint_generator_forward.26} parent=23 // pred_check_branch
          %275 = sbr.rel (%p273) target = $region54
        $region53: #{inpaint_generator_forward.26} parent=23 // pred_region
          %s276 = smul.u32 48, %s19
          %p277 = scmp.lt.s32.totalorder %s276, 143
          %s278 = scalar_select %p277, %s276, 143
          %p279 = scmp.lt.s32.totalorder %s18, 0
          %s280 = scalar_select %p279, %s18, 0
          %s281 = sadd.s32 %s280, %s278
          %s282 = smul.addr %s281, 4
          %s283 = scalar_lea.vmem %s1, %s282
          %s284 = smul.u32 48, %s19
        $region54: #{inpaint_generator_forward.26} parent=23 // pred_fallthru
          _
      $region24: #{inpaint_generator_forward.26} parent=5 // pred_fallthru
        _
      %p285 = scmp.le.s32.totalorder 1, %s10
      %p286 = scmp.lt.s32.totalorder %s10, 4
      %p287 = pnand %p285, %p286
      %p288 = pneg %p287
      // Predicated region
      $region55: #{inpaint_generator_forward.26} parent=5 // pred_check
        _
      $region56: #{inpaint_generator_forward.26} parent=5 // pred_check_branch
        %290 = sbr.rel (%p287) target = $region58
      $region57: #{inpaint_generator_forward.26} parent=5 // pred_region
        %s291 = ssub.s32 %s10, 1
        %s292 = sand.u32 %s44, 1
        %s293 = sand.u32 %s44, 1
        %s294 = smul.addr %s293, 96
        %s295 = scalar_lea.vmem [#allocation3], %s294
        // Predicated region
        $region59: #{inpaint_generator_forward.26} parent=57 // pred_check
          %p296 = pneg %p57
        $region60: #{inpaint_generator_forward.26} parent=57 // pred_check_branch
          %298 = sbr.rel (%p296) target = $region62
        $region61: #{inpaint_generator_forward.26} parent=57 // pred_region
          _
        $region62: #{inpaint_generator_forward.26} parent=57 // pred_fallthru
          _
        %s299 = sand.u32 %s44, 1
        %s300 = sand.u32 %s44, 1
        %s301 = smul.addr %s300, 96
        %s302 = scalar_lea.vmem [#allocation3], %s301
        %p303 = pneg %p57
        %p304 = pneg %p54
        %s305 = smul.u32 48, %s22
        %p306 = scmp.lt.s32.totalorder %s305, 143
        %s307 = scalar_select %p306, %s305, 143
        %p308 = scmp.lt.s32.totalorder %s21, 0
        %s309 = scalar_select %p308, %s21, 0
        %s310 = sadd.s32 %s309, %s307
        %s311 = smul.addr %s310, 4
        %s312 = scalar_lea.vmem %s1, %s311
        %p313 = pneg %p85
        %p314 = pneg %p82
        %p315 = scmp.lt.s32.totalorder %s21, 0
        %s316 = scalar_select %p315, %s21, 0
        %s317 = scalar_lea.vmem %s2, %s316
        %p318 = pneg %p111
        %p319 = pneg %p108
        %s320 = smul.u32 8, %s20
        %p321 = scmp.lt.s32.totalorder %s320, 7
        %s322 = scalar_select %p321, %s320, 7
        %p323 = scmp.lt.s32.totalorder %s21, 0
        %s324 = scalar_select %p323, %s21, 0
        %s325 = sadd.s32 %s324, %s322
        %s326 = smul.addr %s325, 4
        %s327 = scalar_lea.vmem %s3, %s326
        %p328 = pneg %p139
        %p329 = pneg %p136
        %p330 = pneg %p167
        %p331 = pneg %p164
        %s332 = smul.u32 8, %s20
        %p333 = scmp.lt.s32.totalorder %s332, 7
        %s334 = scalar_select %p333, %s332, 7
        %p335 = scmp.lt.s32.totalorder %s21, 0
        %s336 = scalar_select %p335, %s21, 0
        %s337 = sadd.s32 %s336, %s334
        %s338 = smul.addr %s337, 4
        %s339 = scalar_lea.vmem %s4, %s338
        %s340 = smul.u32 8, %s20
        %s341 = smul.u32 3, %s22
        %s342 = smul.u32 48, %s22
        %p343 = scmp.lt.s32.totalorder %s342, 143
        %s344 = scalar_select %p343, %s342, 143
        %p345 = scmp.lt.s32.totalorder %s21, 0
        %s346 = scalar_select %p345, %s21, 0
        %s347 = sadd.s32 %s346, %s344
        %s348 = smul.addr %s347, 4
        %s349 = scalar_lea.vmem %s1, %s348
        %s350 = smul.u32 48, %s22
        %p351 = scmp.lt.s32.totalorder %s21, 0
        %s352 = scalar_select %p351, %s21, 0
        %s353 = scalar_lea.vmem %s2, %s352
        %s354 = smul.u32 8, %s20
        %p355 = scmp.lt.s32.totalorder %s354, 7
        %s356 = scalar_select %p355, %s354, 7
        %p357 = scmp.lt.s32.totalorder %s21, 0
        %s358 = scalar_select %p357, %s21, 0
        %s359 = sadd.s32 %s358, %s356
        %s360 = smul.addr %s359, 4
        %s361 = scalar_lea.vmem %s3, %s360
        %s362 = smul.u32 8, %s20
        %s363 = smul.u32 8, %s20
        %p364 = scmp.lt.s32.totalorder %s363, 7
        %s365 = scalar_select %p364, %s363, 7
        %p366 = scmp.lt.s32.totalorder %s21, 0
        %s367 = scalar_select %p366, %s21, 0
        %s368 = sadd.s32 %s367, %s365
        %s369 = smul.addr %s368, 4
        %s370 = scalar_lea.vmem %s4, %s369
        %s371 = smul.u32 8, %s20
        %p373 = scmp.eq.s32.totalorder %s22, 0
        // Predicated region
        $region63: #{inpaint_generator_forward.26} parent=57 // pred_check
          %p374 = pneg %p373
        $region64: #{inpaint_generator_forward.26} parent=57 // pred_check_branch
          %376 = sbr.rel (%p374) target = $region66
        $region65: #{inpaint_generator_forward.26} parent=57 // pred_region
          %v377 = vld [vmem:[%s353] sm:$0x1]
          %v379 = vlaneseq
          %v380 = vshrl.u32 %v379, 7
          %v381 = vsub.s32 0, %v380
          %v382 = vrot.slane %v377, %v381
          %384 = vst [vmem:[#allocation2] sm:$0xff] %v382
          %385 = vst [vmem:[#allocation2 + $0x8] sm:$0xff] %v382
          %386 = vst [vmem:[#allocation2 + $0x10] sm:$0xff] %v382
          %387 = vst [vmem:[#allocation2 + $0x18] sm:$0xff] %v382
          %388 = vst [vmem:[#allocation2 + $0x20] sm:$0xff] %v382
          %389 = vst [vmem:[#allocation2 + $0x28] sm:$0xff] %v382
          %390 = vst [vmem:[#allocation2 + $0x30] sm:$0xff] %v382
          %391 = vst [vmem:[#allocation2 + $0x38] sm:$0xff] %v382
        $region66: #{inpaint_generator_forward.26} parent=57 // pred_fallthru
          _
        %v392 = vld [vmem:[#allocation2] sm:$0xff]
        %v393 = vld [vmem:[#allocation2 + $0x8] sm:$0xff]
        %v394 = vld [vmem:[#allocation2 + $0x10] sm:$0xff]
        %v395 = vld [vmem:[#allocation2 + $0x18] sm:$0xff]
        %v396 = vld [vmem:[#allocation2 + $0x20] sm:$0xff]
        %v397 = vld [vmem:[#allocation2 + $0x28] sm:$0xff]
        %v398 = vld [vmem:[#allocation2 + $0x30] sm:$0xff]
        %v399 = vld [vmem:[#allocation2 + $0x38] sm:$0xff]
        %v400 = vld [vmem:[%s295] sm:$0xff]
        %v401 = vld [vmem:[%s295 + $0x8] sm:$0xf]
        %v402 = vld [vmem:[%s295 + $0xc] sm:$0xff]
        %v403 = vld [vmem:[%s295 + $0x14] sm:$0xf]
        %v404 = vld [vmem:[%s295 + $0x18] sm:$0xff]
        %v405 = vld [vmem:[%s295 + $0x20] sm:$0xf]
        %v406 = vld [vmem:[%s295 + $0x24] sm:$0xff]
        %v407 = vld [vmem:[%s295 + $0x2c] sm:$0xf]
        %v408 = vld [vmem:[%s295 + $0x30] sm:$0xff]
        %v409 = vld [vmem:[%s295 + $0x38] sm:$0xf]
        %v410 = vld [vmem:[%s295 + $0x3c] sm:$0xff]
        %v411 = vld [vmem:[%s295 + $0x44] sm:$0xf]
        %v412 = vld [vmem:[%s295 + $0x48] sm:$0xff]
        %v413 = vld [vmem:[%s295 + $0x50] sm:$0xf]
        %v414 = vld [vmem:[%s295 + $0x54] sm:$0xff]
        %v415 = vld [vmem:[%s295 + $0x5c] sm:$0xf]
        %v416 = vld [vmem:[%s349] sm:$0xf]
        %v417 = vld [vmem:[%s349 + $0x4] sm:$0xf]
        %v418 = vld [vmem:[%s349 + $0x8] sm:$0xf]
        %v419 = vld [vmem:[%s349 + $0xc] sm:$0xf]
        %v420 = vld [vmem:[%s349 + $0x10] sm:$0xf]
        %v421 = vld [vmem:[%s349 + $0x14] sm:$0xf]
        %v422 = vld [vmem:[%s349 + $0x18] sm:$0xf]
        %v423 = vld [vmem:[%s349 + $0x1c] sm:$0xf]
        %v424 = vld [vmem:[%s349 + $0x20] sm:$0xf]
        %v425 = vld [vmem:[%s349 + $0x24] sm:$0xf]
        %v426 = vld [vmem:[%s349 + $0x28] sm:$0xf]
        %v427 = vld [vmem:[%s349 + $0x2c] sm:$0xf]
        %v428 = vld [vmem:[%s349 + $0x30] sm:$0xf]
        %v429 = vld [vmem:[%s349 + $0x34] sm:$0xf]
        %v430 = vld [vmem:[%s349 + $0x38] sm:$0xf]
        %v431 = vld [vmem:[%s349 + $0x3c] sm:$0xf]
        %v432 = vld [vmem:[%s349 + $0x40] sm:$0xf]
        %v433 = vld [vmem:[%s349 + $0x44] sm:$0xf]
        %v434 = vld [vmem:[%s349 + $0x48] sm:$0xf]
        %v435 = vld [vmem:[%s349 + $0x4c] sm:$0xf]
        %v436 = vld [vmem:[%s349 + $0x50] sm:$0xf]
        %v437 = vld [vmem:[%s349 + $0x54] sm:$0xf]
        %v438 = vld [vmem:[%s349 + $0x58] sm:$0xf]
        %v439 = vld [vmem:[%s349 + $0x5c] sm:$0xf]
        %v440 = vld [vmem:[%s349 + $0x60] sm:$0xf]
        %v441 = vld [vmem:[%s349 + $0x64] sm:$0xf]
        %v442 = vld [vmem:[%s349 + $0x68] sm:$0xf]
        %v443 = vld [vmem:[%s349 + $0x6c] sm:$0xf]
        %v444 = vld [vmem:[%s349 + $0x70] sm:$0xf]
        %v445 = vld [vmem:[%s349 + $0x74] sm:$0xf]
        %v446 = vld [vmem:[%s349 + $0x78] sm:$0xf]
        %v447 = vld [vmem:[%s349 + $0x7c] sm:$0xf]
        %v448 = vld [vmem:[%s349 + $0x80] sm:$0xf]
        %v449 = vld [vmem:[%s349 + $0x84] sm:$0xf]
        %v450 = vld [vmem:[%s349 + $0x88] sm:$0xf]
        %v451 = vld [vmem:[%s349 + $0x8c] sm:$0xf]
        %v452 = vld [vmem:[%s349 + $0x90] sm:$0xf]
        %v453 = vld [vmem:[%s349 + $0x94] sm:$0xf]
        %v454 = vld [vmem:[%s349 + $0x98] sm:$0xf]
        %v455 = vld [vmem:[%s349 + $0x9c] sm:$0xf]
        %v456 = vld [vmem:[%s349 + $0xa0] sm:$0xf]
        %v457 = vld [vmem:[%s349 + $0xa4] sm:$0xf]
        %v458 = vld [vmem:[%s349 + $0xa8] sm:$0xf]
        %v459 = vld [vmem:[%s349 + $0xac] sm:$0xf]
        %v460 = vld [vmem:[%s349 + $0xb0] sm:$0xf]
        %v461 = vld [vmem:[%s349 + $0xb4] sm:$0xf]
        %v462 = vld [vmem:[%s349 + $0xb8] sm:$0xf]
        %v463 = vld [vmem:[%s349 + $0xbc] sm:$0xf]
        %v480 = vunpack.c.l.b16 %v400
        %v481 = vunpack.c.h.b16 %v400
        %v482 = vunpack.c.l.b16 %v401
        %v483 = vunpack.c.l.b16 %v402
        %v484 = vunpack.c.h.b16 %v402
        %v485 = vunpack.c.l.b16 %v403
        %v486 = vunpack.c.l.b16 %v404
        %v487 = vunpack.c.h.b16 %v404
        %v488 = vunpack.c.l.b16 %v405
        %v489 = vunpack.c.l.b16 %v406
        %v490 = vunpack.c.h.b16 %v406
        %v491 = vunpack.c.l.b16 %v407
        %v492 = vunpack.c.l.b16 %v408
        %v493 = vunpack.c.h.b16 %v408
        %v494 = vunpack.c.l.b16 %v409
        %v495 = vunpack.c.l.b16 %v410
        %v496 = vunpack.c.h.b16 %v410
        %v497 = vunpack.c.l.b16 %v411
        %v498 = vunpack.c.l.b16 %v412
        %v499 = vunpack.c.h.b16 %v412
        %v500 = vunpack.c.l.b16 %v413
        %v501 = vunpack.c.l.b16 %v414
        %v502 = vunpack.c.h.b16 %v414
        %v503 = vunpack.c.l.b16 %v415
        %v504 = vpack.c.b16 %v483, %v480
        %v505 = vpack.c.b16 %v484, %v481
        %v506 = vpack.c.b16 %v485, %v482
        %v507 = vpack.c.b16 %v489, %v486
        %v508 = vpack.c.b16 %v490, %v487
        %v509 = vpack.c.b16 %v491, %v488
        %v510 = vpack.c.b16 %v495, %v492
        %v511 = vpack.c.b16 %v496, %v493
        %v512 = vpack.c.b16 %v497, %v494
        %v513 = vpack.c.b16 %v501, %v498
        %v514 = vpack.c.b16 %v502, %v499
        %v515 = vpack.c.b16 %v503, %v500
        %v576 = vunpack.c.l.b16 %v416
        %v577 = vunpack.c.l.b16 %v417
        %v578 = vunpack.c.l.b16 %v418
        %v579 = vunpack.c.l.b16 %v419
        %v580 = vunpack.c.l.b16 %v420
        %v581 = vunpack.c.l.b16 %v421
        %v582 = vunpack.c.l.b16 %v422
        %v583 = vunpack.c.l.b16 %v423
        %v584 = vunpack.c.l.b16 %v424
        %v585 = vunpack.c.l.b16 %v425
        %v586 = vunpack.c.l.b16 %v426
        %v587 = vunpack.c.l.b16 %v427
        %v588 = vunpack.c.l.b16 %v428
        %v589 = vunpack.c.l.b16 %v429
        %v590 = vunpack.c.l.b16 %v430
        %v591 = vunpack.c.l.b16 %v431
        %v592 = vunpack.c.l.b16 %v432
        %v593 = vunpack.c.l.b16 %v433
        %v594 = vunpack.c.l.b16 %v434
        %v595 = vunpack.c.l.b16 %v435
        %v596 = vunpack.c.l.b16 %v436
        %v597 = vunpack.c.l.b16 %v437
        %v598 = vunpack.c.l.b16 %v438
        %v599 = vunpack.c.l.b16 %v439
        %v600 = vunpack.c.l.b16 %v440
        %v601 = vunpack.c.l.b16 %v441
        %v602 = vunpack.c.l.b16 %v442
        %v603 = vunpack.c.l.b16 %v443
        %v604 = vunpack.c.l.b16 %v444
        %v605 = vunpack.c.l.b16 %v445
        %v606 = vunpack.c.l.b16 %v446
        %v607 = vunpack.c.l.b16 %v447
        %v608 = vunpack.c.l.b16 %v448
        %v609 = vunpack.c.l.b16 %v449
        %v610 = vunpack.c.l.b16 %v450
        %v611 = vunpack.c.l.b16 %v451
        %v612 = vunpack.c.l.b16 %v452
        %v613 = vunpack.c.l.b16 %v453
        %v614 = vunpack.c.l.b16 %v454
        %v615 = vunpack.c.l.b16 %v455
        %v616 = vunpack.c.l.b16 %v456
        %v617 = vunpack.c.l.b16 %v457
        %v618 = vunpack.c.l.b16 %v458
        %v619 = vunpack.c.l.b16 %v459
        %v620 = vunpack.c.l.b16 %v460
        %v621 = vunpack.c.l.b16 %v461
        %v622 = vunpack.c.l.b16 %v462
        %v623 = vunpack.c.l.b16 %v463
        %v624 = vpack.c.b16 %v577, %v576
        %v625 = vpack.c.b16 %v579, %v578
        %v626 = vpack.c.b16 %v581, %v580
        %v627 = vpack.c.b16 %v583, %v582
        %v628 = vpack.c.b16 %v585, %v584
        %v629 = vpack.c.b16 %v587, %v586
        %v630 = vpack.c.b16 %v589, %v588
        %v631 = vpack.c.b16 %v591, %v590
        %v632 = vpack.c.b16 %v593, %v592
        %v633 = vpack.c.b16 %v595, %v594
        %v634 = vpack.c.b16 %v597, %v596
        %v635 = vpack.c.b16 %v599, %v598
        %v636 = vpack.c.b16 %v601, %v600
        %v637 = vpack.c.b16 %v603, %v602
        %v638 = vpack.c.b16 %v605, %v604
        %v639 = vpack.c.b16 %v607, %v606
        %v640 = vpack.c.b16 %v609, %v608
        %v641 = vpack.c.b16 %v611, %v610
        %v642 = vpack.c.b16 %v613, %v612
        %v643 = vpack.c.b16 %v615, %v614
        %v644 = vpack.c.b16 %v617, %v616
        %v645 = vpack.c.b16 %v619, %v618
        %v646 = vpack.c.b16 %v621, %v620
        %v647 = vpack.c.b16 %v623, %v622
        %672 = vmatprep.subr.bf16.mxu0 0
        %673 = vmatpush1.bf16.msra.mxu0 %v624
        %674 = vmatprep.subr.bf16.mxu0 0
        %675 = vmatpush1.bf16.msra.mxu0 %v625
        %676 = vmatprep.subr.bf16.mxu0 0
        %677 = vmatpush1.bf16.msra.mxu0 %v626
        %678 = vmatprep.subr.bf16.mxu0 0
        %679 = vmatpush1.bf16.msra.mxu0 %v627
        %680 = vmatprep.subr.bf16.mxu0 0
        %681 = vmatpush1.bf16.msra.mxu0 %v628
        %682 = vmatprep.subr.bf16.mxu0 0
        %683 = vmatpush1.bf16.msra.mxu0 %v629
        %684 = vmatprep.subr.bf16.mxu0 0
        %685 = vmatpush1.bf16.msra.mxu0 %v630
        %686 = vmatprep.subr.bf16.mxu0 0
        %687 = vmatpush1.bf16.msra.mxu0 %v631
        %688 = vmatprep.subr.bf16.mxu0 0
        %689 = vmatpush1.bf16.msra.mxu0 %v632
        %690 = vmatprep.subr.bf16.mxu0 0
        %691 = vmatpush1.bf16.msra.mxu0 %v633
        %692 = vmatprep.subr.bf16.mxu0 0
        %693 = vmatpush1.bf16.msra.mxu0 %v634
        %694 = vmatprep.subr.bf16.mxu0 0
        %695 = vmatpush1.bf16.msra.mxu0 %v635
        %696 = vmatprep.subr.bf16.mxu0 0
        %697 = vmatpush1.bf16.msra.mxu0 %v636
        %698 = vmatprep.subr.bf16.mxu0 0
        %699 = vmatpush1.bf16.msra.mxu0 %v637
        %700 = vmatprep.subr.bf16.mxu0 0
        %701 = vmatpush1.bf16.msra.mxu0 %v638
        %702 = vmatprep.subr.bf16.mxu0 0
        %703 = vmatpush1.bf16.msra.mxu0 %v639
        %704 = vmatprep.mubr.bf16.mxu0 %v505
        %705 = vmatmul.mubr.bf16.gmra.mrb[0].mxu0 %v504
        %v706 = vpop.f32.mrb[0].mxu0
        %v707 = vadd.f32 0.0, %v706
        %v708 = vpop.f32.mrb[0].mxu0
        %v709 = vpop.f32.mrb[0].mxu0
        %v710 = vadd.f32 0.0, %v709
        %v711 = vpop.f32.mrb[0].mxu0
        %712 = vmatprep.mubr.bf16.mxu0 %v508
        %713 = vmatmul.mubr.bf16.gmra.mrb[0].mxu0 %v507
        %v714 = vpop.f32.mrb[0].mxu0
        %v715 = vadd.f32 0.0, %v714
        %v716 = vpop.f32.mrb[0].mxu0
        %v717 = vpop.f32.mrb[0].mxu0
        %v718 = vadd.f32 0.0, %v717
        %v719 = vpop.f32.mrb[0].mxu0
        %720 = vmatprep.mubr.bf16.mxu0 %v511
        %721 = vmatmul.mubr.bf16.gmra.mrb[0].mxu0 %v510
        %v722 = vpop.f32.mrb[0].mxu0
        %v723 = vadd.f32 0.0, %v722
        %v724 = vpop.f32.mrb[0].mxu0
        %v725 = vpop.f32.mrb[0].mxu0
        %v726 = vadd.f32 0.0, %v725
        %v727 = vpop.f32.mrb[0].mxu0
        %728 = vmatprep.mubr.bf16.mxu0 %v514
        %729 = vmatmul.mubr.bf16.gmra.mrb[0].mxu0 %v513
        %v730 = vpop.f32.mrb[0].mxu0
        %v731 = vadd.f32 0.0, %v730
        %v732 = vpop.f32.mrb[0].mxu0
        %v733 = vpop.f32.mrb[0].mxu0
        %v734 = vadd.f32 0.0, %v733
        %v735 = vpop.f32.mrb[0].mxu0
        %736 = vdwg.mxu0
        %737 = vmatprep.subr.bf16.mxu0 0
        %738 = vmatpush1.bf16.msra.mxu0 %v640
        %739 = vmatprep.subr.bf16.mxu0 0
        %740 = vmatpush1.bf16.msra.mxu0 %v641
        %741 = vmatprep.subr.bf16.mxu0 0
        %742 = vmatpush1.bf16.msra.mxu0 %v642
        %743 = vmatprep.subr.bf16.mxu0 0
        %744 = vmatpush1.bf16.msra.mxu0 %v643
        %745 = vmatprep.subr.bf16.mxu0 0
        %746 = vmatpush1.bf16.msra.mxu0 %v644
        %747 = vmatprep.subr.bf16.mxu0 0
        %748 = vmatpush1.bf16.msra.mxu0 %v645
        %749 = vmatprep.subr.bf16.mxu0 0
        %750 = vmatpush1.bf16.msra.mxu0 %v646
        %751 = vmatprep.subr.bf16.mxu0 0
        %752 = vmatpush1.bf16.msra.mxu0 %v647
        %753 = vmatprep.subr.bf16.mxu0 0
        %754 = vmatpush1.bf16.msra.mxu0 0
        %755 = vmatprep.subr.bf16.mxu0 0
        %756 = vmatpush1.bf16.msra.mxu0 0
        %757 = vmatprep.subr.bf16.mxu0 0
        %758 = vmatpush1.bf16.msra.mxu0 0
        %759 = vmatprep.subr.bf16.mxu0 0
        %760 = vmatpush1.bf16.msra.mxu0 0
        %761 = vmatprep.subr.bf16.mxu0 0
        %762 = vmatpush1.bf16.msra.mxu0 0
        %763 = vmatprep.subr.bf16.mxu0 0
        %764 = vmatpush1.bf16.msra.mxu0 0
        %765 = vmatprep.subr.bf16.mxu0 0
        %766 = vmatpush1.bf16.msra.mxu0 0
        %767 = vmatprep.subr.bf16.mxu0 0
        %768 = vmatpush1.bf16.msra.mxu0 0
        %769 = vmatprep.mubr.bf16.mxu0 0
        %770 = vmatmul.mubr.bf16.gmra.mrb[0].mxu0 %v506
        %v771 = vpop.f32.mrb[0].mxu0
        %v772 = vadd.f32 %v707, %v771
        %v773 = vpop.f32.mrb[0].mxu0
        %v774 = vpop.f32.mrb[0].mxu0
        %v775 = vadd.f32 %v710, %v774
        %v776 = vpop.f32.mrb[0].mxu0
        %777 = vmatprep.mubr.bf16.mxu0 0
        %778 = vmatmul.mubr.bf16.gmra.mrb[0].mxu0 %v509
        %v779 = vpop.f32.mrb[0].mxu0
        %v780 = vadd.f32 %v715, %v779
        %v781 = vpop.f32.mrb[0].mxu0
        %v782 = vpop.f32.mrb[0].mxu0
        %v783 = vadd.f32 %v718, %v782
        %v784 = vpop.f32.mrb[0].mxu0
        %785 = vmatprep.mubr.bf16.mxu0 0
        %786 = vmatmul.mubr.bf16.gmra.mrb[0].mxu0 %v512
        %v787 = vpop.f32.mrb[0].mxu0
        %v788 = vadd.f32 %v723, %v787
        %v789 = vpop.f32.mrb[0].mxu0
        %v790 = vpop.f32.mrb[0].mxu0
        %v791 = vadd.f32 %v726, %v790
        %v792 = vpop.f32.mrb[0].mxu0
        %793 = vmatprep.mubr.bf16.mxu0 0
        %794 = vmatmul.mubr.bf16.gmra.mrb[0].mxu0 %v515
        %v795 = vpop.f32.mrb[0].mxu0
        %v796 = vadd.f32 %v731, %v795
        %v797 = vpop.f32.mrb[0].mxu0
        %v798 = vpop.f32.mrb[0].mxu0
        %v799 = vadd.f32 %v734, %v798
        %v800 = vpop.f32.mrb[0].mxu0
        %801 = vdwg.mxu0
        %v802 = vadd.f32 %v392, %v772
        %v803 = vadd.f32 %v393, %v775
        %v804 = vadd.f32 %v394, %v780
        %v805 = vadd.f32 %v395, %v783
        %v806 = vadd.f32 %v396, %v788
        %v807 = vadd.f32 %v397, %v791
        %v808 = vadd.f32 %v398, %v796
        %v809 = vadd.f32 %v399, %v799
        %810 = vst [vmem:[#allocation2] sm:$0xff] %v802
        %811 = vst [vmem:[#allocation2 + $0x8] sm:$0xff] %v803
        %812 = vst [vmem:[#allocation2 + $0x10] sm:$0xff] %v804
        %813 = vst [vmem:[#allocation2 + $0x18] sm:$0xff] %v805
        %814 = vst [vmem:[#allocation2 + $0x20] sm:$0xff] %v806
        %815 = vst [vmem:[#allocation2 + $0x28] sm:$0xff] %v807
        %816 = vst [vmem:[#allocation2 + $0x30] sm:$0xff] %v808
        %817 = vst [vmem:[#allocation2 + $0x38] sm:$0xff] %v809
        %p818 = scmp.eq.s32.totalorder %s22, 2
        // Predicated region
        $region67: #{inpaint_generator_forward.26} parent=57 // pred_check
          %p819 = pneg %p818
        $region68: #{inpaint_generator_forward.26} parent=57 // pred_check_branch
          %821 = sbr.rel (%p819) target = $region70
        $region69: #{inpaint_generator_forward.26} parent=57 // pred_region
          %v822 = vld [vmem:[#allocation2] sm:$0xff]
          %v823 = vld [vmem:[#allocation2 + $0x8] sm:$0xff]
          %v824 = vld [vmem:[#allocation2 + $0x10] sm:$0xff]
          %v825 = vld [vmem:[#allocation2 + $0x18] sm:$0xff]
          %v826 = vld [vmem:[#allocation2 + $0x20] sm:$0xff]
          %v827 = vld [vmem:[#allocation2 + $0x28] sm:$0xff]
          %v828 = vld [vmem:[#allocation2 + $0x30] sm:$0xff]
          %v829 = vld [vmem:[#allocation2 + $0x38] sm:$0xff]
          %vm830 = vcmp.ge.f32.partialorder %v822, 0.0
          %vm831 = vcmp.ge.f32.partialorder %v823, 0.0
          %vm832 = vcmp.ge.f32.partialorder %v824, 0.0
          %vm833 = vcmp.ge.f32.partialorder %v825, 0.0
          %vm834 = vcmp.ge.f32.partialorder %v826, 0.0
          %vm835 = vcmp.ge.f32.partialorder %v827, 0.0
          %vm836 = vcmp.ge.f32.partialorder %v828, 0.0
          %vm837 = vcmp.ge.f32.partialorder %v829, 0.0
          %v838 = vmul.f32 %v822, 0.2
          %v839 = vmul.f32 %v823, 0.2
          %v840 = vmul.f32 %v824, 0.2
          %v841 = vmul.f32 %v825, 0.2
          %v842 = vmul.f32 %v826, 0.2
          %v843 = vmul.f32 %v827, 0.2
          %v844 = vmul.f32 %v828, 0.2
          %v845 = vmul.f32 %v829, 0.2
          %v846 = vsel %vm830, %v822, %v838
          %v847 = vsel %vm831, %v823, %v839
          %v848 = vsel %vm832, %v824, %v840
          %v849 = vsel %vm833, %v825, %v841
          %v850 = vsel %vm834, %v826, %v842
          %v851 = vsel %vm835, %v827, %v843
          %v852 = vsel %vm836, %v828, %v844
          %v853 = vsel %vm837, %v829, %v845
          %v854 = vld [vmem:[%s361] sm:$0xf]
          %v855 = vld [vmem:[%s361 + $0x4] sm:$0xf]
          %v856 = vld [vmem:[%s361 + $0x8] sm:$0xf]
          %v857 = vld [vmem:[%s361 + $0xc] sm:$0xf]
          %v858 = vld [vmem:[%s361 + $0x10] sm:$0xf]
          %v859 = vld [vmem:[%s361 + $0x14] sm:$0xf]
          %v860 = vld [vmem:[%s361 + $0x18] sm:$0xf]
          %v861 = vld [vmem:[%s361 + $0x1c] sm:$0xf]
          %v862 = vunpack.c.l.bf16 %v854
          %v863 = vunpack.c.l.bf16 %v855
          %v864 = vunpack.c.l.bf16 %v856
          %v865 = vunpack.c.l.bf16 %v857
          %v866 = vunpack.c.l.bf16 %v858
          %v867 = vunpack.c.l.bf16 %v859
          %v868 = vunpack.c.l.bf16 %v860
          %v869 = vunpack.c.l.bf16 %v861
          %v870 = vadd.f32 %v846, %v862
          %v871 = vadd.f32 %v847, %v863
          %v872 = vadd.f32 %v848, %v864
          %v873 = vadd.f32 %v849, %v865
          %v874 = vadd.f32 %v850, %v866
          %v875 = vadd.f32 %v851, %v867
          %v876 = vadd.f32 %v852, %v868
          %v877 = vadd.f32 %v853, %v869
          %v878 = vpack.c.bf16 %v871, %v870
          %v879 = vpack.c.bf16 %v873, %v872
          %v880 = vpack.c.bf16 %v875, %v874
          %v881 = vpack.c.bf16 %v877, %v876
          %v886 = vunpack.c.l.b16 %v878
          %v887 = vunpack.c.h.b16 %v878
          %v888 = vunpack.c.l.b16 %v879
          %v889 = vunpack.c.h.b16 %v879
          %v890 = vunpack.c.l.b16 %v880
          %v891 = vunpack.c.h.b16 %v880
          %v892 = vunpack.c.l.b16 %v881
          %v893 = vunpack.c.h.b16 %v881
          %v894 = vpack.c.b16 %v886, %v886
          %v895 = vpack.c.b16 %v887, %v887
          %v896 = vpack.c.b16 %v888, %v888
          %v897 = vpack.c.b16 %v889, %v889
          %v898 = vpack.c.b16 %v890, %v890
          %v899 = vpack.c.b16 %v891, %v891
          %v900 = vpack.c.b16 %v892, %v892
          %v901 = vpack.c.b16 %v893, %v893
          %910 = vst [vmem:[%s370] sm:$0xf] %v894
          %911 = vst [vmem:[%s370 + $0x4] sm:$0xf] %v895
          %912 = vst [vmem:[%s370 + $0x8] sm:$0xf] %v896
          %913 = vst [vmem:[%s370 + $0xc] sm:$0xf] %v897
          %914 = vst [vmem:[%s370 + $0x10] sm:$0xf] %v898
          %915 = vst [vmem:[%s370 + $0x14] sm:$0xf] %v899
          %916 = vst [vmem:[%s370 + $0x18] sm:$0xf] %v900
          %917 = vst [vmem:[%s370 + $0x1c] sm:$0xf] %v901
        $region70: #{inpaint_generator_forward.26} parent=57 // pred_fallthru
          _
        %s918 = smul.u32 8, %s20
        %p919 = scmp.lt.s32.totalorder %s918, 7
        %s920 = scalar_select %p919, %s918, 7
        %p921 = scmp.lt.s32.totalorder %s21, 0
        %s922 = scalar_select %p921, %s21, 0
        %s923 = sadd.s32 %s922, %s920
        %s924 = smul.addr %s923, 4
        %s925 = scalar_lea.vmem %s4, %s924
        // Predicated region
        $region71: #{inpaint_generator_forward.26} parent=57 // pred_check
          %p926 = pneg %p164
        $region72: #{inpaint_generator_forward.26} parent=57 // pred_check_branch
          %928 = sbr.rel (%p926) target = $region74
        $region73: #{inpaint_generator_forward.26} parent=57 // pred_region
          %s929 = smul.u32 8, %s20
        $region74: #{inpaint_generator_forward.26} parent=57 // pred_fallthru
          _
        // Predicated region
        $region75: #{inpaint_generator_forward.26} parent=57 // pred_check
          %p930 = pneg %p164
        $region76: #{inpaint_generator_forward.26} parent=57 // pred_check_branch
          %932 = sbr.rel (%p930) target = $region78
        $region77: #{inpaint_generator_forward.26} parent=57 // pred_region
          %s933 = smul.u32 8, %s20
          %p934 = scmp.lt.s32.totalorder %s933, 7
          %s935 = scalar_select %p934, %s933, 7
          %p936 = scmp.lt.s32.totalorder %s21, 0
          %s937 = scalar_select %p936, %s21, 0
          %s938 = sadd.s32 %s937, %s935
          %s939 = smul.addr %s938, 4
          %s940 = scalar_lea.vmem %s4, %s939
        $region78: #{inpaint_generator_forward.26} parent=57 // pred_fallthru
          _
      $region58: #{inpaint_generator_forward.26} parent=5 // pred_fallthru
        _
      %p941 = scmp.le.s32.totalorder 2, %s10
      // Predicated region
      $region79: #{inpaint_generator_forward.26} parent=5 // pred_check
        %p942 = pneg %p941
      $region80: #{inpaint_generator_forward.26} parent=5 // pred_check_branch
        %944 = sbr.rel (%p942) target = $region82
      $region81: #{inpaint_generator_forward.26} parent=5 // pred_region
        %s945 = ssub.s32 %s10, 2
      $region82: #{inpaint_generator_forward.26} parent=5 // pred_fallthru
        _
    $region6: #{inpaint_generator_forward.26} parent=1 // loop_footer
      %s14 = sadd.s32 1, %s10
    $region7: #{inpaint_generator_forward.26} parent=1 // loop_footer_branch
      %9 = sbr.rel target = $region3
    $region8: #{inpaint_generator_forward.26} parent=1 // loop_exit
      _

// kernel: inpaint_generator_forward.33
$region0: #{inpaint_generator_forward.33}
  #allocation0 [shape = 'u32[]', space=smem, size = 0x4, offset = 0x4, fixed_abs, tag = 'smem constant byte address 0x4 - core index']
  #allocation1 [shape = 'u32[144,128]{1,0:T(1,128)}', space=vmem, size = 0x12000, scoped, tag = 'internal scratch']
  %s0 = inlined_call_operand.vmem [shape: bf16[16,512], index: 0, kind: input, shape index: {}]
  %s1 = inlined_call_operand.vmem [shape: bf16[512,1024], index: 1, kind: input, shape index: {}]
  %s2 = inlined_call_operand.vmem [shape: f32[1,1024], index: 2, kind: input, shape index: {}]
  %s3 = inlined_call_operand.vmem [shape: bf16[1024,128], index: 3, kind: input, shape index: {}]
  %s4 = inlined_call_operand.vmem [shape: f32[1,128], index: 4, kind: input, shape index: {}]
  %s5 = inlined_call_operand.vmem [shape: f32[16,128], index: 5, kind: output, shape index: {}]
  %s6 = sld [smem:[#allocation0]]
  $region30: #{inpaint_generator_forward.33} parent=0
    _
  %s8 = ssub.s32 1, %s6
  %s9 = scalar_select 0, %s8, %s6
  // Predicated region
  $region2: #{inpaint_generator_forward.33} parent=0 // pred_check
    _
  $region3: #{inpaint_generator_forward.33} parent=0 // pred_check_branch
    %11 = sbr.rel (0) target = $region5
  $region4: #{inpaint_generator_forward.33} parent=0 // pred_region
    _
  $region5: #{inpaint_generator_forward.33} parent=0 // pred_fallthru
    _
  // Predicated region
  $region6: #{inpaint_generator_forward.33} parent=0 // pred_check
    _
  $region7: #{inpaint_generator_forward.33} parent=0 // pred_check_branch
    %13 = sbr.rel (0) target = $region9
  $region8: #{inpaint_generator_forward.33} parent=0 // pred_region
    _
  $region9: #{inpaint_generator_forward.33} parent=0 // pred_fallthru
    _
  // Predicated region
  $region10: #{inpaint_generator_forward.33} parent=0 // pred_check
    _
  $region11: #{inpaint_generator_forward.33} parent=0 // pred_check_branch
    %15 = sbr.rel (0) target = $region13
  $region12: #{inpaint_generator_forward.33} parent=0 // pred_region
    _
  $region13: #{inpaint_generator_forward.33} parent=0 // pred_fallthru
    _
  // Predicated region
  $region14: #{inpaint_generator_forward.33} parent=0 // pred_check
    _
  $region15: #{inpaint_generator_forward.33} parent=0 // pred_check_branch
    %17 = sbr.rel (0) target = $region17
  $region16: #{inpaint_generator_forward.33} parent=0 // pred_region
    _
  $region17: #{inpaint_generator_forward.33} parent=0 // pred_fallthru
    _
  // Predicated region
  $region18: #{inpaint_generator_forward.33} parent=0 // pred_check
    _
  $region19: #{inpaint_generator_forward.33} parent=0 // pred_check_branch
    %19 = sbr.rel (0) target = $region21
  $region20: #{inpaint_generator_forward.33} parent=0 // pred_region
    _
  $region21: #{inpaint_generator_forward.33} parent=0 // pred_fallthru
    _
  %v21 = vld [vmem:[%s0] sm:$0xff]
  %v22 = vld [vmem:[%s0 + $0x8] sm:$0xff]
  %v23 = vld [vmem:[%s0 + $0x10] sm:$0xff]
  %v24 = vld [vmem:[%s0 + $0x18] sm:$0xff]
  %v25 = vld [vmem:[%s1] sm:$0xff]
  %v26 = vld [vmem:[%s1 + $0x8] sm:$0xff]
  %v27 = vld [vmem:[%s1 + $0x10] sm:$0xff]
  %v28 = vld [vmem:[%s1 + $0x18] sm:$0xff]
  %v29 = vld [vmem:[%s1 + $0x20] sm:$0xff]
  %v30 = vld [vmem:[%s1 + $0x28] sm:$0xff]
  %v31 = vld [vmem:[%s1 + $0x30] sm:$0xff]
  %v32 = vld [vmem:[%s1 + $0x38] sm:$0xff]
  %v33 = vld [vmem:[%s1 + $0x40] sm:$0xff]
  %v34 = vld [vmem:[%s1 + $0x48] sm:$0xff]
  %v35 = vld [vmem:[%s1 + $0x50] sm:$0xff]
  %v36 = vld [vmem:[%s1 + $0x58] sm:$0xff]
  %v37 = vld [vmem:[%s1 + $0x60] sm:$0xff]
  %v38 = vld [vmem:[%s1 + $0x68] sm:$0xff]
  %v39 = vld [vmem:[%s1 + $0x70] sm:$0xff]
  %v40 = vld [vmem:[%s1 + $0x78] sm:$0xff]
  %v41 = vld [vmem:[%s1 + $0x80] sm:$0xff]
  %v42 = vld [vmem:[%s1 + $0x88] sm:$0xff]
  %v43 = vld [vmem:[%s1 + $0x90] sm:$0xff]
  %v44 = vld [vmem:[%s1 + $0x98] sm:$0xff]
  %v45 = vld [vmem:[%s1 + $0xa0] sm:$0xff]
  %v46 = vld [vmem:[%s1 + $0xa8] sm:$0xff]
  %v47 = vld [vmem:[%s1 + $0xb0] sm:$0xff]
  %v48 = vld [vmem:[%s1 + $0xb8] sm:$0xff]
  %v49 = vld [vmem:[%s1 + $0xc0] sm:$0xff]
  %v50 = vld [vmem:[%s1 + $0xc8] sm:$0xff]
  %v51 = vld [vmem:[%s1 + $0xd0] sm:$0xff]
  %v52 = vld [vmem:[%s1 + $0xd8] sm:$0xff]
  %v53 = vld [vmem:[%s1 + $0xe0] sm:$0xff]
  %v54 = vld [vmem:[%s1 + $0xe8] sm:$0xff]
  %v55 = vld [vmem:[%s1 + $0xf0] sm:$0xff]
  %v56 = vld [vmem:[%s1 + $0xf8] sm:$0xff]
  %v57 = vld [vmem:[%s1 + $0x100] sm:$0xff]
  %v58 = vld [vmem:[%s1 + $0x108] sm:$0xff]
  %v59 = vld [vmem:[%s1 + $0x110] sm:$0xff]
  %v60 = vld [vmem:[%s1 + $0x118] sm:$0xff]
  %v61 = vld [vmem:[%s1 + $0x120] sm:$0xff]
  %v62 = vld [vmem:[%s1 + $0x128] sm:$0xff]
  %v63 = vld [vmem:[%s1 + $0x130] sm:$0xff]
  %v64 = vld [vmem:[%s1 + $0x138] sm:$0xff]
  %v65 = vld [vmem:[%s1 + $0x140] sm:$0xff]
  %v66 = vld [vmem:[%s1 + $0x148] sm:$0xff]
  %v67 = vld [vmem:[%s1 + $0x150] sm:$0xff]
  %v68 = vld [vmem:[%s1 + $0x158] sm:$0xff]
  %v69 = vld [vmem:[%s1 + $0x160] sm:$0xff]
  %v70 = vld [vmem:[%s1 + $0x168] sm:$0xff]
  %v71 = vld [vmem:[%s1 + $0x170] sm:$0xff]
  %v72 = vld [vmem:[%s1 + $0x178] sm:$0xff]
  %v73 = vld [vmem:[%s1 + $0x180] sm:$0xff]
  %v74 = vld [vmem:[%s1 + $0x188] sm:$0xff]
  %v75 = vld [vmem:[%s1 + $0x190] sm:$0xff]
  %v76 = vld [vmem:[%s1 + $0x198] sm:$0xff]
  %v77 = vld [vmem:[%s1 + $0x1a0] sm:$0xff]
  %v78 = vld [vmem:[%s1 + $0x1a8] sm:$0xff]
  %v79 = vld [vmem:[%s1 + $0x1b0] sm:$0xff]
  %v80 = vld [vmem:[%s1 + $0x1b8] sm:$0xff]
  %v81 = vld [vmem:[%s1 + $0x1c0] sm:$0xff]
  %v82 = vld [vmem:[%s1 + $0x1c8] sm:$0xff]
  %v83 = vld [vmem:[%s1 + $0x1d0] sm:$0xff]
  %v84 = vld [vmem:[%s1 + $0x1d8] sm:$0xff]
  %v85 = vld [vmem:[%s1 + $0x1e0] sm:$0xff]
  %v86 = vld [vmem:[%s1 + $0x1e8] sm:$0xff]
  %v87 = vld [vmem:[%s1 + $0x1f0] sm:$0xff]
  %v88 = vld [vmem:[%s1 + $0x1f8] sm:$0xff]
  %v89 = vld [vmem:[%s1 + $0x200] sm:$0xff]
  %v90 = vld [vmem:[%s1 + $0x208] sm:$0xff]
  %v91 = vld [vmem:[%s1 + $0x210] sm:$0xff]
  %v92 = vld [vmem:[%s1 + $0x218] sm:$0xff]
  %v93 = vld [vmem:[%s1 + $0x220] sm:$0xff]
  %v94 = vld [vmem:[%s1 + $0x228] sm:$0xff]
  %v95 = vld [vmem:[%s1 + $0x230] sm:$0xff]
  %v96 = vld [vmem:[%s1 + $0x238] sm:$0xff]
  %v97 = vld [vmem:[%s1 + $0x240] sm:$0xff]
  %v98 = vld [vmem:[%s1 + $0x248] sm:$0xff]
  %v99 = vld [vmem:[%s1 + $0x250] sm:$0xff]
  %v100 = vld [vmem:[%s1 + $0x258] sm:$0xff]
  %v101 = vld [vmem:[%s1 + $0x260] sm:$0xff]
  %v102 = vld [vmem:[%s1 + $0x268] sm:$0xff]
  %v103 = vld [vmem:[%s1 + $0x270] sm:$0xff]
  %v104 = vld [vmem:[%s1 + $0x278] sm:$0xff]
  %v105 = vld [vmem:[%s1 + $0x280] sm:$0xff]
  %v106 = vld [vmem:[%s1 + $0x288] sm:$0xff]
  %v107 = vld [vmem:[%s1 + $0x290] sm:$0xff]
  %v108 = vld [vmem:[%s1 + $0x298] sm:$0xff]
  %v109 = vld [vmem:[%s1 + $0x2a0] sm:$0xff]
  %v110 = vld [vmem:[%s1 + $0x2a8] sm:$0xff]
  %v111 = vld [vmem:[%s1 + $0x2b0] sm:$0xff]
  %v112 = vld [vmem:[%s1 + $0x2b8] sm:$0xff]
  %v113 = vld [vmem:[%s1 + $0x2c0] sm:$0xff]
  %v114 = vld [vmem:[%s1 + $0x2c8] sm:$0xff]
  %v115 = vld [vmem:[%s1 + $0x2d0] sm:$0xff]
  %v116 = vld [vmem:[%s1 + $0x2d8] sm:$0xff]
  %v117 = vld [vmem:[%s1 + $0x2e0] sm:$0xff]
  %v118 = vld [vmem:[%s1 + $0x2e8] sm:$0xff]
  %v119 = vld [vmem:[%s1 + $0x2f0] sm:$0xff]
  %v120 = vld [vmem:[%s1 + $0x2f8] sm:$0xff]
  %v121 = vld [vmem:[%s1 + $0x300] sm:$0xff]
  %v122 = vld [vmem:[%s1 + $0x308] sm:$0xff]
  %v123 = vld [vmem:[%s1 + $0x310] sm:$0xff]
  %v124 = vld [vmem:[%s1 + $0x318] sm:$0xff]
  %v125 = vld [vmem:[%s1 + $0x320] sm:$0xff]
  %v126 = vld [vmem:[%s1 + $0x328] sm:$0xff]
  %v127 = vld [vmem:[%s1 + $0x330] sm:$0xff]
  %v128 = vld [vmem:[%s1 + $0x338] sm:$0xff]
  %v129 = vld [vmem:[%s1 + $0x340] sm:$0xff]
  %v130 = vld [vmem:[%s1 + $0x348] sm:$0xff]
  %v131 = vld [vmem:[%s1 + $0x350] sm:$0xff]
  %v132 = vld [vmem:[%s1 + $0x358] sm:$0xff]
  %v133 = vld [vmem:[%s1 + $0x360] sm:$0xff]
  %v134 = vld [vmem:[%s1 + $0x368] sm:$0xff]
  %v135 = vld [vmem:[%s1 + $0x370] sm:$0xff]
  %v136 = vld [vmem:[%s1 + $0x378] sm:$0xff]
  %v137 = vld [vmem:[%s1 + $0x380] sm:$0xff]
  %v138 = vld [vmem:[%s1 + $0x388] sm:$0xff]
  %v139 = vld [vmem:[%s1 + $0x390] sm:$0xff]
  %v140 = vld [vmem:[%s1 + $0x398] sm:$0xff]
  %v141 = vld [vmem:[%s1 + $0x3a0] sm:$0xff]
  %v142 = vld [vmem:[%s1 + $0x3a8] sm:$0xff]
  %v143 = vld [vmem:[%s1 + $0x3b0] sm:$0xff]
  %v144 = vld [vmem:[%s1 + $0x3b8] sm:$0xff]
  %v145 = vld [vmem:[%s1 + $0x3c0] sm:$0xff]
  %v146 = vld [vmem:[%s1 + $0x3c8] sm:$0xff]
  %v147 = vld [vmem:[%s1 + $0x3d0] sm:$0xff]
  %v148 = vld [vmem:[%s1 + $0x3d8] sm:$0xff]
  %v149 = vld [vmem:[%s1 + $0x3e0] sm:$0xff]
  %v150 = vld [vmem:[%s1 + $0x3e8] sm:$0xff]
  %v151 = vld [vmem:[%s1 + $0x3f0] sm:$0xff]
  %v152 = vld [vmem:[%s1 + $0x3f8] sm:$0xff]
  %v153 = vld [vmem:[%s1 + $0x400] sm:$0xff]
  %v154 = vld [vmem:[%s1 + $0x408] sm:$0xff]
  %v155 = vld [vmem:[%s1 + $0x410] sm:$0xff]
  %v156 = vld [vmem:[%s1 + $0x418] sm:$0xff]
  %v157 = vld [vmem:[%s1 + $0x420] sm:$0xff]
  %v158 = vld [vmem:[%s1 + $0x428] sm:$0xff]
  %v159 = vld [vmem:[%s1 + $0x430] sm:$0xff]
  %v160 = vld [vmem:[%s1 + $0x438] sm:$0xff]
  %v161 = vld [vmem:[%s1 + $0x440] sm:$0xff]
  %v162 = vld [vmem:[%s1 + $0x448] sm:$0xff]
  %v163 = vld [vmem:[%s1 + $0x450] sm:$0xff]
  %v164 = vld [vmem:[%s1 + $0x458] sm:$0xff]
  %v165 = vld [vmem:[%s1 + $0x460] sm:$0xff]
  %v166 = vld [vmem:[%s1 + $0x468] sm:$0xff]
  %v167 = vld [vmem:[%s1 + $0x470] sm:$0xff]
  %v168 = vld [vmem:[%s1 + $0x478] sm:$0xff]
  %v169 = vld [vmem:[%s1 + $0x480] sm:$0xff]
  %v170 = vld [vmem:[%s1 + $0x488] sm:$0xff]
  %v171 = vld [vmem:[%s1 + $0x490] sm:$0xff]
  %v172 = vld [vmem:[%s1 + $0x498] sm:$0xff]
  %v173 = vld [vmem:[%s1 + $0x4a0] sm:$0xff]
  %v174 = vld [vmem:[%s1 + $0x4a8] sm:$0xff]
  %v175 = vld [vmem:[%s1 + $0x4b0] sm:$0xff]
  %v176 = vld [vmem:[%s1 + $0x4b8] sm:$0xff]
  %v177 = vld [vmem:[%s1 + $0x4c0] sm:$0xff]
  %v178 = vld [vmem:[%s1 + $0x4c8] sm:$0xff]
  %v179 = vld [vmem:[%s1 + $0x4d0] sm:$0xff]
  %v180 = vld [vmem:[%s1 + $0x4d8] sm:$0xff]
  %v181 = vld [vmem:[%s1 + $0x4e0] sm:$0xff]
  %v182 = vld [vmem:[%s1 + $0x4e8] sm:$0xff]
  %v183 = vld [vmem:[%s1 + $0x4f0] sm:$0xff]
  %v184 = vld [vmem:[%s1 + $0x4f8] sm:$0xff]
  %v185 = vld [vmem:[%s1 + $0x500] sm:$0xff]
  %v186 = vld [vmem:[%s1 + $0x508] sm:$0xff]
  %v187 = vld [vmem:[%s1 + $0x510] sm:$0xff]
  %v188 = vld [vmem:[%s1 + $0x518] sm:$0xff]
  %v189 = vld [vmem:[%s1 + $0x520] sm:$0xff]
  %v190 = vld [vmem:[%s1 + $0x528] sm:$0xff]
  %v191 = vld [vmem:[%s1 + $0x530] sm:$0xff]
  %v192 = vld [vmem:[%s1 + $0x538] sm:$0xff]
  %v193 = vld [vmem:[%s1 + $0x540] sm:$0xff]
  %v194 = vld [vmem:[%s1 + $0x548] sm:$0xff]
  %v195 = vld [vmem:[%s1 + $0x550] sm:$0xff]
  %v196 = vld [vmem:[%s1 + $0x558] sm:$0xff]
  %v197 = vld [vmem:[%s1 + $0x560] sm:$0xff]
  %v198 = vld [vmem:[%s1 + $0x568] sm:$0xff]
  %v199 = vld [vmem:[%s1 + $0x570] sm:$0xff]
  %v200 = vld [vmem:[%s1 + $0x578] sm:$0xff]
  %v201 = vld [vmem:[%s1 + $0x580] sm:$0xff]
  %v202 = vld [vmem:[%s1 + $0x588] sm:$0xff]
  %v203 = vld [vmem:[%s1 + $0x590] sm:$0xff]
  %v204 = vld [vmem:[%s1 + $0x598] sm:$0xff]
  %v205 = vld [vmem:[%s1 + $0x5a0] sm:$0xff]
  %v206 = vld [vmem:[%s1 + $0x5a8] sm:$0xff]
  %v207 = vld [vmem:[%s1 + $0x5b0] sm:$0xff]
  %v208 = vld [vmem:[%s1 + $0x5b8] sm:$0xff]
  %v209 = vld [vmem:[%s1 + $0x5c0] sm:$0xff]
  %v210 = vld [vmem:[%s1 + $0x5c8] sm:$0xff]
  %v211 = vld [vmem:[%s1 + $0x5d0] sm:$0xff]
  %v212 = vld [vmem:[%s1 + $0x5d8] sm:$0xff]
  %v213 = vld [vmem:[%s1 + $0x5e0] sm:$0xff]
  %v214 = vld [vmem:[%s1 + $0x5e8] sm:$0xff]
  %v215 = vld [vmem:[%s1 + $0x5f0] sm:$0xff]
  %v216 = vld [vmem:[%s1 + $0x5f8] sm:$0xff]
  %v217 = vld [vmem:[%s1 + $0x600] sm:$0xff]
  %v218 = vld [vmem:[%s1 + $0x608] sm:$0xff]
  %v219 = vld [vmem:[%s1 + $0x610] sm:$0xff]
  %v220 = vld [vmem:[%s1 + $0x618] sm:$0xff]
  %v221 = vld [vmem:[%s1 + $0x620] sm:$0xff]
  %v222 = vld [vmem:[%s1 + $0x628] sm:$0xff]
  %v223 = vld [vmem:[%s1 + $0x630] sm:$0xff]
  %v224 = vld [vmem:[%s1 + $0x638] sm:$0xff]
  %v225 = vld [vmem:[%s1 + $0x640] sm:$0xff]
  %v226 = vld [vmem:[%s1 + $0x648] sm:$0xff]
  %v227 = vld [vmem:[%s1 + $0x650] sm:$0xff]
  %v228 = vld [vmem:[%s1 + $0x658] sm:$0xff]
  %v229 = vld [vmem:[%s1 + $0x660] sm:$0xff]
  %v230 = vld [vmem:[%s1 + $0x668] sm:$0xff]
  %v231 = vld [vmem:[%s1 + $0x670] sm:$0xff]
  %v232 = vld [vmem:[%s1 + $0x678] sm:$0xff]
  %v233 = vld [vmem:[%s1 + $0x680] sm:$0xff]
  %v234 = vld [vmem:[%s1 + $0x688] sm:$0xff]
  %v235 = vld [vmem:[%s1 + $0x690] sm:$0xff]
  %v236 = vld [vmem:[%s1 + $0x698] sm:$0xff]
  %v237 = vld [vmem:[%s1 + $0x6a0] sm:$0xff]
  %v238 = vld [vmem:[%s1 + $0x6a8] sm:$0xff]
  %v239 = vld [vmem:[%s1 + $0x6b0] sm:$0xff]
  %v240 = vld [vmem:[%s1 + $0x6b8] sm:$0xff]
  %v241 = vld [vmem:[%s1 + $0x6c0] sm:$0xff]
  %v242 = vld [vmem:[%s1 + $0x6c8] sm:$0xff]
  %v243 = vld [vmem:[%s1 + $0x6d0] sm:$0xff]
  %v244 = vld [vmem:[%s1 + $0x6d8] sm:$0xff]
  %v245 = vld [vmem:[%s1 + $0x6e0] sm:$0xff]
  %v246 = vld [vmem:[%s1 + $0x6e8] sm:$0xff]
  %v247 = vld [vmem:[%s1 + $0x6f0] sm:$0xff]
  %v248 = vld [vmem:[%s1 + $0x6f8] sm:$0xff]
  %v249 = vld [vmem:[%s1 + $0x700] sm:$0xff]
  %v250 = vld [vmem:[%s1 + $0x708] sm:$0xff]
  %v251 = vld [vmem:[%s1 + $0x710] sm:$0xff]
  %v252 = vld [vmem:[%s1 + $0x718] sm:$0xff]
  %v253 = vld [vmem:[%s1 + $0x720] sm:$0xff]
  %v254 = vld [vmem:[%s1 + $0x728] sm:$0xff]
  %v255 = vld [vmem:[%s1 + $0x730] sm:$0xff]
  %v256 = vld [vmem:[%s1 + $0x738] sm:$0xff]
  %v257 = vld [vmem:[%s1 + $0x740] sm:$0xff]
  %v258 = vld [vmem:[%s1 + $0x748] sm:$0xff]
  %v259 = vld [vmem:[%s1 + $0x750] sm:$0xff]
  %v260 = vld [vmem:[%s1 + $0x758] sm:$0xff]
  %v261 = vld [vmem:[%s1 + $0x760] sm:$0xff]
  %v262 = vld [vmem:[%s1 + $0x768] sm:$0xff]
  %v263 = vld [vmem:[%s1 + $0x770] sm:$0xff]
  %v264 = vld [vmem:[%s1 + $0x778] sm:$0xff]
  %v265 = vld [vmem:[%s1 + $0x780] sm:$0xff]
  %v266 = vld [vmem:[%s1 + $0x788] sm:$0xff]
  %v267 = vld [vmem:[%s1 + $0x790] sm:$0xff]
  %v268 = vld [vmem:[%s1 + $0x798] sm:$0xff]
  %v269 = vld [vmem:[%s1 + $0x7a0] sm:$0xff]
  %v270 = vld [vmem:[%s1 + $0x7a8] sm:$0xff]
  %v271 = vld [vmem:[%s1 + $0x7b0] sm:$0xff]
  %v272 = vld [vmem:[%s1 + $0x7b8] sm:$0xff]
  %v273 = vld [vmem:[%s1 + $0x7c0] sm:$0xff]
  %v274 = vld [vmem:[%s1 + $0x7c8] sm:$0xff]
  %v275 = vld [vmem:[%s1 + $0x7d0] sm:$0xff]
  %v276 = vld [vmem:[%s1 + $0x7d8] sm:$0xff]
  %v277 = vld [vmem:[%s1 + $0x7e0] sm:$0xff]
  %v278 = vld [vmem:[%s1 + $0x7e8] sm:$0xff]
  %v279 = vld [vmem:[%s1 + $0x7f0] sm:$0xff]
  %v280 = vld [vmem:[%s1 + $0x7f8] sm:$0xff]
  %v281 = vld [vmem:[%s2] sm:$0xff]
  %v283 = vlaneseq
  %v284 = vshrl.u32 %v283, 7
  %v285 = vsub.s32 0, %v284
  %v286 = vrot.slane %v281, %v285
  %v287 = vlaneseq
  %v288 = vshrl.u32 %v287, 7
  %v289 = vsub.s32 1, %v288
  %v290 = vrot.slane %v281, %v289
  %v291 = vlaneseq
  %v292 = vshrl.u32 %v291, 7
  %v293 = vsub.s32 2, %v292
  %v294 = vrot.slane %v281, %v293
  %v295 = vlaneseq
  %v296 = vshrl.u32 %v295, 7
  %v297 = vsub.s32 3, %v296
  %v298 = vrot.slane %v281, %v297
  %v299 = vlaneseq
  %v300 = vshrl.u32 %v299, 7
  %v301 = vsub.s32 4, %v300
  %v302 = vrot.slane %v281, %v301
  %v303 = vlaneseq
  %v304 = vshrl.u32 %v303, 7
  %v305 = vsub.s32 5, %v304
  %v306 = vrot.slane %v281, %v305
  %v307 = vlaneseq
  %v308 = vshrl.u32 %v307, 7
  %v309 = vsub.s32 6, %v308
  %v310 = vrot.slane %v281, %v309
  %v311 = vlaneseq
  %v312 = vshrl.u32 %v311, 7
  %v313 = vsub.s32 7, %v312
  %v314 = vrot.slane %v281, %v313
  %v327 = vunpack.c.l.b16 %v21
  %v328 = vunpack.c.h.b16 %v21
  %v329 = vunpack.c.l.b16 %v22
  %v330 = vunpack.c.h.b16 %v22
  %v331 = vunpack.c.l.b16 %v23
  %v332 = vunpack.c.h.b16 %v23
  %v333 = vunpack.c.l.b16 %v24
  %v334 = vunpack.c.h.b16 %v24
  %v335 = vpack.c.b16 %v331, %v327
  %v336 = vpack.c.b16 %v332, %v328
  %v337 = vpack.c.b16 %v333, %v329
  %v338 = vpack.c.b16 %v334, %v330
  %v599 = vunpack.c.l.b16 %v25
  %v600 = vunpack.c.h.b16 %v25
  %v601 = vunpack.c.l.b16 %v26
  %v602 = vunpack.c.h.b16 %v26
  %v603 = vunpack.c.l.b16 %v27
  %v604 = vunpack.c.h.b16 %v27
  %v605 = vunpack.c.l.b16 %v28
  %v606 = vunpack.c.h.b16 %v28
  %v607 = vunpack.c.l.b16 %v29
  %v608 = vunpack.c.h.b16 %v29
  %v609 = vunpack.c.l.b16 %v30
  %v610 = vunpack.c.h.b16 %v30
  %v611 = vunpack.c.l.b16 %v31
  %v612 = vunpack.c.h.b16 %v31
  %v613 = vunpack.c.l.b16 %v32
  %v614 = vunpack.c.h.b16 %v32
  %v615 = vunpack.c.l.b16 %v33
  %v616 = vunpack.c.h.b16 %v33
  %v617 = vunpack.c.l.b16 %v34
  %v618 = vunpack.c.h.b16 %v34
  %v619 = vunpack.c.l.b16 %v35
  %v620 = vunpack.c.h.b16 %v35
  %v621 = vunpack.c.l.b16 %v36
  %v622 = vunpack.c.h.b16 %v36
  %v623 = vunpack.c.l.b16 %v37
  %v624 = vunpack.c.h.b16 %v37
  %v625 = vunpack.c.l.b16 %v38
  %v626 = vunpack.c.h.b16 %v38
  %v627 = vunpack.c.l.b16 %v39
  %v628 = vunpack.c.h.b16 %v39
  %v629 = vunpack.c.l.b16 %v40
  %v630 = vunpack.c.h.b16 %v40
  %v631 = vunpack.c.l.b16 %v41
  %v632 = vunpack.c.h.b16 %v41
  %v633 = vunpack.c.l.b16 %v42
  %v634 = vunpack.c.h.b16 %v42
  %v635 = vunpack.c.l.b16 %v43
  %v636 = vunpack.c.h.b16 %v43
  %v637 = vunpack.c.l.b16 %v44
  %v638 = vunpack.c.h.b16 %v44
  %v639 = vunpack.c.l.b16 %v45
  %v640 = vunpack.c.h.b16 %v45
  %v641 = vunpack.c.l.b16 %v46
  %v642 = vunpack.c.h.b16 %v46
  %v643 = vunpack.c.l.b16 %v47
  %v644 = vunpack.c.h.b16 %v47
  %v645 = vunpack.c.l.b16 %v48
  %v646 = vunpack.c.h.b16 %v48
  %v647 = vunpack.c.l.b16 %v49
  %v648 = vunpack.c.h.b16 %v49
  %v649 = vunpack.c.l.b16 %v50
  %v650 = vunpack.c.h.b16 %v50
  %v651 = vunpack.c.l.b16 %v51
  %v652 = vunpack.c.h.b16 %v51
  %v653 = vunpack.c.l.b16 %v52
  %v654 = vunpack.c.h.b16 %v52
  %v655 = vunpack.c.l.b16 %v53
  %v656 = vunpack.c.h.b16 %v53
  %v657 = vunpack.c.l.b16 %v54
  %v658 = vunpack.c.h.b16 %v54
  %v659 = vunpack.c.l.b16 %v55
  %v660 = vunpack.c.h.b16 %v55
  %v661 = vunpack.c.l.b16 %v56
  %v662 = vunpack.c.h.b16 %v56
  %v663 = vunpack.c.l.b16 %v57
  %v664 = vunpack.c.h.b16 %v57
  %v665 = vunpack.c.l.b16 %v58
  %v666 = vunpack.c.h.b16 %v58
  %v667 = vunpack.c.l.b16 %v59
  %v668 = vunpack.c.h.b16 %v59
  %v669 = vunpack.c.l.b16 %v60
  %v670 = vunpack.c.h.b16 %v60
  %v671 = vunpack.c.l.b16 %v61
  %v672 = vunpack.c.h.b16 %v61
  %v673 = vunpack.c.l.b16 %v62
  %v674 = vunpack.c.h.b16 %v62
  %v675 = vunpack.c.l.b16 %v63
  %v676 = vunpack.c.h.b16 %v63
  %v677 = vunpack.c.l.b16 %v64
  %v678 = vunpack.c.h.b16 %v64
  %v679 = vunpack.c.l.b16 %v65
  %v680 = vunpack.c.h.b16 %v65
  %v681 = vunpack.c.l.b16 %v66
  %v682 = vunpack.c.h.b16 %v66
  %v683 = vunpack.c.l.b16 %v67
  %v684 = vunpack.c.h.b16 %v67
  %v685 = vunpack.c.l.b16 %v68
  %v686 = vunpack.c.h.b16 %v68
  %v687 = vunpack.c.l.b16 %v69
  %v688 = vunpack.c.h.b16 %v69
  %v689 = vunpack.c.l.b16 %v70
  %v690 = vunpack.c.h.b16 %v70
  %v691 = vunpack.c.l.b16 %v71
  %v692 = vunpack.c.h.b16 %v71
  %v693 = vunpack.c.l.b16 %v72
  %v694 = vunpack.c.h.b16 %v72
  %v695 = vunpack.c.l.b16 %v73
  %v696 = vunpack.c.h.b16 %v73
  %v697 = vunpack.c.l.b16 %v74
  %v698 = vunpack.c.h.b16 %v74
  %v699 = vunpack.c.l.b16 %v75
  %v700 = vunpack.c.h.b16 %v75
  %v701 = vunpack.c.l.b16 %v76
  %v702 = vunpack.c.h.b16 %v76
  %v703 = vunpack.c.l.b16 %v77
  %v704 = vunpack.c.h.b16 %v77
  %v705 = vunpack.c.l.b16 %v78
  %v706 = vunpack.c.h.b16 %v78
  %v707 = vunpack.c.l.b16 %v79
  %v708 = vunpack.c.h.b16 %v79
  %v709 = vunpack.c.l.b16 %v80
  %v710 = vunpack.c.h.b16 %v80
  %v711 = vunpack.c.l.b16 %v81
  %v712 = vunpack.c.h.b16 %v81
  %v713 = vunpack.c.l.b16 %v82
  %v714 = vunpack.c.h.b16 %v82
  %v715 = vunpack.c.l.b16 %v83
  %v716 = vunpack.c.h.b16 %v83
  %v717 = vunpack.c.l.b16 %v84
  %v718 = vunpack.c.h.b16 %v84
  %v719 = vunpack.c.l.b16 %v85
  %v720 = vunpack.c.h.b16 %v85
  %v721 = vunpack.c.l.b16 %v86
  %v722 = vunpack.c.h.b16 %v86
  %v723 = vunpack.c.l.b16 %v87
  %v724 = vunpack.c.h.b16 %v87
  %v725 = vunpack.c.l.b16 %v88
  %v726 = vunpack.c.h.b16 %v88
  %v727 = vunpack.c.l.b16 %v89
  %v728 = vunpack.c.h.b16 %v89
  %v729 = vunpack.c.l.b16 %v90
  %v730 = vunpack.c.h.b16 %v90
  %v731 = vunpack.c.l.b16 %v91
  %v732 = vunpack.c.h.b16 %v91
  %v733 = vunpack.c.l.b16 %v92
  %v734 = vunpack.c.h.b16 %v92
  %v735 = vunpack.c.l.b16 %v93
  %v736 = vunpack.c.h.b16 %v93
  %v737 = vunpack.c.l.b16 %v94
  %v738 = vunpack.c.h.b16 %v94
  %v739 = vunpack.c.l.b16 %v95
  %v740 = vunpack.c.h.b16 %v95
  %v741 = vunpack.c.l.b16 %v96
  %v742 = vunpack.c.h.b16 %v96
  %v743 = vunpack.c.l.b16 %v97
  %v744 = vunpack.c.h.b16 %v97
  %v745 = vunpack.c.l.b16 %v98
  %v746 = vunpack.c.h.b16 %v98
  %v747 = vunpack.c.l.b16 %v99
  %v748 = vunpack.c.h.b16 %v99
  %v749 = vunpack.c.l.b16 %v100
  %v750 = vunpack.c.h.b16 %v100
  %v751 = vunpack.c.l.b16 %v101
  %v752 = vunpack.c.h.b16 %v101
  %v753 = vunpack.c.l.b16 %v102
  %v754 = vunpack.c.h.b16 %v102
  %v755 = vunpack.c.l.b16 %v103
  %v756 = vunpack.c.h.b16 %v103
  %v757 = vunpack.c.l.b16 %v104
  %v758 = vunpack.c.h.b16 %v104
  %v759 = vunpack.c.l.b16 %v105
  %v760 = vunpack.c.h.b16 %v105
  %v761 = vunpack.c.l.b16 %v106
  %v762 = vunpack.c.h.b16 %v106
  %v763 = vunpack.c.l.b16 %v107
  %v764 = vunpack.c.h.b16 %v107
  %v765 = vunpack.c.l.b16 %v108
  %v766 = vunpack.c.h.b16 %v108
  %v767 = vunpack.c.l.b16 %v109
  %v768 = vunpack.c.h.b16 %v109
  %v769 = vunpack.c.l.b16 %v110
  %v770 = vunpack.c.h.b16 %v110
  %v771 = vunpack.c.l.b16 %v111
  %v772 = vunpack.c.h.b16 %v111
  %v773 = vunpack.c.l.b16 %v112
  %v774 = vunpack.c.h.b16 %v112
  %v775 = vunpack.c.l.b16 %v113
  %v776 = vunpack.c.h.b16 %v113
  %v777 = vunpack.c.l.b16 %v114
  %v778 = vunpack.c.h.b16 %v114
  %v779 = vunpack.c.l.b16 %v115
  %v780 = vunpack.c.h.b16 %v115
  %v781 = vunpack.c.l.b16 %v116
  %v782 = vunpack.c.h.b16 %v116
  %v783 = vunpack.c.l.b16 %v117
  %v784 = vunpack.c.h.b16 %v117
  %v785 = vunpack.c.l.b16 %v118
  %v786 = vunpack.c.h.b16 %v118
  %v787 = vunpack.c.l.b16 %v119
  %v788 = vunpack.c.h.b16 %v119
  %v789 = vunpack.c.l.b16 %v120
  %v790 = vunpack.c.h.b16 %v120
  %v791 = vunpack.c.l.b16 %v121
  %v792 = vunpack.c.h.b16 %v121
  %v793 = vunpack.c.l.b16 %v122
  %v794 = vunpack.c.h.b16 %v122
  %v795 = vunpack.c.l.b16 %v123
  %v796 = vunpack.c.h.b16 %v123
  %v797 = vunpack.c.l.b16 %v124
  %v798 = vunpack.c.h.b16 %v124
  %v799 = vunpack.c.l.b16 %v125
  %v800 = vunpack.c.h.b16 %v125
  %v801 = vunpack.c.l.b16 %v126
  %v802 = vunpack.c.h.b16 %v126
  %v803 = vunpack.c.l.b16 %v127
  %v804 = vunpack.c.h.b16 %v127
  %v805 = vunpack.c.l.b16 %v128
  %v806 = vunpack.c.h.b16 %v128
  %v807 = vunpack.c.l.b16 %v129
  %v808 = vunpack.c.h.b16 %v129
  %v809 = vunpack.c.l.b16 %v130
  %v810 = vunpack.c.h.b16 %v130
  %v811 = vunpack.c.l.b16 %v131
  %v812 = vunpack.c.h.b16 %v131
  %v813 = vunpack.c.l.b16 %v132
  %v814 = vunpack.c.h.b16 %v132
  %v815 = vunpack.c.l.b16 %v133
  %v816 = vunpack.c.h.b16 %v133
  %v817 = vunpack.c.l.b16 %v134
  %v818 = vunpack.c.h.b16 %v134
  %v819 = vunpack.c.l.b16 %v135
  %v820 = vunpack.c.h.b16 %v135
  %v821 = vunpack.c.l.b16 %v136
  %v822 = vunpack.c.h.b16 %v136
  %v823 = vunpack.c.l.b16 %v137
  %v824 = vunpack.c.h.b16 %v137
  %v825 = vunpack.c.l.b16 %v138
  %v826 = vunpack.c.h.b16 %v138
  %v827 = vunpack.c.l.b16 %v139
  %v828 = vunpack.c.h.b16 %v139
  %v829 = vunpack.c.l.b16 %v140
  %v830 = vunpack.c.h.b16 %v140
  %v831 = vunpack.c.l.b16 %v141
  %v832 = vunpack.c.h.b16 %v141
  %v833 = vunpack.c.l.b16 %v142
  %v834 = vunpack.c.h.b16 %v142
  %v835 = vunpack.c.l.b16 %v143
  %v836 = vunpack.c.h.b16 %v143
  %v837 = vunpack.c.l.b16 %v144
  %v838 = vunpack.c.h.b16 %v144
  %v839 = vunpack.c.l.b16 %v145
  %v840 = vunpack.c.h.b16 %v145
  %v841 = vunpack.c.l.b16 %v146
  %v842 = vunpack.c.h.b16 %v146
  %v843 = vunpack.c.l.b16 %v147
  %v844 = vunpack.c.h.b16 %v147
  %v845 = vunpack.c.l.b16 %v148
  %v846 = vunpack.c.h.b16 %v148
  %v847 = vunpack.c.l.b16 %v149
  %v848 = vunpack.c.h.b16 %v149
  %v849 = vunpack.c.l.b16 %v150
  %v850 = vunpack.c.h.b16 %v150
  %v851 = vunpack.c.l.b16 %v151
  %v852 = vunpack.c.h.b16 %v151
  %v853 = vunpack.c.l.b16 %v152
  %v854 = vunpack.c.h.b16 %v152
  %v855 = vunpack.c.l.b16 %v153
  %v856 = vunpack.c.h.b16 %v153
  %v857 = vunpack.c.l.b16 %v154
  %v858 = vunpack.c.h.b16 %v154
  %v859 = vunpack.c.l.b16 %v155
  %v860 = vunpack.c.h.b16 %v155
  %v861 = vunpack.c.l.b16 %v156
  %v862 = vunpack.c.h.b16 %v156
  %v863 = vunpack.c.l.b16 %v157
  %v864 = vunpack.c.h.b16 %v157
  %v865 = vunpack.c.l.b16 %v158
  %v866 = vunpack.c.h.b16 %v158
  %v867 = vunpack.c.l.b16 %v159
  %v868 = vunpack.c.h.b16 %v159
  %v869 = vunpack.c.l.b16 %v160
  %v870 = vunpack.c.h.b16 %v160
  %v871 = vunpack.c.l.b16 %v161
  %v872 = vunpack.c.h.b16 %v161
  %v873 = vunpack.c.l.b16 %v162
  %v874 = vunpack.c.h.b16 %v162
  %v875 = vunpack.c.l.b16 %v163
  %v876 = vunpack.c.h.b16 %v163
  %v877 = vunpack.c.l.b16 %v164
  %v878 = vunpack.c.h.b16 %v164
  %v879 = vunpack.c.l.b16 %v165
  %v880 = vunpack.c.h.b16 %v165
  %v881 = vunpack.c.l.b16 %v166
  %v882 = vunpack.c.h.b16 %v166
  %v883 = vunpack.c.l.b16 %v167
  %v884 = vunpack.c.h.b16 %v167
  %v885 = vunpack.c.l.b16 %v168
  %v886 = vunpack.c.h.b16 %v168
  %v887 = vunpack.c.l.b16 %v169
  %v888 = vunpack.c.h.b16 %v169
  %v889 = vunpack.c.l.b16 %v170
  %v890 = vunpack.c.h.b16 %v170
  %v891 = vunpack.c.l.b16 %v171
  %v892 = vunpack.c.h.b16 %v171
  %v893 = vunpack.c.l.b16 %v172
  %v894 = vunpack.c.h.b16 %v172
  %v895 = vunpack.c.l.b16 %v173
  %v896 = vunpack.c.h.b16 %v173
  %v897 = vunpack.c.l.b16 %v174
  %v898 = vunpack.c.h.b16 %v174
  %v899 = vunpack.c.l.b16 %v175
  %v900 = vunpack.c.h.b16 %v175
  %v901 = vunpack.c.l.b16 %v176
  %v902 = vunpack.c.h.b16 %v176
  %v903 = vunpack.c.l.b16 %v177
  %v904 = vunpack.c.h.b16 %v177
  %v905 = vunpack.c.l.b16 %v178
  %v906 = vunpack.c.h.b16 %v178
  %v907 = vunpack.c.l.b16 %v179
  %v908 = vunpack.c.h.b16 %v179
  %v909 = vunpack.c.l.b16 %v180
  %v910 = vunpack.c.h.b16 %v180
  %v911 = vunpack.c.l.b16 %v181
  %v912 = vunpack.c.h.b16 %v181
  %v913 = vunpack.c.l.b16 %v182
  %v914 = vunpack.c.h.b16 %v182
  %v915 = vunpack.c.l.b16 %v183
  %v916 = vunpack.c.h.b16 %v183
  %v917 = vunpack.c.l.b16 %v184
  %v918 = vunpack.c.h.b16 %v184
  %v919 = vunpack.c.l.b16 %v185
  %v920 = vunpack.c.h.b16 %v185
  %v921 = vunpack.c.l.b16 %v186
  %v922 = vunpack.c.h.b16 %v186
  %v923 = vunpack.c.l.b16 %v187
  %v924 = vunpack.c.h.b16 %v187
  %v925 = vunpack.c.l.b16 %v188
  %v926 = vunpack.c.h.b16 %v188
  %v927 = vunpack.c.l.b16 %v189
  %v928 = vunpack.c.h.b16 %v189
  %v929 = vunpack.c.l.b16 %v190
  %v930 = vunpack.c.h.b16 %v190
  %v931 = vunpack.c.l.b16 %v191
  %v932 = vunpack.c.h.b16 %v191
  %v933 = vunpack.c.l.b16 %v192
  %v934 = vunpack.c.h.b16 %v192
  %v935 = vunpack.c.l.b16 %v193
  %v936 = vunpack.c.h.b16 %v193
  %v937 = vunpack.c.l.b16 %v194
  %v938 = vunpack.c.h.b16 %v194
  %v939 = vunpack.c.l.b16 %v195
  %v940 = vunpack.c.h.b16 %v195
  %v941 = vunpack.c.l.b16 %v196
  %v942 = vunpack.c.h.b16 %v196
  %v943 = vunpack.c.l.b16 %v197
  %v944 = vunpack.c.h.b16 %v197
  %v945 = vunpack.c.l.b16 %v198
  %v946 = vunpack.c.h.b16 %v198
  %v947 = vunpack.c.l.b16 %v199
  %v948 = vunpack.c.h.b16 %v199
  %v949 = vunpack.c.l.b16 %v200
  %v950 = vunpack.c.h.b16 %v200
  %v951 = vunpack.c.l.b16 %v201
  %v952 = vunpack.c.h.b16 %v201
  %v953 = vunpack.c.l.b16 %v202
  %v954 = vunpack.c.h.b16 %v202
  %v955 = vunpack.c.l.b16 %v203
  %v956 = vunpack.c.h.b16 %v203
  %v957 = vunpack.c.l.b16 %v204
  %v958 = vunpack.c.h.b16 %v204
  %v959 = vunpack.c.l.b16 %v205
  %v960 = vunpack.c.h.b16 %v205
  %v961 = vunpack.c.l.b16 %v206
  %v962 = vunpack.c.h.b16 %v206
  %v963 = vunpack.c.l.b16 %v207
  %v964 = vunpack.c.h.b16 %v207
  %v965 = vunpack.c.l.b16 %v208
  %v966 = vunpack.c.h.b16 %v208
  %v967 = vunpack.c.l.b16 %v209
  %v968 = vunpack.c.h.b16 %v209
  %v969 = vunpack.c.l.b16 %v210
  %v970 = vunpack.c.h.b16 %v210
  %v971 = vunpack.c.l.b16 %v211
  %v972 = vunpack.c.h.b16 %v211
  %v973 = vunpack.c.l.b16 %v212
  %v974 = vunpack.c.h.b16 %v212
  %v975 = vunpack.c.l.b16 %v213
  %v976 = vunpack.c.h.b16 %v213
  %v977 = vunpack.c.l.b16 %v214
  %v978 = vunpack.c.h.b16 %v214
  %v979 = vunpack.c.l.b16 %v215
  %v980 = vunpack.c.h.b16 %v215
  %v981 = vunpack.c.l.b16 %v216
  %v982 = vunpack.c.h.b16 %v216
  %v983 = vunpack.c.l.b16 %v217
  %v984 = vunpack.c.h.b16 %v217
  %v985 = vunpack.c.l.b16 %v218
  %v986 = vunpack.c.h.b16 %v218
  %v987 = vunpack.c.l.b16 %v219
  %v988 = vunpack.c.h.b16 %v219
  %v989 = vunpack.c.l.b16 %v220
  %v990 = vunpack.c.h.b16 %v220
  %v991 = vunpack.c.l.b16 %v221
  %v992 = vunpack.c.h.b16 %v221
  %v993 = vunpack.c.l.b16 %v222
  %v994 = vunpack.c.h.b16 %v222
  %v995 = vunpack.c.l.b16 %v223
  %v996 = vunpack.c.h.b16 %v223
  %v997 = vunpack.c.l.b16 %v224
  %v998 = vunpack.c.h.b16 %v224
  %v999 = vunpack.c.l.b16 %v225
  %v1000 = vunpack.c.h.b16 %v225
  %v1001 = vunpack.c.l.b16 %v226
  %v1002 = vunpack.c.h.b16 %v226
  %v1003 = vunpack.c.l.b16 %v227
  %v1004 = vunpack.c.h.b16 %v227
  %v1005 = vunpack.c.l.b16 %v228
  %v1006 = vunpack.c.h.b16 %v228
  %v1007 = vunpack.c.l.b16 %v229
  %v1008 = vunpack.c.h.b16 %v229
  %v1009 = vunpack.c.l.b16 %v230
  %v1010 = vunpack.c.h.b16 %v230
  %v1011 = vunpack.c.l.b16 %v231
  %v1012 = vunpack.c.h.b16 %v231
  %v1013 = vunpack.c.l.b16 %v232
  %v1014 = vunpack.c.h.b16 %v232
  %v1015 = vunpack.c.l.b16 %v233
  %v1016 = vunpack.c.h.b16 %v233
  %v1017 = vunpack.c.l.b16 %v234
  %v1018 = vunpack.c.h.b16 %v234
  %v1019 = vunpack.c.l.b16 %v235
  %v1020 = vunpack.c.h.b16 %v235
  %v1021 = vunpack.c.l.b16 %v236
  %v1022 = vunpack.c.h.b16 %v236
  %v1023 = vunpack.c.l.b16 %v237
  %v1024 = vunpack.c.h.b16 %v237
  %v1025 = vunpack.c.l.b16 %v238
  %v1026 = vunpack.c.h.b16 %v238
  %v1027 = vunpack.c.l.b16 %v239
  %v1028 = vunpack.c.h.b16 %v239
  %v1029 = vunpack.c.l.b16 %v240
  %v1030 = vunpack.c.h.b16 %v240
  %v1031 = vunpack.c.l.b16 %v241
  %v1032 = vunpack.c.h.b16 %v241
  %v1033 = vunpack.c.l.b16 %v242
  %v1034 = vunpack.c.h.b16 %v242
  %v1035 = vunpack.c.l.b16 %v243
  %v1036 = vunpack.c.h.b16 %v243
  %v1037 = vunpack.c.l.b16 %v244
  %v1038 = vunpack.c.h.b16 %v244
  %v1039 = vunpack.c.l.b16 %v245
  %v1040 = vunpack.c.h.b16 %v245
  %v1041 = vunpack.c.l.b16 %v246
  %v1042 = vunpack.c.h.b16 %v246
  %v1043 = vunpack.c.l.b16 %v247
  %v1044 = vunpack.c.h.b16 %v247
  %v1045 = vunpack.c.l.b16 %v248
  %v1046 = vunpack.c.h.b16 %v248
  %v1047 = vunpack.c.l.b16 %v249
  %v1048 = vunpack.c.h.b16 %v249
  %v1049 = vunpack.c.l.b16 %v250
  %v1050 = vunpack.c.h.b16 %v250
  %v1051 = vunpack.c.l.b16 %v251
  %v1052 = vunpack.c.h.b16 %v251
  %v1053 = vunpack.c.l.b16 %v252
  %v1054 = vunpack.c.h.b16 %v252
  %v1055 = vunpack.c.l.b16 %v253
  %v1056 = vunpack.c.h.b16 %v253
  %v1057 = vunpack.c.l.b16 %v254
  %v1058 = vunpack.c.h.b16 %v254
  %v1059 = vunpack.c.l.b16 %v255
  %v1060 = vunpack.c.h.b16 %v255
  %v1061 = vunpack.c.l.b16 %v256
  %v1062 = vunpack.c.h.b16 %v256
  %v1063 = vunpack.c.l.b16 %v257
  %v1064 = vunpack.c.h.b16 %v257
  %v1065 = vunpack.c.l.b16 %v258
  %v1066 = vunpack.c.h.b16 %v258
  %v1067 = vunpack.c.l.b16 %v259
  %v1068 = vunpack.c.h.b16 %v259
  %v1069 = vunpack.c.l.b16 %v260
  %v1070 = vunpack.c.h.b16 %v260
  %v1071 = vunpack.c.l.b16 %v261
  %v1072 = vunpack.c.h.b16 %v261
  %v1073 = vunpack.c.l.b16 %v262
  %v1074 = vunpack.c.h.b16 %v262
  %v1075 = vunpack.c.l.b16 %v263
  %v1076 = vunpack.c.h.b16 %v263
  %v1077 = vunpack.c.l.b16 %v264
  %v1078 = vunpack.c.h.b16 %v264
  %v1079 = vunpack.c.l.b16 %v265
  %v1080 = vunpack.c.h.b16 %v265
  %v1081 = vunpack.c.l.b16 %v266
  %v1082 = vunpack.c.h.b16 %v266
  %v1083 = vunpack.c.l.b16 %v267
  %v1084 = vunpack.c.h.b16 %v267
  %v1085 = vunpack.c.l.b16 %v268
  %v1086 = vunpack.c.h.b16 %v268
  %v1087 = vunpack.c.l.b16 %v269
  %v1088 = vunpack.c.h.b16 %v269
  %v1089 = vunpack.c.l.b16 %v270
  %v1090 = vunpack.c.h.b16 %v270
  %v1091 = vunpack.c.l.b16 %v271
  %v1092 = vunpack.c.h.b16 %v271
  %v1093 = vunpack.c.l.b16 %v272
  %v1094 = vunpack.c.h.b16 %v272
  %v1095 = vunpack.c.l.b16 %v273
  %v1096 = vunpack.c.h.b16 %v273
  %v1097 = vunpack.c.l.b16 %v274
  %v1098 = vunpack.c.h.b16 %v274
  %v1099 = vunpack.c.l.b16 %v275
  %v1100 = vunpack.c.h.b16 %v275
  %v1101 = vunpack.c.l.b16 %v276
  %v1102 = vunpack.c.h.b16 %v276
  %v1103 = vunpack.c.l.b16 %v277
  %v1104 = vunpack.c.h.b16 %v277
  %v1105 = vunpack.c.l.b16 %v278
  %v1106 = vunpack.c.h.b16 %v278
  %v1107 = vunpack.c.l.b16 %v279
  %v1108 = vunpack.c.h.b16 %v279
  %v1109 = vunpack.c.l.b16 %v280
  %v1110 = vunpack.c.h.b16 %v280
  %v1111 = vpack.c.b16 %v607, %v599
  %v1112 = vpack.c.b16 %v608, %v600
  %v1113 = vpack.c.b16 %v609, %v601
  %v1114 = vpack.c.b16 %v610, %v602
  %v1115 = vpack.c.b16 %v611, %v603
  %v1116 = vpack.c.b16 %v612, %v604
  %v1117 = vpack.c.b16 %v613, %v605
  %v1118 = vpack.c.b16 %v614, %v606
  %v1119 = vpack.c.b16 %v623, %v615
  %v1120 = vpack.c.b16 %v624, %v616
  %v1121 = vpack.c.b16 %v625, %v617
  %v1122 = vpack.c.b16 %v626, %v618
  %v1123 = vpack.c.b16 %v627, %v619
  %v1124 = vpack.c.b16 %v628, %v620
  %v1125 = vpack.c.b16 %v629, %v621
  %v1126 = vpack.c.b16 %v630, %v622
  %v1127 = vpack.c.b16 %v639, %v631
  %v1128 = vpack.c.b16 %v640, %v632
  %v1129 = vpack.c.b16 %v641, %v633
  %v1130 = vpack.c.b16 %v642, %v634
  %v1131 = vpack.c.b16 %v643, %v635
  %v1132 = vpack.c.b16 %v644, %v636
  %v1133 = vpack.c.b16 %v645, %v637
  %v1134 = vpack.c.b16 %v646, %v638
  %v1135 = vpack.c.b16 %v655, %v647
  %v1136 = vpack.c.b16 %v656, %v648
  %v1137 = vpack.c.b16 %v657, %v649
  %v1138 = vpack.c.b16 %v658, %v650
  %v1139 = vpack.c.b16 %v659, %v651
  %v1140 = vpack.c.b16 %v660, %v652
  %v1141 = vpack.c.b16 %v661, %v653
  %v1142 = vpack.c.b16 %v662, %v654
  %v1143 = vpack.c.b16 %v671, %v663
  %v1144 = vpack.c.b16 %v672, %v664
  %v1145 = vpack.c.b16 %v673, %v665
  %v1146 = vpack.c.b16 %v674, %v666
  %v1147 = vpack.c.b16 %v675, %v667
  %v1148 = vpack.c.b16 %v676, %v668
  %v1149 = vpack.c.b16 %v677, %v669
  %v1150 = vpack.c.b16 %v678, %v670
  %v1151 = vpack.c.b16 %v687, %v679
  %v1152 = vpack.c.b16 %v688, %v680
  %v1153 = vpack.c.b16 %v689, %v681
  %v1154 = vpack.c.b16 %v690, %v682
  %v1155 = vpack.c.b16 %v691, %v683
  %v1156 = vpack.c.b16 %v692, %v684
  %v1157 = vpack.c.b16 %v693, %v685
  %v1158 = vpack.c.b16 %v694, %v686
  %v1159 = vpack.c.b16 %v703, %v695
  %v1160 = vpack.c.b16 %v704, %v696
  %v1161 = vpack.c.b16 %v705, %v697
  %v1162 = vpack.c.b16 %v706, %v698
  %v1163 = vpack.c.b16 %v707, %v699
  %v1164 = vpack.c.b16 %v708, %v700
  %v1165 = vpack.c.b16 %v709, %v701
  %v1166 = vpack.c.b16 %v710, %v702
  %v1167 = vpack.c.b16 %v719, %v711
  %v1168 = vpack.c.b16 %v720, %v712
  %v1169 = vpack.c.b16 %v721, %v713
  %v1170 = vpack.c.b16 %v722, %v714
  %v1171 = vpack.c.b16 %v723, %v715
  %v1172 = vpack.c.b16 %v724, %v716
  %v1173 = vpack.c.b16 %v725, %v717
  %v1174 = vpack.c.b16 %v726, %v718
  %v1175 = vpack.c.b16 %v735, %v727
  %v1176 = vpack.c.b16 %v736, %v728
  %v1177 = vpack.c.b16 %v737, %v729
  %v1178 = vpack.c.b16 %v738, %v730
  %v1179 = vpack.c.b16 %v739, %v731
  %v1180 = vpack.c.b16 %v740, %v732
  %v1181 = vpack.c.b16 %v741, %v733
  %v1182 = vpack.c.b16 %v742, %v734
  %v1183 = vpack.c.b16 %v751, %v743
  %v1184 = vpack.c.b16 %v752, %v744
  %v1185 = vpack.c.b16 %v753, %v745
  %v1186 = vpack.c.b16 %v754, %v746
  %v1187 = vpack.c.b16 %v755, %v747
  %v1188 = vpack.c.b16 %v756, %v748
  %v1189 = vpack.c.b16 %v757, %v749
  %v1190 = vpack.c.b16 %v758, %v750
  %v1191 = vpack.c.b16 %v767, %v759
  %v1192 = vpack.c.b16 %v768, %v760
  %v1193 = vpack.c.b16 %v769, %v761
  %v1194 = vpack.c.b16 %v770, %v762
  %v1195 = vpack.c.b16 %v771, %v763
  %v1196 = vpack.c.b16 %v772, %v764
  %v1197 = vpack.c.b16 %v773, %v765
  %v1198 = vpack.c.b16 %v774, %v766
  %v1199 = vpack.c.b16 %v783, %v775
  %v1200 = vpack.c.b16 %v784, %v776
  %v1201 = vpack.c.b16 %v785, %v777
  %v1202 = vpack.c.b16 %v786, %v778
  %v1203 = vpack.c.b16 %v787, %v779
  %v1204 = vpack.c.b16 %v788, %v780
  %v1205 = vpack.c.b16 %v789, %v781
  %v1206 = vpack.c.b16 %v790, %v782
  %v1207 = vpack.c.b16 %v799, %v791
  %v1208 = vpack.c.b16 %v800, %v792
  %v1209 = vpack.c.b16 %v801, %v793
  %v1210 = vpack.c.b16 %v802, %v794
  %v1211 = vpack.c.b16 %v803, %v795
  %v1212 = vpack.c.b16 %v804, %v796
  %v1213 = vpack.c.b16 %v805, %v797
  %v1214 = vpack.c.b16 %v806, %v798
  %v1215 = vpack.c.b16 %v815, %v807
  %v1216 = vpack.c.b16 %v816, %v808
  %v1217 = vpack.c.b16 %v817, %v809
  %v1218 = vpack.c.b16 %v818, %v810
  %v1219 = vpack.c.b16 %v819, %v811
  %v1220 = vpack.c.b16 %v820, %v812
  %v1221 = vpack.c.b16 %v821, %v813
  %v1222 = vpack.c.b16 %v822, %v814
  %v1223 = vpack.c.b16 %v831, %v823
  %v1224 = vpack.c.b16 %v832, %v824
  %v1225 = vpack.c.b16 %v833, %v825
  %v1226 = vpack.c.b16 %v834, %v826
  %v1227 = vpack.c.b16 %v835, %v827
  %v1228 = vpack.c.b16 %v836, %v828
  %v1229 = vpack.c.b16 %v837, %v829
  %v1230 = vpack.c.b16 %v838, %v830
  %v1231 = vpack.c.b16 %v847, %v839
  %v1232 = vpack.c.b16 %v848, %v840
  %v1233 = vpack.c.b16 %v849, %v841
  %v1234 = vpack.c.b16 %v850, %v842
  %v1235 = vpack.c.b16 %v851, %v843
  %v1236 = vpack.c.b16 %v852, %v844
  %v1237 = vpack.c.b16 %v853, %v845
  %v1238 = vpack.c.b16 %v854, %v846
  %v1239 = vpack.c.b16 %v863, %v855
  %v1240 = vpack.c.b16 %v864, %v856
  %v1241 = vpack.c.b16 %v865, %v857
  %v1242 = vpack.c.b16 %v866, %v858
  %v1243 = vpack.c.b16 %v867, %v859
  %v1244 = vpack.c.b16 %v868, %v860
  %v1245 = vpack.c.b16 %v869, %v861
  %v1246 = vpack.c.b16 %v870, %v862
  %v1247 = vpack.c.b16 %v879, %v871
  %v1248 = vpack.c.b16 %v880, %v872
  %v1249 = vpack.c.b16 %v881, %v873
  %v1250 = vpack.c.b16 %v882, %v874
  %v1251 = vpack.c.b16 %v883, %v875
  %v1252 = vpack.c.b16 %v884, %v876
  %v1253 = vpack.c.b16 %v885, %v877
  %v1254 = vpack.c.b16 %v886, %v878
  %v1255 = vpack.c.b16 %v895, %v887
  %v1256 = vpack.c.b16 %v896, %v888
  %v1257 = vpack.c.b16 %v897, %v889
  %v1258 = vpack.c.b16 %v898, %v890
  %v1259 = vpack.c.b16 %v899, %v891
  %v1260 = vpack.c.b16 %v900, %v892
  %v1261 = vpack.c.b16 %v901, %v893
  %v1262 = vpack.c.b16 %v902, %v894
  %v1263 = vpack.c.b16 %v911, %v903
  %v1264 = vpack.c.b16 %v912, %v904
  %v1265 = vpack.c.b16 %v913, %v905
  %v1266 = vpack.c.b16 %v914, %v906
  %v1267 = vpack.c.b16 %v915, %v907
  %v1268 = vpack.c.b16 %v916, %v908
  %v1269 = vpack.c.b16 %v917, %v909
  %v1270 = vpack.c.b16 %v918, %v910
  %v1271 = vpack.c.b16 %v927, %v919
  %v1272 = vpack.c.b16 %v928, %v920
  %v1273 = vpack.c.b16 %v929, %v921
  %v1274 = vpack.c.b16 %v930, %v922
  %v1275 = vpack.c.b16 %v931, %v923
  %v1276 = vpack.c.b16 %v932, %v924
  %v1277 = vpack.c.b16 %v933, %v925
  %v1278 = vpack.c.b16 %v934, %v926
  %v1279 = vpack.c.b16 %v943, %v935
  %v1280 = vpack.c.b16 %v944, %v936
  %v1281 = vpack.c.b16 %v945, %v937
  %v1282 = vpack.c.b16 %v946, %v938
  %v1283 = vpack.c.b16 %v947, %v939
  %v1284 = vpack.c.b16 %v948, %v940
  %v1285 = vpack.c.b16 %v949, %v941
  %v1286 = vpack.c.b16 %v950, %v942
  %v1287 = vpack.c.b16 %v959, %v951
  %v1288 = vpack.c.b16 %v960, %v952
  %v1289 = vpack.c.b16 %v961, %v953
  %v1290 = vpack.c.b16 %v962, %v954
  %v1291 = vpack.c.b16 %v963, %v955
  %v1292 = vpack.c.b16 %v964, %v956
  %v1293 = vpack.c.b16 %v965, %v957
  %v1294 = vpack.c.b16 %v966, %v958
  %v1295 = vpack.c.b16 %v975, %v967
  %v1296 = vpack.c.b16 %v976, %v968
  %v1297 = vpack.c.b16 %v977, %v969
  %v1298 = vpack.c.b16 %v978, %v970
  %v1299 = vpack.c.b16 %v979, %v971
  %v1300 = vpack.c.b16 %v980, %v972
  %v1301 = vpack.c.b16 %v981, %v973
  %v1302 = vpack.c.b16 %v982, %v974
  %v1303 = vpack.c.b16 %v991, %v983
  %v1304 = vpack.c.b16 %v992, %v984
  %v1305 = vpack.c.b16 %v993, %v985
  %v1306 = vpack.c.b16 %v994, %v986
  %v1307 = vpack.c.b16 %v995, %v987
  %v1308 = vpack.c.b16 %v996, %v988
  %v1309 = vpack.c.b16 %v997, %v989
  %v1310 = vpack.c.b16 %v998, %v990
  %v1311 = vpack.c.b16 %v1007, %v999
  %v1312 = vpack.c.b16 %v1008, %v1000
  %v1313 = vpack.c.b16 %v1009, %v1001
  %v1314 = vpack.c.b16 %v1010, %v1002
  %v1315 = vpack.c.b16 %v1011, %v1003
  %v1316 = vpack.c.b16 %v1012, %v1004
  %v1317 = vpack.c.b16 %v1013, %v1005
  %v1318 = vpack.c.b16 %v1014, %v1006
  %v1319 = vpack.c.b16 %v1023, %v1015
  %v1320 = vpack.c.b16 %v1024, %v1016
  %v1321 = vpack.c.b16 %v1025, %v1017
  %v1322 = vpack.c.b16 %v1026, %v1018
  %v1323 = vpack.c.b16 %v1027, %v1019
  %v1324 = vpack.c.b16 %v1028, %v1020
  %v1325 = vpack.c.b16 %v1029, %v1021
  %v1326 = vpack.c.b16 %v1030, %v1022
  %v1327 = vpack.c.b16 %v1039, %v1031
  %v1328 = vpack.c.b16 %v1040, %v1032
  %v1329 = vpack.c.b16 %v1041, %v1033
  %v1330 = vpack.c.b16 %v1042, %v1034
  %v1331 = vpack.c.b16 %v1043, %v1035
  %v1332 = vpack.c.b16 %v1044, %v1036
  %v1333 = vpack.c.b16 %v1045, %v1037
  %v1334 = vpack.c.b16 %v1046, %v1038
  %v1335 = vpack.c.b16 %v1055, %v1047
  %v1336 = vpack.c.b16 %v1056, %v1048
  %v1337 = vpack.c.b16 %v1057, %v1049
  %v1338 = vpack.c.b16 %v1058, %v1050
  %v1339 = vpack.c.b16 %v1059, %v1051
  %v1340 = vpack.c.b16 %v1060, %v1052
  %v1341 = vpack.c.b16 %v1061, %v1053
  %v1342 = vpack.c.b16 %v1062, %v1054
  %v1343 = vpack.c.b16 %v1071, %v1063
  %v1344 = vpack.c.b16 %v1072, %v1064
  %v1345 = vpack.c.b16 %v1073, %v1065
  %v1346 = vpack.c.b16 %v1074, %v1066
  %v1347 = vpack.c.b16 %v1075, %v1067
  %v1348 = vpack.c.b16 %v1076, %v1068
  %v1349 = vpack.c.b16 %v1077, %v1069
  %v1350 = vpack.c.b16 %v1078, %v1070
  %v1351 = vpack.c.b16 %v1087, %v1079
  %v1352 = vpack.c.b16 %v1088, %v1080
  %v1353 = vpack.c.b16 %v1089, %v1081
  %v1354 = vpack.c.b16 %v1090, %v1082
  %v1355 = vpack.c.b16 %v1091, %v1083
  %v1356 = vpack.c.b16 %v1092, %v1084
  %v1357 = vpack.c.b16 %v1093, %v1085
  %v1358 = vpack.c.b16 %v1094, %v1086
  %v1359 = vpack.c.b16 %v1103, %v1095
  %v1360 = vpack.c.b16 %v1104, %v1096
  %v1361 = vpack.c.b16 %v1105, %v1097
  %v1362 = vpack.c.b16 %v1106, %v1098
  %v1363 = vpack.c.b16 %v1107, %v1099
  %v1364 = vpack.c.b16 %v1108, %v1100
  %v1365 = vpack.c.b16 %v1109, %v1101
  %v1366 = vpack.c.b16 %v1110, %v1102
  %1623 = vmatprep.subr.bf16.mxu0 %v1112
  %1624 = vmatpush1.bf16.msra.mxu0 %v1111
  %1625 = vmatprep.subr.bf16.mxu0 %v1120
  %1626 = vmatpush1.bf16.msra.mxu0 %v1119
  %1627 = vmatprep.subr.bf16.mxu0 %v1128
  %1628 = vmatpush1.bf16.msra.mxu0 %v1127
  %1629 = vmatprep.subr.bf16.mxu0 %v1136
  %1630 = vmatpush1.bf16.msra.mxu0 %v1135
  %1631 = vmatprep.subr.bf16.mxu0 %v1144
  %1632 = vmatpush1.bf16.msra.mxu0 %v1143
  %1633 = vmatprep.subr.bf16.mxu0 %v1152
  %1634 = vmatpush1.bf16.msra.mxu0 %v1151
  %1635 = vmatprep.subr.bf16.mxu0 %v1160
  %1636 = vmatpush1.bf16.msra.mxu0 %v1159
  %1637 = vmatprep.subr.bf16.mxu0 %v1168
  %1638 = vmatpush1.bf16.msra.mxu0 %v1167
  %1639 = vmatprep.subr.bf16.mxu0 %v1176
  %1640 = vmatpush1.bf16.msra.mxu0 %v1175
  %1641 = vmatprep.subr.bf16.mxu0 %v1184
  %1642 = vmatpush1.bf16.msra.mxu0 %v1183
  %1643 = vmatprep.subr.bf16.mxu0 %v1192
  %1644 = vmatpush1.bf16.msra.mxu0 %v1191
  %1645 = vmatprep.subr.bf16.mxu0 %v1200
  %1646 = vmatpush1.bf16.msra.mxu0 %v1199
  %1647 = vmatprep.subr.bf16.mxu0 %v1208
  %1648 = vmatpush1.bf16.msra.mxu0 %v1207
  %1649 = vmatprep.subr.bf16.mxu0 %v1216
  %1650 = vmatpush1.bf16.msra.mxu0 %v1215
  %1651 = vmatprep.subr.bf16.mxu0 %v1224
  %1652 = vmatpush1.bf16.msra.mxu0 %v1223
  %1653 = vmatprep.subr.bf16.mxu0 %v1232
  %1654 = vmatpush1.bf16.msra.mxu0 %v1231
  %1655 = vmatprep.mubr.bf16.mxu0 %v336
  %1656 = vmatmul.mubr.bf16.gmra.mrb[0].mxu0 %v335
  %v1657 = vpop.f32.mrb[0].mxu0
  %v1658 = vadd.f32 %v286, %v1657
  %v1659 = vpop.f32.mrb[0].mxu0
  %v1660 = vadd.f32 %v290, %v1659
  %v1661 = vpop.f32.mrb[0].mxu0
  %v1662 = vadd.f32 %v286, %v1661
  %v1663 = vpop.f32.mrb[0].mxu0
  %v1664 = vadd.f32 %v290, %v1663
  %1665 = vdwg.mxu0
  %1666 = vmatprep.subr.bf16.mxu0 %v1240
  %1667 = vmatpush1.bf16.msra.mxu0 %v1239
  %1668 = vmatprep.subr.bf16.mxu0 %v1248
  %1669 = vmatpush1.bf16.msra.mxu0 %v1247
  %1670 = vmatprep.subr.bf16.mxu0 %v1256
  %1671 = vmatpush1.bf16.msra.mxu0 %v1255
  %1672 = vmatprep.subr.bf16.mxu0 %v1264
  %1673 = vmatpush1.bf16.msra.mxu0 %v1263
  %1674 = vmatprep.subr.bf16.mxu0 %v1272
  %1675 = vmatpush1.bf16.msra.mxu0 %v1271
  %1676 = vmatprep.subr.bf16.mxu0 %v1280
  %1677 = vmatpush1.bf16.msra.mxu0 %v1279
  %1678 = vmatprep.subr.bf16.mxu0 %v1288
  %1679 = vmatpush1.bf16.msra.mxu0 %v1287
  %1680 = vmatprep.subr.bf16.mxu0 %v1296
  %1681 = vmatpush1.bf16.msra.mxu0 %v1295
  %1682 = vmatprep.subr.bf16.mxu0 %v1304
  %1683 = vmatpush1.bf16.msra.mxu0 %v1303
  %1684 = vmatprep.subr.bf16.mxu0 %v1312
  %1685 = vmatpush1.bf16.msra.mxu0 %v1311
  %1686 = vmatprep.subr.bf16.mxu0 %v1320
  %1687 = vmatpush1.bf16.msra.mxu0 %v1319
  %1688 = vmatprep.subr.bf16.mxu0 %v1328
  %1689 = vmatpush1.bf16.msra.mxu0 %v1327
  %1690 = vmatprep.subr.bf16.mxu0 %v1336
  %1691 = vmatpush1.bf16.msra.mxu0 %v1335
  %1692 = vmatprep.subr.bf16.mxu0 %v1344
  %1693 = vmatpush1.bf16.msra.mxu0 %v1343
  %1694 = vmatprep.subr.bf16.mxu0 %v1352
  %1695 = vmatpush1.bf16.msra.mxu0 %v1351
  %1696 = vmatprep.subr.bf16.mxu0 %v1360
  %1697 = vmatpush1.bf16.msra.mxu0 %v1359
  %1698 = vmatprep.mubr.bf16.mxu0 %v338
  %1699 = vmatmul.mubr.bf16.gmra.mrb[0].mxu0 %v337
  %v1700 = vpop.f32.mrb[0].mxu0
  %v1701 = vadd.f32 %v1658, %v1700
  %v1702 = vpop.f32.mrb[0].mxu0
  %v1703 = vadd.f32 %v1660, %v1702
  %v1704 = vpop.f32.mrb[0].mxu0
  %v1705 = vadd.f32 %v1662, %v1704
  %v1706 = vpop.f32.mrb[0].mxu0
  %v1707 = vadd.f32 %v1664, %v1706
  %1708 = vdwg.mxu0
  %1709 = vmatprep.subr.bf16.mxu0 %v1114
  %1710 = vmatpush1.bf16.msra.mxu0 %v1113
  %1711 = vmatprep.subr.bf16.mxu0 %v1122
  %1712 = vmatpush1.bf16.msra.mxu0 %v1121
  %1713 = vmatprep.subr.bf16.mxu0 %v1130
  %1714 = vmatpush1.bf16.msra.mxu0 %v1129
  %1715 = vmatprep.subr.bf16.mxu0 %v1138
  %1716 = vmatpush1.bf16.msra.mxu0 %v1137
  %1717 = vmatprep.subr.bf16.mxu0 %v1146
  %1718 = vmatpush1.bf16.msra.mxu0 %v1145
  %1719 = vmatprep.subr.bf16.mxu0 %v1154
  %1720 = vmatpush1.bf16.msra.mxu0 %v1153
  %1721 = vmatprep.subr.bf16.mxu0 %v1162
  %1722 = vmatpush1.bf16.msra.mxu0 %v1161
  %1723 = vmatprep.subr.bf16.mxu0 %v1170
  %1724 = vmatpush1.bf16.msra.mxu0 %v1169
  %1725 = vmatprep.subr.bf16.mxu0 %v1178
  %1726 = vmatpush1.bf16.msra.mxu0 %v1177
  %1727 = vmatprep.subr.bf16.mxu0 %v1186
  %1728 = vmatpush1.bf16.msra.mxu0 %v1185
  %1729 = vmatprep.subr.bf16.mxu0 %v1194
  %1730 = vmatpush1.bf16.msra.mxu0 %v1193
  %1731 = vmatprep.subr.bf16.mxu0 %v1202
  %1732 = vmatpush1.bf16.msra.mxu0 %v1201
  %1733 = vmatprep.subr.bf16.mxu0 %v1210
  %1734 = vmatpush1.bf16.msra.mxu0 %v1209
  %1735 = vmatprep.subr.bf16.mxu0 %v1218
  %1736 = vmatpush1.bf16.msra.mxu0 %v1217
  %1737 = vmatprep.subr.bf16.mxu0 %v1226
  %1738 = vmatpush1.bf16.msra.mxu0 %v1225
  %1739 = vmatprep.subr.bf16.mxu0 %v1234
  %1740 = vmatpush1.bf16.msra.mxu0 %v1233
  %1741 = vmatprep.mubr.bf16.mxu0 %v336
  %1742 = vmatmul.mubr.bf16.gmra.mrb[0].mxu0 %v335
  %v1743 = vpop.f32.mrb[0].mxu0
  %v1744 = vadd.f32 %v294, %v1743
  %v1745 = vpop.f32.mrb[0].mxu0
  %v1746 = vadd.f32 %v298, %v1745
  %v1747 = vpop.f32.mrb[0].mxu0
  %v1748 = vadd.f32 %v294, %v1747
  %v1749 = vpop.f32.mrb[0].mxu0
  %v1750 = vadd.f32 %v298, %v1749
  %1751 = vdwg.mxu0
  %1752 = vmatprep.subr.bf16.mxu0 %v1242
  %1753 = vmatpush1.bf16.msra.mxu0 %v1241
  %1754 = vmatprep.subr.bf16.mxu0 %v1250
  %1755 = vmatpush1.bf16.msra.mxu0 %v1249
  %1756 = vmatprep.subr.bf16.mxu0 %v1258
  %1757 = vmatpush1.bf16.msra.mxu0 %v1257
  %1758 = vmatprep.subr.bf16.mxu0 %v1266
  %1759 = vmatpush1.bf16.msra.mxu0 %v1265
  %1760 = vmatprep.subr.bf16.mxu0 %v1274
  %1761 = vmatpush1.bf16.msra.mxu0 %v1273
  %1762 = vmatprep.subr.bf16.mxu0 %v1282
  %1763 = vmatpush1.bf16.msra.mxu0 %v1281
  %1764 = vmatprep.subr.bf16.mxu0 %v1290
  %1765 = vmatpush1.bf16.msra.mxu0 %v1289
  %1766 = vmatprep.subr.bf16.mxu0 %v1298
  %1767 = vmatpush1.bf16.msra.mxu0 %v1297
  %1768 = vmatprep.subr.bf16.mxu0 %v1306
  %1769 = vmatpush1.bf16.msra.mxu0 %v1305
  %1770 = vmatprep.subr.bf16.mxu0 %v1314
  %1771 = vmatpush1.bf16.msra.mxu0 %v1313
  %1772 = vmatprep.subr.bf16.mxu0 %v1322
  %1773 = vmatpush1.bf16.msra.mxu0 %v1321
  %1774 = vmatprep.subr.bf16.mxu0 %v1330
  %1775 = vmatpush1.bf16.msra.mxu0 %v1329
  %1776 = vmatprep.subr.bf16.mxu0 %v1338
  %1777 = vmatpush1.bf16.msra.mxu0 %v1337
  %1778 = vmatprep.subr.bf16.mxu0 %v1346
  %1779 = vmatpush1.bf16.msra.mxu0 %v1345
  %1780 = vmatprep.subr.bf16.mxu0 %v1354
  %1781 = vmatpush1.bf16.msra.mxu0 %v1353
  %1782 = vmatprep.subr.bf16.mxu0 %v1362
  %1783 = vmatpush1.bf16.msra.mxu0 %v1361
  %1784 = vmatprep.mubr.bf16.mxu0 %v338
  %1785 = vmatmul.mubr.bf16.gmra.mrb[0].mxu0 %v337
  %v1786 = vpop.f32.mrb[0].mxu0
  %v1787 = vadd.f32 %v1744, %v1786
  %v1788 = vpop.f32.mrb[0].mxu0
  %v1789 = vadd.f32 %v1746, %v1788
  %v1790 = vpop.f32.mrb[0].mxu0
  %v1791 = vadd.f32 %v1748, %v1790
  %v1792 = vpop.f32.mrb[0].mxu0
  %v1793 = vadd.f32 %v1750, %v1792
  %1794 = vdwg.mxu0
  %1795 = vmatprep.subr.bf16.mxu0 %v1116
  %1796 = vmatpush1.bf16.msra.mxu0 %v1115
  %1797 = vmatprep.subr.bf16.mxu0 %v1124
  %1798 = vmatpush1.bf16.msra.mxu0 %v1123
  %1799 = vmatprep.subr.bf16.mxu0 %v1132
  %1800 = vmatpush1.bf16.msra.mxu0 %v1131
  %1801 = vmatprep.subr.bf16.mxu0 %v1140
  %1802 = vmatpush1.bf16.msra.mxu0 %v1139
  %1803 = vmatprep.subr.bf16.mxu0 %v1148
  %1804 = vmatpush1.bf16.msra.mxu0 %v1147
  %1805 = vmatprep.subr.bf16.mxu0 %v1156
  %1806 = vmatpush1.bf16.msra.mxu0 %v1155
  %1807 = vmatprep.subr.bf16.mxu0 %v1164
  %1808 = vmatpush1.bf16.msra.mxu0 %v1163
  %1809 = vmatprep.subr.bf16.mxu0 %v1172
  %1810 = vmatpush1.bf16.msra.mxu0 %v1171
  %1811 = vmatprep.subr.bf16.mxu0 %v1180
  %1812 = vmatpush1.bf16.msra.mxu0 %v1179
  %1813 = vmatprep.subr.bf16.mxu0 %v1188
  %1814 = vmatpush1.bf16.msra.mxu0 %v1187
  %1815 = vmatprep.subr.bf16.mxu0 %v1196
  %1816 = vmatpush1.bf16.msra.mxu0 %v1195
  %1817 = vmatprep.subr.bf16.mxu0 %v1204
  %1818 = vmatpush1.bf16.msra.mxu0 %v1203
  %1819 = vmatprep.subr.bf16.mxu0 %v1212
  %1820 = vmatpush1.bf16.msra.mxu0 %v1211
  %1821 = vmatprep.subr.bf16.mxu0 %v1220
  %1822 = vmatpush1.bf16.msra.mxu0 %v1219
  %1823 = vmatprep.subr.bf16.mxu0 %v1228
  %1824 = vmatpush1.bf16.msra.mxu0 %v1227
  %1825 = vmatprep.subr.bf16.mxu0 %v1236
  %1826 = vmatpush1.bf16.msra.mxu0 %v1235
  %1827 = vmatprep.mubr.bf16.mxu0 %v336
  %1828 = vmatmul.mubr.bf16.gmra.mrb[0].mxu0 %v335
  %v1829 = vpop.f32.mrb[0].mxu0
  %v1830 = vadd.f32 %v302, %v1829
  %v1831 = vpop.f32.mrb[0].mxu0
  %v1832 = vadd.f32 %v306, %v1831
  %v1833 = vpop.f32.mrb[0].mxu0
  %v1834 = vadd.f32 %v302, %v1833
  %v1835 = vpop.f32.mrb[0].mxu0
  %v1836 = vadd.f32 %v306, %v1835
  %1837 = vdwg.mxu0
  %1838 = vmatprep.subr.bf16.mxu0 %v1244
  %1839 = vmatpush1.bf16.msra.mxu0 %v1243
  %1840 = vmatprep.subr.bf16.mxu0 %v1252
  %1841 = vmatpush1.bf16.msra.mxu0 %v1251
  %1842 = vmatprep.subr.bf16.mxu0 %v1260
  %1843 = vmatpush1.bf16.msra.mxu0 %v1259
  %1844 = vmatprep.subr.bf16.mxu0 %v1268
  %1845 = vmatpush1.bf16.msra.mxu0 %v1267
  %1846 = vmatprep.subr.bf16.mxu0 %v1276
  %1847 = vmatpush1.bf16.msra.mxu0 %v1275
  %1848 = vmatprep.subr.bf16.mxu0 %v1284
  %1849 = vmatpush1.bf16.msra.mxu0 %v1283
  %1850 = vmatprep.subr.bf16.mxu0 %v1292
  %1851 = vmatpush1.bf16.msra.mxu0 %v1291
  %1852 = vmatprep.subr.bf16.mxu0 %v1300
  %1853 = vmatpush1.bf16.msra.mxu0 %v1299
  %1854 = vmatprep.subr.bf16.mxu0 %v1308
  %1855 = vmatpush1.bf16.msra.mxu0 %v1307
  %1856 = vmatprep.subr.bf16.mxu0 %v1316
  %1857 = vmatpush1.bf16.msra.mxu0 %v1315
  %1858 = vmatprep.subr.bf16.mxu0 %v1324
  %1859 = vmatpush1.bf16.msra.mxu0 %v1323
  %1860 = vmatprep.subr.bf16.mxu0 %v1332
  %1861 = vmatpush1.bf16.msra.mxu0 %v1331
  %1862 = vmatprep.subr.bf16.mxu0 %v1340
  %1863 = vmatpush1.bf16.msra.mxu0 %v1339
  %1864 = vmatprep.subr.bf16.mxu0 %v1348
  %1865 = vmatpush1.bf16.msra.mxu0 %v1347
  %1866 = vmatprep.subr.bf16.mxu0 %v1356
  %1867 = vmatpush1.bf16.msra.mxu0 %v1355
  %1868 = vmatprep.subr.bf16.mxu0 %v1364
  %1869 = vmatpush1.bf16.msra.mxu0 %v1363
  %1870 = vmatprep.mubr.bf16.mxu0 %v338
  %1871 = vmatmul.mubr.bf16.gmra.mrb[0].mxu0 %v337
  %v1872 = vpop.f32.mrb[0].mxu0
  %v1873 = vadd.f32 %v1830, %v1872
  %v1874 = vpop.f32.mrb[0].mxu0
  %v1875 = vadd.f32 %v1832, %v1874
  %v1876 = vpop.f32.mrb[0].mxu0
  %v1877 = vadd.f32 %v1834, %v1876
  %v1878 = vpop.f32.mrb[0].mxu0
  %v1879 = vadd.f32 %v1836, %v1878
  %1880 = vdwg.mxu0
  %1881 = vmatprep.subr.bf16.mxu0 %v1118
  %1882 = vmatpush1.bf16.msra.mxu0 %v1117
  %1883 = vmatprep.subr.bf16.mxu0 %v1126
  %1884 = vmatpush1.bf16.msra.mxu0 %v1125
  %1885 = vmatprep.subr.bf16.mxu0 %v1134
  %1886 = vmatpush1.bf16.msra.mxu0 %v1133
  %1887 = vmatprep.subr.bf16.mxu0 %v1142
  %1888 = vmatpush1.bf16.msra.mxu0 %v1141
  %1889 = vmatprep.subr.bf16.mxu0 %v1150
  %1890 = vmatpush1.bf16.msra.mxu0 %v1149
  %1891 = vmatprep.subr.bf16.mxu0 %v1158
  %1892 = vmatpush1.bf16.msra.mxu0 %v1157
  %1893 = vmatprep.subr.bf16.mxu0 %v1166
  %1894 = vmatpush1.bf16.msra.mxu0 %v1165
  %1895 = vmatprep.subr.bf16.mxu0 %v1174
  %1896 = vmatpush1.bf16.msra.mxu0 %v1173
  %1897 = vmatprep.subr.bf16.mxu0 %v1182
  %1898 = vmatpush1.bf16.msra.mxu0 %v1181
  %1899 = vmatprep.subr.bf16.mxu0 %v1190
  %1900 = vmatpush1.bf16.msra.mxu0 %v1189
  %1901 = vmatprep.subr.bf16.mxu0 %v1198
  %1902 = vmatpush1.bf16.msra.mxu0 %v1197
  %1903 = vmatprep.subr.bf16.mxu0 %v1206
  %1904 = vmatpush1.bf16.msra.mxu0 %v1205
  %1905 = vmatprep.subr.bf16.mxu0 %v1214
  %1906 = vmatpush1.bf16.msra.mxu0 %v1213
  %1907 = vmatprep.subr.bf16.mxu0 %v1222
  %1908 = vmatpush1.bf16.msra.mxu0 %v1221
  %1909 = vmatprep.subr.bf16.mxu0 %v1230
  %1910 = vmatpush1.bf16.msra.mxu0 %v1229
  %1911 = vmatprep.subr.bf16.mxu0 %v1238
  %1912 = vmatpush1.bf16.msra.mxu0 %v1237
  %1913 = vmatprep.mubr.bf16.mxu0 %v336
  %1914 = vmatmul.mubr.bf16.gmra.mrb[0].mxu0 %v335
  %v1915 = vpop.f32.mrb[0].mxu0
  %v1916 = vadd.f32 %v310, %v1915
  %v1917 = vpop.f32.mrb[0].mxu0
  %v1918 = vadd.f32 %v314, %v1917
  %v1919 = vpop.f32.mrb[0].mxu0
  %v1920 = vadd.f32 %v310, %v1919
  %v1921 = vpop.f32.mrb[0].mxu0
  %v1922 = vadd.f32 %v314, %v1921
  %1923 = vdwg.mxu0
  %1924 = vmatprep.subr.bf16.mxu0 %v1246
  %1925 = vmatpush1.bf16.msra.mxu0 %v1245
  %1926 = vmatprep.subr.bf16.mxu0 %v1254
  %1927 = vmatpush1.bf16.msra.mxu0 %v1253
  %1928 = vmatprep.subr.bf16.mxu0 %v1262
  %1929 = vmatpush1.bf16.msra.mxu0 %v1261
  %1930 = vmatprep.subr.bf16.mxu0 %v1270
  %1931 = vmatpush1.bf16.msra.mxu0 %v1269
  %1932 = vmatprep.subr.bf16.mxu0 %v1278
  %1933 = vmatpush1.bf16.msra.mxu0 %v1277
  %1934 = vmatprep.subr.bf16.mxu0 %v1286
  %1935 = vmatpush1.bf16.msra.mxu0 %v1285
  %1936 = vmatprep.subr.bf16.mxu0 %v1294
  %1937 = vmatpush1.bf16.msra.mxu0 %v1293
  %1938 = vmatprep.subr.bf16.mxu0 %v1302
  %1939 = vmatpush1.bf16.msra.mxu0 %v1301
  %1940 = vmatprep.subr.bf16.mxu0 %v1310
  %1941 = vmatpush1.bf16.msra.mxu0 %v1309
  %1942 = vmatprep.subr.bf16.mxu0 %v1318
  %1943 = vmatpush1.bf16.msra.mxu0 %v1317
  %1944 = vmatprep.subr.bf16.mxu0 %v1326
  %1945 = vmatpush1.bf16.msra.mxu0 %v1325
  %1946 = vmatprep.subr.bf16.mxu0 %v1334
  %1947 = vmatpush1.bf16.msra.mxu0 %v1333
  %1948 = vmatprep.subr.bf16.mxu0 %v1342
  %1949 = vmatpush1.bf16.msra.mxu0 %v1341
  %1950 = vmatprep.subr.bf16.mxu0 %v1350
  %1951 = vmatpush1.bf16.msra.mxu0 %v1349
  %1952 = vmatprep.subr.bf16.mxu0 %v1358
  %1953 = vmatpush1.bf16.msra.mxu0 %v1357
  %1954 = vmatprep.subr.bf16.mxu0 %v1366
  %1955 = vmatpush1.bf16.msra.mxu0 %v1365
  %1956 = vmatprep.mubr.bf16.mxu0 %v338
  %1957 = vmatmul.mubr.bf16.gmra.mrb[0].mxu0 %v337
  %v1958 = vpop.f32.mrb[0].mxu0
  %v1959 = vadd.f32 %v1916, %v1958
  %v1960 = vpop.f32.mrb[0].mxu0
  %v1961 = vadd.f32 %v1918, %v1960
  %v1962 = vpop.f32.mrb[0].mxu0
  %v1963 = vadd.f32 %v1920, %v1962
  %v1964 = vpop.f32.mrb[0].mxu0
  %v1965 = vadd.f32 %v1922, %v1964
  %1966 = vdwg.mxu0
  %vm1967 = vcmp.ge.f32.partialorder %v1701, 0.0
  %vm1968 = vcmp.ge.f32.partialorder %v1703, 0.0
  %vm1969 = vcmp.ge.f32.partialorder %v1787, 0.0
  %vm1970 = vcmp.ge.f32.partialorder %v1789, 0.0
  %vm1971 = vcmp.ge.f32.partialorder %v1873, 0.0
  %vm1972 = vcmp.ge.f32.partialorder %v1875, 0.0
  %vm1973 = vcmp.ge.f32.partialorder %v1959, 0.0
  %vm1974 = vcmp.ge.f32.partialorder %v1961, 0.0
  %vm1975 = vcmp.ge.f32.partialorder %v1705, 0.0
  %vm1976 = vcmp.ge.f32.partialorder %v1707, 0.0
  %vm1977 = vcmp.ge.f32.partialorder %v1791, 0.0
  %vm1978 = vcmp.ge.f32.partialorder %v1793, 0.0
  %vm1979 = vcmp.ge.f32.partialorder %v1877, 0.0
  %vm1980 = vcmp.ge.f32.partialorder %v1879, 0.0
  %vm1981 = vcmp.ge.f32.partialorder %v1963, 0.0
  %vm1982 = vcmp.ge.f32.partialorder %v1965, 0.0
  %v1983 = vmul.f32 %v1701, 0.01
  %v1984 = vmul.f32 %v1703, 0.01
  %v1985 = vmul.f32 %v1787, 0.01
  %v1986 = vmul.f32 %v1789, 0.01
  %v1987 = vmul.f32 %v1873, 0.01
  %v1988 = vmul.f32 %v1875, 0.01
  %v1989 = vmul.f32 %v1959, 0.01
  %v1990 = vmul.f32 %v1961, 0.01
  %v1991 = vmul.f32 %v1705, 0.01
  %v1992 = vmul.f32 %v1707, 0.01
  %v1993 = vmul.f32 %v1791, 0.01
  %v1994 = vmul.f32 %v1793, 0.01
  %v1995 = vmul.f32 %v1877, 0.01
  %v1996 = vmul.f32 %v1879, 0.01
  %v1997 = vmul.f32 %v1963, 0.01
  %v1998 = vmul.f32 %v1965, 0.01
  %v1999 = vsel %vm1967, %v1701, %v1983
  %v2000 = vsel %vm1968, %v1703, %v1984
  %v2001 = vsel %vm1969, %v1787, %v1985
  %v2002 = vsel %vm1970, %v1789, %v1986
  %v2003 = vsel %vm1971, %v1873, %v1987
  %v2004 = vsel %vm1972, %v1875, %v1988
  %v2005 = vsel %vm1973, %v1959, %v1989
  %v2006 = vsel %vm1974, %v1961, %v1990
  %v2007 = vsel %vm1975, %v1705, %v1991
  %v2008 = vsel %vm1976, %v1707, %v1992
  %v2009 = vsel %vm1977, %v1791, %v1993
  %v2010 = vsel %vm1978, %v1793, %v1994
  %v2011 = vsel %vm1979, %v1877, %v1995
  %v2012 = vsel %vm1980, %v1879, %v1996
  %v2013 = vsel %vm1981, %v1963, %v1997
  %v2014 = vsel %vm1982, %v1965, %v1998
  %v2015 = vpack.c.bf16 %v2007, %v1999
  %v2016 = vpack.c.bf16 %v2008, %v2000
  %v2017 = vpack.c.bf16 %v2009, %v2001
  %v2018 = vpack.c.bf16 %v2010, %v2002
  %v2019 = vpack.c.bf16 %v2011, %v2003
  %v2020 = vpack.c.bf16 %v2012, %v2004
  %v2021 = vpack.c.bf16 %v2013, %v2005
  %v2022 = vpack.c.bf16 %v2014, %v2006
  %v2023 = vld [vmem:[%s3] sm:$0xf]
  %v2024 = vld [vmem:[%s3 + $0x4] sm:$0xf]
  %v2025 = vld [vmem:[%s3 + $0x8] sm:$0xf]
  %v2026 = vld [vmem:[%s3 + $0xc] sm:$0xf]
  %v2027 = vld [vmem:[%s3 + $0x10] sm:$0xf]
  %v2028 = vld [vmem:[%s3 + $0x14] sm:$0xf]
  %v2029 = vld [vmem:[%s3 + $0x18] sm:$0xf]
  %v2030 = vld [vmem:[%s3 + $0x1c] sm:$0xf]
  %v2031 = vld [vmem:[%s3 + $0x20] sm:$0xf]
  %v2032 = vld [vmem:[%s3 + $0x24] sm:$0xf]
  %v2033 = vld [vmem:[%s3 + $0x28] sm:$0xf]
  %v2034 = vld [vmem:[%s3 + $0x2c] sm:$0xf]
  %v2035 = vld [vmem:[%s3 + $0x30] sm:$0xf]
  %v2036 = vld [vmem:[%s3 + $0x34] sm:$0xf]
  %v2037 = vld [vmem:[%s3 + $0x38] sm:$0xf]
  %v2038 = vld [vmem:[%s3 + $0x3c] sm:$0xf]
  %v2039 = vld [vmem:[%s3 + $0x40] sm:$0xf]
  %v2040 = vld [vmem:[%s3 + $0x44] sm:$0xf]
  %v2041 = vld [vmem:[%s3 + $0x48] sm:$0xf]
  %v2042 = vld [vmem:[%s3 + $0x4c] sm:$0xf]
  %v2043 = vld [vmem:[%s3 + $0x50] sm:$0xf]
  %v2044 = vld [vmem:[%s3 + $0x54] sm:$0xf]
  %v2045 = vld [vmem:[%s3 + $0x58] sm:$0xf]
  %v2046 = vld [vmem:[%s3 + $0x5c] sm:$0xf]
  %v2047 = vld [vmem:[%s3 + $0x60] sm:$0xf]
  %v2048 = vld [vmem:[%s3 + $0x64] sm:$0xf]
  %v2049 = vld [vmem:[%s3 + $0x68] sm:$0xf]
  %v2050 = vld [vmem:[%s3 + $0x6c] sm:$0xf]
  %v2051 = vld [vmem:[%s3 + $0x70] sm:$0xf]
  %v2052 = vld [vmem:[%s3 + $0x74] sm:$0xf]
  %v2053 = vld [vmem:[%s3 + $0x78] sm:$0xf]
  %v2054 = vld [vmem:[%s3 + $0x7c] sm:$0xf]
  %v2055 = vld [vmem:[%s3 + $0x80] sm:$0xf]
  %v2056 = vld [vmem:[%s3 + $0x84] sm:$0xf]
  %v2057 = vld [vmem:[%s3 + $0x88] sm:$0xf]
  %v2058 = vld [vmem:[%s3 + $0x8c] sm:$0xf]
  %v2059 = vld [vmem:[%s3 + $0x90] sm:$0xf]
  %v2060 = vld [vmem:[%s3 + $0x94] sm:$0xf]
  %v2061 = vld [vmem:[%s3 + $0x98] sm:$0xf]
  %v2062 = vld [vmem:[%s3 + $0x9c] sm:$0xf]
  %v2063 = vld [vmem:[%s3 + $0xa0] sm:$0xf]
  %v2064 = vld [vmem:[%s3 + $0xa4] sm:$0xf]
  %v2065 = vld [vmem:[%s3 + $0xa8] sm:$0xf]
  %v2066 = vld [vmem:[%s3 + $0xac] sm:$0xf]
  %v2067 = vld [vmem:[%s3 + $0xb0] sm:$0xf]
  %v2068 = vld [vmem:[%s3 + $0xb4] sm:$0xf]
  %v2069 = vld [vmem:[%s3 + $0xb8] sm:$0xf]
  %v2070 = vld [vmem:[%s3 + $0xbc] sm:$0xf]
  %v2071 = vld [vmem:[%s3 + $0xc0] sm:$0xf]
  %v2072 = vld [vmem:[%s3 + $0xc4] sm:$0xf]
  %v2073 = vld [vmem:[%s3 + $0xc8] sm:$0xf]
  %v2074 = vld [vmem:[%s3 + $0xcc] sm:$0xf]
  %v2075 = vld [vmem:[%s3 + $0xd0] sm:$0xf]
  %v2076 = vld [vmem:[%s3 + $0xd4] sm:$0xf]
  %v2077 = vld [vmem:[%s3 + $0xd8] sm:$0xf]
  %v2078 = vld [vmem:[%s3 + $0xdc] sm:$0xf]
  %v2079 = vld [vmem:[%s3 + $0xe0] sm:$0xf]
  %v2080 = vld [vmem:[%s3 + $0xe4] sm:$0xf]
  %v2081 = vld [vmem:[%s3 + $0xe8] sm:$0xf]
  %v2082 = vld [vmem:[%s3 + $0xec] sm:$0xf]
  %v2083 = vld [vmem:[%s3 + $0xf0] sm:$0xf]
  %v2084 = vld [vmem:[%s3 + $0xf4] sm:$0xf]
  %v2085 = vld [vmem:[%s3 + $0xf8] sm:$0xf]
  %v2086 = vld [vmem:[%s3 + $0xfc] sm:$0xf]
  %v2087 = vld [vmem:[%s3 + $0x100] sm:$0xf]
  %v2088 = vld [vmem:[%s3 + $0x104] sm:$0xf]
  %v2089 = vld [vmem:[%s3 + $0x108] sm:$0xf]
  %v2090 = vld [vmem:[%s3 + $0x10c] sm:$0xf]
  %v2091 = vld [vmem:[%s3 + $0x110] sm:$0xf]
  %v2092 = vld [vmem:[%s3 + $0x114] sm:$0xf]
  %v2093 = vld [vmem:[%s3 + $0x118] sm:$0xf]
  %v2094 = vld [vmem:[%s3 + $0x11c] sm:$0xf]
  %v2095 = vld [vmem:[%s3 + $0x120] sm:$0xf]
  %v2096 = vld [vmem:[%s3 + $0x124] sm:$0xf]
  %v2097 = vld [vmem:[%s3 + $0x128] sm:$0xf]
  %v2098 = vld [vmem:[%s3 + $0x12c] sm:$0xf]
  %v2099 = vld [vmem:[%s3 + $0x130] sm:$0xf]
  %v2100 = vld [vmem:[%s3 + $0x134] sm:$0xf]
  %v2101 = vld [vmem:[%s3 + $0x138] sm:$0xf]
  %v2102 = vld [vmem:[%s3 + $0x13c] sm:$0xf]
  %v2103 = vld [vmem:[%s3 + $0x140] sm:$0xf]
  %v2104 = vld [vmem:[%s3 + $0x144] sm:$0xf]
  %v2105 = vld [vmem:[%s3 + $0x148] sm:$0xf]
  %v2106 = vld [vmem:[%s3 + $0x14c] sm:$0xf]
  %v2107 = vld [vmem:[%s3 + $0x150] sm:$0xf]
  %v2108 = vld [vmem:[%s3 + $0x154] sm:$0xf]
  %v2109 = vld [vmem:[%s3 + $0x158] sm:$0xf]
  %v2110 = vld [vmem:[%s3 + $0x15c] sm:$0xf]
  %v2111 = vld [vmem:[%s3 + $0x160] sm:$0xf]
  %v2112 = vld [vmem:[%s3 + $0x164] sm:$0xf]
  %v2113 = vld [vmem:[%s3 + $0x168] sm:$0xf]
  %v2114 = vld [vmem:[%s3 + $0x16c] sm:$0xf]
  %v2115 = vld [vmem:[%s3 + $0x170] sm:$0xf]
  %v2116 = vld [vmem:[%s3 + $0x174] sm:$0xf]
  %v2117 = vld [vmem:[%s3 + $0x178] sm:$0xf]
  %v2118 = vld [vmem:[%s3 + $0x17c] sm:$0xf]
  %v2119 = vld [vmem:[%s3 + $0x180] sm:$0xf]
  %v2120 = vld [vmem:[%s3 + $0x184] sm:$0xf]
  %v2121 = vld [vmem:[%s3 + $0x188] sm:$0xf]
  %v2122 = vld [vmem:[%s3 + $0x18c] sm:$0xf]
  %v2123 = vld [vmem:[%s3 + $0x190] sm:$0xf]
  %v2124 = vld [vmem:[%s3 + $0x194] sm:$0xf]
  %v2125 = vld [vmem:[%s3 + $0x198] sm:$0xf]
  %v2126 = vld [vmem:[%s3 + $0x19c] sm:$0xf]
  %v2127 = vld [vmem:[%s3 + $0x1a0] sm:$0xf]
  %v2128 = vld [vmem:[%s3 + $0x1a4] sm:$0xf]
  %v2129 = vld [vmem:[%s3 + $0x1a8] sm:$0xf]
  %v2130 = vld [vmem:[%s3 + $0x1ac] sm:$0xf]
  %v2131 = vld [vmem:[%s3 + $0x1b0] sm:$0xf]
  %v2132 = vld [vmem:[%s3 + $0x1b4] sm:$0xf]
  %v2133 = vld [vmem:[%s3 + $0x1b8] sm:$0xf]
  %v2134 = vld [vmem:[%s3 + $0x1bc] sm:$0xf]
  %v2135 = vld [vmem:[%s3 + $0x1c0] sm:$0xf]
  %v2136 = vld [vmem:[%s3 + $0x1c4] sm:$0xf]
  %v2137 = vld [vmem:[%s3 + $0x1c8] sm:$0xf]
  %v2138 = vld [vmem:[%s3 + $0x1cc] sm:$0xf]
  %v2139 = vld [vmem:[%s3 + $0x1d0] sm:$0xf]
  %v2140 = vld [vmem:[%s3 + $0x1d4] sm:$0xf]
  %v2141 = vld [vmem:[%s3 + $0x1d8] sm:$0xf]
  %v2142 = vld [vmem:[%s3 + $0x1dc] sm:$0xf]
  %v2143 = vld [vmem:[%s3 + $0x1e0] sm:$0xf]
  %v2144 = vld [vmem:[%s3 + $0x1e4] sm:$0xf]
  %v2145 = vld [vmem:[%s3 + $0x1e8] sm:$0xf]
  %v2146 = vld [vmem:[%s3 + $0x1ec] sm:$0xf]
  %v2147 = vld [vmem:[%s3 + $0x1f0] sm:$0xf]
  %v2148 = vld [vmem:[%s3 + $0x1f4] sm:$0xf]
  %v2149 = vld [vmem:[%s3 + $0x1f8] sm:$0xf]
  %v2150 = vld [vmem:[%s3 + $0x1fc] sm:$0xf]
  %v2151 = vld [vmem:[%s4] sm:$0x1]
  %v2153 = vlaneseq
  %v2154 = vshrl.u32 %v2153, 7
  %v2155 = vsub.s32 0, %v2154
  %v2156 = vrot.slane %v2151, %v2155
  %v2286 = vunpack.c.l.b16 %v2023
  %v2287 = vunpack.c.l.b16 %v2024
  %v2288 = vunpack.c.l.b16 %v2025
  %v2289 = vunpack.c.l.b16 %v2026
  %v2290 = vunpack.c.l.b16 %v2027
  %v2291 = vunpack.c.l.b16 %v2028
  %v2292 = vunpack.c.l.b16 %v2029
  %v2293 = vunpack.c.l.b16 %v2030
  %v2294 = vunpack.c.l.b16 %v2031
  %v2295 = vunpack.c.l.b16 %v2032
  %v2296 = vunpack.c.l.b16 %v2033
  %v2297 = vunpack.c.l.b16 %v2034
  %v2298 = vunpack.c.l.b16 %v2035
  %v2299 = vunpack.c.l.b16 %v2036
  %v2300 = vunpack.c.l.b16 %v2037
  %v2301 = vunpack.c.l.b16 %v2038
  %v2302 = vunpack.c.l.b16 %v2039
  %v2303 = vunpack.c.l.b16 %v2040
  %v2304 = vunpack.c.l.b16 %v2041
  %v2305 = vunpack.c.l.b16 %v2042
  %v2306 = vunpack.c.l.b16 %v2043
  %v2307 = vunpack.c.l.b16 %v2044
  %v2308 = vunpack.c.l.b16 %v2045
  %v2309 = vunpack.c.l.b16 %v2046
  %v2310 = vunpack.c.l.b16 %v2047
  %v2311 = vunpack.c.l.b16 %v2048
  %v2312 = vunpack.c.l.b16 %v2049
  %v2313 = vunpack.c.l.b16 %v2050
  %v2314 = vunpack.c.l.b16 %v2051
  %v2315 = vunpack.c.l.b16 %v2052
  %v2316 = vunpack.c.l.b16 %v2053
  %v2317 = vunpack.c.l.b16 %v2054
  %v2318 = vunpack.c.l.b16 %v2055
  %v2319 = vunpack.c.l.b16 %v2056
  %v2320 = vunpack.c.l.b16 %v2057
  %v2321 = vunpack.c.l.b16 %v2058
  %v2322 = vunpack.c.l.b16 %v2059
  %v2323 = vunpack.c.l.b16 %v2060
  %v2324 = vunpack.c.l.b16 %v2061
  %v2325 = vunpack.c.l.b16 %v2062
  %v2326 = vunpack.c.l.b16 %v2063
  %v2327 = vunpack.c.l.b16 %v2064
  %v2328 = vunpack.c.l.b16 %v2065
  %v2329 = vunpack.c.l.b16 %v2066
  %v2330 = vunpack.c.l.b16 %v2067
  %v2331 = vunpack.c.l.b16 %v2068
  %v2332 = vunpack.c.l.b16 %v2069
  %v2333 = vunpack.c.l.b16 %v2070
  %v2334 = vunpack.c.l.b16 %v2071
  %v2335 = vunpack.c.l.b16 %v2072
  %v2336 = vunpack.c.l.b16 %v2073
  %v2337 = vunpack.c.l.b16 %v2074
  %v2338 = vunpack.c.l.b16 %v2075
  %v2339 = vunpack.c.l.b16 %v2076
  %v2340 = vunpack.c.l.b16 %v2077
  %v2341 = vunpack.c.l.b16 %v2078
  %v2342 = vunpack.c.l.b16 %v2079
  %v2343 = vunpack.c.l.b16 %v2080
  %v2344 = vunpack.c.l.b16 %v2081
  %v2345 = vunpack.c.l.b16 %v2082
  %v2346 = vunpack.c.l.b16 %v2083
  %v2347 = vunpack.c.l.b16 %v2084
  %v2348 = vunpack.c.l.b16 %v2085
  %v2349 = vunpack.c.l.b16 %v2086
  %v2350 = vunpack.c.l.b16 %v2087
  %v2351 = vunpack.c.l.b16 %v2088
  %v2352 = vunpack.c.l.b16 %v2089
  %v2353 = vunpack.c.l.b16 %v2090
  %v2354 = vunpack.c.l.b16 %v2091
  %v2355 = vunpack.c.l.b16 %v2092
  %v2356 = vunpack.c.l.b16 %v2093
  %v2357 = vunpack.c.l.b16 %v2094
  %v2358 = vunpack.c.l.b16 %v2095
  %v2359 = vunpack.c.l.b16 %v2096
  %v2360 = vunpack.c.l.b16 %v2097
  %v2361 = vunpack.c.l.b16 %v2098
  %v2362 = vunpack.c.l.b16 %v2099
  %v2363 = vunpack.c.l.b16 %v2100
  %v2364 = vunpack.c.l.b16 %v2101
  %v2365 = vunpack.c.l.b16 %v2102
  %v2366 = vunpack.c.l.b16 %v2103
  %v2367 = vunpack.c.l.b16 %v2104
  %v2368 = vunpack.c.l.b16 %v2105
  %v2369 = vunpack.c.l.b16 %v2106
  %v2370 = vunpack.c.l.b16 %v2107
  %v2371 = vunpack.c.l.b16 %v2108
  %v2372 = vunpack.c.l.b16 %v2109
  %v2373 = vunpack.c.l.b16 %v2110
  %v2374 = vunpack.c.l.b16 %v2111
  %v2375 = vunpack.c.l.b16 %v2112
  %v2376 = vunpack.c.l.b16 %v2113
  %v2377 = vunpack.c.l.b16 %v2114
  %v2378 = vunpack.c.l.b16 %v2115
  %v2379 = vunpack.c.l.b16 %v2116
  %v2380 = vunpack.c.l.b16 %v2117
  %v2381 = vunpack.c.l.b16 %v2118
  %v2382 = vunpack.c.l.b16 %v2119
  %v2383 = vunpack.c.l.b16 %v2120
  %v2384 = vunpack.c.l.b16 %v2121
  %v2385 = vunpack.c.l.b16 %v2122
  %v2386 = vunpack.c.l.b16 %v2123
  %v2387 = vunpack.c.l.b16 %v2124
  %v2388 = vunpack.c.l.b16 %v2125
  %v2389 = vunpack.c.l.b16 %v2126
  %v2390 = vunpack.c.l.b16 %v2127
  %v2391 = vunpack.c.l.b16 %v2128
  %v2392 = vunpack.c.l.b16 %v2129
  %v2393 = vunpack.c.l.b16 %v2130
  %v2394 = vunpack.c.l.b16 %v2131
  %v2395 = vunpack.c.l.b16 %v2132
  %v2396 = vunpack.c.l.b16 %v2133
  %v2397 = vunpack.c.l.b16 %v2134
  %v2398 = vunpack.c.l.b16 %v2135
  %v2399 = vunpack.c.l.b16 %v2136
  %v2400 = vunpack.c.l.b16 %v2137
  %v2401 = vunpack.c.l.b16 %v2138
  %v2402 = vunpack.c.l.b16 %v2139
  %v2403 = vunpack.c.l.b16 %v2140
  %v2404 = vunpack.c.l.b16 %v2141
  %v2405 = vunpack.c.l.b16 %v2142
  %v2406 = vunpack.c.l.b16 %v2143
  %v2407 = vunpack.c.l.b16 %v2144
  %v2408 = vunpack.c.l.b16 %v2145
  %v2409 = vunpack.c.l.b16 %v2146
  %v2410 = vunpack.c.l.b16 %v2147
  %v2411 = vunpack.c.l.b16 %v2148
  %v2412 = vunpack.c.l.b16 %v2149
  %v2413 = vunpack.c.l.b16 %v2150
  %v2414 = vpack.c.b16 %v2287, %v2286
  %v2415 = vpack.c.b16 %v2289, %v2288
  %v2416 = vpack.c.b16 %v2291, %v2290
  %v2417 = vpack.c.b16 %v2293, %v2292
  %v2418 = vpack.c.b16 %v2295, %v2294
  %v2419 = vpack.c.b16 %v2297, %v2296
  %v2420 = vpack.c.b16 %v2299, %v2298
  %v2421 = vpack.c.b16 %v2301, %v2300
  %v2422 = vpack.c.b16 %v2303, %v2302
  %v2423 = vpack.c.b16 %v2305, %v2304
  %v2424 = vpack.c.b16 %v2307, %v2306
  %v2425 = vpack.c.b16 %v2309, %v2308
  %v2426 = vpack.c.b16 %v2311, %v2310
  %v2427 = vpack.c.b16 %v2313, %v2312
  %v2428 = vpack.c.b16 %v2315, %v2314
  %v2429 = vpack.c.b16 %v2317, %v2316
  %v2430 = vpack.c.b16 %v2319, %v2318
  %v2431 = vpack.c.b16 %v2321, %v2320
  %v2432 = vpack.c.b16 %v2323, %v2322
  %v2433 = vpack.c.b16 %v2325, %v2324
  %v2434 = vpack.c.b16 %v2327, %v2326
  %v2435 = vpack.c.b16 %v2329, %v2328
  %v2436 = vpack.c.b16 %v2331, %v2330
  %v2437 = vpack.c.b16 %v2333, %v2332
  %v2438 = vpack.c.b16 %v2335, %v2334
  %v2439 = vpack.c.b16 %v2337, %v2336
  %v2440 = vpack.c.b16 %v2339, %v2338
  %v2441 = vpack.c.b16 %v2341, %v2340
  %v2442 = vpack.c.b16 %v2343, %v2342
  %v2443 = vpack.c.b16 %v2345, %v2344
  %v2444 = vpack.c.b16 %v2347, %v2346
  %v2445 = vpack.c.b16 %v2349, %v2348
  %v2446 = vpack.c.b16 %v2351, %v2350
  %v2447 = vpack.c.b16 %v2353, %v2352
  %v2448 = vpack.c.b16 %v2355, %v2354
  %v2449 = vpack.c.b16 %v2357, %v2356
  %v2450 = vpack.c.b16 %v2359, %v2358
  %v2451 = vpack.c.b16 %v2361, %v2360
  %v2452 = vpack.c.b16 %v2363, %v2362
  %v2453 = vpack.c.b16 %v2365, %v2364
  %v2454 = vpack.c.b16 %v2367, %v2366
  %v2455 = vpack.c.b16 %v2369, %v2368
  %v2456 = vpack.c.b16 %v2371, %v2370
  %v2457 = vpack.c.b16 %v2373, %v2372
  %v2458 = vpack.c.b16 %v2375, %v2374
  %v2459 = vpack.c.b16 %v2377, %v2376
  %v2460 = vpack.c.b16 %v2379, %v2378
  %v2461 = vpack.c.b16 %v2381, %v2380
  %v2462 = vpack.c.b16 %v2383, %v2382
  %v2463 = vpack.c.b16 %v2385, %v2384
  %v2464 = vpack.c.b16 %v2387, %v2386
  %v2465 = vpack.c.b16 %v2389, %v2388
  %v2466 = vpack.c.b16 %v2391, %v2390
  %v2467 = vpack.c.b16 %v2393, %v2392
  %v2468 = vpack.c.b16 %v2395, %v2394
  %v2469 = vpack.c.b16 %v2397, %v2396
  %v2470 = vpack.c.b16 %v2399, %v2398
  %v2471 = vpack.c.b16 %v2401, %v2400
  %v2472 = vpack.c.b16 %v2403, %v2402
  %v2473 = vpack.c.b16 %v2405, %v2404
  %v2474 = vpack.c.b16 %v2407, %v2406
  %v2475 = vpack.c.b16 %v2409, %v2408
  %v2476 = vpack.c.b16 %v2411, %v2410
  %v2477 = vpack.c.b16 %v2413, %v2412
  %2542 = vmatprep.subr.bf16.mxu0 0
  %2543 = vmatpush1.bf16.msra.mxu0 %v2414
  %2544 = vmatprep.subr.bf16.mxu0 0
  %2545 = vmatpush1.bf16.msra.mxu0 %v2415
  %2546 = vmatprep.subr.bf16.mxu0 0
  %2547 = vmatpush1.bf16.msra.mxu0 %v2416
  %2548 = vmatprep.subr.bf16.mxu0 0
  %2549 = vmatpush1.bf16.msra.mxu0 %v2417
  %2550 = vmatprep.subr.bf16.mxu0 0
  %2551 = vmatpush1.bf16.msra.mxu0 %v2418
  %2552 = vmatprep.subr.bf16.mxu0 0
  %2553 = vmatpush1.bf16.msra.mxu0 %v2419
  %2554 = vmatprep.subr.bf16.mxu0 0
  %2555 = vmatpush1.bf16.msra.mxu0 %v2420
  %2556 = vmatprep.subr.bf16.mxu0 0
  %2557 = vmatpush1.bf16.msra.mxu0 %v2421
  %2558 = vmatprep.subr.bf16.mxu0 0
  %2559 = vmatpush1.bf16.msra.mxu0 %v2422
  %2560 = vmatprep.subr.bf16.mxu0 0
  %2561 = vmatpush1.bf16.msra.mxu0 %v2423
  %2562 = vmatprep.subr.bf16.mxu0 0
  %2563 = vmatpush1.bf16.msra.mxu0 %v2424
  %2564 = vmatprep.subr.bf16.mxu0 0
  %2565 = vmatpush1.bf16.msra.mxu0 %v2425
  %2566 = vmatprep.subr.bf16.mxu0 0
  %2567 = vmatpush1.bf16.msra.mxu0 %v2426
  %2568 = vmatprep.subr.bf16.mxu0 0
  %2569 = vmatpush1.bf16.msra.mxu0 %v2427
  %2570 = vmatprep.subr.bf16.mxu0 0
  %2571 = vmatpush1.bf16.msra.mxu0 %v2428
  %2572 = vmatprep.subr.bf16.mxu0 0
  %2573 = vmatpush1.bf16.msra.mxu0 %v2429
  %2574 = vmatprep.mubr.bf16.mxu0 %v2016
  %2575 = vmatmul.mubr.bf16.gmra.mrb[0].mxu0 %v2015
  %v2576 = vpop.f32.mrb[0].mxu0
  %v2577 = vadd.f32 %v2156, %v2576
  %v2578 = vpop.f32.mrb[0].mxu0
  %v2579 = vpop.f32.mrb[0].mxu0
  %v2580 = vadd.f32 %v2156, %v2579
  %v2581 = vpop.f32.mrb[0].mxu0
  %2582 = vdwg.mxu0
  %2583 = vmatprep.subr.bf16.mxu0 0
  %2584 = vmatpush1.bf16.msra.mxu0 %v2430
  %2585 = vmatprep.subr.bf16.mxu0 0
  %2586 = vmatpush1.bf16.msra.mxu0 %v2431
  %2587 = vmatprep.subr.bf16.mxu0 0
  %2588 = vmatpush1.bf16.msra.mxu0 %v2432
  %2589 = vmatprep.subr.bf16.mxu0 0
  %2590 = vmatpush1.bf16.msra.mxu0 %v2433
  %2591 = vmatprep.subr.bf16.mxu0 0
  %2592 = vmatpush1.bf16.msra.mxu0 %v2434
  %2593 = vmatprep.subr.bf16.mxu0 0
  %2594 = vmatpush1.bf16.msra.mxu0 %v2435
  %2595 = vmatprep.subr.bf16.mxu0 0
  %2596 = vmatpush1.bf16.msra.mxu0 %v2436
  %2597 = vmatprep.subr.bf16.mxu0 0
  %2598 = vmatpush1.bf16.msra.mxu0 %v2437
  %2599 = vmatprep.subr.bf16.mxu0 0
  %2600 = vmatpush1.bf16.msra.mxu0 %v2438
  %2601 = vmatprep.subr.bf16.mxu0 0
  %2602 = vmatpush1.bf16.msra.mxu0 %v2439
  %2603 = vmatprep.subr.bf16.mxu0 0
  %2604 = vmatpush1.bf16.msra.mxu0 %v2440
  %2605 = vmatprep.subr.bf16.mxu0 0
  %2606 = vmatpush1.bf16.msra.mxu0 %v2441
  %2607 = vmatprep.subr.bf16.mxu0 0
  %2608 = vmatpush1.bf16.msra.mxu0 %v2442
  %2609 = vmatprep.subr.bf16.mxu0 0
  %2610 = vmatpush1.bf16.msra.mxu0 %v2443
  %2611 = vmatprep.subr.bf16.mxu0 0
  %2612 = vmatpush1.bf16.msra.mxu0 %v2444
  %2613 = vmatprep.subr.bf16.mxu0 0
  %2614 = vmatpush1.bf16.msra.mxu0 %v2445
  %2615 = vmatprep.mubr.bf16.mxu0 %v2018
  %2616 = vmatmul.mubr.bf16.gmra.mrb[0].mxu0 %v2017
  %v2617 = vpop.f32.mrb[0].mxu0
  %v2618 = vadd.f32 %v2577, %v2617
  %v2619 = vpop.f32.mrb[0].mxu0
  %v2620 = vpop.f32.mrb[0].mxu0
  %v2621 = vadd.f32 %v2580, %v2620
  %v2622 = vpop.f32.mrb[0].mxu0
  %2623 = vdwg.mxu0
  %2624 = vmatprep.subr.bf16.mxu0 0
  %2625 = vmatpush1.bf16.msra.mxu0 %v2446
  %2626 = vmatprep.subr.bf16.mxu0 0
  %2627 = vmatpush1.bf16.msra.mxu0 %v2447
  %2628 = vmatprep.subr.bf16.mxu0 0
  %2629 = vmatpush1.bf16.msra.mxu0 %v2448
  %2630 = vmatprep.subr.bf16.mxu0 0
  %2631 = vmatpush1.bf16.msra.mxu0 %v2449
  %2632 = vmatprep.subr.bf16.mxu0 0
  %2633 = vmatpush1.bf16.msra.mxu0 %v2450
  %2634 = vmatprep.subr.bf16.mxu0 0
  %2635 = vmatpush1.bf16.msra.mxu0 %v2451
  %2636 = vmatprep.subr.bf16.mxu0 0
  %2637 = vmatpush1.bf16.msra.mxu0 %v2452
  %2638 = vmatprep.subr.bf16.mxu0 0
  %2639 = vmatpush1.bf16.msra.mxu0 %v2453
  %2640 = vmatprep.subr.bf16.mxu0 0
  %2641 = vmatpush1.bf16.msra.mxu0 %v2454
  %2642 = vmatprep.subr.bf16.mxu0 0
  %2643 = vmatpush1.bf16.msra.mxu0 %v2455
  %2644 = vmatprep.subr.bf16.mxu0 0
  %2645 = vmatpush1.bf16.msra.mxu0 %v2456
  %2646 = vmatprep.subr.bf16.mxu0 0
  %2647 = vmatpush1.bf16.msra.mxu0 %v2457
  %2648 = vmatprep.subr.bf16.mxu0 0
  %2649 = vmatpush1.bf16.msra.mxu0 %v2458
  %2650 = vmatprep.subr.bf16.mxu0 0
  %2651 = vmatpush1.bf16.msra.mxu0 %v2459
  %2652 = vmatprep.subr.bf16.mxu0 0
  %2653 = vmatpush1.bf16.msra.mxu0 %v2460
  %2654 = vmatprep.subr.bf16.mxu0 0
  %2655 = vmatpush1.bf16.msra.mxu0 %v2461
  %2656 = vmatprep.mubr.bf16.mxu0 %v2020
  %2657 = vmatmul.mubr.bf16.gmra.mrb[0].mxu0 %v2019
  %v2658 = vpop.f32.mrb[0].mxu0
  %v2659 = vadd.f32 %v2618, %v2658
  %v2660 = vpop.f32.mrb[0].mxu0
  %v2661 = vpop.f32.mrb[0].mxu0
  %v2662 = vadd.f32 %v2621, %v2661
  %v2663 = vpop.f32.mrb[0].mxu0
  %2664 = vdwg.mxu0
  %2665 = vmatprep.subr.bf16.mxu0 0
  %2666 = vmatpush1.bf16.msra.mxu0 %v2462
  %2667 = vmatprep.subr.bf16.mxu0 0
  %2668 = vmatpush1.bf16.msra.mxu0 %v2463
  %2669 = vmatprep.subr.bf16.mxu0 0
  %2670 = vmatpush1.bf16.msra.mxu0 %v2464
  %2671 = vmatprep.subr.bf16.mxu0 0
  %2672 = vmatpush1.bf16.msra.mxu0 %v2465
  %2673 = vmatprep.subr.bf16.mxu0 0
  %2674 = vmatpush1.bf16.msra.mxu0 %v2466
  %2675 = vmatprep.subr.bf16.mxu0 0
  %2676 = vmatpush1.bf16.msra.mxu0 %v2467
  %2677 = vmatprep.subr.bf16.mxu0 0
  %2678 = vmatpush1.bf16.msra.mxu0 %v2468
  %2679 = vmatprep.subr.bf16.mxu0 0
  %2680 = vmatpush1.bf16.msra.mxu0 %v2469
  %2681 = vmatprep.subr.bf16.mxu0 0
  %2682 = vmatpush1.bf16.msra.mxu0 %v2470
  %2683 = vmatprep.subr.bf16.mxu0 0
  %2684 = vmatpush1.bf16.msra.mxu0 %v2471
  %2685 = vmatprep.subr.bf16.mxu0 0
  %2686 = vmatpush1.bf16.msra.mxu0 %v2472
  %2687 = vmatprep.subr.bf16.mxu0 0
  %2688 = vmatpush1.bf16.msra.mxu0 %v2473
  %2689 = vmatprep.subr.bf16.mxu0 0
  %2690 = vmatpush1.bf16.msra.mxu0 %v2474
  %2691 = vmatprep.subr.bf16.mxu0 0
  %2692 = vmatpush1.bf16.msra.mxu0 %v2475
  %2693 = vmatprep.subr.bf16.mxu0 0
  %2694 = vmatpush1.bf16.msra.mxu0 %v2476
  %2695 = vmatprep.subr.bf16.mxu0 0
  %2696 = vmatpush1.bf16.msra.mxu0 %v2477
  %2697 = vmatprep.mubr.bf16.mxu0 %v2022
  %2698 = vmatmul.mubr.bf16.gmra.mrb[0].mxu0 %v2021
  %v2699 = vpop.f32.mrb[0].mxu0
  %v2700 = vadd.f32 %v2659, %v2699
  %v2701 = vpop.f32.mrb[0].mxu0
  %v2702 = vpop.f32.mrb[0].mxu0
  %v2703 = vadd.f32 %v2662, %v2702
  %v2704 = vpop.f32.mrb[0].mxu0
  %2705 = vdwg.mxu0
  %2706 = vst [vmem:[%s5] sm:$0xff] %v2700
  %2707 = vst [vmem:[%s5 + $0x8] sm:$0xff] %v2703
  // Predicated region
  $region22: #{inpaint_generator_forward.33} parent=0 // pred_check
    _
  $region23: #{inpaint_generator_forward.33} parent=0 // pred_check_branch
    %2709 = sbr.rel (0) target = $region25
  $region24: #{inpaint_generator_forward.33} parent=0 // pred_region
    _
  $region25: #{inpaint_generator_forward.33} parent=0 // pred_fallthru
    _
  // Predicated region
  $region26: #{inpaint_generator_forward.33} parent=0 // pred_check
    _
  $region27: #{inpaint_generator_forward.33} parent=0 // pred_check_branch
    %2711 = sbr.rel (0) target = $region29
  $region28: #{inpaint_generator_forward.33} parent=0 // pred_region
    _
  $region29: #{inpaint_generator_forward.33} parent=0 // pred_fallthru
    _

</llo_original>
